<compile_context>
chip_gen: v7x
topology: tpu7x:2x2x1
jax: 0.10.0
libtpu: 0.0.40
codegen_flags: <defaults>
</compile_context>

<pallas_src>
import functools

import jax
import jax.numpy as jnp
from jax.experimental import pallas as pl
from jax.experimental.pallas import tpu as pltpu


def _round_up(x, m):
    return (x + m - 1) // m * m


def _choose_tk(kp, cap=512):
    """Largest multiple of 128 that divides kp and is <= cap (static Python)."""
    tk = 128
    for t in range(256, cap + 1, 128):
        if kp % t == 0:
            tk = t
    return tk


# ----------------------------- Pallas kernels ------------------------------

def _matmul_kernel(a_ref, w_ref, b_ref, o_ref, *, relu):
    """Tiled matmul accumulating straight into the resident output block.

    Grid = (M blocks, N blocks, K blocks).  bf16 inputs, f32 accumulation,
    bias + optional ReLU fused into the last K step.
    """
    @pl.when(pl.program_id(2) == 0)
    def _():
        o_ref[...] = jnp.zeros_like(o_ref)

    o_ref[...] += jnp.dot(a_ref[...], w_ref[...],
                          preferred_element_type=jnp.float32)

    @pl.when(pl.program_id(2) == pl.num_programs(2) - 1)
    def _():
        r = o_ref[...] + b_ref[0:1, :]
        if relu:
            r = jnp.maximum(r, 0.0)
        o_ref[...] = r


def _maxpool_kernel(p_ref, o_ref):
    # p_ref: (P, R) window elements, lane-dense R axis; reduce over windows.
    o_ref[...] = jnp.max(p_ref[...], axis=0, keepdims=True)


def _softmax_kernel(x_ref, o_ref):
    x = x_ref[...]
    m = jnp.max(x, axis=-1, keepdims=True)
    e = jnp.exp(x - m)
    o_ref[...] = e / jnp.sum(e, axis=-1, keepdims=True)


# ------------------------ packed-weight matmul wrapper -----------------------

def pack_matmul(w2, b):
    """Pre-pack a (K, N) weight + (N,) bias (done once, outside jit).

    Pads K/N to lane tiles and casts the weight to bf16.  The bias is stored
    unpadded so the true N stays statically recoverable from its shape.
    """
    k, n = w2.shape
    kp, np_ = _round_up(k, 128), _round_up(n, 128)
    wp = jnp.pad(w2.astype(jnp.float32),
                 ((0, kp - k), (0, np_ - n))).astype(jnp.bfloat16)
    return dict(w=wp, b=b.astype(jnp.float32))


def matmul_packed(a, pw, relu=False):
    """a: (M, K) f32, pw: packed weight/bias  ->  (M, N) f32."""
    wp, b = pw['w'], pw['b']
    m, k = a.shape
    kp, np_ = wp.shape
    n = b.shape[0]

    tm = min(128, _round_up(m, 8))   # adaptive M tile for GEMV-shaped layers
    tn = 128                         # safe on v5e/v6e/v7x; >=2 N blocks -> megacore
    tk = _choose_tk(kp)
    mp = _round_up(m, tm)

    ap = jnp.pad(a, ((0, mp - m), (0, kp - k))).astype(jnp.bfloat16)
    bp = jnp.broadcast_to(jnp.pad(b, (0, np_ - n))[None, :], (8, np_))

    out = pl.pallas_call(
        functools.partial(_matmul_kernel, relu=relu),
        out_shape=jax.ShapeDtypeStruct((mp, np_), jnp.float32),
        grid_spec=pltpu.PrefetchScalarGridSpec(
            num_scalar_prefetch=0,
            grid=(mp // tm, np_ // tn, kp // tk),
            in_specs=[
                pl.BlockSpec((tm, tk), lambda i, j, kk: (i, kk)),
                pl.BlockSpec((tk, tn), lambda i, j, kk: (kk, j)),
                pl.BlockSpec((8, tn), lambda i, j, kk: (0, j)),
            ],
            out_specs=pl.BlockSpec((tm, tn), lambda i, j, kk: (i, j)),
        ),
        compiler_params=pltpu.CompilerParams(
            dimension_semantics=("parallel", "parallel", "arbitrary")),
    )(ap, wp, bp)
    return out[:m, :n]


# --------------------------- conv / pool wrappers ---------------------------

def _im2col(x, k, stride, pad):
    n, h, w, c = x.shape
    xp = jnp.pad(x, ((0, 0), (pad, pad), (pad, pad), (0, 0)))
    ho = (h + 2 * pad - k) // stride + 1
    wo = (w + 2 * pad - k) // stride + 1
    cols = []
    for di in range(k):
        for dj in range(k):
            cols.append(xp[:, di:di + (ho - 1) * stride + 1:stride,
                           dj:dj + (wo - 1) * stride + 1:stride, :])
    patches = jnp.concatenate(cols, axis=-1)          # (N, Ho, Wo, k*k*C)
    return patches.reshape(n * ho * wo, k * k * c), (n, ho, wo)


def conv2d_packed(x, pw, k, stride, pad, relu=False):
    """x: NHWC, pw: pre-packed (kh*kw*Cin, Cout) weight + bias."""
    cols, (n, ho, wo) = _im2col(x, k, stride, pad)
    y = matmul_packed(cols, pw, relu=relu)
    return y.reshape(n, ho, wo, -1)


def conv_transpose2d_packed(x, pw, k, stride):
    """PyTorch ConvTranspose2d (no padding), pre-packed as an equivalent conv."""
    n, h, w, c = x.shape
    hd = (h - 1) * stride + 1
    wd = (w - 1) * stride + 1
    xd = jnp.zeros((n, hd, wd, c), x.dtype).at[:, ::stride, ::stride, :].set(x)
    return conv2d_packed(xd, pw, k, 1, k - 1, relu=False)


def maxpool2d(x, k, stride):
    # Decompose big-kernel strided pools (e.g. 16/8 -> 8/8 then 2/1) to cut
    # the number of strided-slice glue ops.
    if stride > 1 and k > stride and k % stride == 0:
        return maxpool2d(maxpool2d(x, stride, stride), k // stride, 1)
    n, h, w, c = x.shape
    ho = (h - k) // stride + 1
    wo = (w - k) // stride + 1
    cols = [x[:, di:di + (ho - 1) * stride + 1:stride,
              dj:dj + (wo - 1) * stride + 1:stride, :]
            for di in range(k) for dj in range(k)]
    patches = jnp.stack(cols, axis=0).reshape(k * k, n * ho * wo * c)
    out = pl.pallas_call(
        _maxpool_kernel,
        out_shape=jax.ShapeDtypeStruct((1, n * ho * wo * c), jnp.float32),
    )(patches)
    return out.reshape(n, ho, wo, c)


def fire(x, fp):
    s = conv2d_packed(x, fp['sq'], k=1, stride=1, pad=0, relu=True)
    # 1x1 expand folded into the 3x3 expand matmul (center-tap K rows);
    # output channels are [e1 | e3], matching torch.cat along channels.
    return conv2d_packed(s, fp['exp'], k=3, stride=1, pad=1, relu=True)


def _flatten_nchw(t_nhwc):
    # Match torch.flatten on an NCHW tensor.
    return jnp.transpose(t_nhwc, (0, 3, 1, 2)).reshape(-1)


# ------------------------------- full forward -------------------------------

def squeezenet_forward(x_nchw, pp):
    x = jnp.transpose(x_nchw, (0, 2, 3, 1))                 # NCHW -> NHWC
    conv1 = conv2d_packed(x, pp['conv1'], 3, 2, 0, relu=False)
    relu1 = jnp.maximum(conv1, 0.0)                         # conv1_relu

    fire2 = fire(maxpool2d(relu1, 3, 2), pp['fire2'])
    fire3 = fire(fire2, pp['fire3'])
    fire4 = fire(maxpool2d(fire3, 3, 2), pp['fire4'])
    fire5 = fire(fire4, pp['fire5'])
    fire6 = fire(maxpool2d(fire5, 3, 2), pp['fire6'])
    fire7 = fire(fire6, pp['fire7'])
    fire8 = fire(fire7, pp['fire8'])
    fire9 = fire(fire8, pp['fire9'])
    conv10 = conv2d_packed(fire9, pp['conv10'], 1, 1, 0, relu=False)

    input_pooling = maxpool2d(x, 16, 8)
    conv1_pooling = maxpool2d(conv1, 4, 4)                  # pre-ReLU, as in ref
    fire3_pooling = maxpool2d(fire3, 2, 2)
    fire5_pooling = fire5                                   # nn.Identity()
    conv10_deconv = conv_transpose2d_packed(conv10, pp['deconv'], 3, 2)

    fina_x = jnp.concatenate([
        _flatten_nchw(input_pooling), _flatten_nchw(conv1_pooling),
        _flatten_nchw(fire3_pooling), _flatten_nchw(fire5_pooling),
        _flatten_nchw(conv10_deconv)])
    a = fina_x[None, :]                                     # (1, F)

    # fc1/fc2/fc3 fused into one (F, 768) matmul -> rows = [fc1; fc2; fc3]
    heads = matmul_packed(a, pp['fc'])[0].reshape(3, 256)

    soft = pl.pallas_call(
        _softmax_kernel,
        out_shape=jax.ShapeDtypeStruct((3, 256), jnp.float32),
    )(heads)                                                # Softmax(dim=0) per head

    pred = soft.reshape(-1).reshape(256, 1, 3)              # np.concatenate + reshape
    # TODO(synk): reference forward calls transforms.ToTensor() without importing
    # torchvision (NameError in the original); we emulate its HWC->CHW permute.
    return jnp.transpose(pred, (2, 0, 1))                   # (3, 256, 1)


# ----------------------------- weight pre-packing ----------------------------

def _conv_w2(w):
    """PyTorch conv weight (Cout, Cin, kh, kw) -> (kh*kw*Cin, Cout) matching im2col."""
    cout, cin, kh, kw = w.shape
    return jnp.transpose(w, (2, 3, 1, 0)).reshape(kh * kw * cin, cout)


def pack_fire(fp):
    (w_sq, b_sq), (w_e1, b_e1), (w_e3, b_e3) = fp['sq'], fp['e1'], fp['e3']
    sq, e1, e3 = w_sq.shape[0], w_e1.shape[0], w_e3.shape[0]
    w1 = jnp.transpose(w_e1, (2, 3, 1, 0)).reshape(sq, e1)       # 1x1 weight
    w3 = jnp.transpose(w_e3, (2, 3, 1, 0)).reshape(9 * sq, e3)   # 3x3 weight
    wc = jnp.zeros((9 * sq, e1 + e3), jnp.float32)
    wc = wc.at[4 * sq:5 * sq, :e1].set(w1)    # center tap (di=1, dj=1) rows
    wc = wc.at[:, e1:].set(w3)
    bc = jnp.concatenate([b_e1, b_e3])
    return dict(sq=pack_matmul(_conv_w2(w_sq), b_sq),
                exp=pack_matmul(wc, bc))


def pack_params(p):
    """Convert raw PyTorch-layout params to packed matmul operands (outside jit)."""
    pp = dict(
        conv1=pack_matmul(_conv_w2(p['conv1'][0]), p['conv1'][1]),
        conv10=pack_matmul(_conv_w2(p['conv10'][0]), p['conv10'][1]),
    )
    for name in ('fire2', 'fire3', 'fire4', 'fire5',
                 'fire6', 'fire7', 'fire8', 'fire9'):
        pp[name] = pack_fire(p[name])
    # ConvTranspose2d weight (Cin, Cout, kh, kw) -> equivalent conv weight.
    wd, bd = p['deconv']
    wconv = jnp.transpose(jnp.flip(wd, axis=(2, 3)), (1, 0, 2, 3))
    pp['deconv'] = pack_matmul(_conv_w2(wconv), bd)
    # Fuse the three Linear heads along N.
    wfc = jnp.concatenate([p['fc1'][0].T, p['fc2'][0].T, p['fc3'][0].T], axis=1)
    bfc = jnp.concatenate([p['fc1'][1], p['fc2'][1], p['fc3'][1]])
    pp['fc'] = pack_matmul(wfc, bfc)
    return pp


# ------------------------------ parameter init ------------------------------

def init_params(key, feat_len):
    keys = iter(jax.random.split(key, 64))

    def conv(cout, cin, k):
        scale = float(cin * k * k) ** -0.5
        w = jax.random.normal(next(keys), (cout, cin, k, k), jnp.float32) * scale
        b = jax.random.normal(next(keys), (cout,), jnp.float32) * 0.01
        return (w, b)

    def fire_p(inp, sq, e1, e3):
        return dict(sq=conv(sq, inp, 1), e1=conv(e1, sq, 1), e3=conv(e3, sq, 3))

    p = dict(
        conv1=conv(96, 3, 3),
        fire2=fire_p(96, 16, 64, 64),
        fire3=fire_p(128, 16, 64, 64),
        fire4=fire_p(128, 32, 128, 128),
        fire5=fire_p(256, 32, 128, 128),
        fire6=fire_p(256, 48, 192, 192),
        fire7=fire_p(384, 48, 192, 192),
        fire8=fire_p(384, 64, 256, 256),
        fire9=fire_p(512, 64, 256, 256),
        conv10=conv(512, 512, 1),
    )
    # ConvTranspose2d weight layout: (Cin, Cout, kh, kw)
    dscale = float(512 * 9) ** -0.5
    p['deconv'] = (
        jax.random.normal(next(keys), (512, 512, 3, 3), jnp.float32) * dscale,
        jax.random.normal(next(keys), (512,), jnp.float32) * 0.01)
    fscale = float(feat_len) ** -0.5
    for name in ('fc1', 'fc2', 'fc3'):
        p[name] = (
            jax.random.normal(next(keys), (256, feat_len), jnp.float32) * fscale,
            jax.random.normal(next(keys), (256,), jnp.float32) * 0.01)
    return p


def _out(h, k, s, p=0):
    return (h + 2 * p - k) // s + 1


if __name__ == "__main__":
    # Small input consistent with the architecture (original hard-codes an FC
    # in_features of 725355 for a large image; here we derive it for 33x33).
    H = W = 33
    c1 = _out(H, 3, 2)           # conv1 spatial
    f23 = _out(c1, 3, 2)         # fire2/3 spatial
    f45 = _out(f23, 3, 2)        # fire4/5 spatial
    f69 = _out(f45, 3, 2)        # fire6..9 / conv10 spatial
    feat_len = (3 * _out(H, 16, 8) ** 2          # input_pooling
                + 96 * _out(c1, 4, 4) ** 2       # conv1_pooling
                + 128 * _out(f23, 2, 2) ** 2     # fire3_pooling
                + 256 * f45 ** 2                 # fire5
                + 512 * ((f69 - 1) * 2 + 3) ** 2)  # conv10_deconv

    key = jax.random.PRNGKey(0)
    pkey, xkey = jax.random.split(key)
    raw_params = init_params(pkey, feat_len)
    packed_params = pack_params(raw_params)      # packing happens OUTSIDE jit
    x = jax.random.normal(xkey, (1, 3, H, W), jnp.float32)   # NCHW input

    fwd = jax.jit(squeezenet_forward)
    out = jax.block_until_ready(fwd(x, packed_params))
    assert out.shape == (3, 256, 1), out.shape
    assert bool(jnp.all(jnp.isfinite(out)))
    print("KERNEL_OK")
</pallas_src>

<mosaic_0001>
module attributes {stable_mosaic.version = 11 : i64} {
  func.func @_maxpool_kernel(%arg0: memref<64x48xf32, #tpu.memory_space<vmem>>, %arg1: memref<1x48xf32, #tpu.memory_space<vmem>>) attributes {dimension_semantics = [], scalar_prefetch = 0 : i64, scratch_operands = 0 : i64, tpu.core_type = #tpu.core_type<tc>} {
    %c0 = arith.constant 0 : index
    %c0_0 = arith.constant 0 : index
    %0 = vector.load %arg0[%c0, %c0_0] : memref<64x48xf32, #tpu.memory_space<vmem>>, vector<64x48xf32>
    %cst = arith.constant dense<0xFF800000> : vector<48xf32>
    %1 = vector.multi_reduction <maximumf>, %0, %cst [0] : vector<64x48xf32> to vector<48xf32>
    %2 = vector.shape_cast %1 : vector<48xf32> to vector<1x48xf32>
    %c0_1 = arith.constant 0 : index
    %c0_2 = arith.constant 0 : index
    %3 = vector.load %arg1[%c0_1, %c0_2] : memref<1x48xf32, #tpu.memory_space<vmem>>, vector<1x48xf32>
    tpu.vector_store %arg1[%c0_1, %c0_2], %2 {strides = array<i32>} : memref<1x48xf32, #tpu.memory_space<vmem>>, vector<1x48xf32>,
    return
  }
}

module attributes {stable_mosaic.version = 11 : i64} {
  func.func @_maxpool_kernel(%arg0: memref<4x27xf32, #tpu.memory_space<vmem>>, %arg1: memref<1x27xf32, #tpu.memory_space<vmem>>) attributes {dimension_semantics = [], scalar_prefetch = 0 : i64, scratch_operands = 0 : i64, tpu.core_type = #tpu.core_type<tc>} {
    %c0 = arith.constant 0 : index
    %c0_0 = arith.constant 0 : index
    %0 = vector.load %arg0[%c0, %c0_0] : memref<4x27xf32, #tpu.memory_space<vmem>>, vector<4x27xf32>
    %cst = arith.constant dense<0xFF800000> : vector<27xf32>
    %1 = vector.multi_reduction <maximumf>, %0, %cst [0] : vector<4x27xf32> to vector<27xf32>
    %2 = vector.shape_cast %1 : vector<27xf32> to vector<1x27xf32>
    %c0_1 = arith.constant 0 : index
    %c0_2 = arith.constant 0 : index
    %3 = vector.load %arg1[%c0_1, %c0_2] : memref<1x27xf32, #tpu.memory_space<vmem>>, vector<1x27xf32>
    tpu.vector_store %arg1[%c0_1, %c0_2], %2 {strides = array<i32>} : memref<1x27xf32, #tpu.memory_space<vmem>>, vector<1x27xf32>,
    return
  }
}

module attributes {stable_mosaic.version = 11 : i64} {
  func.func @_matmul_kernel(%arg0: i32, %arg1: i32, %arg2: i32, %arg3: memref<128x128xbf16, #tpu.memory_space<vmem>>, %arg4: memref<128x128xbf16, #tpu.memory_space<vmem>>, %arg5: memref<8x128xf32, #tpu.memory_space<vmem>>, %arg6: memref<128x128xf32, #tpu.memory_space<vmem>>) attributes {dimension_semantics = [#tpu.dimension_semantics<parallel>, #tpu.dimension_semantics<parallel>, #tpu.dimension_semantics<arbitrary>], iteration_bounds = array<i64: 2, 1, 1>, scalar_prefetch = 0 : i64, scratch_operands = 0 : i64, tpu.core_type = #tpu.core_type<tc>, window_params = [{transform_indices = @transform_0, window_bounds = array<i64: 128, 128>}, {transform_indices = @transform_1, window_bounds = array<i64: 128, 128>}, {transform_indices = @transform_2, window_bounds = array<i64: 8, 128>}, {transform_indices = @transform_3, window_bounds = array<i64: 128, 128>}]} {
    %c0_i32 = arith.constant 0 : i32
    %0 = arith.cmpi eq, %arg2, %c0_i32 : i32
    %1 = arith.extui %0 : i1 to i32
    %c0_i32_0 = arith.constant 0 : i32
    %2 = arith.cmpi ne, %1, %c0_i32_0 : i32
    scf.if %2 {
      %cst_10 = arith.constant 0.000000e+00 : f32
      %12 = vector.broadcast %cst_10 : f32 to vector<128x128xf32>
      %c0_11 = arith.constant 0 : index
      %c0_12 = arith.constant 0 : index
      %13 = vector.load %arg6[%c0_11, %c0_12] : memref<128x128xf32, #tpu.memory_space<vmem>>, vector<128x128xf32>
      tpu.vector_store %arg6[%c0_11, %c0_12], %12 {strides = array<i32>} : memref<128x128xf32, #tpu.memory_space<vmem>>, vector<128x128xf32>,
    } else {
    }
    %c0 = arith.constant 0 : index
    %c0_1 = arith.constant 0 : index
    %3 = vector.load %arg6[%c0, %c0_1] : memref<128x128xf32, #tpu.memory_space<vmem>>, vector<128x128xf32>
    %c0_2 = arith.constant 0 : index
    %c0_3 = arith.constant 0 : index
    %4 = vector.load %arg3[%c0_2, %c0_3] : memref<128x128xbf16, #tpu.memory_space<vmem>>, vector<128x128xbf16>
    %c0_4 = arith.constant 0 : index
    %c0_5 = arith.constant 0 : index
    %5 = vector.load %arg4[%c0_4, %c0_5] : memref<128x128xbf16, #tpu.memory_space<vmem>>, vector<128x128xbf16>
    %cst = arith.constant dense<0.000000e+00> : vector<128x128xf32>
    %6 = tpu.matmul %4, %5, %cst {dimension_numbers = #tpu.dot_dimension_numbers<[1], [0], [0], [1], [0, 0, 1, 1], [], []>} : vector<128x128xbf16>, vector<128x128xbf16>, vector<128x128xf32> -> vector<128x128xf32>
    %7 = arith.addf %3, %6 : vector<128x128xf32>
    %c0_6 = arith.constant 0 : index
    %c0_7 = arith.constant 0 : index
    %8 = vector.load %arg6[%c0_6, %c0_7] : memref<128x128xf32, #tpu.memory_space<vmem>>, vector<128x128xf32>
    tpu.vector_store %arg6[%c0_6, %c0_7], %7 {strides = array<i32>} : memref<128x128xf32, #tpu.memory_space<vmem>>, vector<128x128xf32>,
    %c0_i32_8 = arith.constant 0 : i32
    %9 = arith.cmpi eq, %arg2, %c0_i32_8 : i32
    %10 = arith.extui %9 : i1 to i32
    %c0_i32_9 = arith.constant 0 : i32
    %11 = arith.cmpi ne, %10, %c0_i32_9 : i32
    scf.if %11 {
      %c0_10 = arith.constant 0 : index
      %c0_11 = arith.constant 0 : index
      %12 = vector.load %arg6[%c0_10, %c0_11] : memref<128x128xf32, #tpu.memory_space<vmem>>, vector<128x128xf32>
      %c0_12 = arith.constant 0 : index
      %c0_13 = arith.constant 0 : index
      %13 = vector.load %arg5[%c0_12, %c0_13] : memref<8x128xf32, #tpu.memory_space<vmem>>, vector<1x128xf32>
      %14 = vector.broadcast %13 : vector<1x128xf32> to vector<128x128xf32>
      %15 = arith.addf %12, %14 : vector<128x128xf32>
      %c0_14 = arith.constant 0 : index
      %c0_15 = arith.constant 0 : index
      %16 = vector.load %arg6[%c0_14, %c0_15] : memref<128x128xf32, #tpu.memory_space<vmem>>, vector<128x128xf32>
      tpu.vector_store %arg6[%c0_14, %c0_15], %15 {strides = array<i32>} : memref<128x128xf32, #tpu.memory_space<vmem>>, vector<128x128xf32>,
    } else {
    }
    return
  }
  func.func @transform_0(%arg0: i32, %arg1: i32, %arg2: i32) -> (i32, i32) {
    %c0_i32 = arith.constant 0 : i32
    return %arg0, %arg2 : i32, i32
  }
  func.func @transform_1(%arg0: i32, %arg1: i32, %arg2: i32) -> (i32, i32) {
    %c0_i32 = arith.constant 0 : i32
    return %arg2, %arg1 : i32, i32
  }
  func.func @transform_2(%arg0: i32, %arg1: i32, %arg2: i32) -> (i32, i32) {
    %c0_i32 = arith.constant 0 : i32
    %c0_i32_0 = arith.constant 0 : i32
    return %c0_i32, %arg1 : i32, i32
  }
  func.func @transform_3(%arg0: i32, %arg1: i32, %arg2: i32) -> (i32, i32) {
    %c0_i32 = arith.constant 0 : i32
    return %arg0, %arg1 : i32, i32
  }
}

module attributes {stable_mosaic.version = 11 : i64} {
  func.func @_maxpool_kernel(%arg0: memref<16x1536xf32, #tpu.memory_space<vmem>>, %arg1: memref<1x1536xf32, #tpu.memory_space<vmem>>) attributes {dimension_semantics = [], scalar_prefetch = 0 : i64, scratch_operands = 0 : i64, tpu.core_type = #tpu.core_type<tc>} {
    %c0 = arith.constant 0 : index
    %c0_0 = arith.constant 0 : index
    %0 = vector.load %arg0[%c0, %c0_0] : memref<16x1536xf32, #tpu.memory_space<vmem>>, vector<16x1536xf32>
    %cst = arith.constant dense<0xFF800000> : vector<1536xf32>
    %1 = vector.multi_reduction <maximumf>, %0, %cst [0] : vector<16x1536xf32> to vector<1536xf32>
    %2 = vector.shape_cast %1 : vector<1536xf32> to vector<1x1536xf32>
    %c0_1 = arith.constant 0 : index
    %c0_2 = arith.constant 0 : index
    %3 = vector.load %arg1[%c0_1, %c0_2] : memref<1x1536xf32, #tpu.memory_space<vmem>>, vector<1x1536xf32>
    tpu.vector_store %arg1[%c0_1, %c0_2], %2 {strides = array<i32>} : memref<1x1536xf32, #tpu.memory_space<vmem>>, vector<1x1536xf32>,
    return
  }
}

module attributes {stable_mosaic.version = 11 : i64} {
  func.func @_matmul_kernel(%arg0: i32, %arg1: i32, %arg2: i32, %arg3: memref<56x128xbf16, #tpu.memory_space<vmem>>, %arg4: memref<128x128xbf16, #tpu.memory_space<vmem>>, %arg5: memref<8x128xf32, #tpu.memory_space<vmem>>, %arg6: memref<56x128xf32, #tpu.memory_space<vmem>>) attributes {dimension_semantics = [#tpu.dimension_semantics<parallel>, #tpu.dimension_semantics<parallel>, #tpu.dimension_semantics<arbitrary>], iteration_bounds = array<i64: 1, 1, 1>, scalar_prefetch = 0 : i64, scratch_operands = 0 : i64, tpu.core_type = #tpu.core_type<tc>, window_params = [{transform_indices = @transform_0, window_bounds = array<i64: 56, 128>}, {transform_indices = @transform_1, window_bounds = array<i64: 128, 128>}, {transform_indices = @transform_2, window_bounds = array<i64: 8, 128>}, {transform_indices = @transform_3, window_bounds = array<i64: 56, 128>}]} {
    %c0_i32 = arith.constant 0 : i32
    %0 = arith.cmpi eq, %arg2, %c0_i32 : i32
    %1 = arith.extui %0 : i1 to i32
    %c0_i32_0 = arith.constant 0 : i32
    %2 = arith.cmpi ne, %1, %c0_i32_0 : i32
    scf.if %2 {
      %cst_10 = arith.constant 0.000000e+00 : f32
      %12 = vector.broadcast %cst_10 : f32 to vector<56x128xf32>
      %c0_11 = arith.constant 0 : index
      %c0_12 = arith.constant 0 : index
      %13 = vector.load %arg6[%c0_11, %c0_12] : memref<56x128xf32, #tpu.memory_space<vmem>>, vector<56x128xf32>
      tpu.vector_store %arg6[%c0_11, %c0_12], %12 {strides = array<i32>} : memref<56x128xf32, #tpu.memory_space<vmem>>, vector<56x128xf32>,
    } else {
    }
    %c0 = arith.constant 0 : index
    %c0_1 = arith.constant 0 : index
    %3 = vector.load %arg6[%c0, %c0_1] : memref<56x128xf32, #tpu.memory_space<vmem>>, vector<56x128xf32>
    %c0_2 = arith.constant 0 : index
    %c0_3 = arith.constant 0 : index
    %4 = vector.load %arg3[%c0_2, %c0_3] : memref<56x128xbf16, #tpu.memory_space<vmem>>, vector<56x128xbf16>
    %c0_4 = arith.constant 0 : index
    %c0_5 = arith.constant 0 : index
    %5 = vector.load %arg4[%c0_4, %c0_5] : memref<128x128xbf16, #tpu.memory_space<vmem>>, vector<128x128xbf16>
    %cst = arith.constant dense<0.000000e+00> : vector<56x128xf32>
    %6 = tpu.matmul %4, %5, %cst {dimension_numbers = #tpu.dot_dimension_numbers<[1], [0], [0], [1], [0, 0, 1, 1], [], []>} : vector<56x128xbf16>, vector<128x128xbf16>, vector<56x128xf32> -> vector<56x128xf32>
    %7 = arith.addf %3, %6 : vector<56x128xf32>
    %c0_6 = arith.constant 0 : index
    %c0_7 = arith.constant 0 : index
    %8 = vector.load %arg6[%c0_6, %c0_7] : memref<56x128xf32, #tpu.memory_space<vmem>>, vector<56x128xf32>
    tpu.vector_store %arg6[%c0_6, %c0_7], %7 {strides = array<i32>} : memref<56x128xf32, #tpu.memory_space<vmem>>, vector<56x128xf32>,
    %c0_i32_8 = arith.constant 0 : i32
    %9 = arith.cmpi eq, %arg2, %c0_i32_8 : i32
    %10 = arith.extui %9 : i1 to i32
    %c0_i32_9 = arith.constant 0 : i32
    %11 = arith.cmpi ne, %10, %c0_i32_9 : i32
    scf.if %11 {
      %c0_10 = arith.constant 0 : index
      %c0_11 = arith.constant 0 : index
      %12 = vector.load %arg6[%c0_10, %c0_11] : memref<56x128xf32, #tpu.memory_space<vmem>>, vector<56x128xf32>
      %c0_12 = arith.constant 0 : index
      %c0_13 = arith.constant 0 : index
      %13 = vector.load %arg5[%c0_12, %c0_13] : memref<8x128xf32, #tpu.memory_space<vmem>>, vector<1x128xf32>
      %14 = vector.broadcast %13 : vector<1x128xf32> to vector<56x128xf32>
      %15 = arith.addf %12, %14 : vector<56x128xf32>
      %cst_14 = arith.constant 0.000000e+00 : f32
      %16 = vector.broadcast %cst_14 : f32 to vector<56x128xf32>
      %17 = arith.maximumf %15, %16 : vector<56x128xf32>
      %c0_15 = arith.constant 0 : index
      %c0_16 = arith.constant 0 : index
      %18 = vector.load %arg6[%c0_15, %c0_16] : memref<56x128xf32, #tpu.memory_space<vmem>>, vector<56x128xf32>
      tpu.vector_store %arg6[%c0_15, %c0_16], %17 {strides = array<i32>} : memref<56x128xf32, #tpu.memory_space<vmem>>, vector<56x128xf32>,
    } else {
    }
    return
  }
  func.func @transform_0(%arg0: i32, %arg1: i32, %arg2: i32) -> (i32, i32) {
    %c0_i32 = arith.constant 0 : i32
    return %arg0, %arg2 : i32, i32
  }
  func.func @transform_1(%arg0: i32, %arg1: i32, %arg2: i32) -> (i32, i32) {
    %c0_i32 = arith.constant 0 : i32
    return %arg2, %arg1 : i32, i32
  }
  func.func @transform_2(%arg0: i32, %arg1: i32, %arg2: i32) -> (i32, i32) {
    %c0_i32 = arith.constant 0 : i32
    %c0_i32_0 = arith.constant 0 : i32
    return %c0_i32, %arg1 : i32, i32
  }
  func.func @transform_3(%arg0: i32, %arg1: i32, %arg2: i32) -> (i32, i32) {
    %c0_i32 = arith.constant 0 : i32
    return %arg0, %arg1 : i32, i32
  }
}

module attributes {stable_mosaic.version = 11 : i64} {
  func.func @_maxpool_kernel(%arg0: memref<9x4704xf32, #tpu.memory_space<vmem>>, %arg1: memref<1x4704xf32, #tpu.memory_space<vmem>>) attributes {dimension_semantics = [], scalar_prefetch = 0 : i64, scratch_operands = 0 : i64, tpu.core_type = #tpu.core_type<tc>} {
    %c0 = arith.constant 0 : index
    %c0_0 = arith.constant 0 : index
    %0 = vector.load %arg0[%c0, %c0_0] : memref<9x4704xf32, #tpu.memory_space<vmem>>, vector<9x4704xf32>
    %cst = arith.constant dense<0xFF800000> : vector<4704xf32>
    %1 = vector.multi_reduction <maximumf>, %0, %cst [0] : vector<9x4704xf32> to vector<4704xf32>
    %2 = vector.shape_cast %1 : vector<4704xf32> to vector<1x4704xf32>
    %c0_1 = arith.constant 0 : index
    %c0_2 = arith.constant 0 : index
    %3 = vector.load %arg1[%c0_1, %c0_2] : memref<1x4704xf32, #tpu.memory_space<vmem>>, vector<1x4704xf32>
    tpu.vector_store %arg1[%c0_1, %c0_2], %2 {strides = array<i32>} : memref<1x4704xf32, #tpu.memory_space<vmem>>, vector<1x4704xf32>,
    return
  }
}

module attributes {stable_mosaic.version = 11 : i64} {
  func.func @_matmul_kernel(%arg0: i32, %arg1: i32, %arg2: i32, %arg3: memref<56x256xbf16, #tpu.memory_space<vmem>>, %arg4: memref<256x128xbf16, #tpu.memory_space<vmem>>, %arg5: memref<8x128xf32, #tpu.memory_space<vmem>>, %arg6: memref<56x128xf32, #tpu.memory_space<vmem>>) attributes {dimension_semantics = [#tpu.dimension_semantics<parallel>, #tpu.dimension_semantics<parallel>, #tpu.dimension_semantics<arbitrary>], iteration_bounds = array<i64: 1, 1, 1>, scalar_prefetch = 0 : i64, scratch_operands = 0 : i64, tpu.core_type = #tpu.core_type<tc>, window_params = [{transform_indices = @transform_0, window_bounds = array<i64: 56, 256>}, {transform_indices = @transform_1, window_bounds = array<i64: 256, 128>}, {transform_indices = @transform_2, window_bounds = array<i64: 8, 128>}, {transform_indices = @transform_3, window_bounds = array<i64: 56, 128>}]} {
    %c0_i32 = arith.constant 0 : i32
    %0 = arith.cmpi eq, %arg2, %c0_i32 : i32
    %1 = arith.extui %0 : i1 to i32
    %c0_i32_0 = arith.constant 0 : i32
    %2 = arith.cmpi ne, %1, %c0_i32_0 : i32
    scf.if %2 {
      %cst_10 = arith.constant 0.000000e+00 : f32
      %12 = vector.broadcast %cst_10 : f32 to vector<56x128xf32>
      %c0_11 = arith.constant 0 : index
      %c0_12 = arith.constant 0 : index
      %13 = vector.load %arg6[%c0_11, %c0_12] : memref<56x128xf32, #tpu.memory_space<vmem>>, vector<56x128xf32>
      tpu.vector_store %arg6[%c0_11, %c0_12], %12 {strides = array<i32>} : memref<56x128xf32, #tpu.memory_space<vmem>>, vector<56x128xf32>,
    } else {
    }
    %c0 = arith.constant 0 : index
    %c0_1 = arith.constant 0 : index
    %3 = vector.load %arg6[%c0, %c0_1] : memref<56x128xf32, #tpu.memory_space<vmem>>, vector<56x128xf32>
    %c0_2 = arith.constant 0 : index
    %c0_3 = arith.constant 0 : index
    %4 = vector.load %arg3[%c0_2, %c0_3] : memref<56x256xbf16, #tpu.memory_space<vmem>>, vector<56x256xbf16>
    %c0_4 = arith.constant 0 : index
    %c0_5 = arith.constant 0 : index
    %5 = vector.load %arg4[%c0_4, %c0_5] : memref<256x128xbf16, #tpu.memory_space<vmem>>, vector<256x128xbf16>
    %cst = arith.constant dense<0.000000e+00> : vector<56x128xf32>
    %6 = tpu.matmul %4, %5, %cst {dimension_numbers = #tpu.dot_dimension_numbers<[1], [0], [0], [1], [0, 0, 1, 1], [], []>} : vector<56x256xbf16>, vector<256x128xbf16>, vector<56x128xf32> -> vector<56x128xf32>
    %7 = arith.addf %3, %6 : vector<56x128xf32>
    %c0_6 = arith.constant 0 : index
    %c0_7 = arith.constant 0 : index
    %8 = vector.load %arg6[%c0_6, %c0_7] : memref<56x128xf32, #tpu.memory_space<vmem>>, vector<56x128xf32>
    tpu.vector_store %arg6[%c0_6, %c0_7], %7 {strides = array<i32>} : memref<56x128xf32, #tpu.memory_space<vmem>>, vector<56x128xf32>,
    %c0_i32_8 = arith.constant 0 : i32
    %9 = arith.cmpi eq, %arg2, %c0_i32_8 : i32
    %10 = arith.extui %9 : i1 to i32
    %c0_i32_9 = arith.constant 0 : i32
    %11 = arith.cmpi ne, %10, %c0_i32_9 : i32
    scf.if %11 {
      %c0_10 = arith.constant 0 : index
      %c0_11 = arith.constant 0 : index
      %12 = vector.load %arg6[%c0_10, %c0_11] : memref<56x128xf32, #tpu.memory_space<vmem>>, vector<56x128xf32>
      %c0_12 = arith.constant 0 : index
      %c0_13 = arith.constant 0 : index
      %13 = vector.load %arg5[%c0_12, %c0_13] : memref<8x128xf32, #tpu.memory_space<vmem>>, vector<1x128xf32>
      %14 = vector.broadcast %13 : vector<1x128xf32> to vector<56x128xf32>
      %15 = arith.addf %12, %14 : vector<56x128xf32>
      %cst_14 = arith.constant 0.000000e+00 : f32
      %16 = vector.broadcast %cst_14 : f32 to vector<56x128xf32>
      %17 = arith.maximumf %15, %16 : vector<56x128xf32>
      %c0_15 = arith.constant 0 : index
      %c0_16 = arith.constant 0 : index
      %18 = vector.load %arg6[%c0_15, %c0_16] : memref<56x128xf32, #tpu.memory_space<vmem>>, vector<56x128xf32>
      tpu.vector_store %arg6[%c0_15, %c0_16], %17 {strides = array<i32>} : memref<56x128xf32, #tpu.memory_space<vmem>>, vector<56x128xf32>,
    } else {
    }
    return
  }
  func.func @transform_0(%arg0: i32, %arg1: i32, %arg2: i32) -> (i32, i32) {
    %c0_i32 = arith.constant 0 : i32
    return %arg0, %arg2 : i32, i32
  }
  func.func @transform_1(%arg0: i32, %arg1: i32, %arg2: i32) -> (i32, i32) {
    %c0_i32 = arith.constant 0 : i32
    return %arg2, %arg1 : i32, i32
  }
  func.func @transform_2(%arg0: i32, %arg1: i32, %arg2: i32) -> (i32, i32) {
    %c0_i32 = arith.constant 0 : i32
    %c0_i32_0 = arith.constant 0 : i32
    return %c0_i32, %arg1 : i32, i32
  }
  func.func @transform_3(%arg0: i32, %arg1: i32, %arg2: i32) -> (i32, i32) {
    %c0_i32 = arith.constant 0 : i32
    return %arg0, %arg1 : i32, i32
  }
}

module attributes {stable_mosaic.version = 11 : i64} {
  func.func @_maxpool_kernel(%arg0: memref<4x1152xf32, #tpu.memory_space<vmem>>, %arg1: memref<1x1152xf32, #tpu.memory_space<vmem>>) attributes {dimension_semantics = [], scalar_prefetch = 0 : i64, scratch_operands = 0 : i64, tpu.core_type = #tpu.core_type<tc>} {
    %c0 = arith.constant 0 : index
    %c0_0 = arith.constant 0 : index
    %0 = vector.load %arg0[%c0, %c0_0] : memref<4x1152xf32, #tpu.memory_space<vmem>>, vector<4x1152xf32>
    %cst = arith.constant dense<0xFF800000> : vector<1152xf32>
    %1 = vector.multi_reduction <maximumf>, %0, %cst [0] : vector<4x1152xf32> to vector<1152xf32>
    %2 = vector.shape_cast %1 : vector<1152xf32> to vector<1x1152xf32>
    %c0_1 = arith.constant 0 : index
    %c0_2 = arith.constant 0 : index
    %3 = vector.load %arg1[%c0_1, %c0_2] : memref<1x1152xf32, #tpu.memory_space<vmem>>, vector<1x1152xf32>
    tpu.vector_store %arg1[%c0_1, %c0_2], %2 {strides = array<i32>} : memref<1x1152xf32, #tpu.memory_space<vmem>>, vector<1x1152xf32>,
    return
  }
}

module attributes {stable_mosaic.version = 11 : i64} {
  func.func @_maxpool_kernel(%arg0: memref<9x1152xf32, #tpu.memory_space<vmem>>, %arg1: memref<1x1152xf32, #tpu.memory_space<vmem>>) attributes {dimension_semantics = [], scalar_prefetch = 0 : i64, scratch_operands = 0 : i64, tpu.core_type = #tpu.core_type<tc>} {
    %c0 = arith.constant 0 : index
    %c0_0 = arith.constant 0 : index
    %0 = vector.load %arg0[%c0, %c0_0] : memref<9x1152xf32, #tpu.memory_space<vmem>>, vector<9x1152xf32>
    %cst = arith.constant dense<0xFF800000> : vector<1152xf32>
    %1 = vector.multi_reduction <maximumf>, %0, %cst [0] : vector<9x1152xf32> to vector<1152xf32>
    %2 = vector.shape_cast %1 : vector<1152xf32> to vector<1x1152xf32>
    %c0_1 = arith.constant 0 : index
    %c0_2 = arith.constant 0 : index
    %3 = vector.load %arg1[%c0_1, %c0_2] : memref<1x1152xf32, #tpu.memory_space<vmem>>, vector<1x1152xf32>
    tpu.vector_store %arg1[%c0_1, %c0_2], %2 {strides = array<i32>} : memref<1x1152xf32, #tpu.memory_space<vmem>>, vector<1x1152xf32>,
    return
  }
}

module attributes {stable_mosaic.version = 11 : i64} {
  func.func @_matmul_kernel(%arg0: i32, %arg1: i32, %arg2: i32, %arg3: memref<16x128xbf16, #tpu.memory_space<vmem>>, %arg4: memref<128x128xbf16, #tpu.memory_space<vmem>>, %arg5: memref<8x128xf32, #tpu.memory_space<vmem>>, %arg6: memref<16x128xf32, #tpu.memory_space<vmem>>) attributes {dimension_semantics = [#tpu.dimension_semantics<parallel>, #tpu.dimension_semantics<parallel>, #tpu.dimension_semantics<arbitrary>], iteration_bounds = array<i64: 1, 1, 1>, scalar_prefetch = 0 : i64, scratch_operands = 0 : i64, tpu.core_type = #tpu.core_type<tc>, window_params = [{transform_indices = @transform_0, window_bounds = array<i64: 16, 128>}, {transform_indices = @transform_1, window_bounds = array<i64: 128, 128>}, {transform_indices = @transform_2, window_bounds = array<i64: 8, 128>}, {transform_indices = @transform_3, window_bounds = array<i64: 16, 128>}]} {
    %c0_i32 = arith.constant 0 : i32
    %0 = arith.cmpi eq, %arg2, %c0_i32 : i32
    %1 = arith.extui %0 : i1 to i32
    %c0_i32_0 = arith.constant 0 : i32
    %2 = arith.cmpi ne, %1, %c0_i32_0 : i32
    scf.if %2 {
      %cst_10 = arith.constant 0.000000e+00 : f32
      %12 = vector.broadcast %cst_10 : f32 to vector<16x128xf32>
      %c0_11 = arith.constant 0 : index
      %c0_12 = arith.constant 0 : index
      %13 = vector.load %arg6[%c0_11, %c0_12] : memref<16x128xf32, #tpu.memory_space<vmem>>, vector<16x128xf32>
      tpu.vector_store %arg6[%c0_11, %c0_12], %12 {strides = array<i32>} : memref<16x128xf32, #tpu.memory_space<vmem>>, vector<16x128xf32>,
    } else {
    }
    %c0 = arith.constant 0 : index
    %c0_1 = arith.constant 0 : index
    %3 = vector.load %arg6[%c0, %c0_1] : memref<16x128xf32, #tpu.memory_space<vmem>>, vector<16x128xf32>
    %c0_2 = arith.constant 0 : index
    %c0_3 = arith.constant 0 : index
    %4 = vector.load %arg3[%c0_2, %c0_3] : memref<16x128xbf16, #tpu.memory_space<vmem>>, vector<16x128xbf16>
    %c0_4 = arith.constant 0 : index
    %c0_5 = arith.constant 0 : index
    %5 = vector.load %arg4[%c0_4, %c0_5] : memref<128x128xbf16, #tpu.memory_space<vmem>>, vector<128x128xbf16>
    %cst = arith.constant dense<0.000000e+00> : vector<16x128xf32>
    %6 = tpu.matmul %4, %5, %cst {dimension_numbers = #tpu.dot_dimension_numbers<[1], [0], [0], [1], [0, 0, 1, 1], [], []>} : vector<16x128xbf16>, vector<128x128xbf16>, vector<16x128xf32> -> vector<16x128xf32>
    %7 = arith.addf %3, %6 : vector<16x128xf32>
    %c0_6 = arith.constant 0 : index
    %c0_7 = arith.constant 0 : index
    %8 = vector.load %arg6[%c0_6, %c0_7] : memref<16x128xf32, #tpu.memory_space<vmem>>, vector<16x128xf32>
    tpu.vector_store %arg6[%c0_6, %c0_7], %7 {strides = array<i32>} : memref<16x128xf32, #tpu.memory_space<vmem>>, vector<16x128xf32>,
    %c0_i32_8 = arith.constant 0 : i32
    %9 = arith.cmpi eq, %arg2, %c0_i32_8 : i32
    %10 = arith.extui %9 : i1 to i32
    %c0_i32_9 = arith.constant 0 : i32
    %11 = arith.cmpi ne, %10, %c0_i32_9 : i32
    scf.if %11 {
      %c0_10 = arith.constant 0 : index
      %c0_11 = arith.constant 0 : index
      %12 = vector.load %arg6[%c0_10, %c0_11] : memref<16x128xf32, #tpu.memory_space<vmem>>, vector<16x128xf32>
      %c0_12 = arith.constant 0 : index
      %c0_13 = arith.constant 0 : index
      %13 = vector.load %arg5[%c0_12, %c0_13] : memref<8x128xf32, #tpu.memory_space<vmem>>, vector<1x128xf32>
      %14 = vector.broadcast %13 : vector<1x128xf32> to vector<16x128xf32>
      %15 = arith.addf %12, %14 : vector<16x128xf32>
      %cst_14 = arith.constant 0.000000e+00 : f32
      %16 = vector.broadcast %cst_14 : f32 to vector<16x128xf32>
      %17 = arith.maximumf %15, %16 : vector<16x128xf32>
      %c0_15 = arith.constant 0 : index
      %c0_16 = arith.constant 0 : index
      %18 = vector.load %arg6[%c0_15, %c0_16] : memref<16x128xf32, #tpu.memory_space<vmem>>, vector<16x128xf32>
      tpu.vector_store %arg6[%c0_15, %c0_16], %17 {strides = array<i32>} : memref<16x128xf32, #tpu.memory_space<vmem>>, vector<16x128xf32>,
    } else {
    }
    return
  }
  func.func @transform_0(%arg0: i32, %arg1: i32, %arg2: i32) -> (i32, i32) {
    %c0_i32 = arith.constant 0 : i32
    return %arg0, %arg2 : i32, i32
  }
  func.func @transform_1(%arg0: i32, %arg1: i32, %arg2: i32) -> (i32, i32) {
    %c0_i32 = arith.constant 0 : i32
    return %arg2, %arg1 : i32, i32
  }
  func.func @transform_2(%arg0: i32, %arg1: i32, %arg2: i32) -> (i32, i32) {
    %c0_i32 = arith.constant 0 : i32
    %c0_i32_0 = arith.constant 0 : i32
    return %c0_i32, %arg1 : i32, i32
  }
  func.func @transform_3(%arg0: i32, %arg1: i32, %arg2: i32) -> (i32, i32) {
    %c0_i32 = arith.constant 0 : i32
    return %arg0, %arg1 : i32, i32
  }
}

module attributes {stable_mosaic.version = 11 : i64} {
  func.func @_matmul_kernel(%arg0: i32, %arg1: i32, %arg2: i32, %arg3: memref<16x384xbf16, #tpu.memory_space<vmem>>, %arg4: memref<384x128xbf16, #tpu.memory_space<vmem>>, %arg5: memref<8x128xf32, #tpu.memory_space<vmem>>, %arg6: memref<16x128xf32, #tpu.memory_space<vmem>>) attributes {dimension_semantics = [#tpu.dimension_semantics<parallel>, #tpu.dimension_semantics<parallel>, #tpu.dimension_semantics<arbitrary>], iteration_bounds = array<i64: 1, 2, 1>, scalar_prefetch = 0 : i64, scratch_operands = 0 : i64, tpu.core_type = #tpu.core_type<tc>, window_params = [{transform_indices = @transform_0, window_bounds = array<i64: 16, 384>}, {transform_indices = @transform_1, window_bounds = array<i64: 384, 128>}, {transform_indices = @transform_2, window_bounds = array<i64: 8, 128>}, {transform_indices = @transform_3, window_bounds = array<i64: 16, 128>}]} {
    %c0_i32 = arith.constant 0 : i32
    %0 = arith.cmpi eq, %arg2, %c0_i32 : i32
    %1 = arith.extui %0 : i1 to i32
    %c0_i32_0 = arith.constant 0 : i32
    %2 = arith.cmpi ne, %1, %c0_i32_0 : i32
    scf.if %2 {
      %cst_10 = arith.constant 0.000000e+00 : f32
      %12 = vector.broadcast %cst_10 : f32 to vector<16x128xf32>
      %c0_11 = arith.constant 0 : index
      %c0_12 = arith.constant 0 : index
      %13 = vector.load %arg6[%c0_11, %c0_12] : memref<16x128xf32, #tpu.memory_space<vmem>>, vector<16x128xf32>
      tpu.vector_store %arg6[%c0_11, %c0_12], %12 {strides = array<i32>} : memref<16x128xf32, #tpu.memory_space<vmem>>, vector<16x128xf32>,
    } else {
    }
    %c0 = arith.constant 0 : index
    %c0_1 = arith.constant 0 : index
    %3 = vector.load %arg6[%c0, %c0_1] : memref<16x128xf32, #tpu.memory_space<vmem>>, vector<16x128xf32>
    %c0_2 = arith.constant 0 : index
    %c0_3 = arith.constant 0 : index
    %4 = vector.load %arg3[%c0_2, %c0_3] : memref<16x384xbf16, #tpu.memory_space<vmem>>, vector<16x384xbf16>
    %c0_4 = arith.constant 0 : index
    %c0_5 = arith.constant 0 : index
    %5 = vector.load %arg4[%c0_4, %c0_5] : memref<384x128xbf16, #tpu.memory_space<vmem>>, vector<384x128xbf16>
    %cst = arith.constant dense<0.000000e+00> : vector<16x128xf32>
    %6 = tpu.matmul %4, %5, %cst {dimension_numbers = #tpu.dot_dimension_numbers<[1], [0], [0], [1], [0, 0, 1, 1], [], []>} : vector<16x384xbf16>, vector<384x128xbf16>, vector<16x128xf32> -> vector<16x128xf32>
    %7 = arith.addf %3, %6 : vector<16x128xf32>
    %c0_6 = arith.constant 0 : index
    %c0_7 = arith.constant 0 : index
    %8 = vector.load %arg6[%c0_6, %c0_7] : memref<16x128xf32, #tpu.memory_space<vmem>>, vector<16x128xf32>
    tpu.vector_store %arg6[%c0_6, %c0_7], %7 {strides = array<i32>} : memref<16x128xf32, #tpu.memory_space<vmem>>, vector<16x128xf32>,
    %c0_i32_8 = arith.constant 0 : i32
    %9 = arith.cmpi eq, %arg2, %c0_i32_8 : i32
    %10 = arith.extui %9 : i1 to i32
    %c0_i32_9 = arith.constant 0 : i32
    %11 = arith.cmpi ne, %10, %c0_i32_9 : i32
    scf.if %11 {
      %c0_10 = arith.constant 0 : index
      %c0_11 = arith.constant 0 : index
      %12 = vector.load %arg6[%c0_10, %c0_11] : memref<16x128xf32, #tpu.memory_space<vmem>>, vector<16x128xf32>
      %c0_12 = arith.constant 0 : index
      %c0_13 = arith.constant 0 : index
      %13 = vector.load %arg5[%c0_12, %c0_13] : memref<8x128xf32, #tpu.memory_space<vmem>>, vector<1x128xf32>
      %14 = vector.broadcast %13 : vector<1x128xf32> to vector<16x128xf32>
      %15 = arith.addf %12, %14 : vector<16x128xf32>
      %cst_14 = arith.constant 0.000000e+00 : f32
      %16 = vector.broadcast %cst_14 : f32 to vector<16x128xf32>
      %17 = arith.maximumf %15, %16 : vector<16x128xf32>
      %c0_15 = arith.constant 0 : index
      %c0_16 = arith.constant 0 : index
      %18 = vector.load %arg6[%c0_15, %c0_16] : memref<16x128xf32, #tpu.memory_space<vmem>>, vector<16x128xf32>
      tpu.vector_store %arg6[%c0_15, %c0_16], %17 {strides = array<i32>} : memref<16x128xf32, #tpu.memory_space<vmem>>, vector<16x128xf32>,
    } else {
    }
    return
  }
  func.func @transform_0(%arg0: i32, %arg1: i32, %arg2: i32) -> (i32, i32) {
    %c0_i32 = arith.constant 0 : i32
    return %arg0, %arg2 : i32, i32
  }
  func.func @transform_1(%arg0: i32, %arg1: i32, %arg2: i32) -> (i32, i32) {
    %c0_i32 = arith.constant 0 : i32
    return %arg2, %arg1 : i32, i32
  }
  func.func @transform_2(%arg0: i32, %arg1: i32, %arg2: i32) -> (i32, i32) {
    %c0_i32 = arith.constant 0 : i32
    %c0_i32_0 = arith.constant 0 : i32
    return %c0_i32, %arg1 : i32, i32
  }
  func.func @transform_3(%arg0: i32, %arg1: i32, %arg2: i32) -> (i32, i32) {
    %c0_i32 = arith.constant 0 : i32
    return %arg0, %arg1 : i32, i32
  }
}

module attributes {stable_mosaic.version = 11 : i64} {
  func.func @_matmul_kernel(%arg0: i32, %arg1: i32, %arg2: i32, %arg3: memref<16x256xbf16, #tpu.memory_space<vmem>>, %arg4: memref<256x128xbf16, #tpu.memory_space<vmem>>, %arg5: memref<8x128xf32, #tpu.memory_space<vmem>>, %arg6: memref<16x128xf32, #tpu.memory_space<vmem>>) attributes {dimension_semantics = [#tpu.dimension_semantics<parallel>, #tpu.dimension_semantics<parallel>, #tpu.dimension_semantics<arbitrary>], iteration_bounds = array<i64: 1, 1, 1>, scalar_prefetch = 0 : i64, scratch_operands = 0 : i64, tpu.core_type = #tpu.core_type<tc>, window_params = [{transform_indices = @transform_0, window_bounds = array<i64: 16, 256>}, {transform_indices = @transform_1, window_bounds = array<i64: 256, 128>}, {transform_indices = @transform_2, window_bounds = array<i64: 8, 128>}, {transform_indices = @transform_3, window_bounds = array<i64: 16, 128>}]} {
    %c0_i32 = arith.constant 0 : i32
    %0 = arith.cmpi eq, %arg2, %c0_i32 : i32
    %1 = arith.extui %0 : i1 to i32
    %c0_i32_0 = arith.constant 0 : i32
    %2 = arith.cmpi ne, %1, %c0_i32_0 : i32
    scf.if %2 {
      %cst_10 = arith.constant 0.000000e+00 : f32
      %12 = vector.broadcast %cst_10 : f32 to vector<16x128xf32>
      %c0_11 = arith.constant 0 : index
      %c0_12 = arith.constant 0 : index
      %13 = vector.load %arg6[%c0_11, %c0_12] : memref<16x128xf32, #tpu.memory_space<vmem>>, vector<16x128xf32>
      tpu.vector_store %arg6[%c0_11, %c0_12], %12 {strides = array<i32>} : memref<16x128xf32, #tpu.memory_space<vmem>>, vector<16x128xf32>,
    } else {
    }
    %c0 = arith.constant 0 : index
    %c0_1 = arith.constant 0 : index
    %3 = vector.load %arg6[%c0, %c0_1] : memref<16x128xf32, #tpu.memory_space<vmem>>, vector<16x128xf32>
    %c0_2 = arith.constant 0 : index
    %c0_3 = arith.constant 0 : index
    %4 = vector.load %arg3[%c0_2, %c0_3] : memref<16x256xbf16, #tpu.memory_space<vmem>>, vector<16x256xbf16>
    %c0_4 = arith.constant 0 : index
    %c0_5 = arith.constant 0 : index
    %5 = vector.load %arg4[%c0_4, %c0_5] : memref<256x128xbf16, #tpu.memory_space<vmem>>, vector<256x128xbf16>
    %cst = arith.constant dense<0.000000e+00> : vector<16x128xf32>
    %6 = tpu.matmul %4, %5, %cst {dimension_numbers = #tpu.dot_dimension_numbers<[1], [0], [0], [1], [0, 0, 1, 1], [], []>} : vector<16x256xbf16>, vector<256x128xbf16>, vector<16x128xf32> -> vector<16x128xf32>
    %7 = arith.addf %3, %6 : vector<16x128xf32>
    %c0_6 = arith.constant 0 : index
    %c0_7 = arith.constant 0 : index
    %8 = vector.load %arg6[%c0_6, %c0_7] : memref<16x128xf32, #tpu.memory_space<vmem>>, vector<16x128xf32>
    tpu.vector_store %arg6[%c0_6, %c0_7], %7 {strides = array<i32>} : memref<16x128xf32, #tpu.memory_space<vmem>>, vector<16x128xf32>,
    %c0_i32_8 = arith.constant 0 : i32
    %9 = arith.cmpi eq, %arg2, %c0_i32_8 : i32
    %10 = arith.extui %9 : i1 to i32
    %c0_i32_9 = arith.constant 0 : i32
    %11 = arith.cmpi ne, %10, %c0_i32_9 : i32
    scf.if %11 {
      %c0_10 = arith.constant 0 : index
      %c0_11 = arith.constant 0 : index
      %12 = vector.load %arg6[%c0_10, %c0_11] : memref<16x128xf32, #tpu.memory_space<vmem>>, vector<16x128xf32>
      %c0_12 = arith.constant 0 : index
      %c0_13 = arith.constant 0 : index
      %13 = vector.load %arg5[%c0_12, %c0_13] : memref<8x128xf32, #tpu.memory_space<vmem>>, vector<1x128xf32>
      %14 = vector.broadcast %13 : vector<1x128xf32> to vector<16x128xf32>
      %15 = arith.addf %12, %14 : vector<16x128xf32>
      %cst_14 = arith.constant 0.000000e+00 : f32
      %16 = vector.broadcast %cst_14 : f32 to vector<16x128xf32>
      %17 = arith.maximumf %15, %16 : vector<16x128xf32>
      %c0_15 = arith.constant 0 : index
      %c0_16 = arith.constant 0 : index
      %18 = vector.load %arg6[%c0_15, %c0_16] : memref<16x128xf32, #tpu.memory_space<vmem>>, vector<16x128xf32>
      tpu.vector_store %arg6[%c0_15, %c0_16], %17 {strides = array<i32>} : memref<16x128xf32, #tpu.memory_space<vmem>>, vector<16x128xf32>,
    } else {
    }
    return
  }
  func.func @transform_0(%arg0: i32, %arg1: i32, %arg2: i32) -> (i32, i32) {
    %c0_i32 = arith.constant 0 : i32
    return %arg0, %arg2 : i32, i32
  }
  func.func @transform_1(%arg0: i32, %arg1: i32, %arg2: i32) -> (i32, i32) {
    %c0_i32 = arith.constant 0 : i32
    return %arg2, %arg1 : i32, i32
  }
  func.func @transform_2(%arg0: i32, %arg1: i32, %arg2: i32) -> (i32, i32) {
    %c0_i32 = arith.constant 0 : i32
    %c0_i32_0 = arith.constant 0 : i32
    return %c0_i32, %arg1 : i32, i32
  }
  func.func @transform_3(%arg0: i32, %arg1: i32, %arg2: i32) -> (i32, i32) {
    %c0_i32 = arith.constant 0 : i32
    return %arg0, %arg1 : i32, i32
  }
}

module attributes {stable_mosaic.version = 11 : i64} {
  func.func @_maxpool_kernel(%arg0: memref<9x256xf32, #tpu.memory_space<vmem>>, %arg1: memref<1x256xf32, #tpu.memory_space<vmem>>) attributes {dimension_semantics = [], scalar_prefetch = 0 : i64, scratch_operands = 0 : i64, tpu.core_type = #tpu.core_type<tc>} {
    %c0 = arith.constant 0 : index
    %c0_0 = arith.constant 0 : index
    %0 = vector.load %arg0[%c0, %c0_0] : memref<9x256xf32, #tpu.memory_space<vmem>>, vector<9x256xf32>
    %cst = arith.constant dense<0xFF800000> : vector<256xf32>
    %1 = vector.multi_reduction <maximumf>, %0, %cst [0] : vector<9x256xf32> to vector<256xf32>
    %2 = vector.shape_cast %1 : vector<256xf32> to vector<1x256xf32>
    %c0_1 = arith.constant 0 : index
    %c0_2 = arith.constant 0 : index
    %3 = vector.load %arg1[%c0_1, %c0_2] : memref<1x256xf32, #tpu.memory_space<vmem>>, vector<1x256xf32>
    tpu.vector_store %arg1[%c0_1, %c0_2], %2 {strides = array<i32>} : memref<1x256xf32, #tpu.memory_space<vmem>>, vector<1x256xf32>,
    return
  }
}

module attributes {stable_mosaic.version = 11 : i64} {
  func.func @_matmul_kernel(%arg0: i32, %arg1: i32, %arg2: i32, %arg3: memref<8x256xbf16, #tpu.memory_space<vmem>>, %arg4: memref<256x128xbf16, #tpu.memory_space<vmem>>, %arg5: memref<8x128xf32, #tpu.memory_space<vmem>>, %arg6: memref<8x128xf32, #tpu.memory_space<vmem>>) attributes {dimension_semantics = [#tpu.dimension_semantics<parallel>, #tpu.dimension_semantics<parallel>, #tpu.dimension_semantics<arbitrary>], iteration_bounds = array<i64: 1, 1, 1>, scalar_prefetch = 0 : i64, scratch_operands = 0 : i64, tpu.core_type = #tpu.core_type<tc>, window_params = [{transform_indices = @transform_0, window_bounds = array<i64: 8, 256>}, {transform_indices = @transform_1, window_bounds = array<i64: 256, 128>}, {transform_indices = @transform_2, window_bounds = array<i64: 8, 128>}, {transform_indices = @transform_3, window_bounds = array<i64: 8, 128>}]} {
    %c0_i32 = arith.constant 0 : i32
    %0 = arith.cmpi eq, %arg2, %c0_i32 : i32
    %1 = arith.extui %0 : i1 to i32
    %c0_i32_0 = arith.constant 0 : i32
    %2 = arith.cmpi ne, %1, %c0_i32_0 : i32
    scf.if %2 {
      %cst_10 = arith.constant 0.000000e+00 : f32
      %12 = vector.broadcast %cst_10 : f32 to vector<8x128xf32>
      %c0_11 = arith.constant 0 : index
      %c0_12 = arith.constant 0 : index
      %13 = vector.load %arg6[%c0_11, %c0_12] : memref<8x128xf32, #tpu.memory_space<vmem>>, vector<8x128xf32>
      tpu.vector_store %arg6[%c0_11, %c0_12], %12 {strides = array<i32>} : memref<8x128xf32, #tpu.memory_space<vmem>>, vector<8x128xf32>,
    } else {
    }
    %c0 = arith.constant 0 : index
    %c0_1 = arith.constant 0 : index
    %3 = vector.load %arg6[%c0, %c0_1] : memref<8x128xf32, #tpu.memory_space<vmem>>, vector<8x128xf32>
    %c0_2 = arith.constant 0 : index
    %c0_3 = arith.constant 0 : index
    %4 = vector.load %arg3[%c0_2, %c0_3] : memref<8x256xbf16, #tpu.memory_space<vmem>>, vector<8x256xbf16>
    %c0_4 = arith.constant 0 : index
    %c0_5 = arith.constant 0 : index
    %5 = vector.load %arg4[%c0_4, %c0_5] : memref<256x128xbf16, #tpu.memory_space<vmem>>, vector<256x128xbf16>
    %cst = arith.constant dense<0.000000e+00> : vector<8x128xf32>
    %6 = tpu.matmul %4, %5, %cst {dimension_numbers = #tpu.dot_dimension_numbers<[1], [0], [0], [1], [0, 0, 1, 1], [], []>} : vector<8x256xbf16>, vector<256x128xbf16>, vector<8x128xf32> -> vector<8x128xf32>
    %7 = arith.addf %3, %6 : vector<8x128xf32>
    %c0_6 = arith.constant 0 : index
    %c0_7 = arith.constant 0 : index
    %8 = vector.load %arg6[%c0_6, %c0_7] : memref<8x128xf32, #tpu.memory_space<vmem>>, vector<8x128xf32>
    tpu.vector_store %arg6[%c0_6, %c0_7], %7 {strides = array<i32>} : memref<8x128xf32, #tpu.memory_space<vmem>>, vector<8x128xf32>,
    %c0_i32_8 = arith.constant 0 : i32
    %9 = arith.cmpi eq, %arg2, %c0_i32_8 : i32
    %10 = arith.extui %9 : i1 to i32
    %c0_i32_9 = arith.constant 0 : i32
    %11 = arith.cmpi ne, %10, %c0_i32_9 : i32
    scf.if %11 {
      %c0_10 = arith.constant 0 : index
      %c0_11 = arith.constant 0 : index
      %12 = vector.load %arg6[%c0_10, %c0_11] : memref<8x128xf32, #tpu.memory_space<vmem>>, vector<8x128xf32>
      %c0_12 = arith.constant 0 : index
      %c0_13 = arith.constant 0 : index
      %13 = vector.load %arg5[%c0_12, %c0_13] : memref<8x128xf32, #tpu.memory_space<vmem>>, vector<1x128xf32>
      %14 = vector.broadcast %13 : vector<1x128xf32> to vector<8x128xf32>
      %15 = arith.addf %12, %14 : vector<8x128xf32>
      %cst_14 = arith.constant 0.000000e+00 : f32
      %16 = vector.broadcast %cst_14 : f32 to vector<8x128xf32>
      %17 = arith.maximumf %15, %16 : vector<8x128xf32>
      %c0_15 = arith.constant 0 : index
      %c0_16 = arith.constant 0 : index
      %18 = vector.load %arg6[%c0_15, %c0_16] : memref<8x128xf32, #tpu.memory_space<vmem>>, vector<8x128xf32>
      tpu.vector_store %arg6[%c0_15, %c0_16], %17 {strides = array<i32>} : memref<8x128xf32, #tpu.memory_space<vmem>>, vector<8x128xf32>,
    } else {
    }
    return
  }
  func.func @transform_0(%arg0: i32, %arg1: i32, %arg2: i32) -> (i32, i32) {
    %c0_i32 = arith.constant 0 : i32
    return %arg0, %arg2 : i32, i32
  }
  func.func @transform_1(%arg0: i32, %arg1: i32, %arg2: i32) -> (i32, i32) {
    %c0_i32 = arith.constant 0 : i32
    return %arg2, %arg1 : i32, i32
  }
  func.func @transform_2(%arg0: i32, %arg1: i32, %arg2: i32) -> (i32, i32) {
    %c0_i32 = arith.constant 0 : i32
    %c0_i32_0 = arith.constant 0 : i32
    return %c0_i32, %arg1 : i32, i32
  }
  func.func @transform_3(%arg0: i32, %arg1: i32, %arg2: i32) -> (i32, i32) {
    %c0_i32 = arith.constant 0 : i32
    return %arg0, %arg1 : i32, i32
  }
}

module attributes {stable_mosaic.version = 11 : i64} {
  func.func @_matmul_kernel(%arg0: i32, %arg1: i32, %arg2: i32, %arg3: memref<8x512xbf16, #tpu.memory_space<vmem>>, %arg4: memref<512x128xbf16, #tpu.memory_space<vmem>>, %arg5: memref<8x128xf32, #tpu.memory_space<vmem>>, %arg6: memref<8x128xf32, #tpu.memory_space<vmem>>) attributes {dimension_semantics = [#tpu.dimension_semantics<parallel>, #tpu.dimension_semantics<parallel>, #tpu.dimension_semantics<arbitrary>], iteration_bounds = array<i64: 1, 3, 1>, scalar_prefetch = 0 : i64, scratch_operands = 0 : i64, tpu.core_type = #tpu.core_type<tc>, window_params = [{transform_indices = @transform_0, window_bounds = array<i64: 8, 512>}, {transform_indices = @transform_1, window_bounds = array<i64: 512, 128>}, {transform_indices = @transform_2, window_bounds = array<i64: 8, 128>}, {transform_indices = @transform_3, window_bounds = array<i64: 8, 128>}]} {
    %c0_i32 = arith.constant 0 : i32
    %0 = arith.cmpi eq, %arg2, %c0_i32 : i32
    %1 = arith.extui %0 : i1 to i32
    %c0_i32_0 = arith.constant 0 : i32
    %2 = arith.cmpi ne, %1, %c0_i32_0 : i32
    scf.if %2 {
      %cst_10 = arith.constant 0.000000e+00 : f32
      %12 = vector.broadcast %cst_10 : f32 to vector<8x128xf32>
      %c0_11 = arith.constant 0 : index
      %c0_12 = arith.constant 0 : index
      %13 = vector.load %arg6[%c0_11, %c0_12] : memref<8x128xf32, #tpu.memory_space<vmem>>, vector<8x128xf32>
      tpu.vector_store %arg6[%c0_11, %c0_12], %12 {strides = array<i32>} : memref<8x128xf32, #tpu.memory_space<vmem>>, vector<8x128xf32>,
    } else {
    }
    %c0 = arith.constant 0 : index
    %c0_1 = arith.constant 0 : index
    %3 = vector.load %arg6[%c0, %c0_1] : memref<8x128xf32, #tpu.memory_space<vmem>>, vector<8x128xf32>
    %c0_2 = arith.constant 0 : index
    %c0_3 = arith.constant 0 : index
    %4 = vector.load %arg3[%c0_2, %c0_3] : memref<8x512xbf16, #tpu.memory_space<vmem>>, vector<8x512xbf16>
    %c0_4 = arith.constant 0 : index
    %c0_5 = arith.constant 0 : index
    %5 = vector.load %arg4[%c0_4, %c0_5] : memref<512x128xbf16, #tpu.memory_space<vmem>>, vector<512x128xbf16>
    %cst = arith.constant dense<0.000000e+00> : vector<8x128xf32>
    %6 = tpu.matmul %4, %5, %cst {dimension_numbers = #tpu.dot_dimension_numbers<[1], [0], [0], [1], [0, 0, 1, 1], [], []>} : vector<8x512xbf16>, vector<512x128xbf16>, vector<8x128xf32> -> vector<8x128xf32>
    %7 = arith.addf %3, %6 : vector<8x128xf32>
    %c0_6 = arith.constant 0 : index
    %c0_7 = arith.constant 0 : index
    %8 = vector.load %arg6[%c0_6, %c0_7] : memref<8x128xf32, #tpu.memory_space<vmem>>, vector<8x128xf32>
    tpu.vector_store %arg6[%c0_6, %c0_7], %7 {strides = array<i32>} : memref<8x128xf32, #tpu.memory_space<vmem>>, vector<8x128xf32>,
    %c0_i32_8 = arith.constant 0 : i32
    %9 = arith.cmpi eq, %arg2, %c0_i32_8 : i32
    %10 = arith.extui %9 : i1 to i32
    %c0_i32_9 = arith.constant 0 : i32
    %11 = arith.cmpi ne, %10, %c0_i32_9 : i32
    scf.if %11 {
      %c0_10 = arith.constant 0 : index
      %c0_11 = arith.constant 0 : index
      %12 = vector.load %arg6[%c0_10, %c0_11] : memref<8x128xf32, #tpu.memory_space<vmem>>, vector<8x128xf32>
      %c0_12 = arith.constant 0 : index
      %c0_13 = arith.constant 0 : index
      %13 = vector.load %arg5[%c0_12, %c0_13] : memref<8x128xf32, #tpu.memory_space<vmem>>, vector<1x128xf32>
      %14 = vector.broadcast %13 : vector<1x128xf32> to vector<8x128xf32>
      %15 = arith.addf %12, %14 : vector<8x128xf32>
      %cst_14 = arith.constant 0.000000e+00 : f32
      %16 = vector.broadcast %cst_14 : f32 to vector<8x128xf32>
      %17 = arith.maximumf %15, %16 : vector<8x128xf32>
      %c0_15 = arith.constant 0 : index
      %c0_16 = arith.constant 0 : index
      %18 = vector.load %arg6[%c0_15, %c0_16] : memref<8x128xf32, #tpu.memory_space<vmem>>, vector<8x128xf32>
      tpu.vector_store %arg6[%c0_15, %c0_16], %17 {strides = array<i32>} : memref<8x128xf32, #tpu.memory_space<vmem>>, vector<8x128xf32>,
    } else {
    }
    return
  }
  func.func @transform_0(%arg0: i32, %arg1: i32, %arg2: i32) -> (i32, i32) {
    %c0_i32 = arith.constant 0 : i32
    return %arg0, %arg2 : i32, i32
  }
  func.func @transform_1(%arg0: i32, %arg1: i32, %arg2: i32) -> (i32, i32) {
    %c0_i32 = arith.constant 0 : i32
    return %arg2, %arg1 : i32, i32
  }
  func.func @transform_2(%arg0: i32, %arg1: i32, %arg2: i32) -> (i32, i32) {
    %c0_i32 = arith.constant 0 : i32
    %c0_i32_0 = arith.constant 0 : i32
    return %c0_i32, %arg1 : i32, i32
  }
  func.func @transform_3(%arg0: i32, %arg1: i32, %arg2: i32) -> (i32, i32) {
    %c0_i32 = arith.constant 0 : i32
    return %arg0, %arg1 : i32, i32
  }
}

module attributes {stable_mosaic.version = 11 : i64} {
  func.func @_matmul_kernel(%arg0: i32, %arg1: i32, %arg2: i32, %arg3: memref<8x384xbf16, #tpu.memory_space<vmem>>, %arg4: memref<384x128xbf16, #tpu.memory_space<vmem>>, %arg5: memref<8x128xf32, #tpu.memory_space<vmem>>, %arg6: memref<8x128xf32, #tpu.memory_space<vmem>>) attributes {dimension_semantics = [#tpu.dimension_semantics<parallel>, #tpu.dimension_semantics<parallel>, #tpu.dimension_semantics<arbitrary>], iteration_bounds = array<i64: 1, 1, 1>, scalar_prefetch = 0 : i64, scratch_operands = 0 : i64, tpu.core_type = #tpu.core_type<tc>, window_params = [{transform_indices = @transform_0, window_bounds = array<i64: 8, 384>}, {transform_indices = @transform_1, window_bounds = array<i64: 384, 128>}, {transform_indices = @transform_2, window_bounds = array<i64: 8, 128>}, {transform_indices = @transform_3, window_bounds = array<i64: 8, 128>}]} {
    %c0_i32 = arith.constant 0 : i32
    %0 = arith.cmpi eq, %arg2, %c0_i32 : i32
    %1 = arith.extui %0 : i1 to i32
    %c0_i32_0 = arith.constant 0 : i32
    %2 = arith.cmpi ne, %1, %c0_i32_0 : i32
    scf.if %2 {
      %cst_10 = arith.constant 0.000000e+00 : f32
      %12 = vector.broadcast %cst_10 : f32 to vector<8x128xf32>
      %c0_11 = arith.constant 0 : index
      %c0_12 = arith.constant 0 : index
      %13 = vector.load %arg6[%c0_11, %c0_12] : memref<8x128xf32, #tpu.memory_space<vmem>>, vector<8x128xf32>
      tpu.vector_store %arg6[%c0_11, %c0_12], %12 {strides = array<i32>} : memref<8x128xf32, #tpu.memory_space<vmem>>, vector<8x128xf32>,
    } else {
    }
    %c0 = arith.constant 0 : index
    %c0_1 = arith.constant 0 : index
    %3 = vector.load %arg6[%c0, %c0_1] : memref<8x128xf32, #tpu.memory_space<vmem>>, vector<8x128xf32>
    %c0_2 = arith.constant 0 : index
    %c0_3 = arith.constant 0 : index
    %4 = vector.load %arg3[%c0_2, %c0_3] : memref<8x384xbf16, #tpu.memory_space<vmem>>, vector<8x384xbf16>
    %c0_4 = arith.constant 0 : index
    %c0_5 = arith.constant 0 : index
    %5 = vector.load %arg4[%c0_4, %c0_5] : memref<384x128xbf16, #tpu.memory_space<vmem>>, vector<384x128xbf16>
    %cst = arith.constant dense<0.000000e+00> : vector<8x128xf32>
    %6 = tpu.matmul %4, %5, %cst {dimension_numbers = #tpu.dot_dimension_numbers<[1], [0], [0], [1], [0, 0, 1, 1], [], []>} : vector<8x384xbf16>, vector<384x128xbf16>, vector<8x128xf32> -> vector<8x128xf32>
    %7 = arith.addf %3, %6 : vector<8x128xf32>
    %c0_6 = arith.constant 0 : index
    %c0_7 = arith.constant 0 : index
    %8 = vector.load %arg6[%c0_6, %c0_7] : memref<8x128xf32, #tpu.memory_space<vmem>>, vector<8x128xf32>
    tpu.vector_store %arg6[%c0_6, %c0_7], %7 {strides = array<i32>} : memref<8x128xf32, #tpu.memory_space<vmem>>, vector<8x128xf32>,
    %c0_i32_8 = arith.constant 0 : i32
    %9 = arith.cmpi eq, %arg2, %c0_i32_8 : i32
    %10 = arith.extui %9 : i1 to i32
    %c0_i32_9 = arith.constant 0 : i32
    %11 = arith.cmpi ne, %10, %c0_i32_9 : i32
    scf.if %11 {
      %c0_10 = arith.constant 0 : index
      %c0_11 = arith.constant 0 : index
      %12 = vector.load %arg6[%c0_10, %c0_11] : memref<8x128xf32, #tpu.memory_space<vmem>>, vector<8x128xf32>
      %c0_12 = arith.constant 0 : index
      %c0_13 = arith.constant 0 : index
      %13 = vector.load %arg5[%c0_12, %c0_13] : memref<8x128xf32, #tpu.memory_space<vmem>>, vector<1x128xf32>
      %14 = vector.broadcast %13 : vector<1x128xf32> to vector<8x128xf32>
      %15 = arith.addf %12, %14 : vector<8x128xf32>
      %cst_14 = arith.constant 0.000000e+00 : f32
      %16 = vector.broadcast %cst_14 : f32 to vector<8x128xf32>
      %17 = arith.maximumf %15, %16 : vector<8x128xf32>
      %c0_15 = arith.constant 0 : index
      %c0_16 = arith.constant 0 : index
      %18 = vector.load %arg6[%c0_15, %c0_16] : memref<8x128xf32, #tpu.memory_space<vmem>>, vector<8x128xf32>
      tpu.vector_store %arg6[%c0_15, %c0_16], %17 {strides = array<i32>} : memref<8x128xf32, #tpu.memory_space<vmem>>, vector<8x128xf32>,
    } else {
    }
    return
  }
  func.func @transform_0(%arg0: i32, %arg1: i32, %arg2: i32) -> (i32, i32) {
    %c0_i32 = arith.constant 0 : i32
    return %arg0, %arg2 : i32, i32
  }
  func.func @transform_1(%arg0: i32, %arg1: i32, %arg2: i32) -> (i32, i32) {
    %c0_i32 = arith.constant 0 : i32
    return %arg2, %arg1 : i32, i32
  }
  func.func @transform_2(%arg0: i32, %arg1: i32, %arg2: i32) -> (i32, i32) {
    %c0_i32 = arith.constant 0 : i32
    %c0_i32_0 = arith.constant 0 : i32
    return %c0_i32, %arg1 : i32, i32
  }
  func.func @transform_3(%arg0: i32, %arg1: i32, %arg2: i32) -> (i32, i32) {
    %c0_i32 = arith.constant 0 : i32
    return %arg0, %arg1 : i32, i32
  }
}

module attributes {stable_mosaic.version = 11 : i64} {
  func.func @_matmul_kernel(%arg0: i32, %arg1: i32, %arg2: i32, %arg3: memref<8x128xbf16, #tpu.memory_space<vmem>>, %arg4: memref<128x128xbf16, #tpu.memory_space<vmem>>, %arg5: memref<8x128xf32, #tpu.memory_space<vmem>>, %arg6: memref<8x128xf32, #tpu.memory_space<vmem>>) attributes {dimension_semantics = [#tpu.dimension_semantics<parallel>, #tpu.dimension_semantics<parallel>, #tpu.dimension_semantics<arbitrary>], iteration_bounds = array<i64: 1, 4, 5>, scalar_prefetch = 0 : i64, scratch_operands = 0 : i64, tpu.core_type = #tpu.core_type<tc>, window_params = [{transform_indices = @transform_0, window_bounds = array<i64: 8, 128>}, {transform_indices = @transform_1, window_bounds = array<i64: 128, 128>}, {transform_indices = @transform_2, window_bounds = array<i64: 8, 128>}, {transform_indices = @transform_3, window_bounds = array<i64: 8, 128>}]} {
    %c0_i32 = arith.constant 0 : i32
    %0 = arith.cmpi eq, %arg2, %c0_i32 : i32
    %1 = arith.extui %0 : i1 to i32
    %c0_i32_0 = arith.constant 0 : i32
    %2 = arith.cmpi ne, %1, %c0_i32_0 : i32
    scf.if %2 {
      %cst_9 = arith.constant 0.000000e+00 : f32
      %12 = vector.broadcast %cst_9 : f32 to vector<8x128xf32>
      %c0_10 = arith.constant 0 : index
      %c0_11 = arith.constant 0 : index
      %13 = vector.load %arg6[%c0_10, %c0_11] : memref<8x128xf32, #tpu.memory_space<vmem>>, vector<8x128xf32>
      tpu.vector_store %arg6[%c0_10, %c0_11], %12 {strides = array<i32>} : memref<8x128xf32, #tpu.memory_space<vmem>>, vector<8x128xf32>,
    } else {
    }
    %c0 = arith.constant 0 : index
    %c0_1 = arith.constant 0 : index
    %3 = vector.load %arg6[%c0, %c0_1] : memref<8x128xf32, #tpu.memory_space<vmem>>, vector<8x128xf32>
    %c0_2 = arith.constant 0 : index
    %c0_3 = arith.constant 0 : index
    %4 = vector.load %arg3[%c0_2, %c0_3] : memref<8x128xbf16, #tpu.memory_space<vmem>>, vector<8x128xbf16>
    %c0_4 = arith.constant 0 : index
    %c0_5 = arith.constant 0 : index
    %5 = vector.load %arg4[%c0_4, %c0_5] : memref<128x128xbf16, #tpu.memory_space<vmem>>, vector<128x128xbf16>
    %cst = arith.constant dense<0.000000e+00> : vector<8x128xf32>
    %6 = tpu.matmul %4, %5, %cst {dimension_numbers = #tpu.dot_dimension_numbers<[1], [0], [0], [1], [0, 0, 1, 1], [], []>} : vector<8x128xbf16>, vector<128x128xbf16>, vector<8x128xf32> -> vector<8x128xf32>
    %7 = arith.addf %3, %6 : vector<8x128xf32>
    %c0_6 = arith.constant 0 : index
    %c0_7 = arith.constant 0 : index
    %8 = vector.load %arg6[%c0_6, %c0_7] : memref<8x128xf32, #tpu.memory_space<vmem>>, vector<8x128xf32>
    tpu.vector_store %arg6[%c0_6, %c0_7], %7 {strides = array<i32>} : memref<8x128xf32, #tpu.memory_space<vmem>>, vector<8x128xf32>,
    %c4_i32 = arith.constant 4 : i32
    %9 = arith.cmpi eq, %arg2, %c4_i32 : i32
    %10 = arith.extui %9 : i1 to i32
    %c0_i32_8 = arith.constant 0 : i32
    %11 = arith.cmpi ne, %10, %c0_i32_8 : i32
    scf.if %11 {
      %c0_9 = arith.constant 0 : index
      %c0_10 = arith.constant 0 : index
      %12 = vector.load %arg6[%c0_9, %c0_10] : memref<8x128xf32, #tpu.memory_space<vmem>>, vector<8x128xf32>
      %c0_11 = arith.constant 0 : index
      %c0_12 = arith.constant 0 : index
      %13 = vector.load %arg5[%c0_11, %c0_12] : memref<8x128xf32, #tpu.memory_space<vmem>>, vector<1x128xf32>
      %14 = vector.broadcast %13 : vector<1x128xf32> to vector<8x128xf32>
      %15 = arith.addf %12, %14 : vector<8x128xf32>
      %cst_13 = arith.constant 0.000000e+00 : f32
      %16 = vector.broadcast %cst_13 : f32 to vector<8x128xf32>
      %17 = arith.maximumf %15, %16 : vector<8x128xf32>
      %c0_14 = arith.constant 0 : index
      %c0_15 = arith.constant 0 : index
      %18 = vector.load %arg6[%c0_14, %c0_15] : memref<8x128xf32, #tpu.memory_space<vmem>>, vector<8x128xf32>
      tpu.vector_store %arg6[%c0_14, %c0_15], %17 {strides = array<i32>} : memref<8x128xf32, #tpu.memory_space<vmem>>, vector<8x128xf32>,
    } else {
    }
    return
  }
  func.func @transform_0(%arg0: i32, %arg1: i32, %arg2: i32) -> (i32, i32) {
    %c0_i32 = arith.constant 0 : i32
    return %arg0, %arg2 : i32, i32
  }
  func.func @transform_1(%arg0: i32, %arg1: i32, %arg2: i32) -> (i32, i32) {
    %c0_i32 = arith.constant 0 : i32
    return %arg2, %arg1 : i32, i32
  }
  func.func @transform_2(%arg0: i32, %arg1: i32, %arg2: i32) -> (i32, i32) {
    %c0_i32 = arith.constant 0 : i32
    %c0_i32_0 = arith.constant 0 : i32
    return %c0_i32, %arg1 : i32, i32
  }
  func.func @transform_3(%arg0: i32, %arg1: i32, %arg2: i32) -> (i32, i32) {
    %c0_i32 = arith.constant 0 : i32
    return %arg0, %arg1 : i32, i32
  }
}

module attributes {stable_mosaic.version = 11 : i64} {
  func.func @_matmul_kernel(%arg0: i32, %arg1: i32, %arg2: i32, %arg3: memref<8x512xbf16, #tpu.memory_space<vmem>>, %arg4: memref<512x128xbf16, #tpu.memory_space<vmem>>, %arg5: memref<8x128xf32, #tpu.memory_space<vmem>>, %arg6: memref<8x128xf32, #tpu.memory_space<vmem>>) attributes {dimension_semantics = [#tpu.dimension_semantics<parallel>, #tpu.dimension_semantics<parallel>, #tpu.dimension_semantics<arbitrary>], iteration_bounds = array<i64: 1, 1, 1>, scalar_prefetch = 0 : i64, scratch_operands = 0 : i64, tpu.core_type = #tpu.core_type<tc>, window_params = [{transform_indices = @transform_0, window_bounds = array<i64: 8, 512>}, {transform_indices = @transform_1, window_bounds = array<i64: 512, 128>}, {transform_indices = @transform_2, window_bounds = array<i64: 8, 128>}, {transform_indices = @transform_3, window_bounds = array<i64: 8, 128>}]} {
    %c0_i32 = arith.constant 0 : i32
    %0 = arith.cmpi eq, %arg2, %c0_i32 : i32
    %1 = arith.extui %0 : i1 to i32
    %c0_i32_0 = arith.constant 0 : i32
    %2 = arith.cmpi ne, %1, %c0_i32_0 : i32
    scf.if %2 {
      %cst_10 = arith.constant 0.000000e+00 : f32
      %12 = vector.broadcast %cst_10 : f32 to vector<8x128xf32>
      %c0_11 = arith.constant 0 : index
      %c0_12 = arith.constant 0 : index
      %13 = vector.load %arg6[%c0_11, %c0_12] : memref<8x128xf32, #tpu.memory_space<vmem>>, vector<8x128xf32>
      tpu.vector_store %arg6[%c0_11, %c0_12], %12 {strides = array<i32>} : memref<8x128xf32, #tpu.memory_space<vmem>>, vector<8x128xf32>,
    } else {
    }
    %c0 = arith.constant 0 : index
    %c0_1 = arith.constant 0 : index
    %3 = vector.load %arg6[%c0, %c0_1] : memref<8x128xf32, #tpu.memory_space<vmem>>, vector<8x128xf32>
    %c0_2 = arith.constant 0 : index
    %c0_3 = arith.constant 0 : index
    %4 = vector.load %arg3[%c0_2, %c0_3] : memref<8x512xbf16, #tpu.memory_space<vmem>>, vector<8x512xbf16>
    %c0_4 = arith.constant 0 : index
    %c0_5 = arith.constant 0 : index
    %5 = vector.load %arg4[%c0_4, %c0_5] : memref<512x128xbf16, #tpu.memory_space<vmem>>, vector<512x128xbf16>
    %cst = arith.constant dense<0.000000e+00> : vector<8x128xf32>
    %6 = tpu.matmul %4, %5, %cst {dimension_numbers = #tpu.dot_dimension_numbers<[1], [0], [0], [1], [0, 0, 1, 1], [], []>} : vector<8x512xbf16>, vector<512x128xbf16>, vector<8x128xf32> -> vector<8x128xf32>
    %7 = arith.addf %3, %6 : vector<8x128xf32>
    %c0_6 = arith.constant 0 : index
    %c0_7 = arith.constant 0 : index
    %8 = vector.load %arg6[%c0_6, %c0_7] : memref<8x128xf32, #tpu.memory_space<vmem>>, vector<8x128xf32>
    tpu.vector_store %arg6[%c0_6, %c0_7], %7 {strides = array<i32>} : memref<8x128xf32, #tpu.memory_space<vmem>>, vector<8x128xf32>,
    %c0_i32_8 = arith.constant 0 : i32
    %9 = arith.cmpi eq, %arg2, %c0_i32_8 : i32
    %10 = arith.extui %9 : i1 to i32
    %c0_i32_9 = arith.constant 0 : i32
    %11 = arith.cmpi ne, %10, %c0_i32_9 : i32
    scf.if %11 {
      %c0_10 = arith.constant 0 : index
      %c0_11 = arith.constant 0 : index
      %12 = vector.load %arg6[%c0_10, %c0_11] : memref<8x128xf32, #tpu.memory_space<vmem>>, vector<8x128xf32>
      %c0_12 = arith.constant 0 : index
      %c0_13 = arith.constant 0 : index
      %13 = vector.load %arg5[%c0_12, %c0_13] : memref<8x128xf32, #tpu.memory_space<vmem>>, vector<1x128xf32>
      %14 = vector.broadcast %13 : vector<1x128xf32> to vector<8x128xf32>
      %15 = arith.addf %12, %14 : vector<8x128xf32>
      %cst_14 = arith.constant 0.000000e+00 : f32
      %16 = vector.broadcast %cst_14 : f32 to vector<8x128xf32>
      %17 = arith.maximumf %15, %16 : vector<8x128xf32>
      %c0_15 = arith.constant 0 : index
      %c0_16 = arith.constant 0 : index
      %18 = vector.load %arg6[%c0_15, %c0_16] : memref<8x128xf32, #tpu.memory_space<vmem>>, vector<8x128xf32>
      tpu.vector_store %arg6[%c0_15, %c0_16], %17 {strides = array<i32>} : memref<8x128xf32, #tpu.memory_space<vmem>>, vector<8x128xf32>,
    } else {
    }
    return
  }
  func.func @transform_0(%arg0: i32, %arg1: i32, %arg2: i32) -> (i32, i32) {
    %c0_i32 = arith.constant 0 : i32
    return %arg0, %arg2 : i32, i32
  }
  func.func @transform_1(%arg0: i32, %arg1: i32, %arg2: i32) -> (i32, i32) {
    %c0_i32 = arith.constant 0 : i32
    return %arg2, %arg1 : i32, i32
  }
  func.func @transform_2(%arg0: i32, %arg1: i32, %arg2: i32) -> (i32, i32) {
    %c0_i32 = arith.constant 0 : i32
    %c0_i32_0 = arith.constant 0 : i32
    return %c0_i32, %arg1 : i32, i32
  }
  func.func @transform_3(%arg0: i32, %arg1: i32, %arg2: i32) -> (i32, i32) {
    %c0_i32 = arith.constant 0 : i32
    return %arg0, %arg1 : i32, i32
  }
}

module attributes {stable_mosaic.version = 11 : i64} {
  func.func @_matmul_kernel(%arg0: i32, %arg1: i32, %arg2: i32, %arg3: memref<8x512xbf16, #tpu.memory_space<vmem>>, %arg4: memref<512x128xbf16, #tpu.memory_space<vmem>>, %arg5: memref<8x128xf32, #tpu.memory_space<vmem>>, %arg6: memref<8x128xf32, #tpu.memory_space<vmem>>) attributes {dimension_semantics = [#tpu.dimension_semantics<parallel>, #tpu.dimension_semantics<parallel>, #tpu.dimension_semantics<arbitrary>], iteration_bounds = array<i64: 1, 4, 1>, scalar_prefetch = 0 : i64, scratch_operands = 0 : i64, tpu.core_type = #tpu.core_type<tc>, window_params = [{transform_indices = @transform_0, window_bounds = array<i64: 8, 512>}, {transform_indices = @transform_1, window_bounds = array<i64: 512, 128>}, {transform_indices = @transform_2, window_bounds = array<i64: 8, 128>}, {transform_indices = @transform_3, window_bounds = array<i64: 8, 128>}]} {
    %c0_i32 = arith.constant 0 : i32
    %0 = arith.cmpi eq, %arg2, %c0_i32 : i32
    %1 = arith.extui %0 : i1 to i32
    %c0_i32_0 = arith.constant 0 : i32
    %2 = arith.cmpi ne, %1, %c0_i32_0 : i32
    scf.if %2 {
      %cst_10 = arith.constant 0.000000e+00 : f32
      %12 = vector.broadcast %cst_10 : f32 to vector<8x128xf32>
      %c0_11 = arith.constant 0 : index
      %c0_12 = arith.constant 0 : index
      %13 = vector.load %arg6[%c0_11, %c0_12] : memref<8x128xf32, #tpu.memory_space<vmem>>, vector<8x128xf32>
      tpu.vector_store %arg6[%c0_11, %c0_12], %12 {strides = array<i32>} : memref<8x128xf32, #tpu.memory_space<vmem>>, vector<8x128xf32>,
    } else {
    }
    %c0 = arith.constant 0 : index
    %c0_1 = arith.constant 0 : index
    %3 = vector.load %arg6[%c0, %c0_1] : memref<8x128xf32, #tpu.memory_space<vmem>>, vector<8x128xf32>
    %c0_2 = arith.constant 0 : index
    %c0_3 = arith.constant 0 : index
    %4 = vector.load %arg3[%c0_2, %c0_3] : memref<8x512xbf16, #tpu.memory_space<vmem>>, vector<8x512xbf16>
    %c0_4 = arith.constant 0 : index
    %c0_5 = arith.constant 0 : index
    %5 = vector.load %arg4[%c0_4, %c0_5] : memref<512x128xbf16, #tpu.memory_space<vmem>>, vector<512x128xbf16>
    %cst = arith.constant dense<0.000000e+00> : vector<8x128xf32>
    %6 = tpu.matmul %4, %5, %cst {dimension_numbers = #tpu.dot_dimension_numbers<[1], [0], [0], [1], [0, 0, 1, 1], [], []>} : vector<8x512xbf16>, vector<512x128xbf16>, vector<8x128xf32> -> vector<8x128xf32>
    %7 = arith.addf %3, %6 : vector<8x128xf32>
    %c0_6 = arith.constant 0 : index
    %c0_7 = arith.constant 0 : index
    %8 = vector.load %arg6[%c0_6, %c0_7] : memref<8x128xf32, #tpu.memory_space<vmem>>, vector<8x128xf32>
    tpu.vector_store %arg6[%c0_6, %c0_7], %7 {strides = array<i32>} : memref<8x128xf32, #tpu.memory_space<vmem>>, vector<8x128xf32>,
    %c0_i32_8 = arith.constant 0 : i32
    %9 = arith.cmpi eq, %arg2, %c0_i32_8 : i32
    %10 = arith.extui %9 : i1 to i32
    %c0_i32_9 = arith.constant 0 : i32
    %11 = arith.cmpi ne, %10, %c0_i32_9 : i32
    scf.if %11 {
      %c0_10 = arith.constant 0 : index
      %c0_11 = arith.constant 0 : index
      %12 = vector.load %arg6[%c0_10, %c0_11] : memref<8x128xf32, #tpu.memory_space<vmem>>, vector<8x128xf32>
      %c0_12 = arith.constant 0 : index
      %c0_13 = arith.constant 0 : index
      %13 = vector.load %arg5[%c0_12, %c0_13] : memref<8x128xf32, #tpu.memory_space<vmem>>, vector<1x128xf32>
      %14 = vector.broadcast %13 : vector<1x128xf32> to vector<8x128xf32>
      %15 = arith.addf %12, %14 : vector<8x128xf32>
      %c0_14 = arith.constant 0 : index
      %c0_15 = arith.constant 0 : index
      %16 = vector.load %arg6[%c0_14, %c0_15] : memref<8x128xf32, #tpu.memory_space<vmem>>, vector<8x128xf32>
      tpu.vector_store %arg6[%c0_14, %c0_15], %15 {strides = array<i32>} : memref<8x128xf32, #tpu.memory_space<vmem>>, vector<8x128xf32>,
    } else {
    }
    return
  }
  func.func @transform_0(%arg0: i32, %arg1: i32, %arg2: i32) -> (i32, i32) {
    %c0_i32 = arith.constant 0 : i32
    return %arg0, %arg2 : i32, i32
  }
  func.func @transform_1(%arg0: i32, %arg1: i32, %arg2: i32) -> (i32, i32) {
    %c0_i32 = arith.constant 0 : i32
    return %arg2, %arg1 : i32, i32
  }
  func.func @transform_2(%arg0: i32, %arg1: i32, %arg2: i32) -> (i32, i32) {
    %c0_i32 = arith.constant 0 : i32
    %c0_i32_0 = arith.constant 0 : i32
    return %c0_i32, %arg1 : i32, i32
  }
  func.func @transform_3(%arg0: i32, %arg1: i32, %arg2: i32) -> (i32, i32) {
    %c0_i32 = arith.constant 0 : i32
    return %arg0, %arg1 : i32, i32
  }
}

module attributes {stable_mosaic.version = 11 : i64} {
  func.func @_matmul_kernel(%arg0: i32, %arg1: i32, %arg2: i32, %arg3: memref<16x512xbf16, #tpu.memory_space<vmem>>, %arg4: memref<512x128xbf16, #tpu.memory_space<vmem>>, %arg5: memref<8x128xf32, #tpu.memory_space<vmem>>, %arg6: memref<16x128xf32, #tpu.memory_space<vmem>>) attributes {dimension_semantics = [#tpu.dimension_semantics<parallel>, #tpu.dimension_semantics<parallel>, #tpu.dimension_semantics<arbitrary>], iteration_bounds = array<i64: 1, 4, 9>, scalar_prefetch = 0 : i64, scratch_operands = 0 : i64, tpu.core_type = #tpu.core_type<tc>, window_params = [{transform_indices = @transform_0, window_bounds = array<i64: 16, 512>}, {transform_indices = @transform_1, window_bounds = array<i64: 512, 128>}, {transform_indices = @transform_2, window_bounds = array<i64: 8, 128>}, {transform_indices = @transform_3, window_bounds = array<i64: 16, 128>}]} {
    %c0_i32 = arith.constant 0 : i32
    %0 = arith.cmpi eq, %arg2, %c0_i32 : i32
    %1 = arith.extui %0 : i1 to i32
    %c0_i32_0 = arith.constant 0 : i32
    %2 = arith.cmpi ne, %1, %c0_i32_0 : i32
    scf.if %2 {
      %cst_9 = arith.constant 0.000000e+00 : f32
      %12 = vector.broadcast %cst_9 : f32 to vector<16x128xf32>
      %c0_10 = arith.constant 0 : index
      %c0_11 = arith.constant 0 : index
      %13 = vector.load %arg6[%c0_10, %c0_11] : memref<16x128xf32, #tpu.memory_space<vmem>>, vector<16x128xf32>
      tpu.vector_store %arg6[%c0_10, %c0_11], %12 {strides = array<i32>} : memref<16x128xf32, #tpu.memory_space<vmem>>, vector<16x128xf32>,
    } else {
    }
    %c0 = arith.constant 0 : index
    %c0_1 = arith.constant 0 : index
    %3 = vector.load %arg6[%c0, %c0_1] : memref<16x128xf32, #tpu.memory_space<vmem>>, vector<16x128xf32>
    %c0_2 = arith.constant 0 : index
    %c0_3 = arith.constant 0 : index
    %4 = vector.load %arg3[%c0_2, %c0_3] : memref<16x512xbf16, #tpu.memory_space<vmem>>, vector<16x512xbf16>
    %c0_4 = arith.constant 0 : index
    %c0_5 = arith.constant 0 : index
    %5 = vector.load %arg4[%c0_4, %c0_5] : memref<512x128xbf16, #tpu.memory_space<vmem>>, vector<512x128xbf16>
    %cst = arith.constant dense<0.000000e+00> : vector<16x128xf32>
    %6 = tpu.matmul %4, %5, %cst {dimension_numbers = #tpu.dot_dimension_numbers<[1], [0], [0], [1], [0, 0, 1, 1], [], []>} : vector<16x512xbf16>, vector<512x128xbf16>, vector<16x128xf32> -> vector<16x128xf32>
    %7 = arith.addf %3, %6 : vector<16x128xf32>
    %c0_6 = arith.constant 0 : index
    %c0_7 = arith.constant 0 : index
    %8 = vector.load %arg6[%c0_6, %c0_7] : memref<16x128xf32, #tpu.memory_space<vmem>>, vector<16x128xf32>
    tpu.vector_store %arg6[%c0_6, %c0_7], %7 {strides = array<i32>} : memref<16x128xf32, #tpu.memory_space<vmem>>, vector<16x128xf32>,
    %c8_i32 = arith.constant 8 : i32
    %9 = arith.cmpi eq, %arg2, %c8_i32 : i32
    %10 = arith.extui %9 : i1 to i32
    %c0_i32_8 = arith.constant 0 : i32
    %11 = arith.cmpi ne, %10, %c0_i32_8 : i32
    scf.if %11 {
      %c0_9 = arith.constant 0 : index
      %c0_10 = arith.constant 0 : index
      %12 = vector.load %arg6[%c0_9, %c0_10] : memref<16x128xf32, #tpu.memory_space<vmem>>, vector<16x128xf32>
      %c0_11 = arith.constant 0 : index
      %c0_12 = arith.constant 0 : index
      %13 = vector.load %arg5[%c0_11, %c0_12] : memref<8x128xf32, #tpu.memory_space<vmem>>, vector<1x128xf32>
      %14 = vector.broadcast %13 : vector<1x128xf32> to vector<16x128xf32>
      %15 = arith.addf %12, %14 : vector<16x128xf32>
      %c0_13 = arith.constant 0 : index
      %c0_14 = arith.constant 0 : index
      %16 = vector.load %arg6[%c0_13, %c0_14] : memref<16x128xf32, #tpu.memory_space<vmem>>, vector<16x128xf32>
      tpu.vector_store %arg6[%c0_13, %c0_14], %15 {strides = array<i32>} : memref<16x128xf32, #tpu.memory_space<vmem>>, vector<16x128xf32>,
    } else {
    }
    return
  }
  func.func @transform_0(%arg0: i32, %arg1: i32, %arg2: i32) -> (i32, i32) {
    %c0_i32 = arith.constant 0 : i32
    return %arg0, %arg2 : i32, i32
  }
  func.func @transform_1(%arg0: i32, %arg1: i32, %arg2: i32) -> (i32, i32) {
    %c0_i32 = arith.constant 0 : i32
    return %arg2, %arg1 : i32, i32
  }
  func.func @transform_2(%arg0: i32, %arg1: i32, %arg2: i32) -> (i32, i32) {
    %c0_i32 = arith.constant 0 : i32
    %c0_i32_0 = arith.constant 0 : i32
    return %c0_i32, %arg1 : i32, i32
  }
  func.func @transform_3(%arg0: i32, %arg1: i32, %arg2: i32) -> (i32, i32) {
    %c0_i32 = arith.constant 0 : i32
    return %arg0, %arg1 : i32, i32
  }
}

module attributes {stable_mosaic.version = 11 : i64} {
  func.func @_matmul_kernel(%arg0: i32, %arg1: i32, %arg2: i32, %arg3: memref<8x512xbf16, #tpu.memory_space<vmem>>, %arg4: memref<512x128xbf16, #tpu.memory_space<vmem>>, %arg5: memref<8x128xf32, #tpu.memory_space<vmem>>, %arg6: memref<8x128xf32, #tpu.memory_space<vmem>>) attributes {dimension_semantics = [#tpu.dimension_semantics<parallel>, #tpu.dimension_semantics<parallel>, #tpu.dimension_semantics<arbitrary>], iteration_bounds = array<i64: 1, 6, 19>, scalar_prefetch = 0 : i64, scratch_operands = 0 : i64, tpu.core_type = #tpu.core_type<tc>, window_params = [{transform_indices = @transform_0, window_bounds = array<i64: 8, 512>}, {transform_indices = @transform_1, window_bounds = array<i64: 512, 128>}, {transform_indices = @transform_2, window_bounds = array<i64: 8, 128>}, {transform_indices = @transform_3, window_bounds = array<i64: 8, 128>}]} {
    %c0_i32 = arith.constant 0 : i32
    %0 = arith.cmpi eq, %arg2, %c0_i32 : i32
    %1 = arith.extui %0 : i1 to i32
    %c0_i32_0 = arith.constant 0 : i32
    %2 = arith.cmpi ne, %1, %c0_i32_0 : i32
    scf.if %2 {
      %cst_9 = arith.constant 0.000000e+00 : f32
      %12 = vector.broadcast %cst_9 : f32 to vector<8x128xf32>
      %c0_10 = arith.constant 0 : index
      %c0_11 = arith.constant 0 : index
      %13 = vector.load %arg6[%c0_10, %c0_11] : memref<8x128xf32, #tpu.memory_space<vmem>>, vector<8x128xf32>
      tpu.vector_store %arg6[%c0_10, %c0_11], %12 {strides = array<i32>} : memref<8x128xf32, #tpu.memory_space<vmem>>, vector<8x128xf32>,
    } else {
    }
    %c0 = arith.constant 0 : index
    %c0_1 = arith.constant 0 : index
    %3 = vector.load %arg6[%c0, %c0_1] : memref<8x128xf32, #tpu.memory_space<vmem>>, vector<8x128xf32>
    %c0_2 = arith.constant 0 : index
    %c0_3 = arith.constant 0 : index
    %4 = vector.load %arg3[%c0_2, %c0_3] : memref<8x512xbf16, #tpu.memory_space<vmem>>, vector<8x512xbf16>
    %c0_4 = arith.constant 0 : index
    %c0_5 = arith.constant 0 : index
    %5 = vector.load %arg4[%c0_4, %c0_5] : memref<512x128xbf16, #tpu.memory_space<vmem>>, vector<512x128xbf16>
    %cst = arith.constant dense<0.000000e+00> : vector<8x128xf32>
    %6 = tpu.matmul %4, %5, %cst {dimension_numbers = #tpu.dot_dimension_numbers<[1], [0], [0], [1], [0, 0, 1, 1], [], []>} : vector<8x512xbf16>, vector<512x128xbf16>, vector<8x128xf32> -> vector<8x128xf32>
    %7 = arith.addf %3, %6 : vector<8x128xf32>
    %c0_6 = arith.constant 0 : index
    %c0_7 = arith.constant 0 : index
    %8 = vector.load %arg6[%c0_6, %c0_7] : memref<8x128xf32, #tpu.memory_space<vmem>>, vector<8x128xf32>
    tpu.vector_store %arg6[%c0_6, %c0_7], %7 {strides = array<i32>} : memref<8x128xf32, #tpu.memory_space<vmem>>, vector<8x128xf32>,
    %c18_i32 = arith.constant 18 : i32
    %9 = arith.cmpi eq, %arg2, %c18_i32 : i32
    %10 = arith.extui %9 : i1 to i32
    %c0_i32_8 = arith.constant 0 : i32
    %11 = arith.cmpi ne, %10, %c0_i32_8 : i32
    scf.if %11 {
      %c0_9 = arith.constant 0 : index
      %c0_10 = arith.constant 0 : index
      %12 = vector.load %arg6[%c0_9, %c0_10] : memref<8x128xf32, #tpu.memory_space<vmem>>, vector<8x128xf32>
      %c0_11 = arith.constant 0 : index
      %c0_12 = arith.constant 0 : index
      %13 = vector.load %arg5[%c0_11, %c0_12] : memref<8x128xf32, #tpu.memory_space<vmem>>, vector<1x128xf32>
      %14 = vector.broadcast %13 : vector<1x128xf32> to vector<8x128xf32>
      %15 = arith.addf %12, %14 : vector<8x128xf32>
      %c0_13 = arith.constant 0 : index
      %c0_14 = arith.constant 0 : index
      %16 = vector.load %arg6[%c0_13, %c0_14] : memref<8x128xf32, #tpu.memory_space<vmem>>, vector<8x128xf32>
      tpu.vector_store %arg6[%c0_13, %c0_14], %15 {strides = array<i32>} : memref<8x128xf32, #tpu.memory_space<vmem>>, vector<8x128xf32>,
    } else {
    }
    return
  }
  func.func @transform_0(%arg0: i32, %arg1: i32, %arg2: i32) -> (i32, i32) {
    %c0_i32 = arith.constant 0 : i32
    return %arg0, %arg2 : i32, i32
  }
  func.func @transform_1(%arg0: i32, %arg1: i32, %arg2: i32) -> (i32, i32) {
    %c0_i32 = arith.constant 0 : i32
    return %arg2, %arg1 : i32, i32
  }
  func.func @transform_2(%arg0: i32, %arg1: i32, %arg2: i32) -> (i32, i32) {
    %c0_i32 = arith.constant 0 : i32
    %c0_i32_0 = arith.constant 0 : i32
    return %c0_i32, %arg1 : i32, i32
  }
  func.func @transform_3(%arg0: i32, %arg1: i32, %arg2: i32) -> (i32, i32) {
    %c0_i32 = arith.constant 0 : i32
    return %arg0, %arg1 : i32, i32
  }
}

module attributes {stable_mosaic.version = 11 : i64} {
  func.func @_softmax_kernel(%arg0: memref<3x256xf32, #tpu.memory_space<vmem>>, %arg1: memref<3x256xf32, #tpu.memory_space<vmem>>) attributes {dimension_semantics = [], scalar_prefetch = 0 : i64, scratch_operands = 0 : i64, tpu.core_type = #tpu.core_type<tc>} {
    %c0 = arith.constant 0 : index
    %c0_0 = arith.constant 0 : index
    %0 = vector.load %arg0[%c0, %c0_0] : memref<3x256xf32, #tpu.memory_space<vmem>>, vector<3x256xf32>
    %cst = arith.constant dense<0xFF800000> : vector<3xf32>
    %1 = vector.multi_reduction <maximumf>, %0, %cst [1] : vector<3x256xf32> to vector<3xf32>
    %2 = vector.shape_cast %1 : vector<3xf32> to vector<3x1xf32>
    %3 = vector.broadcast %2 : vector<3x1xf32> to vector<3x256xf32>
    %4 = arith.subf %0, %3 : vector<3x256xf32>
    %5 = math.exp %4 : vector<3x256xf32>
    %cst_1 = arith.constant dense<0.000000e+00> : vector<3xf32>
    %6 = vector.multi_reduction <add>, %5, %cst_1 [1] : vector<3x256xf32> to vector<3xf32>
    %7 = vector.shape_cast %6 : vector<3xf32> to vector<3x1xf32>
    %8 = vector.broadcast %7 : vector<3x1xf32> to vector<3x256xf32>
    %9 = arith.divf %5, %8 : vector<3x256xf32>
    %c0_2 = arith.constant 0 : index
    %c0_3 = arith.constant 0 : index
    %10 = vector.load %arg1[%c0_2, %c0_3] : memref<3x256xf32, #tpu.memory_space<vmem>>, vector<3x256xf32>
    tpu.vector_store %arg1[%c0_2, %c0_3], %9 {strides = array<i32>} : memref<3x256xf32, #tpu.memory_space<vmem>>, vector<3x256xf32>,
    return
  }
}

</mosaic_0001>

<llo_original>
// kernel: squeezenet_forward.49
$region0: #{squeezenet_forward.49}
  #allocation0 [shape = 'u32[]', space=smem, size = 0x4, offset = 0x4, fixed_abs, tag = 'smem constant byte address 0x4 - core index']
  #allocation1 [shape = 'u32[144,128]{1,0:T(1,128)}', space=vmem, size = 0x12000, scoped, tag = 'internal scratch']
  %s0 = inlined_call_operand.vmem [shape: f32[64,48], index: 0, kind: input, shape index: {}]
  %s1 = inlined_call_operand.vmem [shape: f32[1,48], index: 1, kind: output, shape index: {}]
  %s2 = sld [smem:[#allocation0]]
  $region14: #{squeezenet_forward.49} parent=0
    _
  %s4 = ssub.s32 1, %s2
  %s5 = scalar_select 0, %s4, %s2
  // Predicated region
  $region2: #{squeezenet_forward.49} parent=0 // pred_check
    _
  $region3: #{squeezenet_forward.49} parent=0 // pred_check_branch
    %7 = sbr.rel (0) target = $region5
  $region4: #{squeezenet_forward.49} parent=0 // pred_region
    _
  $region5: #{squeezenet_forward.49} parent=0 // pred_fallthru
    _
  %v8 = vld [vmem:[%s0] sm:$0xff]
  %v9 = vld [vmem:[%s0 + $0x8] sm:$0xff]
  %v10 = vld [vmem:[%s0 + $0x10] sm:$0xff]
  %v11 = vld [vmem:[%s0 + $0x18] sm:$0xff]
  %v12 = vld [vmem:[%s0 + $0x20] sm:$0xff]
  %v13 = vld [vmem:[%s0 + $0x28] sm:$0xff]
  %v14 = vld [vmem:[%s0 + $0x30] sm:$0xff]
  %v15 = vld [vmem:[%s0 + $0x38] sm:$0xff]
  %vm16 = vcmask 392192
  %v17 = vsel %vm16, %v8, -inf
  %v18 = vsel %vm16, %v9, -inf
  %v19 = vsel %vm16, %v10, -inf
  %v20 = vsel %vm16, %v11, -inf
  %v21 = vsel %vm16, %v12, -inf
  %v22 = vmax.f32 %v17, %v21
  %v23 = vsel %vm16, %v13, -inf
  %v24 = vmax.f32 %v18, %v23
  %v25 = vsel %vm16, %v14, -inf
  %v26 = vmax.f32 %v19, %v25
  %v27 = vsel %vm16, %v15, -inf
  %v28 = vmax.f32 %v20, %v27
  %v29 = vmax.f32 %v22, %v24
  %v30 = vmax.f32 %v26, %v28
  %v31 = vmax.f32 %v29, %v30
  %v32 = vrot.slane %v31, 4
  %v33 = vmax.f32 %v31, %v32
  %v34 = vrot.slane %v33, 2
  %v35 = vmax.f32 %v33, %v34
  %v36 = vrot.slane %v35, 1
  %v37 = vmax.f32 %v35, %v36
  %vm38 = vcmask 385024
  %39 = vst.msk [vmem:[%s1] sm:$0x1] %vm38, %v37
  // Predicated region
  $region6: #{squeezenet_forward.49} parent=0 // pred_check
    _
  $region7: #{squeezenet_forward.49} parent=0 // pred_check_branch
    %41 = sbr.rel (0) target = $region9
  $region8: #{squeezenet_forward.49} parent=0 // pred_region
    _
  $region9: #{squeezenet_forward.49} parent=0 // pred_fallthru
    _
  // Predicated region
  $region10: #{squeezenet_forward.49} parent=0 // pred_check
    _
  $region11: #{squeezenet_forward.49} parent=0 // pred_check_branch
    %43 = sbr.rel (0) target = $region13
  $region12: #{squeezenet_forward.49} parent=0 // pred_region
    _
  $region13: #{squeezenet_forward.49} parent=0 // pred_fallthru
    _

// kernel: squeezenet_forward.50
$region0: #{squeezenet_forward.50}
  #allocation0 [shape = 'u32[]', space=smem, size = 0x4, offset = 0x4, fixed_abs, tag = 'smem constant byte address 0x4 - core index']
  #allocation1 [shape = 'u32[144,128]{1,0:T(1,128)}', space=vmem, size = 0x12000, scoped, tag = 'internal scratch']
  %s0 = inlined_call_operand.vmem [shape: f32[4,27], index: 0, kind: input, shape index: {}]
  %s1 = inlined_call_operand.vmem [shape: f32[1,27], index: 1, kind: output, shape index: {}]
  %s2 = sld [smem:[#allocation0]]
  $region14: #{squeezenet_forward.50} parent=0
    _
  %s4 = ssub.s32 1, %s2
  %s5 = scalar_select 0, %s4, %s2
  // Predicated region
  $region2: #{squeezenet_forward.50} parent=0 // pred_check
    _
  $region3: #{squeezenet_forward.50} parent=0 // pred_check_branch
    %7 = sbr.rel (0) target = $region5
  $region4: #{squeezenet_forward.50} parent=0 // pred_region
    _
  $region5: #{squeezenet_forward.50} parent=0 // pred_fallthru
    _
  %v8 = vld [vmem:[%s0] sm:$0xf]
  %vm9 = vcmask 216064
  %v10 = vsel %vm9, %v8, -inf
  %v11 = vrot.slane %v10, 4
  %v12 = vmax.f32 %v10, %v11
  %v13 = vrot.slane %v12, 2
  %v14 = vmax.f32 %v12, %v13
  %v15 = vrot.slane %v14, 1
  %v16 = vmax.f32 %v14, %v15
  %vm17 = vcmask 212992
  %18 = vst.msk [vmem:[%s1] sm:$0x1] %vm17, %v16
  // Predicated region
  $region6: #{squeezenet_forward.50} parent=0 // pred_check
    _
  $region7: #{squeezenet_forward.50} parent=0 // pred_check_branch
    %20 = sbr.rel (0) target = $region9
  $region8: #{squeezenet_forward.50} parent=0 // pred_region
    _
  $region9: #{squeezenet_forward.50} parent=0 // pred_fallthru
    _
  // Predicated region
  $region10: #{squeezenet_forward.50} parent=0 // pred_check
    _
  $region11: #{squeezenet_forward.50} parent=0 // pred_check_branch
    %22 = sbr.rel (0) target = $region13
  $region12: #{squeezenet_forward.50} parent=0 // pred_region
    _
  $region13: #{squeezenet_forward.50} parent=0 // pred_fallthru
    _

// kernel: squeezenet_forward.28
$region0: #{squeezenet_forward.28}
  #allocation0 [shape = 'u32[]', space=smem, size = 0x4, offset = 0x4, fixed_abs, tag = 'smem constant byte address 0x4 - core index']
  #allocation1 [shape = 'u32[144,128]{1,0:T(1,128)}', space=vmem, size = 0x12000, scoped, tag = 'internal scratch']
  %s0 = inlined_call_operand.vmem [shape: bf16[256,128], index: 0, kind: input, shape index: {}]
  %s1 = inlined_call_operand.hbm [shape: bf16[128,128], index: 1, kind: input, shape index: {}]
  %s2 = inlined_call_operand.vmem [shape: f32[8,128], index: 2, kind: input, shape index: {}]
  %s3 = inlined_call_operand.vmem [shape: f32[256,128], index: 3, kind: output, shape index: {}]
  %s4 = sld [smem:[#allocation0]]
  $region57: #{squeezenet_forward.28} parent=0
    _
  %s6 = ssub.s32 1, %s4
  %s7 = scalar_select 0, %s6, %s4
  $region1: #{squeezenet_forward.28} parent=0
    #allocation2 [shape = 'u8[32768]{0}', space=vmem, size = 0x8000, scoped, tag = 'input window, operand 1, single buffered']
    #allocation3 [shape = 's32[2]{0}', space=sflag, size = 0x8, scoped, tag = 'scoped memory for squeezenet_forward.28']
    %8 = vsyncpa [#allocation3], 0
    loop: start=0, step=1, limit=4
    $region2: #{squeezenet_forward.28} parent=1 // loop_pre_header
      _
    $region3: #{squeezenet_forward.28} parent=1 // loop_header
      %s10 = sphi 0, %s14
      %p11 = scmp.ge.s32.totalorder %s10, 4
      %s17 = sphi 0, %s36
      %s18 = sphi 0, %s32
      %s19 = sphi 0, %s28
      %s20 = sphi 0, %s17
      %s21 = sphi 0, %s18
      %s22 = sphi 0, %s19
      %s23 = sphi 0, %s20
      %s24 = sphi 0, %s21
      %s25 = sphi 0, %s22
      %s41 = sphi 0, %s43
      %s44 = sphi 0, %s41
      %s45 = sphi 0, %s44
      %s61 = sphi 0, %s45
      %s69 = sphi 0, %s71
      %s72 = sphi 0, %s69
      %s73 = sphi 0, %s72
      %s89 = sphi 0, %s73
      %s95 = sphi 0, %s97
      %s98 = sphi 0, %s95
      %s99 = sphi 0, %s98
      %s115 = sphi 0, %s99
      %s123 = sphi 0, %s125
      %s126 = sphi 0, %s123
      %s127 = sphi 0, %s126
      %s143 = sphi 0, %s127
    $region4: #{squeezenet_forward.28} parent=1 // loop_header_branch
      %13 = sbr.rel (%p11) target = $region8
    $region5: #{squeezenet_forward.28} parent=1 // loop_body
      %s15 = ssub.s32 %s10, 1
      %s16 = ssub.s32 %s10, 2
      %s26 = sadd.s32 1, %s19
      %p27 = scmp.ge.s32.totalorder %s26, 1
      %s28 = scalar_select %p27, 0, %s26
      %s29 = sadd.s32 1, %s18
      %s30 = scalar_select %p27, %s29, %s18
      %p31 = scmp.ge.s32.totalorder %s30, 1
      %s32 = scalar_select %p31, 0, %s30
      %s33 = sadd.s32 1, %s17
      %s34 = scalar_select %p31, %s33, %s17
      %p35 = scmp.ge.s32.totalorder %s34, 2
      %s36 = scalar_select %p35, 0, %s34
      %s37 = ssub.s32 %s17, %s36
      %s38 = ssub.s32 %s19, %s28
      %s39 = sor.u32 %s37, %s38
      %p40 = scmp.eq.s32.totalorder %s39, 0
      %s42 = sadd.s32 %s41, 1
      %s43 = scalar_select %p40, %s41, %s42
      %p46 = pneg %p40
      %p47 = scmp.eq.s32.totalorder %s10, 1
      %p48 = por %p46, %p47
      %p49 = scmp.ne.s32.totalorder %s41, %s44
      %p50 = scmp.eq.s32.totalorder %s10, 0
      %p51 = por %p49, %p50
      %p52 = scmp.ne.s32.totalorder %s41, %s44
      %p53 = scmp.eq.s32.totalorder %s15, 1
      %p54 = por %p52, %p53
      %p55 = scmp.ne.s32.totalorder %s44, %s45
      %p56 = scmp.eq.s32.totalorder %s15, 0
      %p57 = por %p55, %p56
      %p58 = scmp.ne.s32.totalorder %s44, %s45
      %p59 = scmp.eq.s32.totalorder %s16, 1
      %p60 = por %p58, %p59
      %p62 = scmp.ne.s32.totalorder %s45, %s61
      %p63 = scmp.eq.s32.totalorder %s16, 0
      %p64 = por %p62, %p63
      %s65 = ssub.s32 %s19, %s28
      %s66 = ssub.s32 %s18, %s32
      %s67 = sor.u32 %s65, %s66
      %p68 = scmp.eq.s32.totalorder %s67, 0
      %s70 = sadd.s32 %s69, 1
      %s71 = scalar_select %p68, %s69, %s70
      %p74 = pneg %p68
      %p75 = scmp.eq.s32.totalorder %s10, 1
      %p76 = por %p74, %p75
      %p77 = scmp.ne.s32.totalorder %s69, %s72
      %p78 = scmp.eq.s32.totalorder %s10, 0
      %p79 = por %p77, %p78
      %p80 = scmp.ne.s32.totalorder %s69, %s72
      %p81 = scmp.eq.s32.totalorder %s15, 1
      %p82 = por %p80, %p81
      %p83 = scmp.ne.s32.totalorder %s72, %s73
      %p84 = scmp.eq.s32.totalorder %s15, 0
      %p85 = por %p83, %p84
      %p86 = scmp.ne.s32.totalorder %s72, %s73
      %p87 = scmp.eq.s32.totalorder %s16, 1
      %p88 = por %p86, %p87
      %p90 = scmp.ne.s32.totalorder %s73, %s89
      %p91 = scmp.eq.s32.totalorder %s16, 0
      %p92 = por %p90, %p91
      %s93 = ssub.s32 %s18, %s32
      %p94 = scmp.eq.s32.totalorder %s93, 0
      %s96 = sadd.s32 %s95, 1
      %s97 = scalar_select %p94, %s95, %s96
      %p100 = pneg %p94
      %p101 = scmp.eq.s32.totalorder %s10, 1
      %p102 = por %p100, %p101
      %p103 = scmp.ne.s32.totalorder %s95, %s98
      %p104 = scmp.eq.s32.totalorder %s10, 0
      %p105 = por %p103, %p104
      %p106 = scmp.ne.s32.totalorder %s95, %s98
      %p107 = scmp.eq.s32.totalorder %s15, 1
      %p108 = por %p106, %p107
      %p109 = scmp.ne.s32.totalorder %s98, %s99
      %p110 = scmp.eq.s32.totalorder %s15, 0
      %p111 = por %p109, %p110
      %p112 = scmp.ne.s32.totalorder %s98, %s99
      %p113 = scmp.eq.s32.totalorder %s16, 1
      %p114 = por %p112, %p113
      %p116 = scmp.ne.s32.totalorder %s99, %s115
      %p117 = scmp.eq.s32.totalorder %s16, 0
      %p118 = por %p116, %p117
      %s119 = ssub.s32 %s17, %s36
      %s120 = ssub.s32 %s18, %s32
      %s121 = sor.u32 %s119, %s120
      %p122 = scmp.eq.s32.totalorder %s121, 0
      %s124 = sadd.s32 %s123, 1
      %s125 = scalar_select %p122, %s123, %s124
      %p128 = pneg %p122
      %p129 = scmp.eq.s32.totalorder %s10, 1
      %p130 = por %p128, %p129
      %p131 = scmp.ne.s32.totalorder %s123, %s126
      %p132 = scmp.eq.s32.totalorder %s10, 0
      %p133 = por %p131, %p132
      %p134 = scmp.ne.s32.totalorder %s123, %s126
      %p135 = scmp.eq.s32.totalorder %s15, 1
      %p136 = por %p134, %p135
      %p137 = scmp.ne.s32.totalorder %s126, %s127
      %p138 = scmp.eq.s32.totalorder %s15, 0
      %p139 = por %p137, %p138
      %p140 = scmp.ne.s32.totalorder %s126, %s127
      %p141 = scmp.eq.s32.totalorder %s16, 1
      %p142 = por %p140, %p141
      %p144 = scmp.ne.s32.totalorder %s127, %s143
      %p145 = scmp.eq.s32.totalorder %s16, 0
      %p146 = por %p144, %p145
      %p147 = scmp.le.s32.totalorder 1, %s10
      %p148 = scmp.lt.s32.totalorder %s10, 3
      %p149 = pnand %p147, %p148
      %p150 = pneg %p149
      // Predicated region
      $region9: #{squeezenet_forward.28} parent=5 // pred_check
        _
      $region10: #{squeezenet_forward.28} parent=5 // pred_check_branch
        %152 = sbr.rel (%p149) target = $region12
      $region11: #{squeezenet_forward.28} parent=5 // pred_region
        %s153 = ssub.s32 %s10, 1
        // Predicated region
        $region13: #{squeezenet_forward.28} parent=11 // pred_check
          %p154 = pneg %p85
        $region14: #{squeezenet_forward.28} parent=11 // pred_check_branch
          %156 = sbr.rel (%p154) target = $region16
        $region15: #{squeezenet_forward.28} parent=11 // pred_region
          %s157 = smul.u32 16, %s22
          %s159 = ssub.s32 1024, 1024
          %160 = vsyncadd [#allocation3], %s159
          %s161 = sadd.s32 %s21, %s157
          %s162 = smul.addr %s161, 64
          %s163 = scalar_lea.hbm %s1, %s162
          %s164 = sshll.u32 [#allocation2], 4
          %s165 = int_to_ptr.vmem [resolvable:$true] %s164
          %170 = dma.hbm_to_vmem [thread:$0]  %s163, 1024, %s165, [#allocation3], 64, 64, 4
        $region16: #{squeezenet_forward.28} parent=11 // pred_fallthru
          _
        // Predicated region
        $region17: #{squeezenet_forward.28} parent=11 // pred_check
          %p171 = pneg %p111
        $region18: #{squeezenet_forward.28} parent=11 // pred_check_branch
          %173 = sbr.rel (%p171) target = $region20
        $region19: #{squeezenet_forward.28} parent=11 // pred_region
          %p174 = scmp.lt.s32.totalorder %s21, 0
          %s175 = scalar_select %p174, %s21, 0
          %s176 = smul.addr %s175, 8
          %s177 = scalar_lea.vmem %s2, %s176
        $region20: #{squeezenet_forward.28} parent=11 // pred_fallthru
          _
      $region12: #{squeezenet_forward.28} parent=5 // pred_fallthru
        _
      %p178 = scmp.lt.s32.totalorder %s10, 2
      // Predicated region
      $region21: #{squeezenet_forward.28} parent=5 // pred_check
        %p179 = pneg %p178
      $region22: #{squeezenet_forward.28} parent=5 // pred_check_branch
        %181 = sbr.rel (%p179) target = $region24
      $region23: #{squeezenet_forward.28} parent=5 // pred_region
        // Predicated region
        $region25: #{squeezenet_forward.28} parent=23 // pred_check
          %p182 = pneg %p51
        $region26: #{squeezenet_forward.28} parent=23 // pred_check_branch
          %184 = sbr.rel (%p182) target = $region28
        $region27: #{squeezenet_forward.28} parent=23 // pred_region
          %s185 = smul.u32 16, %s17
          %p186 = scmp.lt.s32.totalorder %s185, 31
          %s187 = scalar_select %p186, %s185, 31
          %p188 = scmp.lt.s32.totalorder %s19, 0
          %s189 = scalar_select %p188, %s19, 0
          %s190 = sadd.s32 %s189, %s187
          %s191 = smul.addr %s190, 4
          %s192 = scalar_lea.vmem %s0, %s191
          %s193 = smul.u32 16, %s17
        $region28: #{squeezenet_forward.28} parent=23 // pred_fallthru
          _
      $region24: #{squeezenet_forward.28} parent=5 // pred_fallthru
        _
      %p194 = scmp.le.s32.totalorder 1, %s10
      %p195 = scmp.lt.s32.totalorder %s10, 3
      %p196 = pnand %p194, %p195
      %p197 = pneg %p196
      // Predicated region
      $region29: #{squeezenet_forward.28} parent=5 // pred_check
        _
      $region30: #{squeezenet_forward.28} parent=5 // pred_check_branch
        %199 = sbr.rel (%p196) target = $region32
      $region31: #{squeezenet_forward.28} parent=5 // pred_region
        %s200 = ssub.s32 %s10, 1
        // Predicated region
        $region33: #{squeezenet_forward.28} parent=31 // pred_check
          %p201 = pneg %p85
        $region34: #{squeezenet_forward.28} parent=31 // pred_check_branch
          %203 = sbr.rel (%p201) target = $region36
        $region35: #{squeezenet_forward.28} parent=31 // pred_region
          %204 = dma.done [#allocation3], 1024
        $region36: #{squeezenet_forward.28} parent=31 // pred_fallthru
          _
        %s205 = smul.u32 16, %s20
        %p206 = scmp.lt.s32.totalorder %s205, 31
        %s207 = scalar_select %p206, %s205, 31
        %p208 = scmp.lt.s32.totalorder %s22, 0
        %s209 = scalar_select %p208, %s22, 0
        %s210 = sadd.s32 %s209, %s207
        %s211 = smul.addr %s210, 4
        %s212 = scalar_lea.vmem %s0, %s211
        %p213 = pneg %p57
        %p214 = pneg %p54
        %p215 = pneg %p85
        %p216 = pneg %p82
        %p217 = scmp.lt.s32.totalorder %s21, 0
        %s218 = scalar_select %p217, %s21, 0
        %s219 = smul.addr %s218, 8
        %s220 = scalar_lea.vmem %s2, %s219
        %p221 = pneg %p111
        %p222 = pneg %p108
        %p223 = pneg %p139
        %p224 = pneg %p136
        %s225 = smul.u32 16, %s20
        %p226 = scmp.lt.s32.totalorder %s225, 31
        %s227 = scalar_select %p226, %s225, 31
        %p228 = scmp.lt.s32.totalorder %s21, 0
        %s229 = scalar_select %p228, %s21, 0
        %s230 = sadd.s32 %s229, %s227
        %s231 = smul.addr %s230, 8
        %s232 = scalar_lea.vmem %s3, %s231
        %s233 = smul.u32 16, %s20
        %p234 = scmp.lt.s32.totalorder %s233, 31
        %s235 = scalar_select %p234, %s233, 31
        %p236 = scmp.lt.s32.totalorder %s22, 0
        %s237 = scalar_select %p236, %s22, 0
        %s238 = sadd.s32 %s237, %s235
        %s239 = smul.addr %s238, 4
        %s240 = scalar_lea.vmem %s0, %s239
        %s241 = smul.u32 16, %s20
        %s242 = smul.u32 16, %s22
        %p243 = scmp.lt.s32.totalorder %s21, 0
        %s244 = scalar_select %p243, %s21, 0
        %s245 = smul.addr %s244, 8
        %s246 = scalar_lea.vmem %s2, %s245
        %s247 = smul.u32 16, %s20
        %p248 = scmp.lt.s32.totalorder %s247, 31
        %s249 = scalar_select %p248, %s247, 31
        %p250 = scmp.lt.s32.totalorder %s21, 0
        %s251 = scalar_select %p250, %s21, 0
        %s252 = sadd.s32 %s251, %s249
        %s253 = smul.addr %s252, 8
        %s254 = scalar_lea.vmem %s3, %s253
        %s255 = smul.u32 16, %s20
        %p257 = scmp.eq.s32.totalorder %s22, 0
        // Predicated region
        $region37: #{squeezenet_forward.28} parent=31 // pred_check
          %p258 = pneg %p257
        $region38: #{squeezenet_forward.28} parent=31 // pred_check_branch
          %260 = sbr.rel (%p258) target = $region40
        $region39: #{squeezenet_forward.28} parent=31 // pred_region
          %261 = vst [vmem:[%s254] sm:$0xff] 0.0
          %262 = vst [vmem:[%s254 + $0x8] sm:$0xff] 0.0
          %263 = vst [vmem:[%s254 + $0x10] sm:$0xff] 0.0
          %264 = vst [vmem:[%s254 + $0x18] sm:$0xff] 0.0
          %265 = vst [vmem:[%s254 + $0x20] sm:$0xff] 0.0
          %266 = vst [vmem:[%s254 + $0x28] sm:$0xff] 0.0
          %267 = vst [vmem:[%s254 + $0x30] sm:$0xff] 0.0
          %268 = vst [vmem:[%s254 + $0x38] sm:$0xff] 0.0
          %269 = vst [vmem:[%s254 + $0x40] sm:$0xff] 0.0
          %270 = vst [vmem:[%s254 + $0x48] sm:$0xff] 0.0
          %271 = vst [vmem:[%s254 + $0x50] sm:$0xff] 0.0
          %272 = vst [vmem:[%s254 + $0x58] sm:$0xff] 0.0
          %273 = vst [vmem:[%s254 + $0x60] sm:$0xff] 0.0
          %274 = vst [vmem:[%s254 + $0x68] sm:$0xff] 0.0
          %275 = vst [vmem:[%s254 + $0x70] sm:$0xff] 0.0
          %276 = vst [vmem:[%s254 + $0x78] sm:$0xff] 0.0
        $region40: #{squeezenet_forward.28} parent=31 // pred_fallthru
          _
        %v277 = vld [vmem:[%s254] sm:$0xff]
        %v278 = vld [vmem:[%s254 + $0x8] sm:$0xff]
        %v279 = vld [vmem:[%s254 + $0x10] sm:$0xff]
        %v280 = vld [vmem:[%s254 + $0x18] sm:$0xff]
        %v281 = vld [vmem:[%s254 + $0x20] sm:$0xff]
        %v282 = vld [vmem:[%s254 + $0x28] sm:$0xff]
        %v283 = vld [vmem:[%s254 + $0x30] sm:$0xff]
        %v284 = vld [vmem:[%s254 + $0x38] sm:$0xff]
        %v285 = vld [vmem:[%s254 + $0x40] sm:$0xff]
        %v286 = vld [vmem:[%s254 + $0x48] sm:$0xff]
        %v287 = vld [vmem:[%s254 + $0x50] sm:$0xff]
        %v288 = vld [vmem:[%s254 + $0x58] sm:$0xff]
        %v289 = vld [vmem:[%s254 + $0x60] sm:$0xff]
        %v290 = vld [vmem:[%s254 + $0x68] sm:$0xff]
        %v291 = vld [vmem:[%s254 + $0x70] sm:$0xff]
        %v292 = vld [vmem:[%s254 + $0x78] sm:$0xff]
        %v293 = vld [vmem:[%s240] sm:$0xf]
        %v294 = vld [vmem:[%s240 + $0x4] sm:$0xf]
        %v295 = vld [vmem:[%s240 + $0x8] sm:$0xf]
        %v296 = vld [vmem:[%s240 + $0xc] sm:$0xf]
        %v297 = vld [vmem:[%s240 + $0x10] sm:$0xf]
        %v298 = vld [vmem:[%s240 + $0x14] sm:$0xf]
        %v299 = vld [vmem:[%s240 + $0x18] sm:$0xf]
        %v300 = vld [vmem:[%s240 + $0x1c] sm:$0xf]
        %v301 = vld [vmem:[%s240 + $0x20] sm:$0xf]
        %v302 = vld [vmem:[%s240 + $0x24] sm:$0xf]
        %v303 = vld [vmem:[%s240 + $0x28] sm:$0xf]
        %v304 = vld [vmem:[%s240 + $0x2c] sm:$0xf]
        %v305 = vld [vmem:[%s240 + $0x30] sm:$0xf]
        %v306 = vld [vmem:[%s240 + $0x34] sm:$0xf]
        %v307 = vld [vmem:[%s240 + $0x38] sm:$0xf]
        %v308 = vld [vmem:[%s240 + $0x3c] sm:$0xf]
        %v309 = vld [vmem:[#allocation2] sm:$0xf]
        %v310 = vld [vmem:[#allocation2 + $0x4] sm:$0xf]
        %v311 = vld [vmem:[#allocation2 + $0x8] sm:$0xf]
        %v312 = vld [vmem:[#allocation2 + $0xc] sm:$0xf]
        %v313 = vld [vmem:[#allocation2 + $0x10] sm:$0xf]
        %v314 = vld [vmem:[#allocation2 + $0x14] sm:$0xf]
        %v315 = vld [vmem:[#allocation2 + $0x18] sm:$0xf]
        %v316 = vld [vmem:[#allocation2 + $0x1c] sm:$0xf]
        %v317 = vld [vmem:[#allocation2 + $0x20] sm:$0xf]
        %v318 = vld [vmem:[#allocation2 + $0x24] sm:$0xf]
        %v319 = vld [vmem:[#allocation2 + $0x28] sm:$0xf]
        %v320 = vld [vmem:[#allocation2 + $0x2c] sm:$0xf]
        %v321 = vld [vmem:[#allocation2 + $0x30] sm:$0xf]
        %v322 = vld [vmem:[#allocation2 + $0x34] sm:$0xf]
        %v323 = vld [vmem:[#allocation2 + $0x38] sm:$0xf]
        %v324 = vld [vmem:[#allocation2 + $0x3c] sm:$0xf]
        %v341 = vunpack.c.l.b16 %v293
        %v342 = vunpack.c.l.b16 %v294
        %v343 = vunpack.c.l.b16 %v295
        %v344 = vunpack.c.l.b16 %v296
        %v345 = vunpack.c.l.b16 %v297
        %v346 = vunpack.c.l.b16 %v298
        %v347 = vunpack.c.l.b16 %v299
        %v348 = vunpack.c.l.b16 %v300
        %v349 = vunpack.c.l.b16 %v301
        %v350 = vunpack.c.l.b16 %v302
        %v351 = vunpack.c.l.b16 %v303
        %v352 = vunpack.c.l.b16 %v304
        %v353 = vunpack.c.l.b16 %v305
        %v354 = vunpack.c.l.b16 %v306
        %v355 = vunpack.c.l.b16 %v307
        %v356 = vunpack.c.l.b16 %v308
        %v357 = vpack.c.b16 %v342, %v341
        %v358 = vpack.c.b16 %v344, %v343
        %v359 = vpack.c.b16 %v346, %v345
        %v360 = vpack.c.b16 %v348, %v347
        %v361 = vpack.c.b16 %v350, %v349
        %v362 = vpack.c.b16 %v352, %v351
        %v363 = vpack.c.b16 %v354, %v353
        %v364 = vpack.c.b16 %v356, %v355
        %v389 = vunpack.c.l.b16 %v309
        %v390 = vunpack.c.l.b16 %v310
        %v391 = vunpack.c.l.b16 %v311
        %v392 = vunpack.c.l.b16 %v312
        %v393 = vunpack.c.l.b16 %v313
        %v394 = vunpack.c.l.b16 %v314
        %v395 = vunpack.c.l.b16 %v315
        %v396 = vunpack.c.l.b16 %v316
        %v397 = vunpack.c.l.b16 %v317
        %v398 = vunpack.c.l.b16 %v318
        %v399 = vunpack.c.l.b16 %v319
        %v400 = vunpack.c.l.b16 %v320
        %v401 = vunpack.c.l.b16 %v321
        %v402 = vunpack.c.l.b16 %v322
        %v403 = vunpack.c.l.b16 %v323
        %v404 = vunpack.c.l.b16 %v324
        %v405 = vpack.c.b16 %v390, %v389
        %v406 = vpack.c.b16 %v392, %v391
        %v407 = vpack.c.b16 %v394, %v393
        %v408 = vpack.c.b16 %v396, %v395
        %v409 = vpack.c.b16 %v398, %v397
        %v410 = vpack.c.b16 %v400, %v399
        %v411 = vpack.c.b16 %v402, %v401
        %v412 = vpack.c.b16 %v404, %v403
        %421 = vmatprep.subr.bf16.mxu0 0
        %422 = vmatpush1.bf16.msra.mxu0 %v405
        %423 = vmatprep.subr.bf16.mxu0 0
        %424 = vmatpush1.bf16.msra.mxu0 %v406
        %425 = vmatprep.subr.bf16.mxu0 0
        %426 = vmatpush1.bf16.msra.mxu0 %v407
        %427 = vmatprep.subr.bf16.mxu0 0
        %428 = vmatpush1.bf16.msra.mxu0 %v408
        %429 = vmatprep.subr.bf16.mxu0 0
        %430 = vmatpush1.bf16.msra.mxu0 %v409
        %431 = vmatprep.subr.bf16.mxu0 0
        %432 = vmatpush1.bf16.msra.mxu0 %v410
        %433 = vmatprep.subr.bf16.mxu0 0
        %434 = vmatpush1.bf16.msra.mxu0 %v411
        %435 = vmatprep.subr.bf16.mxu0 0
        %436 = vmatpush1.bf16.msra.mxu0 %v412
        %437 = vmatprep.subr.bf16.mxu0 0
        %438 = vmatpush1.bf16.msra.mxu0 0
        %439 = vmatprep.subr.bf16.mxu0 0
        %440 = vmatpush1.bf16.msra.mxu0 0
        %441 = vmatprep.subr.bf16.mxu0 0
        %442 = vmatpush1.bf16.msra.mxu0 0
        %443 = vmatprep.subr.bf16.mxu0 0
        %444 = vmatpush1.bf16.msra.mxu0 0
        %445 = vmatprep.subr.bf16.mxu0 0
        %446 = vmatpush1.bf16.msra.mxu0 0
        %447 = vmatprep.subr.bf16.mxu0 0
        %448 = vmatpush1.bf16.msra.mxu0 0
        %449 = vmatprep.subr.bf16.mxu0 0
        %450 = vmatpush1.bf16.msra.mxu0 0
        %451 = vmatprep.subr.bf16.mxu0 0
        %452 = vmatpush1.bf16.msra.mxu0 0
        %453 = vmatprep.mubr.bf16.mxu0 0
        %454 = vmatmul.mubr.bf16.gmra.mrb[0].mxu0 %v357
        %v455 = vpop.f32.mrb[0].mxu0
        %v456 = vadd.f32 0.0, %v455
        %v457 = vpop.f32.mrb[0].mxu0
        %v458 = vpop.f32.mrb[0].mxu0
        %v459 = vadd.f32 0.0, %v458
        %v460 = vpop.f32.mrb[0].mxu0
        %461 = vmatprep.mubr.bf16.mxu0 0
        %462 = vmatmul.mubr.bf16.gmra.mrb[0].mxu0 %v358
        %v463 = vpop.f32.mrb[0].mxu0
        %v464 = vadd.f32 0.0, %v463
        %v465 = vpop.f32.mrb[0].mxu0
        %v466 = vpop.f32.mrb[0].mxu0
        %v467 = vadd.f32 0.0, %v466
        %v468 = vpop.f32.mrb[0].mxu0
        %469 = vmatprep.mubr.bf16.mxu0 0
        %470 = vmatmul.mubr.bf16.gmra.mrb[0].mxu0 %v359
        %v471 = vpop.f32.mrb[0].mxu0
        %v472 = vadd.f32 0.0, %v471
        %v473 = vpop.f32.mrb[0].mxu0
        %v474 = vpop.f32.mrb[0].mxu0
        %v475 = vadd.f32 0.0, %v474
        %v476 = vpop.f32.mrb[0].mxu0
        %477 = vmatprep.mubr.bf16.mxu0 0
        %478 = vmatmul.mubr.bf16.gmra.mrb[0].mxu0 %v360
        %v479 = vpop.f32.mrb[0].mxu0
        %v480 = vadd.f32 0.0, %v479
        %v481 = vpop.f32.mrb[0].mxu0
        %v482 = vpop.f32.mrb[0].mxu0
        %v483 = vadd.f32 0.0, %v482
        %v484 = vpop.f32.mrb[0].mxu0
        %485 = vmatprep.mubr.bf16.mxu0 0
        %486 = vmatmul.mubr.bf16.gmra.mrb[0].mxu0 %v361
        %v487 = vpop.f32.mrb[0].mxu0
        %v488 = vadd.f32 0.0, %v487
        %v489 = vpop.f32.mrb[0].mxu0
        %v490 = vpop.f32.mrb[0].mxu0
        %v491 = vadd.f32 0.0, %v490
        %v492 = vpop.f32.mrb[0].mxu0
        %493 = vmatprep.mubr.bf16.mxu0 0
        %494 = vmatmul.mubr.bf16.gmra.mrb[0].mxu0 %v362
        %v495 = vpop.f32.mrb[0].mxu0
        %v496 = vadd.f32 0.0, %v495
        %v497 = vpop.f32.mrb[0].mxu0
        %v498 = vpop.f32.mrb[0].mxu0
        %v499 = vadd.f32 0.0, %v498
        %v500 = vpop.f32.mrb[0].mxu0
        %501 = vmatprep.mubr.bf16.mxu0 0
        %502 = vmatmul.mubr.bf16.gmra.mrb[0].mxu0 %v363
        %v503 = vpop.f32.mrb[0].mxu0
        %v504 = vadd.f32 0.0, %v503
        %v505 = vpop.f32.mrb[0].mxu0
        %v506 = vpop.f32.mrb[0].mxu0
        %v507 = vadd.f32 0.0, %v506
        %v508 = vpop.f32.mrb[0].mxu0
        %509 = vmatprep.mubr.bf16.mxu0 0
        %510 = vmatmul.mubr.bf16.gmra.mrb[0].mxu0 %v364
        %v511 = vpop.f32.mrb[0].mxu0
        %v512 = vadd.f32 0.0, %v511
        %v513 = vpop.f32.mrb[0].mxu0
        %v514 = vpop.f32.mrb[0].mxu0
        %v515 = vadd.f32 0.0, %v514
        %v516 = vpop.f32.mrb[0].mxu0
        %517 = vdwg.mxu0
        %v518 = vadd.f32 %v277, %v456
        %v519 = vadd.f32 %v278, %v459
        %v520 = vadd.f32 %v279, %v464
        %v521 = vadd.f32 %v280, %v467
        %v522 = vadd.f32 %v281, %v472
        %v523 = vadd.f32 %v282, %v475
        %v524 = vadd.f32 %v283, %v480
        %v525 = vadd.f32 %v284, %v483
        %v526 = vadd.f32 %v285, %v488
        %v527 = vadd.f32 %v286, %v491
        %v528 = vadd.f32 %v287, %v496
        %v529 = vadd.f32 %v288, %v499
        %v530 = vadd.f32 %v289, %v504
        %v531 = vadd.f32 %v290, %v507
        %v532 = vadd.f32 %v291, %v512
        %v533 = vadd.f32 %v292, %v515
        %534 = vst [vmem:[%s254] sm:$0xff] %v518
        %535 = vst [vmem:[%s254 + $0x8] sm:$0xff] %v519
        %536 = vst [vmem:[%s254 + $0x10] sm:$0xff] %v520
        %537 = vst [vmem:[%s254 + $0x18] sm:$0xff] %v521
        %538 = vst [vmem:[%s254 + $0x20] sm:$0xff] %v522
        %539 = vst [vmem:[%s254 + $0x28] sm:$0xff] %v523
        %540 = vst [vmem:[%s254 + $0x30] sm:$0xff] %v524
        %541 = vst [vmem:[%s254 + $0x38] sm:$0xff] %v525
        %542 = vst [vmem:[%s254 + $0x40] sm:$0xff] %v526
        %543 = vst [vmem:[%s254 + $0x48] sm:$0xff] %v527
        %544 = vst [vmem:[%s254 + $0x50] sm:$0xff] %v528
        %545 = vst [vmem:[%s254 + $0x58] sm:$0xff] %v529
        %546 = vst [vmem:[%s254 + $0x60] sm:$0xff] %v530
        %547 = vst [vmem:[%s254 + $0x68] sm:$0xff] %v531
        %548 = vst [vmem:[%s254 + $0x70] sm:$0xff] %v532
        %549 = vst [vmem:[%s254 + $0x78] sm:$0xff] %v533
        // Predicated region
        $region41: #{squeezenet_forward.28} parent=31 // pred_check
          %p550 = pneg %p257
        $region42: #{squeezenet_forward.28} parent=31 // pred_check_branch
          %552 = sbr.rel (%p550) target = $region44
        $region43: #{squeezenet_forward.28} parent=31 // pred_region
          %v553 = vld [vmem:[%s254] sm:$0xff]
          %v554 = vld [vmem:[%s254 + $0x8] sm:$0xff]
          %v555 = vld [vmem:[%s254 + $0x10] sm:$0xff]
          %v556 = vld [vmem:[%s254 + $0x18] sm:$0xff]
          %v557 = vld [vmem:[%s254 + $0x20] sm:$0xff]
          %v558 = vld [vmem:[%s254 + $0x28] sm:$0xff]
          %v559 = vld [vmem:[%s254 + $0x30] sm:$0xff]
          %v560 = vld [vmem:[%s254 + $0x38] sm:$0xff]
          %v561 = vld [vmem:[%s254 + $0x40] sm:$0xff]
          %v562 = vld [vmem:[%s254 + $0x48] sm:$0xff]
          %v563 = vld [vmem:[%s254 + $0x50] sm:$0xff]
          %v564 = vld [vmem:[%s254 + $0x58] sm:$0xff]
          %v565 = vld [vmem:[%s254 + $0x60] sm:$0xff]
          %v566 = vld [vmem:[%s254 + $0x68] sm:$0xff]
          %v567 = vld [vmem:[%s254 + $0x70] sm:$0xff]
          %v568 = vld [vmem:[%s254 + $0x78] sm:$0xff]
          %v569 = vld [vmem:[%s246] sm:$0x1]
          %v570 = vlaneseq
          %v571 = vshrl.u32 %v570, 7
          %v572 = vsub.s32 0, %v571
          %v573 = vrot.slane %v569, %v572
          %v574 = vadd.f32 %v553, %v573
          %v575 = vadd.f32 %v554, %v573
          %v576 = vadd.f32 %v555, %v573
          %v577 = vadd.f32 %v556, %v573
          %v578 = vadd.f32 %v557, %v573
          %v579 = vadd.f32 %v558, %v573
          %v580 = vadd.f32 %v559, %v573
          %v581 = vadd.f32 %v560, %v573
          %v582 = vadd.f32 %v561, %v573
          %v583 = vadd.f32 %v562, %v573
          %v584 = vadd.f32 %v563, %v573
          %v585 = vadd.f32 %v564, %v573
          %v586 = vadd.f32 %v565, %v573
          %v587 = vadd.f32 %v566, %v573
          %v588 = vadd.f32 %v567, %v573
          %v589 = vadd.f32 %v568, %v573
          %590 = vst [vmem:[%s254] sm:$0xff] %v574
          %591 = vst [vmem:[%s254 + $0x8] sm:$0xff] %v575
          %592 = vst [vmem:[%s254 + $0x10] sm:$0xff] %v576
          %593 = vst [vmem:[%s254 + $0x18] sm:$0xff] %v577
          %594 = vst [vmem:[%s254 + $0x20] sm:$0xff] %v578
          %595 = vst [vmem:[%s254 + $0x28] sm:$0xff] %v579
          %596 = vst [vmem:[%s254 + $0x30] sm:$0xff] %v580
          %597 = vst [vmem:[%s254 + $0x38] sm:$0xff] %v581
          %598 = vst [vmem:[%s254 + $0x40] sm:$0xff] %v582
          %599 = vst [vmem:[%s254 + $0x48] sm:$0xff] %v583
          %600 = vst [vmem:[%s254 + $0x50] sm:$0xff] %v584
          %601 = vst [vmem:[%s254 + $0x58] sm:$0xff] %v585
          %602 = vst [vmem:[%s254 + $0x60] sm:$0xff] %v586
          %603 = vst [vmem:[%s254 + $0x68] sm:$0xff] %v587
          %604 = vst [vmem:[%s254 + $0x70] sm:$0xff] %v588
          %605 = vst [vmem:[%s254 + $0x78] sm:$0xff] %v589
        $region44: #{squeezenet_forward.28} parent=31 // pred_fallthru
          _
        %s606 = smul.u32 16, %s20
        %p607 = scmp.lt.s32.totalorder %s606, 31
        %s608 = scalar_select %p607, %s606, 31
        %p609 = scmp.lt.s32.totalorder %s21, 0
        %s610 = scalar_select %p609, %s21, 0
        %s611 = sadd.s32 %s610, %s608
        %s612 = smul.addr %s611, 8
        %s613 = scalar_lea.vmem %s3, %s612
        // Predicated region
        $region45: #{squeezenet_forward.28} parent=31 // pred_check
          %p614 = pneg %p136
        $region46: #{squeezenet_forward.28} parent=31 // pred_check_branch
          %616 = sbr.rel (%p614) target = $region48
        $region47: #{squeezenet_forward.28} parent=31 // pred_region
          %s617 = smul.u32 16, %s20
        $region48: #{squeezenet_forward.28} parent=31 // pred_fallthru
          _
      $region32: #{squeezenet_forward.28} parent=5 // pred_fallthru
        _
      %p618 = scmp.le.s32.totalorder 2, %s10
      // Predicated region
      $region49: #{squeezenet_forward.28} parent=5 // pred_check
        %p619 = pneg %p618
      $region50: #{squeezenet_forward.28} parent=5 // pred_check_branch
        %621 = sbr.rel (%p619) target = $region52
      $region51: #{squeezenet_forward.28} parent=5 // pred_region
        %s622 = ssub.s32 %s10, 2
        // Predicated region
        $region53: #{squeezenet_forward.28} parent=51 // pred_check
          %p623 = pneg %p142
        $region54: #{squeezenet_forward.28} parent=51 // pred_check_branch
          %625 = sbr.rel (%p623) target = $region56
        $region55: #{squeezenet_forward.28} parent=51 // pred_region
          %s626 = smul.u32 16, %s23
          %p627 = scmp.lt.s32.totalorder %s626, 31
          %s628 = scalar_select %p627, %s626, 31
          %p629 = scmp.lt.s32.totalorder %s24, 0
          %s630 = scalar_select %p629, %s24, 0
          %s631 = sadd.s32 %s630, %s628
          %s632 = smul.addr %s631, 8
          %s633 = scalar_lea.vmem %s3, %s632
        $region56: #{squeezenet_forward.28} parent=51 // pred_fallthru
          _
      $region52: #{squeezenet_forward.28} parent=5 // pred_fallthru
        _
    $region6: #{squeezenet_forward.28} parent=1 // loop_footer
      %s14 = sadd.s32 1, %s10
    $region7: #{squeezenet_forward.28} parent=1 // loop_footer_branch
      %9 = sbr.rel target = $region3
    $region8: #{squeezenet_forward.28} parent=1 // loop_exit
      _
    %634 = vsyncpa [#allocation3], 1
    %s635 = scalar_lea.sflag [#allocation3], 1
    %636 = vsyncpa %s635, 1

// kernel: squeezenet_forward.51
$region0: #{squeezenet_forward.51}
  #allocation0 [shape = 'u32[]', space=smem, size = 0x4, offset = 0x4, fixed_abs, tag = 'smem constant byte address 0x4 - core index']
  #allocation1 [shape = 'u32[144,128]{1,0:T(1,128)}', space=vmem, size = 0x12000, scoped, tag = 'internal scratch']
  %s0 = inlined_call_operand.vmem [shape: f32[16,1536], index: 0, kind: input, shape index: {}]
  %s1 = inlined_call_operand.vmem [shape: f32[1,1536], index: 1, kind: output, shape index: {}]
  %s2 = sld [smem:[#allocation0]]
  $region14: #{squeezenet_forward.51} parent=0
    _
  %s4 = ssub.s32 1, %s2
  %s5 = scalar_select 0, %s4, %s2
  // Predicated region
  $region2: #{squeezenet_forward.51} parent=0 // pred_check
    _
  $region3: #{squeezenet_forward.51} parent=0 // pred_check_branch
    %7 = sbr.rel (0) target = $region5
  $region4: #{squeezenet_forward.51} parent=0 // pred_region
    _
  $region5: #{squeezenet_forward.51} parent=0 // pred_fallthru
    _
  %v8 = vld [vmem:[%s0] sm:$0xff]
  %v9 = vld [vmem:[%s0 + $0x8] sm:$0xff]
  %v10 = vld [vmem:[%s0 + $0x10] sm:$0xff]
  %v11 = vld [vmem:[%s0 + $0x18] sm:$0xff]
  %v12 = vld [vmem:[%s0 + $0x20] sm:$0xff]
  %v13 = vld [vmem:[%s0 + $0x28] sm:$0xff]
  %v14 = vld [vmem:[%s0 + $0x30] sm:$0xff]
  %v15 = vld [vmem:[%s0 + $0x38] sm:$0xff]
  %v16 = vld [vmem:[%s0 + $0x40] sm:$0xff]
  %v17 = vld [vmem:[%s0 + $0x48] sm:$0xff]
  %v18 = vld [vmem:[%s0 + $0x50] sm:$0xff]
  %v19 = vld [vmem:[%s0 + $0x58] sm:$0xff]
  %v20 = vld [vmem:[%s0 + $0x60] sm:$0xff]
  %v21 = vld [vmem:[%s0 + $0x68] sm:$0xff]
  %v22 = vld [vmem:[%s0 + $0x70] sm:$0xff]
  %v23 = vld [vmem:[%s0 + $0x78] sm:$0xff]
  %v24 = vld [vmem:[%s0 + $0x80] sm:$0xff]
  %v25 = vld [vmem:[%s0 + $0x88] sm:$0xff]
  %v26 = vld [vmem:[%s0 + $0x90] sm:$0xff]
  %v27 = vld [vmem:[%s0 + $0x98] sm:$0xff]
  %v28 = vld [vmem:[%s0 + $0xa0] sm:$0xff]
  %v29 = vld [vmem:[%s0 + $0xa8] sm:$0xff]
  %v30 = vld [vmem:[%s0 + $0xb0] sm:$0xff]
  %v31 = vld [vmem:[%s0 + $0xb8] sm:$0xff]
  %v32 = vmax.f32 %v8, %v20
  %v33 = vrot.slane %v32, 4
  %v34 = vmax.f32 %v32, %v33
  %v35 = vrot.slane %v34, 2
  %v36 = vmax.f32 %v34, %v35
  %v37 = vrot.slane %v36, 1
  %v38 = vmax.f32 %v36, %v37
  %v39 = vmax.f32 %v9, %v21
  %v40 = vrot.slane %v39, 4
  %v41 = vmax.f32 %v39, %v40
  %v42 = vrot.slane %v41, 2
  %v43 = vmax.f32 %v41, %v42
  %v44 = vrot.slane %v43, 1
  %v45 = vmax.f32 %v43, %v44
  %v46 = vmax.f32 %v10, %v22
  %v47 = vrot.slane %v46, 4
  %v48 = vmax.f32 %v46, %v47
  %v49 = vrot.slane %v48, 2
  %v50 = vmax.f32 %v48, %v49
  %v51 = vrot.slane %v50, 1
  %v52 = vmax.f32 %v50, %v51
  %v53 = vmax.f32 %v11, %v23
  %v54 = vrot.slane %v53, 4
  %v55 = vmax.f32 %v53, %v54
  %v56 = vrot.slane %v55, 2
  %v57 = vmax.f32 %v55, %v56
  %v58 = vrot.slane %v57, 1
  %v59 = vmax.f32 %v57, %v58
  %v60 = vmax.f32 %v12, %v24
  %v61 = vrot.slane %v60, 4
  %v62 = vmax.f32 %v60, %v61
  %v63 = vrot.slane %v62, 2
  %v64 = vmax.f32 %v62, %v63
  %v65 = vrot.slane %v64, 1
  %v66 = vmax.f32 %v64, %v65
  %v67 = vmax.f32 %v13, %v25
  %v68 = vrot.slane %v67, 4
  %v69 = vmax.f32 %v67, %v68
  %v70 = vrot.slane %v69, 2
  %v71 = vmax.f32 %v69, %v70
  %v72 = vrot.slane %v71, 1
  %v73 = vmax.f32 %v71, %v72
  %v74 = vmax.f32 %v14, %v26
  %v75 = vrot.slane %v74, 4
  %v76 = vmax.f32 %v74, %v75
  %v77 = vrot.slane %v76, 2
  %v78 = vmax.f32 %v76, %v77
  %v79 = vrot.slane %v78, 1
  %v80 = vmax.f32 %v78, %v79
  %v81 = vmax.f32 %v15, %v27
  %v82 = vrot.slane %v81, 4
  %v83 = vmax.f32 %v81, %v82
  %v84 = vrot.slane %v83, 2
  %v85 = vmax.f32 %v83, %v84
  %v86 = vrot.slane %v85, 1
  %v87 = vmax.f32 %v85, %v86
  %v88 = vmax.f32 %v16, %v28
  %v89 = vrot.slane %v88, 4
  %v90 = vmax.f32 %v88, %v89
  %v91 = vrot.slane %v90, 2
  %v92 = vmax.f32 %v90, %v91
  %v93 = vrot.slane %v92, 1
  %v94 = vmax.f32 %v92, %v93
  %v95 = vmax.f32 %v17, %v29
  %v96 = vrot.slane %v95, 4
  %v97 = vmax.f32 %v95, %v96
  %v98 = vrot.slane %v97, 2
  %v99 = vmax.f32 %v97, %v98
  %v100 = vrot.slane %v99, 1
  %v101 = vmax.f32 %v99, %v100
  %v102 = vmax.f32 %v18, %v30
  %v103 = vrot.slane %v102, 4
  %v104 = vmax.f32 %v102, %v103
  %v105 = vrot.slane %v104, 2
  %v106 = vmax.f32 %v104, %v105
  %v107 = vrot.slane %v106, 1
  %v108 = vmax.f32 %v106, %v107
  %v109 = vmax.f32 %v19, %v31
  %v110 = vrot.slane %v109, 4
  %v111 = vmax.f32 %v109, %v110
  %v112 = vrot.slane %v111, 2
  %v113 = vmax.f32 %v111, %v112
  %v114 = vrot.slane %v113, 1
  %v115 = vmax.f32 %v113, %v114
  %v128 = vcombine.low %v38, %v45
  %v129 = vcombine.low %v52, %v59
  %v130 = vcombine.low %v66, %v73
  %v131 = vcombine.low %v80, %v87
  %v133 = vunpack.c.l.s4 1966171168
  %v134 = vunpack.c.0.s8 %v133
  %v135 = vlaneseq
  %v136 = vshrl.u32 %v135, 7
  %v137 = vsub.s32 %v134, %v136
  %v138 = vrot.slane %v128, %v137
  %v140 = vunpack.c.l.s4 1966171168
  %v141 = vunpack.c.0.s8 %v140
  %v142 = vlaneseq
  %v143 = vshrl.u32 %v142, 7
  %v144 = vsub.s32 %v141, %v143
  %v145 = vrot.slane %v129, %v144
  %v147 = vunpack.c.l.s4 1966171168
  %v148 = vunpack.c.0.s8 %v147
  %v149 = vlaneseq
  %v150 = vshrl.u32 %v149, 7
  %v151 = vsub.s32 %v148, %v150
  %v152 = vrot.slane %v130, %v151
  %v154 = vunpack.c.l.s4 1966171168
  %v155 = vunpack.c.0.s8 %v154
  %v156 = vlaneseq
  %v157 = vshrl.u32 %v156, 7
  %v158 = vsub.s32 %v155, %v157
  %v159 = vrot.slane %v131, %v158
  %v160 = vcombine.low %v138, %v145
  %v161 = vcombine.low %v152, %v159
  %v163 = vunpack.c.l.s4 1966171168
  %v164 = vunpack.c.0.s8 %v163
  %v165 = vlaneseq
  %v166 = vshrl.u32 %v165, 7
  %v167 = vsub.s32 %v164, %v166
  %v168 = vrot.slane %v160, %v167
  %v170 = vunpack.c.l.s4 1966171168
  %v171 = vunpack.c.0.s8 %v170
  %v172 = vlaneseq
  %v173 = vshrl.u32 %v172, 7
  %v174 = vsub.s32 %v171, %v173
  %v175 = vrot.slane %v161, %v174
  %v176 = vcombine.low %v168, %v175
  %v177 = vcombine.low %v94, %v101
  %v178 = vcombine.low %v108, %v115
  %v180 = vunpack.c.l.s4 1966171168
  %v181 = vunpack.c.0.s8 %v180
  %v182 = vlaneseq
  %v183 = vshrl.u32 %v182, 7
  %v184 = vsub.s32 %v181, %v183
  %v185 = vrot.slane %v177, %v184
  %v187 = vunpack.c.l.s4 1966171168
  %v188 = vunpack.c.0.s8 %v187
  %v189 = vlaneseq
  %v190 = vshrl.u32 %v189, 7
  %v191 = vsub.s32 %v188, %v190
  %v192 = vrot.slane %v178, %v191
  %v193 = vcombine.low %v185, %v192
  %v195 = vunpack.c.l.s4 1966171168
  %v196 = vunpack.c.0.s8 %v195
  %v197 = vlaneseq
  %v198 = vshrl.u32 %v197, 7
  %v199 = vsub.s32 %v196, %v198
  %v200 = vrot.slane %v193, %v199
  %203 = vst [vmem:[%s1] sm:$0xff] %v176
  %v204 = vlaneseq
  %vm205 = vcmp.ge.s32.totalorder %v204, 0
  %vm206 = vcmp.lt.s32.totalorder %v204, 512
  %vm207 = vmand %vm205, %vm206
  %208 = vst.msk [vmem:[%s1 + $0x8] sm:$0xf] %vm207, %v200
  // Predicated region
  $region6: #{squeezenet_forward.51} parent=0 // pred_check
    _
  $region7: #{squeezenet_forward.51} parent=0 // pred_check_branch
    %210 = sbr.rel (0) target = $region9
  $region8: #{squeezenet_forward.51} parent=0 // pred_region
    _
  $region9: #{squeezenet_forward.51} parent=0 // pred_fallthru
    _
  // Predicated region
  $region10: #{squeezenet_forward.51} parent=0 // pred_check
    _
  $region11: #{squeezenet_forward.51} parent=0 // pred_check_branch
    %212 = sbr.rel (0) target = $region13
  $region12: #{squeezenet_forward.51} parent=0 // pred_region
    _
  $region13: #{squeezenet_forward.51} parent=0 // pred_fallthru
    _

// kernel: squeezenet_forward.30
$region0: #{squeezenet_forward.30}
  #allocation0 [shape = 'u32[]', space=smem, size = 0x4, offset = 0x4, fixed_abs, tag = 'smem constant byte address 0x4 - core index']
  #allocation1 [shape = 'u32[144,128]{1,0:T(1,128)}', space=vmem, size = 0x12000, scoped, tag = 'internal scratch']
  %s0 = inlined_call_operand.vmem [shape: bf16[56,128], index: 0, kind: input, shape index: {}]
  %s1 = inlined_call_operand.hbm [shape: bf16[128,128], index: 1, kind: input, shape index: {}]
  %s2 = inlined_call_operand.vmem [shape: f32[8,128], index: 2, kind: input, shape index: {}]
  %s3 = inlined_call_operand.vmem [shape: f32[56,128], index: 3, kind: output, shape index: {}]
  %s4 = sld [smem:[#allocation0]]
  $region34: #{squeezenet_forward.30} parent=0
    _
  %s6 = ssub.s32 1, %s4
  %s7 = scalar_select 0, %s6, %s4
  $region1: #{squeezenet_forward.30} parent=0
    #allocation2 [shape = 'u8[32768]{0}', space=vmem, size = 0x8000, scoped, tag = 'input window, operand 1, single buffered']
    #allocation3 [shape = 's32[1]{0}', space=sflag, size = 0x4, scoped, tag = 'scoped memory for squeezenet_forward.30']
    %8 = vsyncpa [#allocation3], 0
    // Predicated region
    $region2: #{squeezenet_forward.30} parent=1 // pred_check
      _
    $region3: #{squeezenet_forward.30} parent=1 // pred_check_branch
      %10 = sbr.rel (0) target = $region5
    $region4: #{squeezenet_forward.30} parent=1 // pred_region
      _
    $region5: #{squeezenet_forward.30} parent=1 // pred_fallthru
      _
    // Predicated region
    $region6: #{squeezenet_forward.30} parent=1 // pred_check
      _
    $region7: #{squeezenet_forward.30} parent=1 // pred_check_branch
      %12 = sbr.rel (0) target = $region9
    $region8: #{squeezenet_forward.30} parent=1 // pred_region
      %s14 = ssub.s32 1024, 1024
      %15 = vsyncadd [#allocation3], %s14
      %s16 = sshll.u32 [#allocation2], 4
      %s17 = int_to_ptr.vmem [resolvable:$true] %s16
      %22 = dma.hbm_to_vmem [thread:$0]  %s1, 1024, %s17, [#allocation3], 64, 64, 4
    $region9: #{squeezenet_forward.30} parent=1 // pred_fallthru
      _
    // Predicated region
    $region10: #{squeezenet_forward.30} parent=1 // pred_check
      _
    $region11: #{squeezenet_forward.30} parent=1 // pred_check_branch
      %24 = sbr.rel (0) target = $region13
    $region12: #{squeezenet_forward.30} parent=1 // pred_region
      _
    $region13: #{squeezenet_forward.30} parent=1 // pred_fallthru
      _
    // Predicated region
    $region14: #{squeezenet_forward.30} parent=1 // pred_check
      _
    $region15: #{squeezenet_forward.30} parent=1 // pred_check_branch
      %26 = sbr.rel (0) target = $region17
    $region16: #{squeezenet_forward.30} parent=1 // pred_region
      %27 = dma.done [#allocation3], 1024
    $region17: #{squeezenet_forward.30} parent=1 // pred_fallthru
      _
    %p29 = scmp.eq.s32.totalorder 0, 0
    // Predicated region
    $region18: #{squeezenet_forward.30} parent=1 // pred_check
      %p30 = pneg %p29
    $region19: #{squeezenet_forward.30} parent=1 // pred_check_branch
      %32 = sbr.rel (%p30) target = $region21
    $region20: #{squeezenet_forward.30} parent=1 // pred_region
      %33 = vst [vmem:[%s3] sm:$0xff] 0.0
      %34 = vst [vmem:[%s3 + $0x8] sm:$0xff] 0.0
      %35 = vst [vmem:[%s3 + $0x10] sm:$0xff] 0.0
      %36 = vst [vmem:[%s3 + $0x18] sm:$0xff] 0.0
      %37 = vst [vmem:[%s3 + $0x20] sm:$0xff] 0.0
      %38 = vst [vmem:[%s3 + $0x28] sm:$0xff] 0.0
      %39 = vst [vmem:[%s3 + $0x30] sm:$0xff] 0.0
    $region21: #{squeezenet_forward.30} parent=1 // pred_fallthru
      _
    %v40 = vld [vmem:[%s3] sm:$0xff]
    %v41 = vld [vmem:[%s3 + $0x8] sm:$0xff]
    %v42 = vld [vmem:[%s3 + $0x10] sm:$0xff]
    %v43 = vld [vmem:[%s3 + $0x18] sm:$0xff]
    %v44 = vld [vmem:[%s3 + $0x20] sm:$0xff]
    %v45 = vld [vmem:[%s3 + $0x28] sm:$0xff]
    %v46 = vld [vmem:[%s3 + $0x30] sm:$0xff]
    %v47 = vld [vmem:[%s0] sm:$0xf]
    %v48 = vld [vmem:[%s0 + $0x4] sm:$0xf]
    %v49 = vld [vmem:[%s0 + $0x8] sm:$0xf]
    %v50 = vld [vmem:[%s0 + $0xc] sm:$0xf]
    %v51 = vld [vmem:[%s0 + $0x10] sm:$0xf]
    %v52 = vld [vmem:[%s0 + $0x14] sm:$0xf]
    %v53 = vld [vmem:[%s0 + $0x18] sm:$0xf]
    %v54 = vld [vmem:[#allocation2] sm:$0xf]
    %v55 = vld [vmem:[#allocation2 + $0x4] sm:$0xf]
    %v56 = vld [vmem:[#allocation2 + $0x8] sm:$0xf]
    %v57 = vld [vmem:[#allocation2 + $0xc] sm:$0xf]
    %v58 = vld [vmem:[#allocation2 + $0x10] sm:$0xf]
    %v59 = vld [vmem:[#allocation2 + $0x14] sm:$0xf]
    %v60 = vld [vmem:[#allocation2 + $0x18] sm:$0xf]
    %v61 = vld [vmem:[#allocation2 + $0x1c] sm:$0xf]
    %v62 = vld [vmem:[#allocation2 + $0x20] sm:$0xf]
    %v63 = vld [vmem:[#allocation2 + $0x24] sm:$0xf]
    %v64 = vld [vmem:[#allocation2 + $0x28] sm:$0xf]
    %v65 = vld [vmem:[#allocation2 + $0x2c] sm:$0xf]
    %v66 = vld [vmem:[#allocation2 + $0x30] sm:$0xf]
    %v67 = vld [vmem:[#allocation2 + $0x34] sm:$0xf]
    %v68 = vld [vmem:[#allocation2 + $0x38] sm:$0xf]
    %v69 = vld [vmem:[#allocation2 + $0x3c] sm:$0xf]
    %v77 = vunpack.c.l.b16 %v47
    %v78 = vunpack.c.l.b16 %v48
    %v79 = vunpack.c.l.b16 %v49
    %v80 = vunpack.c.l.b16 %v50
    %v81 = vunpack.c.l.b16 %v51
    %v82 = vunpack.c.l.b16 %v52
    %v83 = vunpack.c.l.b16 %v53
    %v84 = vpack.c.b16 %v78, %v77
    %v85 = vpack.c.b16 %v80, %v79
    %v86 = vpack.c.b16 %v82, %v81
    %v87 = vpack.c.b16 %v83, %v83
    %v108 = vunpack.c.l.b16 %v54
    %v109 = vunpack.c.l.b16 %v55
    %v110 = vunpack.c.l.b16 %v56
    %v111 = vunpack.c.l.b16 %v57
    %v112 = vunpack.c.l.b16 %v58
    %v113 = vunpack.c.l.b16 %v59
    %v114 = vunpack.c.l.b16 %v60
    %v115 = vunpack.c.l.b16 %v61
    %v116 = vunpack.c.l.b16 %v62
    %v117 = vunpack.c.l.b16 %v63
    %v118 = vunpack.c.l.b16 %v64
    %v119 = vunpack.c.l.b16 %v65
    %v120 = vunpack.c.l.b16 %v66
    %v121 = vunpack.c.l.b16 %v67
    %v122 = vunpack.c.l.b16 %v68
    %v123 = vunpack.c.l.b16 %v69
    %v124 = vpack.c.b16 %v109, %v108
    %v125 = vpack.c.b16 %v111, %v110
    %v126 = vpack.c.b16 %v113, %v112
    %v127 = vpack.c.b16 %v115, %v114
    %v128 = vpack.c.b16 %v117, %v116
    %v129 = vpack.c.b16 %v119, %v118
    %v130 = vpack.c.b16 %v121, %v120
    %v131 = vpack.c.b16 %v123, %v122
    %140 = vmatprep.subr.bf16.mxu0 0
    %141 = vmatpush1.bf16.msra.mxu0 %v124
    %142 = vmatprep.subr.bf16.mxu0 0
    %143 = vmatpush1.bf16.msra.mxu0 %v125
    %144 = vmatprep.subr.bf16.mxu0 0
    %145 = vmatpush1.bf16.msra.mxu0 %v126
    %146 = vmatprep.subr.bf16.mxu0 0
    %147 = vmatpush1.bf16.msra.mxu0 %v127
    %148 = vmatprep.subr.bf16.mxu0 0
    %149 = vmatpush1.bf16.msra.mxu0 %v128
    %150 = vmatprep.subr.bf16.mxu0 0
    %151 = vmatpush1.bf16.msra.mxu0 %v129
    %152 = vmatprep.subr.bf16.mxu0 0
    %153 = vmatpush1.bf16.msra.mxu0 %v130
    %154 = vmatprep.subr.bf16.mxu0 0
    %155 = vmatpush1.bf16.msra.mxu0 %v131
    %156 = vmatprep.subr.bf16.mxu0 0
    %157 = vmatpush1.bf16.msra.mxu0 0
    %158 = vmatprep.subr.bf16.mxu0 0
    %159 = vmatpush1.bf16.msra.mxu0 0
    %160 = vmatprep.subr.bf16.mxu0 0
    %161 = vmatpush1.bf16.msra.mxu0 0
    %162 = vmatprep.subr.bf16.mxu0 0
    %163 = vmatpush1.bf16.msra.mxu0 0
    %164 = vmatprep.subr.bf16.mxu0 0
    %165 = vmatpush1.bf16.msra.mxu0 0
    %166 = vmatprep.subr.bf16.mxu0 0
    %167 = vmatpush1.bf16.msra.mxu0 0
    %168 = vmatprep.subr.bf16.mxu0 0
    %169 = vmatpush1.bf16.msra.mxu0 0
    %170 = vmatprep.subr.bf16.mxu0 0
    %171 = vmatpush1.bf16.msra.mxu0 0
    %172 = vmatprep.mubr.bf16.mxu0 0
    %173 = vmatmul.mubr.bf16.gmra.mrb[0].mxu0 %v84
    %v174 = vpop.f32.mrb[0].mxu0
    %v175 = vadd.f32 0.0, %v174
    %v176 = vpop.f32.mrb[0].mxu0
    %v177 = vpop.f32.mrb[0].mxu0
    %v178 = vadd.f32 0.0, %v177
    %v179 = vpop.f32.mrb[0].mxu0
    %180 = vmatprep.mubr.bf16.mxu0 0
    %181 = vmatmul.mubr.bf16.gmra.mrb[0].mxu0 %v85
    %v182 = vpop.f32.mrb[0].mxu0
    %v183 = vadd.f32 0.0, %v182
    %v184 = vpop.f32.mrb[0].mxu0
    %v185 = vpop.f32.mrb[0].mxu0
    %v186 = vadd.f32 0.0, %v185
    %v187 = vpop.f32.mrb[0].mxu0
    %188 = vmatprep.mubr.bf16.mxu0 0
    %189 = vmatmul.mubr.bf16.gmra.mrb[0].mxu0 %v86
    %v190 = vpop.f32.mrb[0].mxu0
    %v191 = vadd.f32 0.0, %v190
    %v192 = vpop.f32.mrb[0].mxu0
    %v193 = vpop.f32.mrb[0].mxu0
    %v194 = vadd.f32 0.0, %v193
    %v195 = vpop.f32.mrb[0].mxu0
    %196 = vmatprep.mubr.bf16.mxu0 0
    %197 = vmatmul.mubr.bf16.gmra.mrb[0].mxu0 %v87
    %v198 = vpop.f32.mrb[0].mxu0
    %v199 = vadd.f32 0.0, %v198
    %v200 = vpop.f32.mrb[0].mxu0
    %v201 = vpop.f32.mrb[0].mxu0
    %v202 = vpop.f32.mrb[0].mxu0
    %203 = vdwg.mxu0
    %v204 = vadd.f32 %v40, %v175
    %v205 = vadd.f32 %v41, %v178
    %v206 = vadd.f32 %v42, %v183
    %v207 = vadd.f32 %v43, %v186
    %v208 = vadd.f32 %v44, %v191
    %v209 = vadd.f32 %v45, %v194
    %v210 = vadd.f32 %v46, %v199
    %211 = vst [vmem:[%s3] sm:$0xff] %v204
    %212 = vst [vmem:[%s3 + $0x8] sm:$0xff] %v205
    %213 = vst [vmem:[%s3 + $0x10] sm:$0xff] %v206
    %214 = vst [vmem:[%s3 + $0x18] sm:$0xff] %v207
    %215 = vst [vmem:[%s3 + $0x20] sm:$0xff] %v208
    %216 = vst [vmem:[%s3 + $0x28] sm:$0xff] %v209
    %217 = vst [vmem:[%s3 + $0x30] sm:$0xff] %v210
    // Predicated region
    $region22: #{squeezenet_forward.30} parent=1 // pred_check
      %p218 = pneg %p29
    $region23: #{squeezenet_forward.30} parent=1 // pred_check_branch
      %220 = sbr.rel (%p218) target = $region25
    $region24: #{squeezenet_forward.30} parent=1 // pred_region
      %v221 = vld [vmem:[%s3] sm:$0xff]
      %v222 = vld [vmem:[%s3 + $0x8] sm:$0xff]
      %v223 = vld [vmem:[%s3 + $0x10] sm:$0xff]
      %v224 = vld [vmem:[%s3 + $0x18] sm:$0xff]
      %v225 = vld [vmem:[%s3 + $0x20] sm:$0xff]
      %v226 = vld [vmem:[%s3 + $0x28] sm:$0xff]
      %v227 = vld [vmem:[%s3 + $0x30] sm:$0xff]
      %v228 = vld [vmem:[%s2] sm:$0x1]
      %v229 = vlaneseq
      %v230 = vshrl.u32 %v229, 7
      %v231 = vsub.s32 0, %v230
      %v232 = vrot.slane %v228, %v231
      %v233 = vadd.f32 %v221, %v232
      %v234 = vadd.f32 %v222, %v232
      %v235 = vadd.f32 %v223, %v232
      %v236 = vadd.f32 %v224, %v232
      %v237 = vadd.f32 %v225, %v232
      %v238 = vadd.f32 %v226, %v232
      %v239 = vadd.f32 %v227, %v232
      %v240 = vmax.f32 %v233, 0.0
      %v241 = vmax.f32 %v234, 0.0
      %v242 = vmax.f32 %v235, 0.0
      %v243 = vmax.f32 %v236, 0.0
      %v244 = vmax.f32 %v237, 0.0
      %v245 = vmax.f32 %v238, 0.0
      %v246 = vmax.f32 %v239, 0.0
      %247 = vst [vmem:[%s3] sm:$0xff] %v240
      %248 = vst [vmem:[%s3 + $0x8] sm:$0xff] %v241
      %249 = vst [vmem:[%s3 + $0x10] sm:$0xff] %v242
      %250 = vst [vmem:[%s3 + $0x18] sm:$0xff] %v243
      %251 = vst [vmem:[%s3 + $0x20] sm:$0xff] %v244
      %252 = vst [vmem:[%s3 + $0x28] sm:$0xff] %v245
      %253 = vst [vmem:[%s3 + $0x30] sm:$0xff] %v246
    $region25: #{squeezenet_forward.30} parent=1 // pred_fallthru
      _
    // Predicated region
    $region26: #{squeezenet_forward.30} parent=1 // pred_check
      _
    $region27: #{squeezenet_forward.30} parent=1 // pred_check_branch
      %255 = sbr.rel (0) target = $region29
    $region28: #{squeezenet_forward.30} parent=1 // pred_region
      _
    $region29: #{squeezenet_forward.30} parent=1 // pred_fallthru
      _
    // Predicated region
    $region30: #{squeezenet_forward.30} parent=1 // pred_check
      _
    $region31: #{squeezenet_forward.30} parent=1 // pred_check_branch
      %257 = sbr.rel (0) target = $region33
    $region32: #{squeezenet_forward.30} parent=1 // pred_region
      _
    $region33: #{squeezenet_forward.30} parent=1 // pred_fallthru
      _
    %258 = vsyncpa [#allocation3], 1

// kernel: squeezenet_forward.29
$region0: #{squeezenet_forward.29}
  #allocation0 [shape = 'u32[]', space=smem, size = 0x4, offset = 0x4, fixed_abs, tag = 'smem constant byte address 0x4 - core index']
  #allocation1 [shape = 'u32[144,128]{1,0:T(1,128)}', space=vmem, size = 0x12000, scoped, tag = 'internal scratch']
  %s0 = inlined_call_operand.vmem [shape: f32[9,4704], index: 0, kind: input, shape index: {}]
  %s1 = inlined_call_operand.vmem [shape: f32[1,4704], index: 1, kind: output, shape index: {}]
  %s2 = sld [smem:[#allocation0]]
  $region14: #{squeezenet_forward.29} parent=0
    _
  %s4 = ssub.s32 1, %s2
  %s5 = scalar_select 0, %s4, %s2
  // Predicated region
  $region2: #{squeezenet_forward.29} parent=0 // pred_check
    _
  $region3: #{squeezenet_forward.29} parent=0 // pred_check_branch
    %7 = sbr.rel (0) target = $region5
  $region4: #{squeezenet_forward.29} parent=0 // pred_region
    _
  $region5: #{squeezenet_forward.29} parent=0 // pred_fallthru
    _
  %v8 = vld [vmem:[%s0] sm:$0xff]
  %v9 = vld [vmem:[%s0 + $0x8] sm:$0xff]
  %v10 = vld [vmem:[%s0 + $0x10] sm:$0xff]
  %v11 = vld [vmem:[%s0 + $0x18] sm:$0xff]
  %v12 = vld [vmem:[%s0 + $0x20] sm:$0xff]
  %v13 = vld [vmem:[%s0 + $0x28] sm:$0xff]
  %v14 = vld [vmem:[%s0 + $0x30] sm:$0xff]
  %v15 = vld [vmem:[%s0 + $0x38] sm:$0xff]
  %v16 = vld [vmem:[%s0 + $0x40] sm:$0xff]
  %v17 = vld [vmem:[%s0 + $0x48] sm:$0xff]
  %v18 = vld [vmem:[%s0 + $0x50] sm:$0xff]
  %v19 = vld [vmem:[%s0 + $0x58] sm:$0xff]
  %v20 = vld [vmem:[%s0 + $0x60] sm:$0xff]
  %v21 = vld [vmem:[%s0 + $0x68] sm:$0xff]
  %v22 = vld [vmem:[%s0 + $0x70] sm:$0xff]
  %v23 = vld [vmem:[%s0 + $0x78] sm:$0xff]
  %v24 = vld [vmem:[%s0 + $0x80] sm:$0xff]
  %v25 = vld [vmem:[%s0 + $0x88] sm:$0xff]
  %v26 = vld [vmem:[%s0 + $0x90] sm:$0xff]
  %v27 = vld [vmem:[%s0 + $0x98] sm:$0xff]
  %v28 = vld [vmem:[%s0 + $0xa0] sm:$0xff]
  %v29 = vld [vmem:[%s0 + $0xa8] sm:$0xff]
  %v30 = vld [vmem:[%s0 + $0xb0] sm:$0xff]
  %v31 = vld [vmem:[%s0 + $0xb8] sm:$0xff]
  %v32 = vld [vmem:[%s0 + $0xc0] sm:$0xff]
  %v33 = vld [vmem:[%s0 + $0xc8] sm:$0xff]
  %v34 = vld [vmem:[%s0 + $0xd0] sm:$0xff]
  %v35 = vld [vmem:[%s0 + $0xd8] sm:$0xff]
  %v36 = vld [vmem:[%s0 + $0xe0] sm:$0xff]
  %v37 = vld [vmem:[%s0 + $0xe8] sm:$0xff]
  %v38 = vld [vmem:[%s0 + $0xf0] sm:$0xff]
  %v39 = vld [vmem:[%s0 + $0xf8] sm:$0xff]
  %v40 = vld [vmem:[%s0 + $0x100] sm:$0xff]
  %v41 = vld [vmem:[%s0 + $0x108] sm:$0xff]
  %v42 = vld [vmem:[%s0 + $0x110] sm:$0xff]
  %v43 = vld [vmem:[%s0 + $0x118] sm:$0xff]
  %v44 = vld [vmem:[%s0 + $0x120] sm:$0xff]
  %v45 = vld [vmem:[%s0 + $0x128] sm:$0x1]
  %v46 = vld [vmem:[%s0 + $0x130] sm:$0x1]
  %v47 = vld [vmem:[%s0 + $0x138] sm:$0x1]
  %v48 = vld [vmem:[%s0 + $0x140] sm:$0x1]
  %v49 = vld [vmem:[%s0 + $0x148] sm:$0x1]
  %v50 = vld [vmem:[%s0 + $0x150] sm:$0x1]
  %v51 = vld [vmem:[%s0 + $0x158] sm:$0x1]
  %v52 = vld [vmem:[%s0 + $0x160] sm:$0x1]
  %v53 = vld [vmem:[%s0 + $0x168] sm:$0x1]
  %v54 = vld [vmem:[%s0 + $0x170] sm:$0x1]
  %v55 = vld [vmem:[%s0 + $0x178] sm:$0x1]
  %v56 = vld [vmem:[%s0 + $0x180] sm:$0x1]
  %v57 = vld [vmem:[%s0 + $0x188] sm:$0x1]
  %v58 = vld [vmem:[%s0 + $0x190] sm:$0x1]
  %v59 = vld [vmem:[%s0 + $0x198] sm:$0x1]
  %v60 = vld [vmem:[%s0 + $0x1a0] sm:$0x1]
  %v61 = vld [vmem:[%s0 + $0x1a8] sm:$0x1]
  %v62 = vld [vmem:[%s0 + $0x1b0] sm:$0x1]
  %v63 = vld [vmem:[%s0 + $0x1b8] sm:$0x1]
  %v64 = vld [vmem:[%s0 + $0x1c0] sm:$0x1]
  %v65 = vld [vmem:[%s0 + $0x1c8] sm:$0x1]
  %v66 = vld [vmem:[%s0 + $0x1d0] sm:$0x1]
  %v67 = vld [vmem:[%s0 + $0x1d8] sm:$0x1]
  %v68 = vld [vmem:[%s0 + $0x1e0] sm:$0x1]
  %v69 = vld [vmem:[%s0 + $0x1e8] sm:$0x1]
  %v70 = vld [vmem:[%s0 + $0x1f0] sm:$0x1]
  %v71 = vld [vmem:[%s0 + $0x1f8] sm:$0x1]
  %v72 = vld [vmem:[%s0 + $0x200] sm:$0x1]
  %v73 = vld [vmem:[%s0 + $0x208] sm:$0x1]
  %v74 = vld [vmem:[%s0 + $0x210] sm:$0x1]
  %v75 = vld [vmem:[%s0 + $0x218] sm:$0x1]
  %v76 = vld [vmem:[%s0 + $0x220] sm:$0x1]
  %v77 = vld [vmem:[%s0 + $0x228] sm:$0x1]
  %v78 = vld [vmem:[%s0 + $0x230] sm:$0x1]
  %v79 = vld [vmem:[%s0 + $0x238] sm:$0x1]
  %v80 = vld [vmem:[%s0 + $0x240] sm:$0x1]
  %v81 = vld [vmem:[%s0 + $0x248] sm:$0x1]
  %vm82 = vcmask 1040384
  %v83 = vsel %vm82, %v45, -inf
  %v84 = vmax.f32 %v8, %v83
  %v85 = vrot.slane %v84, 4
  %v86 = vmax.f32 %v84, %v85
  %v87 = vrot.slane %v86, 2
  %v88 = vmax.f32 %v86, %v87
  %v89 = vrot.slane %v88, 1
  %v90 = vmax.f32 %v88, %v89
  %v91 = vsel %vm82, %v46, -inf
  %v92 = vmax.f32 %v9, %v91
  %v93 = vrot.slane %v92, 4
  %v94 = vmax.f32 %v92, %v93
  %v95 = vrot.slane %v94, 2
  %v96 = vmax.f32 %v94, %v95
  %v97 = vrot.slane %v96, 1
  %v98 = vmax.f32 %v96, %v97
  %v99 = vsel %vm82, %v47, -inf
  %v100 = vmax.f32 %v10, %v99
  %v101 = vrot.slane %v100, 4
  %v102 = vmax.f32 %v100, %v101
  %v103 = vrot.slane %v102, 2
  %v104 = vmax.f32 %v102, %v103
  %v105 = vrot.slane %v104, 1
  %v106 = vmax.f32 %v104, %v105
  %v107 = vsel %vm82, %v48, -inf
  %v108 = vmax.f32 %v11, %v107
  %v109 = vrot.slane %v108, 4
  %v110 = vmax.f32 %v108, %v109
  %v111 = vrot.slane %v110, 2
  %v112 = vmax.f32 %v110, %v111
  %v113 = vrot.slane %v112, 1
  %v114 = vmax.f32 %v112, %v113
  %v115 = vsel %vm82, %v49, -inf
  %v116 = vmax.f32 %v12, %v115
  %v117 = vrot.slane %v116, 4
  %v118 = vmax.f32 %v116, %v117
  %v119 = vrot.slane %v118, 2
  %v120 = vmax.f32 %v118, %v119
  %v121 = vrot.slane %v120, 1
  %v122 = vmax.f32 %v120, %v121
  %v123 = vsel %vm82, %v50, -inf
  %v124 = vmax.f32 %v13, %v123
  %v125 = vrot.slane %v124, 4
  %v126 = vmax.f32 %v124, %v125
  %v127 = vrot.slane %v126, 2
  %v128 = vmax.f32 %v126, %v127
  %v129 = vrot.slane %v128, 1
  %v130 = vmax.f32 %v128, %v129
  %v131 = vsel %vm82, %v51, -inf
  %v132 = vmax.f32 %v14, %v131
  %v133 = vrot.slane %v132, 4
  %v134 = vmax.f32 %v132, %v133
  %v135 = vrot.slane %v134, 2
  %v136 = vmax.f32 %v134, %v135
  %v137 = vrot.slane %v136, 1
  %v138 = vmax.f32 %v136, %v137
  %v139 = vsel %vm82, %v52, -inf
  %v140 = vmax.f32 %v15, %v139
  %v141 = vrot.slane %v140, 4
  %v142 = vmax.f32 %v140, %v141
  %v143 = vrot.slane %v142, 2
  %v144 = vmax.f32 %v142, %v143
  %v145 = vrot.slane %v144, 1
  %v146 = vmax.f32 %v144, %v145
  %v147 = vsel %vm82, %v53, -inf
  %v148 = vmax.f32 %v16, %v147
  %v149 = vrot.slane %v148, 4
  %v150 = vmax.f32 %v148, %v149
  %v151 = vrot.slane %v150, 2
  %v152 = vmax.f32 %v150, %v151
  %v153 = vrot.slane %v152, 1
  %v154 = vmax.f32 %v152, %v153
  %v155 = vsel %vm82, %v54, -inf
  %v156 = vmax.f32 %v17, %v155
  %v157 = vrot.slane %v156, 4
  %v158 = vmax.f32 %v156, %v157
  %v159 = vrot.slane %v158, 2
  %v160 = vmax.f32 %v158, %v159
  %v161 = vrot.slane %v160, 1
  %v162 = vmax.f32 %v160, %v161
  %v163 = vsel %vm82, %v55, -inf
  %v164 = vmax.f32 %v18, %v163
  %v165 = vrot.slane %v164, 4
  %v166 = vmax.f32 %v164, %v165
  %v167 = vrot.slane %v166, 2
  %v168 = vmax.f32 %v166, %v167
  %v169 = vrot.slane %v168, 1
  %v170 = vmax.f32 %v168, %v169
  %v171 = vsel %vm82, %v56, -inf
  %v172 = vmax.f32 %v19, %v171
  %v173 = vrot.slane %v172, 4
  %v174 = vmax.f32 %v172, %v173
  %v175 = vrot.slane %v174, 2
  %v176 = vmax.f32 %v174, %v175
  %v177 = vrot.slane %v176, 1
  %v178 = vmax.f32 %v176, %v177
  %v179 = vsel %vm82, %v57, -inf
  %v180 = vmax.f32 %v20, %v179
  %v181 = vrot.slane %v180, 4
  %v182 = vmax.f32 %v180, %v181
  %v183 = vrot.slane %v182, 2
  %v184 = vmax.f32 %v182, %v183
  %v185 = vrot.slane %v184, 1
  %v186 = vmax.f32 %v184, %v185
  %v187 = vsel %vm82, %v58, -inf
  %v188 = vmax.f32 %v21, %v187
  %v189 = vrot.slane %v188, 4
  %v190 = vmax.f32 %v188, %v189
  %v191 = vrot.slane %v190, 2
  %v192 = vmax.f32 %v190, %v191
  %v193 = vrot.slane %v192, 1
  %v194 = vmax.f32 %v192, %v193
  %v195 = vsel %vm82, %v59, -inf
  %v196 = vmax.f32 %v22, %v195
  %v197 = vrot.slane %v196, 4
  %v198 = vmax.f32 %v196, %v197
  %v199 = vrot.slane %v198, 2
  %v200 = vmax.f32 %v198, %v199
  %v201 = vrot.slane %v200, 1
  %v202 = vmax.f32 %v200, %v201
  %v203 = vsel %vm82, %v60, -inf
  %v204 = vmax.f32 %v23, %v203
  %v205 = vrot.slane %v204, 4
  %v206 = vmax.f32 %v204, %v205
  %v207 = vrot.slane %v206, 2
  %v208 = vmax.f32 %v206, %v207
  %v209 = vrot.slane %v208, 1
  %v210 = vmax.f32 %v208, %v209
  %v211 = vsel %vm82, %v61, -inf
  %v212 = vmax.f32 %v24, %v211
  %v213 = vrot.slane %v212, 4
  %v214 = vmax.f32 %v212, %v213
  %v215 = vrot.slane %v214, 2
  %v216 = vmax.f32 %v214, %v215
  %v217 = vrot.slane %v216, 1
  %v218 = vmax.f32 %v216, %v217
  %v219 = vsel %vm82, %v62, -inf
  %v220 = vmax.f32 %v25, %v219
  %v221 = vrot.slane %v220, 4
  %v222 = vmax.f32 %v220, %v221
  %v223 = vrot.slane %v222, 2
  %v224 = vmax.f32 %v222, %v223
  %v225 = vrot.slane %v224, 1
  %v226 = vmax.f32 %v224, %v225
  %v227 = vsel %vm82, %v63, -inf
  %v228 = vmax.f32 %v26, %v227
  %v229 = vrot.slane %v228, 4
  %v230 = vmax.f32 %v228, %v229
  %v231 = vrot.slane %v230, 2
  %v232 = vmax.f32 %v230, %v231
  %v233 = vrot.slane %v232, 1
  %v234 = vmax.f32 %v232, %v233
  %v235 = vsel %vm82, %v64, -inf
  %v236 = vmax.f32 %v27, %v235
  %v237 = vrot.slane %v236, 4
  %v238 = vmax.f32 %v236, %v237
  %v239 = vrot.slane %v238, 2
  %v240 = vmax.f32 %v238, %v239
  %v241 = vrot.slane %v240, 1
  %v242 = vmax.f32 %v240, %v241
  %v243 = vsel %vm82, %v65, -inf
  %v244 = vmax.f32 %v28, %v243
  %v245 = vrot.slane %v244, 4
  %v246 = vmax.f32 %v244, %v245
  %v247 = vrot.slane %v246, 2
  %v248 = vmax.f32 %v246, %v247
  %v249 = vrot.slane %v248, 1
  %v250 = vmax.f32 %v248, %v249
  %v251 = vsel %vm82, %v66, -inf
  %v252 = vmax.f32 %v29, %v251
  %v253 = vrot.slane %v252, 4
  %v254 = vmax.f32 %v252, %v253
  %v255 = vrot.slane %v254, 2
  %v256 = vmax.f32 %v254, %v255
  %v257 = vrot.slane %v256, 1
  %v258 = vmax.f32 %v256, %v257
  %v259 = vsel %vm82, %v67, -inf
  %v260 = vmax.f32 %v30, %v259
  %v261 = vrot.slane %v260, 4
  %v262 = vmax.f32 %v260, %v261
  %v263 = vrot.slane %v262, 2
  %v264 = vmax.f32 %v262, %v263
  %v265 = vrot.slane %v264, 1
  %v266 = vmax.f32 %v264, %v265
  %v267 = vsel %vm82, %v68, -inf
  %v268 = vmax.f32 %v31, %v267
  %v269 = vrot.slane %v268, 4
  %v270 = vmax.f32 %v268, %v269
  %v271 = vrot.slane %v270, 2
  %v272 = vmax.f32 %v270, %v271
  %v273 = vrot.slane %v272, 1
  %v274 = vmax.f32 %v272, %v273
  %v275 = vsel %vm82, %v69, -inf
  %v276 = vmax.f32 %v32, %v275
  %v277 = vrot.slane %v276, 4
  %v278 = vmax.f32 %v276, %v277
  %v279 = vrot.slane %v278, 2
  %v280 = vmax.f32 %v278, %v279
  %v281 = vrot.slane %v280, 1
  %v282 = vmax.f32 %v280, %v281
  %v283 = vsel %vm82, %v70, -inf
  %v284 = vmax.f32 %v33, %v283
  %v285 = vrot.slane %v284, 4
  %v286 = vmax.f32 %v284, %v285
  %v287 = vrot.slane %v286, 2
  %v288 = vmax.f32 %v286, %v287
  %v289 = vrot.slane %v288, 1
  %v290 = vmax.f32 %v288, %v289
  %v291 = vsel %vm82, %v71, -inf
  %v292 = vmax.f32 %v34, %v291
  %v293 = vrot.slane %v292, 4
  %v294 = vmax.f32 %v292, %v293
  %v295 = vrot.slane %v294, 2
  %v296 = vmax.f32 %v294, %v295
  %v297 = vrot.slane %v296, 1
  %v298 = vmax.f32 %v296, %v297
  %v299 = vsel %vm82, %v72, -inf
  %v300 = vmax.f32 %v35, %v299
  %v301 = vrot.slane %v300, 4
  %v302 = vmax.f32 %v300, %v301
  %v303 = vrot.slane %v302, 2
  %v304 = vmax.f32 %v302, %v303
  %v305 = vrot.slane %v304, 1
  %v306 = vmax.f32 %v304, %v305
  %v307 = vsel %vm82, %v73, -inf
  %v308 = vmax.f32 %v36, %v307
  %v309 = vrot.slane %v308, 4
  %v310 = vmax.f32 %v308, %v309
  %v311 = vrot.slane %v310, 2
  %v312 = vmax.f32 %v310, %v311
  %v313 = vrot.slane %v312, 1
  %v314 = vmax.f32 %v312, %v313
  %v315 = vsel %vm82, %v74, -inf
  %v316 = vmax.f32 %v37, %v315
  %v317 = vrot.slane %v316, 4
  %v318 = vmax.f32 %v316, %v317
  %v319 = vrot.slane %v318, 2
  %v320 = vmax.f32 %v318, %v319
  %v321 = vrot.slane %v320, 1
  %v322 = vmax.f32 %v320, %v321
  %v323 = vsel %vm82, %v75, -inf
  %v324 = vmax.f32 %v38, %v323
  %v325 = vrot.slane %v324, 4
  %v326 = vmax.f32 %v324, %v325
  %v327 = vrot.slane %v326, 2
  %v328 = vmax.f32 %v326, %v327
  %v329 = vrot.slane %v328, 1
  %v330 = vmax.f32 %v328, %v329
  %v331 = vsel %vm82, %v76, -inf
  %v332 = vmax.f32 %v39, %v331
  %v333 = vrot.slane %v332, 4
  %v334 = vmax.f32 %v332, %v333
  %v335 = vrot.slane %v334, 2
  %v336 = vmax.f32 %v334, %v335
  %v337 = vrot.slane %v336, 1
  %v338 = vmax.f32 %v336, %v337
  %v339 = vsel %vm82, %v77, -inf
  %v340 = vmax.f32 %v40, %v339
  %v341 = vrot.slane %v340, 4
  %v342 = vmax.f32 %v340, %v341
  %v343 = vrot.slane %v342, 2
  %v344 = vmax.f32 %v342, %v343
  %v345 = vrot.slane %v344, 1
  %v346 = vmax.f32 %v344, %v345
  %v347 = vsel %vm82, %v78, -inf
  %v348 = vmax.f32 %v41, %v347
  %v349 = vrot.slane %v348, 4
  %v350 = vmax.f32 %v348, %v349
  %v351 = vrot.slane %v350, 2
  %v352 = vmax.f32 %v350, %v351
  %v353 = vrot.slane %v352, 1
  %v354 = vmax.f32 %v352, %v353
  %v355 = vsel %vm82, %v79, -inf
  %v356 = vmax.f32 %v42, %v355
  %v357 = vrot.slane %v356, 4
  %v358 = vmax.f32 %v356, %v357
  %v359 = vrot.slane %v358, 2
  %v360 = vmax.f32 %v358, %v359
  %v361 = vrot.slane %v360, 1
  %v362 = vmax.f32 %v360, %v361
  %v363 = vsel %vm82, %v80, -inf
  %v364 = vmax.f32 %v43, %v363
  %v365 = vrot.slane %v364, 4
  %v366 = vmax.f32 %v364, %v365
  %v367 = vrot.slane %v366, 2
  %v368 = vmax.f32 %v366, %v367
  %v369 = vrot.slane %v368, 1
  %v370 = vmax.f32 %v368, %v369
  %vm371 = vcmask 785408
  %v372 = vsel %vm371, %v44, -inf
  %vm373 = vcmask 778240
  %v374 = vsel %vm373, %v81, -inf
  %v375 = vmax.f32 %v372, %v374
  %v376 = vrot.slane %v375, 4
  %v377 = vmax.f32 %v375, %v376
  %v378 = vrot.slane %v377, 2
  %v379 = vmax.f32 %v377, %v378
  %v380 = vrot.slane %v379, 1
  %v381 = vmax.f32 %v379, %v380
  %v419 = vcombine.low %v90, %v98
  %v420 = vcombine.low %v106, %v114
  %v421 = vcombine.low %v122, %v130
  %v422 = vcombine.low %v138, %v146
  %v424 = vunpack.c.l.s4 1966171168
  %v425 = vunpack.c.0.s8 %v424
  %v426 = vlaneseq
  %v427 = vshrl.u32 %v426, 7
  %v428 = vsub.s32 %v425, %v427
  %v429 = vrot.slane %v419, %v428
  %v431 = vunpack.c.l.s4 1966171168
  %v432 = vunpack.c.0.s8 %v431
  %v433 = vlaneseq
  %v434 = vshrl.u32 %v433, 7
  %v435 = vsub.s32 %v432, %v434
  %v436 = vrot.slane %v420, %v435
  %v438 = vunpack.c.l.s4 1966171168
  %v439 = vunpack.c.0.s8 %v438
  %v440 = vlaneseq
  %v441 = vshrl.u32 %v440, 7
  %v442 = vsub.s32 %v439, %v441
  %v443 = vrot.slane %v421, %v442
  %v445 = vunpack.c.l.s4 1966171168
  %v446 = vunpack.c.0.s8 %v445
  %v447 = vlaneseq
  %v448 = vshrl.u32 %v447, 7
  %v449 = vsub.s32 %v446, %v448
  %v450 = vrot.slane %v422, %v449
  %v451 = vcombine.low %v429, %v436
  %v452 = vcombine.low %v443, %v450
  %v454 = vunpack.c.l.s4 1966171168
  %v455 = vunpack.c.0.s8 %v454
  %v456 = vlaneseq
  %v457 = vshrl.u32 %v456, 7
  %v458 = vsub.s32 %v455, %v457
  %v459 = vrot.slane %v451, %v458
  %v461 = vunpack.c.l.s4 1966171168
  %v462 = vunpack.c.0.s8 %v461
  %v463 = vlaneseq
  %v464 = vshrl.u32 %v463, 7
  %v465 = vsub.s32 %v462, %v464
  %v466 = vrot.slane %v452, %v465
  %v467 = vcombine.low %v459, %v466
  %v468 = vcombine.low %v154, %v162
  %v469 = vcombine.low %v170, %v178
  %v470 = vcombine.low %v186, %v194
  %v471 = vcombine.low %v202, %v210
  %v473 = vunpack.c.l.s4 1966171168
  %v474 = vunpack.c.0.s8 %v473
  %v475 = vlaneseq
  %v476 = vshrl.u32 %v475, 7
  %v477 = vsub.s32 %v474, %v476
  %v478 = vrot.slane %v468, %v477
  %v480 = vunpack.c.l.s4 1966171168
  %v481 = vunpack.c.0.s8 %v480
  %v482 = vlaneseq
  %v483 = vshrl.u32 %v482, 7
  %v484 = vsub.s32 %v481, %v483
  %v485 = vrot.slane %v469, %v484
  %v487 = vunpack.c.l.s4 1966171168
  %v488 = vunpack.c.0.s8 %v487
  %v489 = vlaneseq
  %v490 = vshrl.u32 %v489, 7
  %v491 = vsub.s32 %v488, %v490
  %v492 = vrot.slane %v470, %v491
  %v494 = vunpack.c.l.s4 1966171168
  %v495 = vunpack.c.0.s8 %v494
  %v496 = vlaneseq
  %v497 = vshrl.u32 %v496, 7
  %v498 = vsub.s32 %v495, %v497
  %v499 = vrot.slane %v471, %v498
  %v500 = vcombine.low %v478, %v485
  %v501 = vcombine.low %v492, %v499
  %v503 = vunpack.c.l.s4 1966171168
  %v504 = vunpack.c.0.s8 %v503
  %v505 = vlaneseq
  %v506 = vshrl.u32 %v505, 7
  %v507 = vsub.s32 %v504, %v506
  %v508 = vrot.slane %v500, %v507
  %v510 = vunpack.c.l.s4 1966171168
  %v511 = vunpack.c.0.s8 %v510
  %v512 = vlaneseq
  %v513 = vshrl.u32 %v512, 7
  %v514 = vsub.s32 %v511, %v513
  %v515 = vrot.slane %v501, %v514
  %v516 = vcombine.low %v508, %v515
  %v517 = vcombine.low %v218, %v226
  %v518 = vcombine.low %v234, %v242
  %v519 = vcombine.low %v250, %v258
  %v520 = vcombine.low %v266, %v274
  %v522 = vunpack.c.l.s4 1966171168
  %v523 = vunpack.c.0.s8 %v522
  %v524 = vlaneseq
  %v525 = vshrl.u32 %v524, 7
  %v526 = vsub.s32 %v523, %v525
  %v527 = vrot.slane %v517, %v526
  %v529 = vunpack.c.l.s4 1966171168
  %v530 = vunpack.c.0.s8 %v529
  %v531 = vlaneseq
  %v532 = vshrl.u32 %v531, 7
  %v533 = vsub.s32 %v530, %v532
  %v534 = vrot.slane %v518, %v533
  %v536 = vunpack.c.l.s4 1966171168
  %v537 = vunpack.c.0.s8 %v536
  %v538 = vlaneseq
  %v539 = vshrl.u32 %v538, 7
  %v540 = vsub.s32 %v537, %v539
  %v541 = vrot.slane %v519, %v540
  %v543 = vunpack.c.l.s4 1966171168
  %v544 = vunpack.c.0.s8 %v543
  %v545 = vlaneseq
  %v546 = vshrl.u32 %v545, 7
  %v547 = vsub.s32 %v544, %v546
  %v548 = vrot.slane %v520, %v547
  %v549 = vcombine.low %v527, %v534
  %v550 = vcombine.low %v541, %v548
  %v552 = vunpack.c.l.s4 1966171168
  %v553 = vunpack.c.0.s8 %v552
  %v554 = vlaneseq
  %v555 = vshrl.u32 %v554, 7
  %v556 = vsub.s32 %v553, %v555
  %v557 = vrot.slane %v549, %v556
  %v559 = vunpack.c.l.s4 1966171168
  %v560 = vunpack.c.0.s8 %v559
  %v561 = vlaneseq
  %v562 = vshrl.u32 %v561, 7
  %v563 = vsub.s32 %v560, %v562
  %v564 = vrot.slane %v550, %v563
  %v565 = vcombine.low %v557, %v564
  %v566 = vcombine.low %v282, %v290
  %v567 = vcombine.low %v298, %v306
  %v568 = vcombine.low %v314, %v322
  %v569 = vcombine.low %v330, %v338
  %v571 = vunpack.c.l.s4 1966171168
  %v572 = vunpack.c.0.s8 %v571
  %v573 = vlaneseq
  %v574 = vshrl.u32 %v573, 7
  %v575 = vsub.s32 %v572, %v574
  %v576 = vrot.slane %v566, %v575
  %v578 = vunpack.c.l.s4 1966171168
  %v579 = vunpack.c.0.s8 %v578
  %v580 = vlaneseq
  %v581 = vshrl.u32 %v580, 7
  %v582 = vsub.s32 %v579, %v581
  %v583 = vrot.slane %v567, %v582
  %v585 = vunpack.c.l.s4 1966171168
  %v586 = vunpack.c.0.s8 %v585
  %v587 = vlaneseq
  %v588 = vshrl.u32 %v587, 7
  %v589 = vsub.s32 %v586, %v588
  %v590 = vrot.slane %v568, %v589
  %v592 = vunpack.c.l.s4 1966171168
  %v593 = vunpack.c.0.s8 %v592
  %v594 = vlaneseq
  %v595 = vshrl.u32 %v594, 7
  %v596 = vsub.s32 %v593, %v595
  %v597 = vrot.slane %v569, %v596
  %v598 = vcombine.low %v576, %v583
  %v599 = vcombine.low %v590, %v597
  %v601 = vunpack.c.l.s4 1966171168
  %v602 = vunpack.c.0.s8 %v601
  %v603 = vlaneseq
  %v604 = vshrl.u32 %v603, 7
  %v605 = vsub.s32 %v602, %v604
  %v606 = vrot.slane %v598, %v605
  %v608 = vunpack.c.l.s4 1966171168
  %v609 = vunpack.c.0.s8 %v608
  %v610 = vlaneseq
  %v611 = vshrl.u32 %v610, 7
  %v612 = vsub.s32 %v609, %v611
  %v613 = vrot.slane %v599, %v612
  %v614 = vcombine.low %v606, %v613
  %v615 = vcombine.low %v346, %v354
  %v616 = vcombine.low %v362, %v370
  %v618 = vunpack.c.l.s4 1966171168
  %v619 = vunpack.c.0.s8 %v618
  %v620 = vlaneseq
  %v621 = vshrl.u32 %v620, 7
  %v622 = vsub.s32 %v619, %v621
  %v623 = vrot.slane %v615, %v622
  %v625 = vunpack.c.l.s4 1966171168
  %v626 = vunpack.c.0.s8 %v625
  %v627 = vlaneseq
  %v628 = vshrl.u32 %v627, 7
  %v629 = vsub.s32 %v626, %v628
  %v630 = vrot.slane %v616, %v629
  %v632 = vunpack.c.l.s4 1966171168
  %v633 = vunpack.c.0.s8 %v632
  %v634 = vlaneseq
  %v635 = vshrl.u32 %v634, 7
  %v636 = vsub.s32 %v633, %v635
  %v637 = vrot.slane %v381, %v636
  %v638 = vcombine.low %v623, %v630
  %v640 = vunpack.c.l.s4 1966171168
  %v641 = vunpack.c.0.s8 %v640
  %v642 = vlaneseq
  %v643 = vshrl.u32 %v642, 7
  %v644 = vsub.s32 %v641, %v643
  %v645 = vrot.slane %v638, %v644
  %v647 = vunpack.c.l.s4 1966171168
  %v648 = vunpack.c.0.s8 %v647
  %v649 = vlaneseq
  %v650 = vshrl.u32 %v649, 7
  %v651 = vsub.s32 %v648, %v650
  %v652 = vrot.slane %v637, %v651
  %v653 = vcombine.low %v645, %v652
  %659 = vst [vmem:[%s1] sm:$0xff] %v467
  %660 = vst [vmem:[%s1 + $0x8] sm:$0xff] %v516
  %661 = vst [vmem:[%s1 + $0x10] sm:$0xff] %v565
  %662 = vst [vmem:[%s1 + $0x18] sm:$0xff] %v614
  %v663 = vlaneseq
  %vm664 = vcmp.ge.s32.totalorder %v663, 0
  %vm665 = vcmp.lt.s32.totalorder %v663, 608
  %vm666 = vmand %vm664, %vm665
  %667 = vst.msk [vmem:[%s1 + $0x20] sm:$0x1f] %vm666, %v653
  // Predicated region
  $region6: #{squeezenet_forward.29} parent=0 // pred_check
    _
  $region7: #{squeezenet_forward.29} parent=0 // pred_check_branch
    %669 = sbr.rel (0) target = $region9
  $region8: #{squeezenet_forward.29} parent=0 // pred_region
    _
  $region9: #{squeezenet_forward.29} parent=0 // pred_fallthru
    _
  // Predicated region
  $region10: #{squeezenet_forward.29} parent=0 // pred_check
    _
  $region11: #{squeezenet_forward.29} parent=0 // pred_check_branch
    %671 = sbr.rel (0) target = $region13
  $region12: #{squeezenet_forward.29} parent=0 // pred_region
    _
  $region13: #{squeezenet_forward.29} parent=0 // pred_fallthru
    _

// kernel: squeezenet_forward.31
$region0: #{squeezenet_forward.31}
  #allocation0 [shape = 'u32[]', space=smem, size = 0x4, offset = 0x4, fixed_abs, tag = 'smem constant byte address 0x4 - core index']
  #allocation1 [shape = 'u32[144,128]{1,0:T(1,128)}', space=vmem, size = 0x12000, scoped, tag = 'internal scratch']
  %s0 = inlined_call_operand.vmem [shape: bf16[56,256], index: 0, kind: input, shape index: {}]
  %s1 = inlined_call_operand.hbm [shape: bf16[256,128], index: 1, kind: input, shape index: {}]
  %s2 = inlined_call_operand.vmem [shape: f32[8,128], index: 2, kind: input, shape index: {}]
  %s3 = inlined_call_operand.vmem [shape: f32[56,128], index: 3, kind: output, shape index: {}]
  %s4 = sld [smem:[#allocation0]]
  $region34: #{squeezenet_forward.31} parent=0
    _
  %s6 = ssub.s32 1, %s4
  %s7 = scalar_select 0, %s6, %s4
  $region1: #{squeezenet_forward.31} parent=0
    #allocation2 [shape = 'u8[65536]{0}', space=vmem, size = 0x10000, scoped, tag = 'input window, operand 1, single buffered']
    #allocation3 [shape = 's32[1]{0}', space=sflag, size = 0x4, scoped, tag = 'scoped memory for squeezenet_forward.31']
    %8 = vsyncpa [#allocation3], 0
    // Predicated region
    $region2: #{squeezenet_forward.31} parent=1 // pred_check
      _
    $region3: #{squeezenet_forward.31} parent=1 // pred_check_branch
      %10 = sbr.rel (0) target = $region5
    $region4: #{squeezenet_forward.31} parent=1 // pred_region
      _
    $region5: #{squeezenet_forward.31} parent=1 // pred_fallthru
      _
    // Predicated region
    $region6: #{squeezenet_forward.31} parent=1 // pred_check
      _
    $region7: #{squeezenet_forward.31} parent=1 // pred_check_branch
      %12 = sbr.rel (0) target = $region9
    $region8: #{squeezenet_forward.31} parent=1 // pred_region
      %s14 = ssub.s32 2048, 2048
      %15 = vsyncadd [#allocation3], %s14
      %s16 = sshll.u32 [#allocation2], 4
      %s17 = int_to_ptr.vmem [resolvable:$true] %s16
      %22 = dma.hbm_to_vmem [thread:$0]  %s1, 2048, %s17, [#allocation3], 64, 64, 4
    $region9: #{squeezenet_forward.31} parent=1 // pred_fallthru
      _
    // Predicated region
    $region10: #{squeezenet_forward.31} parent=1 // pred_check
      _
    $region11: #{squeezenet_forward.31} parent=1 // pred_check_branch
      %24 = sbr.rel (0) target = $region13
    $region12: #{squeezenet_forward.31} parent=1 // pred_region
      _
    $region13: #{squeezenet_forward.31} parent=1 // pred_fallthru
      _
    // Predicated region
    $region14: #{squeezenet_forward.31} parent=1 // pred_check
      _
    $region15: #{squeezenet_forward.31} parent=1 // pred_check_branch
      %26 = sbr.rel (0) target = $region17
    $region16: #{squeezenet_forward.31} parent=1 // pred_region
      %27 = dma.done [#allocation3], 2048
    $region17: #{squeezenet_forward.31} parent=1 // pred_fallthru
      _
    %p29 = scmp.eq.s32.totalorder 0, 0
    // Predicated region
    $region18: #{squeezenet_forward.31} parent=1 // pred_check
      %p30 = pneg %p29
    $region19: #{squeezenet_forward.31} parent=1 // pred_check_branch
      %32 = sbr.rel (%p30) target = $region21
    $region20: #{squeezenet_forward.31} parent=1 // pred_region
      %33 = vst [vmem:[%s3] sm:$0xff] 0.0
      %34 = vst [vmem:[%s3 + $0x8] sm:$0xff] 0.0
      %35 = vst [vmem:[%s3 + $0x10] sm:$0xff] 0.0
      %36 = vst [vmem:[%s3 + $0x18] sm:$0xff] 0.0
      %37 = vst [vmem:[%s3 + $0x20] sm:$0xff] 0.0
      %38 = vst [vmem:[%s3 + $0x28] sm:$0xff] 0.0
      %39 = vst [vmem:[%s3 + $0x30] sm:$0xff] 0.0
    $region21: #{squeezenet_forward.31} parent=1 // pred_fallthru
      _
    %v40 = vld [vmem:[%s3] sm:$0xff]
    %v41 = vld [vmem:[%s3 + $0x8] sm:$0xff]
    %v42 = vld [vmem:[%s3 + $0x10] sm:$0xff]
    %v43 = vld [vmem:[%s3 + $0x18] sm:$0xff]
    %v44 = vld [vmem:[%s3 + $0x20] sm:$0xff]
    %v45 = vld [vmem:[%s3 + $0x28] sm:$0xff]
    %v46 = vld [vmem:[%s3 + $0x30] sm:$0xff]
    %v47 = vld [vmem:[%s0] sm:$0xff]
    %v48 = vld [vmem:[%s0 + $0x8] sm:$0xff]
    %v49 = vld [vmem:[%s0 + $0x10] sm:$0xff]
    %v50 = vld [vmem:[%s0 + $0x18] sm:$0xff]
    %v51 = vld [vmem:[%s0 + $0x20] sm:$0xff]
    %v52 = vld [vmem:[%s0 + $0x28] sm:$0xff]
    %v53 = vld [vmem:[%s0 + $0x30] sm:$0xff]
    %v54 = vld [vmem:[#allocation2] sm:$0xf]
    %v55 = vld [vmem:[#allocation2 + $0x4] sm:$0xf]
    %v56 = vld [vmem:[#allocation2 + $0x8] sm:$0xf]
    %v57 = vld [vmem:[#allocation2 + $0xc] sm:$0xf]
    %v58 = vld [vmem:[#allocation2 + $0x10] sm:$0xf]
    %v59 = vld [vmem:[#allocation2 + $0x14] sm:$0xf]
    %v60 = vld [vmem:[#allocation2 + $0x18] sm:$0xf]
    %v61 = vld [vmem:[#allocation2 + $0x1c] sm:$0xf]
    %v62 = vld [vmem:[#allocation2 + $0x20] sm:$0xf]
    %v63 = vld [vmem:[#allocation2 + $0x24] sm:$0xf]
    %v64 = vld [vmem:[#allocation2 + $0x28] sm:$0xf]
    %v65 = vld [vmem:[#allocation2 + $0x2c] sm:$0xf]
    %v66 = vld [vmem:[#allocation2 + $0x30] sm:$0xf]
    %v67 = vld [vmem:[#allocation2 + $0x34] sm:$0xf]
    %v68 = vld [vmem:[#allocation2 + $0x38] sm:$0xf]
    %v69 = vld [vmem:[#allocation2 + $0x3c] sm:$0xf]
    %v70 = vld [vmem:[#allocation2 + $0x40] sm:$0xf]
    %v71 = vld [vmem:[#allocation2 + $0x44] sm:$0xf]
    %v72 = vld [vmem:[#allocation2 + $0x48] sm:$0xf]
    %v73 = vld [vmem:[#allocation2 + $0x4c] sm:$0xf]
    %v74 = vld [vmem:[#allocation2 + $0x50] sm:$0xf]
    %v75 = vld [vmem:[#allocation2 + $0x54] sm:$0xf]
    %v76 = vld [vmem:[#allocation2 + $0x58] sm:$0xf]
    %v77 = vld [vmem:[#allocation2 + $0x5c] sm:$0xf]
    %v78 = vld [vmem:[#allocation2 + $0x60] sm:$0xf]
    %v79 = vld [vmem:[#allocation2 + $0x64] sm:$0xf]
    %v80 = vld [vmem:[#allocation2 + $0x68] sm:$0xf]
    %v81 = vld [vmem:[#allocation2 + $0x6c] sm:$0xf]
    %v82 = vld [vmem:[#allocation2 + $0x70] sm:$0xf]
    %v83 = vld [vmem:[#allocation2 + $0x74] sm:$0xf]
    %v84 = vld [vmem:[#allocation2 + $0x78] sm:$0xf]
    %v85 = vld [vmem:[#allocation2 + $0x7c] sm:$0xf]
    %v93 = vunpack.c.l.b16 %v47
    %v94 = vunpack.c.h.b16 %v47
    %v95 = vunpack.c.l.b16 %v48
    %v96 = vunpack.c.h.b16 %v48
    %v97 = vunpack.c.l.b16 %v49
    %v98 = vunpack.c.h.b16 %v49
    %v99 = vunpack.c.l.b16 %v50
    %v100 = vunpack.c.h.b16 %v50
    %v101 = vunpack.c.l.b16 %v51
    %v102 = vunpack.c.h.b16 %v51
    %v103 = vunpack.c.l.b16 %v52
    %v104 = vunpack.c.h.b16 %v52
    %v105 = vunpack.c.l.b16 %v53
    %v106 = vunpack.c.h.b16 %v53
    %v107 = vpack.c.b16 %v95, %v93
    %v108 = vpack.c.b16 %v96, %v94
    %v109 = vpack.c.b16 %v99, %v97
    %v110 = vpack.c.b16 %v100, %v98
    %v111 = vpack.c.b16 %v103, %v101
    %v112 = vpack.c.b16 %v104, %v102
    %v113 = vpack.c.b16 %v105, %v105
    %v114 = vpack.c.b16 %v106, %v106
    %v155 = vunpack.c.l.b16 %v54
    %v156 = vunpack.c.l.b16 %v55
    %v157 = vunpack.c.l.b16 %v56
    %v158 = vunpack.c.l.b16 %v57
    %v159 = vunpack.c.l.b16 %v58
    %v160 = vunpack.c.l.b16 %v59
    %v161 = vunpack.c.l.b16 %v60
    %v162 = vunpack.c.l.b16 %v61
    %v163 = vunpack.c.l.b16 %v62
    %v164 = vunpack.c.l.b16 %v63
    %v165 = vunpack.c.l.b16 %v64
    %v166 = vunpack.c.l.b16 %v65
    %v167 = vunpack.c.l.b16 %v66
    %v168 = vunpack.c.l.b16 %v67
    %v169 = vunpack.c.l.b16 %v68
    %v170 = vunpack.c.l.b16 %v69
    %v171 = vunpack.c.l.b16 %v70
    %v172 = vunpack.c.l.b16 %v71
    %v173 = vunpack.c.l.b16 %v72
    %v174 = vunpack.c.l.b16 %v73
    %v175 = vunpack.c.l.b16 %v74
    %v176 = vunpack.c.l.b16 %v75
    %v177 = vunpack.c.l.b16 %v76
    %v178 = vunpack.c.l.b16 %v77
    %v179 = vunpack.c.l.b16 %v78
    %v180 = vunpack.c.l.b16 %v79
    %v181 = vunpack.c.l.b16 %v80
    %v182 = vunpack.c.l.b16 %v81
    %v183 = vunpack.c.l.b16 %v82
    %v184 = vunpack.c.l.b16 %v83
    %v185 = vunpack.c.l.b16 %v84
    %v186 = vunpack.c.l.b16 %v85
    %v187 = vpack.c.b16 %v156, %v155
    %v188 = vpack.c.b16 %v158, %v157
    %v189 = vpack.c.b16 %v160, %v159
    %v190 = vpack.c.b16 %v162, %v161
    %v191 = vpack.c.b16 %v164, %v163
    %v192 = vpack.c.b16 %v166, %v165
    %v193 = vpack.c.b16 %v168, %v167
    %v194 = vpack.c.b16 %v170, %v169
    %v195 = vpack.c.b16 %v172, %v171
    %v196 = vpack.c.b16 %v174, %v173
    %v197 = vpack.c.b16 %v176, %v175
    %v198 = vpack.c.b16 %v178, %v177
    %v199 = vpack.c.b16 %v180, %v179
    %v200 = vpack.c.b16 %v182, %v181
    %v201 = vpack.c.b16 %v184, %v183
    %v202 = vpack.c.b16 %v186, %v185
    %219 = vmatprep.subr.bf16.mxu0 0
    %220 = vmatpush1.bf16.msra.mxu0 %v187
    %221 = vmatprep.subr.bf16.mxu0 0
    %222 = vmatpush1.bf16.msra.mxu0 %v188
    %223 = vmatprep.subr.bf16.mxu0 0
    %224 = vmatpush1.bf16.msra.mxu0 %v189
    %225 = vmatprep.subr.bf16.mxu0 0
    %226 = vmatpush1.bf16.msra.mxu0 %v190
    %227 = vmatprep.subr.bf16.mxu0 0
    %228 = vmatpush1.bf16.msra.mxu0 %v191
    %229 = vmatprep.subr.bf16.mxu0 0
    %230 = vmatpush1.bf16.msra.mxu0 %v192
    %231 = vmatprep.subr.bf16.mxu0 0
    %232 = vmatpush1.bf16.msra.mxu0 %v193
    %233 = vmatprep.subr.bf16.mxu0 0
    %234 = vmatpush1.bf16.msra.mxu0 %v194
    %235 = vmatprep.subr.bf16.mxu0 0
    %236 = vmatpush1.bf16.msra.mxu0 %v195
    %237 = vmatprep.subr.bf16.mxu0 0
    %238 = vmatpush1.bf16.msra.mxu0 %v196
    %239 = vmatprep.subr.bf16.mxu0 0
    %240 = vmatpush1.bf16.msra.mxu0 %v197
    %241 = vmatprep.subr.bf16.mxu0 0
    %242 = vmatpush1.bf16.msra.mxu0 %v198
    %243 = vmatprep.subr.bf16.mxu0 0
    %244 = vmatpush1.bf16.msra.mxu0 %v199
    %245 = vmatprep.subr.bf16.mxu0 0
    %246 = vmatpush1.bf16.msra.mxu0 %v200
    %247 = vmatprep.subr.bf16.mxu0 0
    %248 = vmatpush1.bf16.msra.mxu0 %v201
    %249 = vmatprep.subr.bf16.mxu0 0
    %250 = vmatpush1.bf16.msra.mxu0 %v202
    %251 = vmatprep.mubr.bf16.mxu0 %v108
    %252 = vmatmul.mubr.bf16.gmra.mrb[0].mxu0 %v107
    %v253 = vpop.f32.mrb[0].mxu0
    %v254 = vadd.f32 0.0, %v253
    %v255 = vpop.f32.mrb[0].mxu0
    %v256 = vpop.f32.mrb[0].mxu0
    %v257 = vadd.f32 0.0, %v256
    %v258 = vpop.f32.mrb[0].mxu0
    %259 = vmatprep.mubr.bf16.mxu0 %v110
    %260 = vmatmul.mubr.bf16.gmra.mrb[0].mxu0 %v109
    %v261 = vpop.f32.mrb[0].mxu0
    %v262 = vadd.f32 0.0, %v261
    %v263 = vpop.f32.mrb[0].mxu0
    %v264 = vpop.f32.mrb[0].mxu0
    %v265 = vadd.f32 0.0, %v264
    %v266 = vpop.f32.mrb[0].mxu0
    %267 = vmatprep.mubr.bf16.mxu0 %v112
    %268 = vmatmul.mubr.bf16.gmra.mrb[0].mxu0 %v111
    %v269 = vpop.f32.mrb[0].mxu0
    %v270 = vadd.f32 0.0, %v269
    %v271 = vpop.f32.mrb[0].mxu0
    %v272 = vpop.f32.mrb[0].mxu0
    %v273 = vadd.f32 0.0, %v272
    %v274 = vpop.f32.mrb[0].mxu0
    %275 = vmatprep.mubr.bf16.mxu0 %v114
    %276 = vmatmul.mubr.bf16.gmra.mrb[0].mxu0 %v113
    %v277 = vpop.f32.mrb[0].mxu0
    %v278 = vadd.f32 0.0, %v277
    %v279 = vpop.f32.mrb[0].mxu0
    %v280 = vpop.f32.mrb[0].mxu0
    %v281 = vpop.f32.mrb[0].mxu0
    %282 = vdwg.mxu0
    %v283 = vadd.f32 %v40, %v254
    %v284 = vadd.f32 %v41, %v257
    %v285 = vadd.f32 %v42, %v262
    %v286 = vadd.f32 %v43, %v265
    %v287 = vadd.f32 %v44, %v270
    %v288 = vadd.f32 %v45, %v273
    %v289 = vadd.f32 %v46, %v278
    %290 = vst [vmem:[%s3] sm:$0xff] %v283
    %291 = vst [vmem:[%s3 + $0x8] sm:$0xff] %v284
    %292 = vst [vmem:[%s3 + $0x10] sm:$0xff] %v285
    %293 = vst [vmem:[%s3 + $0x18] sm:$0xff] %v286
    %294 = vst [vmem:[%s3 + $0x20] sm:$0xff] %v287
    %295 = vst [vmem:[%s3 + $0x28] sm:$0xff] %v288
    %296 = vst [vmem:[%s3 + $0x30] sm:$0xff] %v289
    // Predicated region
    $region22: #{squeezenet_forward.31} parent=1 // pred_check
      %p297 = pneg %p29
    $region23: #{squeezenet_forward.31} parent=1 // pred_check_branch
      %299 = sbr.rel (%p297) target = $region25
    $region24: #{squeezenet_forward.31} parent=1 // pred_region
      %v300 = vld [vmem:[%s3] sm:$0xff]
      %v301 = vld [vmem:[%s3 + $0x8] sm:$0xff]
      %v302 = vld [vmem:[%s3 + $0x10] sm:$0xff]
      %v303 = vld [vmem:[%s3 + $0x18] sm:$0xff]
      %v304 = vld [vmem:[%s3 + $0x20] sm:$0xff]
      %v305 = vld [vmem:[%s3 + $0x28] sm:$0xff]
      %v306 = vld [vmem:[%s3 + $0x30] sm:$0xff]
      %v307 = vld [vmem:[%s2] sm:$0x1]
      %v308 = vlaneseq
      %v309 = vshrl.u32 %v308, 7
      %v310 = vsub.s32 0, %v309
      %v311 = vrot.slane %v307, %v310
      %v312 = vadd.f32 %v300, %v311
      %v313 = vadd.f32 %v301, %v311
      %v314 = vadd.f32 %v302, %v311
      %v315 = vadd.f32 %v303, %v311
      %v316 = vadd.f32 %v304, %v311
      %v317 = vadd.f32 %v305, %v311
      %v318 = vadd.f32 %v306, %v311
      %v319 = vmax.f32 %v312, 0.0
      %v320 = vmax.f32 %v313, 0.0
      %v321 = vmax.f32 %v314, 0.0
      %v322 = vmax.f32 %v315, 0.0
      %v323 = vmax.f32 %v316, 0.0
      %v324 = vmax.f32 %v317, 0.0
      %v325 = vmax.f32 %v318, 0.0
      %326 = vst [vmem:[%s3] sm:$0xff] %v319
      %327 = vst [vmem:[%s3 + $0x8] sm:$0xff] %v320
      %328 = vst [vmem:[%s3 + $0x10] sm:$0xff] %v321
      %329 = vst [vmem:[%s3 + $0x18] sm:$0xff] %v322
      %330 = vst [vmem:[%s3 + $0x20] sm:$0xff] %v323
      %331 = vst [vmem:[%s3 + $0x28] sm:$0xff] %v324
      %332 = vst [vmem:[%s3 + $0x30] sm:$0xff] %v325
    $region25: #{squeezenet_forward.31} parent=1 // pred_fallthru
      _
    // Predicated region
    $region26: #{squeezenet_forward.31} parent=1 // pred_check
      _
    $region27: #{squeezenet_forward.31} parent=1 // pred_check_branch
      %334 = sbr.rel (0) target = $region29
    $region28: #{squeezenet_forward.31} parent=1 // pred_region
      _
    $region29: #{squeezenet_forward.31} parent=1 // pred_fallthru
      _
    // Predicated region
    $region30: #{squeezenet_forward.31} parent=1 // pred_check
      _
    $region31: #{squeezenet_forward.31} parent=1 // pred_check_branch
      %336 = sbr.rel (0) target = $region33
    $region32: #{squeezenet_forward.31} parent=1 // pred_region
      _
    $region33: #{squeezenet_forward.31} parent=1 // pred_fallthru
      _
    %337 = vsyncpa [#allocation3], 1

// kernel: squeezenet_forward.52
$region0: #{squeezenet_forward.52}
  #allocation0 [shape = 'u32[]', space=smem, size = 0x4, offset = 0x4, fixed_abs, tag = 'smem constant byte address 0x4 - core index']
  #allocation1 [shape = 'u32[144,128]{1,0:T(1,128)}', space=vmem, size = 0x12000, scoped, tag = 'internal scratch']
  %s0 = inlined_call_operand.vmem [shape: f32[4,1152], index: 0, kind: input, shape index: {}]
  %s1 = inlined_call_operand.vmem [shape: f32[1,1152], index: 1, kind: output, shape index: {}]
  %s2 = sld [smem:[#allocation0]]
  $region14: #{squeezenet_forward.52} parent=0
    _
  %s4 = ssub.s32 1, %s2
  %s5 = scalar_select 0, %s4, %s2
  // Predicated region
  $region2: #{squeezenet_forward.52} parent=0 // pred_check
    _
  $region3: #{squeezenet_forward.52} parent=0 // pred_check_branch
    %7 = sbr.rel (0) target = $region5
  $region4: #{squeezenet_forward.52} parent=0 // pred_region
    _
  $region5: #{squeezenet_forward.52} parent=0 // pred_fallthru
    _
  %v8 = vld [vmem:[%s0] sm:$0xff]
  %v9 = vld [vmem:[%s0 + $0x8] sm:$0xff]
  %v10 = vld [vmem:[%s0 + $0x10] sm:$0xff]
  %v11 = vld [vmem:[%s0 + $0x18] sm:$0xff]
  %v12 = vld [vmem:[%s0 + $0x20] sm:$0xf]
  %v17 = vcombine.high %v8, %v8
  %v18 = vcombine.high %v9, %v9
  %v19 = vcombine.high %v10, %v10
  %v20 = vcombine.high %v11, %v11
  %vm25 = vcmask 1043456
  %v26 = vsel %vm25, %v8, -inf
  %v27 = vrot.slane %v26, 4
  %v28 = vmax.f32 %v26, %v27
  %v29 = vrot.slane %v28, 2
  %v30 = vmax.f32 %v28, %v29
  %v31 = vrot.slane %v30, 1
  %v32 = vmax.f32 %v30, %v31
  %v33 = vsel %vm25, %v17, -inf
  %v34 = vrot.slane %v33, 4
  %v35 = vmax.f32 %v33, %v34
  %v36 = vrot.slane %v35, 2
  %v37 = vmax.f32 %v35, %v36
  %v38 = vrot.slane %v37, 1
  %v39 = vmax.f32 %v37, %v38
  %v40 = vsel %vm25, %v9, -inf
  %v41 = vrot.slane %v40, 4
  %v42 = vmax.f32 %v40, %v41
  %v43 = vrot.slane %v42, 2
  %v44 = vmax.f32 %v42, %v43
  %v45 = vrot.slane %v44, 1
  %v46 = vmax.f32 %v44, %v45
  %v47 = vsel %vm25, %v18, -inf
  %v48 = vrot.slane %v47, 4
  %v49 = vmax.f32 %v47, %v48
  %v50 = vrot.slane %v49, 2
  %v51 = vmax.f32 %v49, %v50
  %v52 = vrot.slane %v51, 1
  %v53 = vmax.f32 %v51, %v52
  %v54 = vsel %vm25, %v10, -inf
  %v55 = vrot.slane %v54, 4
  %v56 = vmax.f32 %v54, %v55
  %v57 = vrot.slane %v56, 2
  %v58 = vmax.f32 %v56, %v57
  %v59 = vrot.slane %v58, 1
  %v60 = vmax.f32 %v58, %v59
  %v61 = vsel %vm25, %v19, -inf
  %v62 = vrot.slane %v61, 4
  %v63 = vmax.f32 %v61, %v62
  %v64 = vrot.slane %v63, 2
  %v65 = vmax.f32 %v63, %v64
  %v66 = vrot.slane %v65, 1
  %v67 = vmax.f32 %v65, %v66
  %v68 = vsel %vm25, %v11, -inf
  %v69 = vrot.slane %v68, 4
  %v70 = vmax.f32 %v68, %v69
  %v71 = vrot.slane %v70, 2
  %v72 = vmax.f32 %v70, %v71
  %v73 = vrot.slane %v72, 1
  %v74 = vmax.f32 %v72, %v73
  %v75 = vsel %vm25, %v20, -inf
  %v76 = vrot.slane %v75, 4
  %v77 = vmax.f32 %v75, %v76
  %v78 = vrot.slane %v77, 2
  %v79 = vmax.f32 %v77, %v78
  %v80 = vrot.slane %v79, 1
  %v81 = vmax.f32 %v79, %v80
  %v82 = vsel %vm25, %v12, -inf
  %v83 = vrot.slane %v82, 4
  %v84 = vmax.f32 %v82, %v83
  %v85 = vrot.slane %v84, 2
  %v86 = vmax.f32 %v84, %v85
  %v87 = vrot.slane %v86, 1
  %v88 = vmax.f32 %v86, %v87
  %v98 = vcombine.low %v32, %v39
  %v99 = vcombine.low %v46, %v53
  %v100 = vcombine.low %v60, %v67
  %v101 = vcombine.low %v74, %v81
  %v103 = vunpack.c.l.s4 1966171168
  %v104 = vunpack.c.0.s8 %v103
  %v105 = vlaneseq
  %v106 = vshrl.u32 %v105, 7
  %v107 = vsub.s32 %v104, %v106
  %v108 = vrot.slane %v98, %v107
  %v110 = vunpack.c.l.s4 1966171168
  %v111 = vunpack.c.0.s8 %v110
  %v112 = vlaneseq
  %v113 = vshrl.u32 %v112, 7
  %v114 = vsub.s32 %v111, %v113
  %v115 = vrot.slane %v99, %v114
  %v117 = vunpack.c.l.s4 1966171168
  %v118 = vunpack.c.0.s8 %v117
  %v119 = vlaneseq
  %v120 = vshrl.u32 %v119, 7
  %v121 = vsub.s32 %v118, %v120
  %v122 = vrot.slane %v100, %v121
  %v124 = vunpack.c.l.s4 1966171168
  %v125 = vunpack.c.0.s8 %v124
  %v126 = vlaneseq
  %v127 = vshrl.u32 %v126, 7
  %v128 = vsub.s32 %v125, %v127
  %v129 = vrot.slane %v101, %v128
  %v130 = vcombine.low %v108, %v115
  %v131 = vcombine.low %v122, %v129
  %v133 = vunpack.c.l.s4 1966171168
  %v134 = vunpack.c.0.s8 %v133
  %v135 = vlaneseq
  %v136 = vshrl.u32 %v135, 7
  %v137 = vsub.s32 %v134, %v136
  %v138 = vrot.slane %v130, %v137
  %v140 = vunpack.c.l.s4 1966171168
  %v141 = vunpack.c.0.s8 %v140
  %v142 = vlaneseq
  %v143 = vshrl.u32 %v142, 7
  %v144 = vsub.s32 %v141, %v143
  %v145 = vrot.slane %v131, %v144
  %v146 = vcombine.low %v138, %v145
  %v148 = vunpack.c.l.s4 1966171168
  %v149 = vunpack.c.0.s8 %v148
  %v150 = vlaneseq
  %v151 = vshrl.u32 %v150, 7
  %v152 = vsub.s32 %v149, %v151
  %v153 = vrot.slane %v88, %v152
  %v155 = vunpack.c.l.s4 1966171168
  %v156 = vunpack.c.0.s8 %v155
  %v157 = vlaneseq
  %v158 = vshrl.u32 %v157, 7
  %v159 = vsub.s32 %v156, %v158
  %v160 = vrot.slane %v153, %v159
  %163 = vst [vmem:[%s1] sm:$0xff] %v146
  %v164 = vlaneseq
  %vm165 = vcmp.ge.s32.totalorder %v164, 0
  %vm166 = vcmp.lt.s32.totalorder %v164, 128
  %vm167 = vmand %vm165, %vm166
  %168 = vst.msk [vmem:[%s1 + $0x8] sm:$0x1] %vm167, %v160
  // Predicated region
  $region6: #{squeezenet_forward.52} parent=0 // pred_check
    _
  $region7: #{squeezenet_forward.52} parent=0 // pred_check_branch
    %170 = sbr.rel (0) target = $region9
  $region8: #{squeezenet_forward.52} parent=0 // pred_region
    _
  $region9: #{squeezenet_forward.52} parent=0 // pred_fallthru
    _
  // Predicated region
  $region10: #{squeezenet_forward.52} parent=0 // pred_check
    _
  $region11: #{squeezenet_forward.52} parent=0 // pred_check_branch
    %172 = sbr.rel (0) target = $region13
  $region12: #{squeezenet_forward.52} parent=0 // pred_region
    _
  $region13: #{squeezenet_forward.52} parent=0 // pred_fallthru
    _

// kernel: squeezenet_forward.34
$region0: #{squeezenet_forward.34}
  #allocation0 [shape = 'u32[]', space=smem, size = 0x4, offset = 0x4, fixed_abs, tag = 'smem constant byte address 0x4 - core index']
  #allocation1 [shape = 'u32[144,128]{1,0:T(1,128)}', space=vmem, size = 0x12000, scoped, tag = 'internal scratch']
  %s0 = inlined_call_operand.vmem [shape: f32[9,1152], index: 0, kind: input, shape index: {}]
  %s1 = inlined_call_operand.vmem [shape: f32[1,1152], index: 1, kind: output, shape index: {}]
  %s2 = sld [smem:[#allocation0]]
  $region14: #{squeezenet_forward.34} parent=0
    _
  %s4 = ssub.s32 1, %s2
  %s5 = scalar_select 0, %s4, %s2
  // Predicated region
  $region2: #{squeezenet_forward.34} parent=0 // pred_check
    _
  $region3: #{squeezenet_forward.34} parent=0 // pred_check_branch
    %7 = sbr.rel (0) target = $region5
  $region4: #{squeezenet_forward.34} parent=0 // pred_region
    _
  $region5: #{squeezenet_forward.34} parent=0 // pred_fallthru
    _
  %v8 = vld [vmem:[%s0] sm:$0xff]
  %v9 = vld [vmem:[%s0 + $0x8] sm:$0xff]
  %v10 = vld [vmem:[%s0 + $0x10] sm:$0xff]
  %v11 = vld [vmem:[%s0 + $0x18] sm:$0xff]
  %v12 = vld [vmem:[%s0 + $0x20] sm:$0xff]
  %v13 = vld [vmem:[%s0 + $0x28] sm:$0xff]
  %v14 = vld [vmem:[%s0 + $0x30] sm:$0xff]
  %v15 = vld [vmem:[%s0 + $0x38] sm:$0xff]
  %v16 = vld [vmem:[%s0 + $0x40] sm:$0xff]
  %v17 = vld [vmem:[%s0 + $0x48] sm:$0x1]
  %v18 = vld [vmem:[%s0 + $0x50] sm:$0x1]
  %v19 = vld [vmem:[%s0 + $0x58] sm:$0x1]
  %v20 = vld [vmem:[%s0 + $0x60] sm:$0x1]
  %v21 = vld [vmem:[%s0 + $0x68] sm:$0x1]
  %v22 = vld [vmem:[%s0 + $0x70] sm:$0x1]
  %v23 = vld [vmem:[%s0 + $0x78] sm:$0x1]
  %v24 = vld [vmem:[%s0 + $0x80] sm:$0x1]
  %v25 = vld [vmem:[%s0 + $0x88] sm:$0x1]
  %vm26 = vcmask 1040384
  %v27 = vsel %vm26, %v17, -inf
  %v28 = vmax.f32 %v8, %v27
  %v29 = vrot.slane %v28, 4
  %v30 = vmax.f32 %v28, %v29
  %v31 = vrot.slane %v30, 2
  %v32 = vmax.f32 %v30, %v31
  %v33 = vrot.slane %v32, 1
  %v34 = vmax.f32 %v32, %v33
  %v35 = vsel %vm26, %v18, -inf
  %v36 = vmax.f32 %v9, %v35
  %v37 = vrot.slane %v36, 4
  %v38 = vmax.f32 %v36, %v37
  %v39 = vrot.slane %v38, 2
  %v40 = vmax.f32 %v38, %v39
  %v41 = vrot.slane %v40, 1
  %v42 = vmax.f32 %v40, %v41
  %v43 = vsel %vm26, %v19, -inf
  %v44 = vmax.f32 %v10, %v43
  %v45 = vrot.slane %v44, 4
  %v46 = vmax.f32 %v44, %v45
  %v47 = vrot.slane %v46, 2
  %v48 = vmax.f32 %v46, %v47
  %v49 = vrot.slane %v48, 1
  %v50 = vmax.f32 %v48, %v49
  %v51 = vsel %vm26, %v20, -inf
  %v52 = vmax.f32 %v11, %v51
  %v53 = vrot.slane %v52, 4
  %v54 = vmax.f32 %v52, %v53
  %v55 = vrot.slane %v54, 2
  %v56 = vmax.f32 %v54, %v55
  %v57 = vrot.slane %v56, 1
  %v58 = vmax.f32 %v56, %v57
  %v59 = vsel %vm26, %v21, -inf
  %v60 = vmax.f32 %v12, %v59
  %v61 = vrot.slane %v60, 4
  %v62 = vmax.f32 %v60, %v61
  %v63 = vrot.slane %v62, 2
  %v64 = vmax.f32 %v62, %v63
  %v65 = vrot.slane %v64, 1
  %v66 = vmax.f32 %v64, %v65
  %v67 = vsel %vm26, %v22, -inf
  %v68 = vmax.f32 %v13, %v67
  %v69 = vrot.slane %v68, 4
  %v70 = vmax.f32 %v68, %v69
  %v71 = vrot.slane %v70, 2
  %v72 = vmax.f32 %v70, %v71
  %v73 = vrot.slane %v72, 1
  %v74 = vmax.f32 %v72, %v73
  %v75 = vsel %vm26, %v23, -inf
  %v76 = vmax.f32 %v14, %v75
  %v77 = vrot.slane %v76, 4
  %v78 = vmax.f32 %v76, %v77
  %v79 = vrot.slane %v78, 2
  %v80 = vmax.f32 %v78, %v79
  %v81 = vrot.slane %v80, 1
  %v82 = vmax.f32 %v80, %v81
  %v83 = vsel %vm26, %v24, -inf
  %v84 = vmax.f32 %v15, %v83
  %v85 = vrot.slane %v84, 4
  %v86 = vmax.f32 %v84, %v85
  %v87 = vrot.slane %v86, 2
  %v88 = vmax.f32 %v86, %v87
  %v89 = vrot.slane %v88, 1
  %v90 = vmax.f32 %v88, %v89
  %v91 = vsel %vm26, %v25, -inf
  %v92 = vmax.f32 %v16, %v91
  %v93 = vrot.slane %v92, 4
  %v94 = vmax.f32 %v92, %v93
  %v95 = vrot.slane %v94, 2
  %v96 = vmax.f32 %v94, %v95
  %v97 = vrot.slane %v96, 1
  %v98 = vmax.f32 %v96, %v97
  %v108 = vcombine.low %v34, %v42
  %v109 = vcombine.low %v50, %v58
  %v110 = vcombine.low %v66, %v74
  %v111 = vcombine.low %v82, %v90
  %v113 = vunpack.c.l.s4 1966171168
  %v114 = vunpack.c.0.s8 %v113
  %v115 = vlaneseq
  %v116 = vshrl.u32 %v115, 7
  %v117 = vsub.s32 %v114, %v116
  %v118 = vrot.slane %v108, %v117
  %v120 = vunpack.c.l.s4 1966171168
  %v121 = vunpack.c.0.s8 %v120
  %v122 = vlaneseq
  %v123 = vshrl.u32 %v122, 7
  %v124 = vsub.s32 %v121, %v123
  %v125 = vrot.slane %v109, %v124
  %v127 = vunpack.c.l.s4 1966171168
  %v128 = vunpack.c.0.s8 %v127
  %v129 = vlaneseq
  %v130 = vshrl.u32 %v129, 7
  %v131 = vsub.s32 %v128, %v130
  %v132 = vrot.slane %v110, %v131
  %v134 = vunpack.c.l.s4 1966171168
  %v135 = vunpack.c.0.s8 %v134
  %v136 = vlaneseq
  %v137 = vshrl.u32 %v136, 7
  %v138 = vsub.s32 %v135, %v137
  %v139 = vrot.slane %v111, %v138
  %v140 = vcombine.low %v118, %v125
  %v141 = vcombine.low %v132, %v139
  %v143 = vunpack.c.l.s4 1966171168
  %v144 = vunpack.c.0.s8 %v143
  %v145 = vlaneseq
  %v146 = vshrl.u32 %v145, 7
  %v147 = vsub.s32 %v144, %v146
  %v148 = vrot.slane %v140, %v147
  %v150 = vunpack.c.l.s4 1966171168
  %v151 = vunpack.c.0.s8 %v150
  %v152 = vlaneseq
  %v153 = vshrl.u32 %v152, 7
  %v154 = vsub.s32 %v151, %v153
  %v155 = vrot.slane %v141, %v154
  %v156 = vcombine.low %v148, %v155
  %v158 = vunpack.c.l.s4 1966171168
  %v159 = vunpack.c.0.s8 %v158
  %v160 = vlaneseq
  %v161 = vshrl.u32 %v160, 7
  %v162 = vsub.s32 %v159, %v161
  %v163 = vrot.slane %v98, %v162
  %v165 = vunpack.c.l.s4 1966171168
  %v166 = vunpack.c.0.s8 %v165
  %v167 = vlaneseq
  %v168 = vshrl.u32 %v167, 7
  %v169 = vsub.s32 %v166, %v168
  %v170 = vrot.slane %v163, %v169
  %173 = vst [vmem:[%s1] sm:$0xff] %v156
  %v174 = vlaneseq
  %vm175 = vcmp.ge.s32.totalorder %v174, 0
  %vm176 = vcmp.lt.s32.totalorder %v174, 128
  %vm177 = vmand %vm175, %vm176
  %178 = vst.msk [vmem:[%s1 + $0x8] sm:$0x1] %vm177, %v170
  // Predicated region
  $region6: #{squeezenet_forward.34} parent=0 // pred_check
    _
  $region7: #{squeezenet_forward.34} parent=0 // pred_check_branch
    %180 = sbr.rel (0) target = $region9
  $region8: #{squeezenet_forward.34} parent=0 // pred_region
    _
  $region9: #{squeezenet_forward.34} parent=0 // pred_fallthru
    _
  // Predicated region
  $region10: #{squeezenet_forward.34} parent=0 // pred_check
    _
  $region11: #{squeezenet_forward.34} parent=0 // pred_check_branch
    %182 = sbr.rel (0) target = $region13
  $region12: #{squeezenet_forward.34} parent=0 // pred_region
    _
  $region13: #{squeezenet_forward.34} parent=0 // pred_fallthru
    _

// kernel: squeezenet_forward.35
$region0: #{squeezenet_forward.35}
  #allocation0 [shape = 'u32[]', space=smem, size = 0x4, offset = 0x4, fixed_abs, tag = 'smem constant byte address 0x4 - core index']
  #allocation1 [shape = 'u32[144,128]{1,0:T(1,128)}', space=vmem, size = 0x12000, scoped, tag = 'internal scratch']
  %s0 = inlined_call_operand.vmem [shape: bf16[16,128], index: 0, kind: input, shape index: {}]
  %s1 = inlined_call_operand.hbm [shape: bf16[128,128], index: 1, kind: input, shape index: {}]
  %s2 = inlined_call_operand.vmem [shape: f32[8,128], index: 2, kind: input, shape index: {}]
  %s3 = inlined_call_operand.vmem [shape: f32[16,128], index: 3, kind: output, shape index: {}]
  %s4 = sld [smem:[#allocation0]]
  $region34: #{squeezenet_forward.35} parent=0
    _
  %s6 = ssub.s32 1, %s4
  %s7 = scalar_select 0, %s6, %s4
  $region1: #{squeezenet_forward.35} parent=0
    #allocation2 [shape = 'u8[32768]{0}', space=vmem, size = 0x8000, scoped, tag = 'input window, operand 1, single buffered']
    #allocation3 [shape = 's32[1]{0}', space=sflag, size = 0x4, scoped, tag = 'scoped memory for squeezenet_forward.35']
    %8 = vsyncpa [#allocation3], 0
    // Predicated region
    $region2: #{squeezenet_forward.35} parent=1 // pred_check
      _
    $region3: #{squeezenet_forward.35} parent=1 // pred_check_branch
      %10 = sbr.rel (0) target = $region5
    $region4: #{squeezenet_forward.35} parent=1 // pred_region
      _
    $region5: #{squeezenet_forward.35} parent=1 // pred_fallthru
      _
    // Predicated region
    $region6: #{squeezenet_forward.35} parent=1 // pred_check
      _
    $region7: #{squeezenet_forward.35} parent=1 // pred_check_branch
      %12 = sbr.rel (0) target = $region9
    $region8: #{squeezenet_forward.35} parent=1 // pred_region
      %s14 = ssub.s32 1024, 1024
      %15 = vsyncadd [#allocation3], %s14
      %s16 = sshll.u32 [#allocation2], 4
      %s17 = int_to_ptr.vmem [resolvable:$true] %s16
      %22 = dma.hbm_to_vmem [thread:$0]  %s1, 1024, %s17, [#allocation3], 64, 64, 4
    $region9: #{squeezenet_forward.35} parent=1 // pred_fallthru
      _
    // Predicated region
    $region10: #{squeezenet_forward.35} parent=1 // pred_check
      _
    $region11: #{squeezenet_forward.35} parent=1 // pred_check_branch
      %24 = sbr.rel (0) target = $region13
    $region12: #{squeezenet_forward.35} parent=1 // pred_region
      _
    $region13: #{squeezenet_forward.35} parent=1 // pred_fallthru
      _
    // Predicated region
    $region14: #{squeezenet_forward.35} parent=1 // pred_check
      _
    $region15: #{squeezenet_forward.35} parent=1 // pred_check_branch
      %26 = sbr.rel (0) target = $region17
    $region16: #{squeezenet_forward.35} parent=1 // pred_region
      %27 = dma.done [#allocation3], 1024
    $region17: #{squeezenet_forward.35} parent=1 // pred_fallthru
      _
    %p29 = scmp.eq.s32.totalorder 0, 0
    // Predicated region
    $region18: #{squeezenet_forward.35} parent=1 // pred_check
      %p30 = pneg %p29
    $region19: #{squeezenet_forward.35} parent=1 // pred_check_branch
      %32 = sbr.rel (%p30) target = $region21
    $region20: #{squeezenet_forward.35} parent=1 // pred_region
      %33 = vst [vmem:[%s3] sm:$0xff] 0.0
      %34 = vst [vmem:[%s3 + $0x8] sm:$0xff] 0.0
    $region21: #{squeezenet_forward.35} parent=1 // pred_fallthru
      _
    %v35 = vld [vmem:[%s3] sm:$0xff]
    %v36 = vld [vmem:[%s3 + $0x8] sm:$0xff]
    %v37 = vld [vmem:[%s0] sm:$0xf]
    %v38 = vld [vmem:[%s0 + $0x4] sm:$0xf]
    %v39 = vld [vmem:[#allocation2] sm:$0xf]
    %v40 = vld [vmem:[#allocation2 + $0x4] sm:$0xf]
    %v41 = vld [vmem:[#allocation2 + $0x8] sm:$0xf]
    %v42 = vld [vmem:[#allocation2 + $0xc] sm:$0xf]
    %v43 = vld [vmem:[#allocation2 + $0x10] sm:$0xf]
    %v44 = vld [vmem:[#allocation2 + $0x14] sm:$0xf]
    %v45 = vld [vmem:[#allocation2 + $0x18] sm:$0xf]
    %v46 = vld [vmem:[#allocation2 + $0x1c] sm:$0xf]
    %v47 = vld [vmem:[#allocation2 + $0x20] sm:$0xf]
    %v48 = vld [vmem:[#allocation2 + $0x24] sm:$0xf]
    %v49 = vld [vmem:[#allocation2 + $0x28] sm:$0xf]
    %v50 = vld [vmem:[#allocation2 + $0x2c] sm:$0xf]
    %v51 = vld [vmem:[#allocation2 + $0x30] sm:$0xf]
    %v52 = vld [vmem:[#allocation2 + $0x34] sm:$0xf]
    %v53 = vld [vmem:[#allocation2 + $0x38] sm:$0xf]
    %v54 = vld [vmem:[#allocation2 + $0x3c] sm:$0xf]
    %v57 = vunpack.c.l.b16 %v37
    %v58 = vunpack.c.l.b16 %v38
    %v59 = vpack.c.b16 %v58, %v57
    %v77 = vunpack.c.l.b16 %v39
    %v78 = vunpack.c.l.b16 %v40
    %v79 = vunpack.c.l.b16 %v41
    %v80 = vunpack.c.l.b16 %v42
    %v81 = vunpack.c.l.b16 %v43
    %v82 = vunpack.c.l.b16 %v44
    %v83 = vunpack.c.l.b16 %v45
    %v84 = vunpack.c.l.b16 %v46
    %v85 = vunpack.c.l.b16 %v47
    %v86 = vunpack.c.l.b16 %v48
    %v87 = vunpack.c.l.b16 %v49
    %v88 = vunpack.c.l.b16 %v50
    %v89 = vunpack.c.l.b16 %v51
    %v90 = vunpack.c.l.b16 %v52
    %v91 = vunpack.c.l.b16 %v53
    %v92 = vunpack.c.l.b16 %v54
    %v93 = vpack.c.b16 %v78, %v77
    %v94 = vpack.c.b16 %v80, %v79
    %v95 = vpack.c.b16 %v82, %v81
    %v96 = vpack.c.b16 %v84, %v83
    %v97 = vpack.c.b16 %v86, %v85
    %v98 = vpack.c.b16 %v88, %v87
    %v99 = vpack.c.b16 %v90, %v89
    %v100 = vpack.c.b16 %v92, %v91
    %109 = vmatprep.subr.bf16.mxu0 0
    %110 = vmatpush1.bf16.msra.mxu0 %v93
    %111 = vmatprep.subr.bf16.mxu0 0
    %112 = vmatpush1.bf16.msra.mxu0 %v94
    %113 = vmatprep.subr.bf16.mxu0 0
    %114 = vmatpush1.bf16.msra.mxu0 %v95
    %115 = vmatprep.subr.bf16.mxu0 0
    %116 = vmatpush1.bf16.msra.mxu0 %v96
    %117 = vmatprep.subr.bf16.mxu0 0
    %118 = vmatpush1.bf16.msra.mxu0 %v97
    %119 = vmatprep.subr.bf16.mxu0 0
    %120 = vmatpush1.bf16.msra.mxu0 %v98
    %121 = vmatprep.subr.bf16.mxu0 0
    %122 = vmatpush1.bf16.msra.mxu0 %v99
    %123 = vmatprep.subr.bf16.mxu0 0
    %124 = vmatpush1.bf16.msra.mxu0 %v100
    %125 = vmatprep.subr.bf16.mxu0 0
    %126 = vmatpush1.bf16.msra.mxu0 0
    %127 = vmatprep.subr.bf16.mxu0 0
    %128 = vmatpush1.bf16.msra.mxu0 0
    %129 = vmatprep.subr.bf16.mxu0 0
    %130 = vmatpush1.bf16.msra.mxu0 0
    %131 = vmatprep.subr.bf16.mxu0 0
    %132 = vmatpush1.bf16.msra.mxu0 0
    %133 = vmatprep.subr.bf16.mxu0 0
    %134 = vmatpush1.bf16.msra.mxu0 0
    %135 = vmatprep.subr.bf16.mxu0 0
    %136 = vmatpush1.bf16.msra.mxu0 0
    %137 = vmatprep.subr.bf16.mxu0 0
    %138 = vmatpush1.bf16.msra.mxu0 0
    %139 = vmatprep.subr.bf16.mxu0 0
    %140 = vmatpush1.bf16.msra.mxu0 0
    %141 = vmatprep.mubr.bf16.mxu0 0
    %142 = vmatmul.mubr.bf16.gmra.mrb[0].mxu0 %v59
    %v143 = vpop.f32.mrb[0].mxu0
    %v144 = vadd.f32 0.0, %v143
    %v145 = vpop.f32.mrb[0].mxu0
    %v146 = vpop.f32.mrb[0].mxu0
    %v147 = vadd.f32 0.0, %v146
    %v148 = vpop.f32.mrb[0].mxu0
    %149 = vdwg.mxu0
    %v150 = vadd.f32 %v35, %v144
    %v151 = vadd.f32 %v36, %v147
    %152 = vst [vmem:[%s3] sm:$0xff] %v150
    %153 = vst [vmem:[%s3 + $0x8] sm:$0xff] %v151
    // Predicated region
    $region22: #{squeezenet_forward.35} parent=1 // pred_check
      %p154 = pneg %p29
    $region23: #{squeezenet_forward.35} parent=1 // pred_check_branch
      %156 = sbr.rel (%p154) target = $region25
    $region24: #{squeezenet_forward.35} parent=1 // pred_region
      %v157 = vld [vmem:[%s3] sm:$0xff]
      %v158 = vld [vmem:[%s3 + $0x8] sm:$0xff]
      %v159 = vld [vmem:[%s2] sm:$0x1]
      %v160 = vlaneseq
      %v161 = vshrl.u32 %v160, 7
      %v162 = vsub.s32 0, %v161
      %v163 = vrot.slane %v159, %v162
      %v164 = vadd.f32 %v157, %v163
      %v165 = vadd.f32 %v158, %v163
      %v166 = vmax.f32 %v164, 0.0
      %v167 = vmax.f32 %v165, 0.0
      %168 = vst [vmem:[%s3] sm:$0xff] %v166
      %169 = vst [vmem:[%s3 + $0x8] sm:$0xff] %v167
    $region25: #{squeezenet_forward.35} parent=1 // pred_fallthru
      _
    // Predicated region
    $region26: #{squeezenet_forward.35} parent=1 // pred_check
      _
    $region27: #{squeezenet_forward.35} parent=1 // pred_check_branch
      %171 = sbr.rel (0) target = $region29
    $region28: #{squeezenet_forward.35} parent=1 // pred_region
      _
    $region29: #{squeezenet_forward.35} parent=1 // pred_fallthru
      _
    // Predicated region
    $region30: #{squeezenet_forward.35} parent=1 // pred_check
      _
    $region31: #{squeezenet_forward.35} parent=1 // pred_check_branch
      %173 = sbr.rel (0) target = $region33
    $region32: #{squeezenet_forward.35} parent=1 // pred_region
      _
    $region33: #{squeezenet_forward.35} parent=1 // pred_fallthru
      _
    %174 = vsyncpa [#allocation3], 1

// kernel: squeezenet_forward.37
$region0: #{squeezenet_forward.37}
  #allocation0 [shape = 'u32[]', space=smem, size = 0x4, offset = 0x4, fixed_abs, tag = 'smem constant byte address 0x4 - core index']
  #allocation1 [shape = 'u32[144,128]{1,0:T(1,128)}', space=vmem, size = 0x12000, scoped, tag = 'internal scratch']
  %s0 = inlined_call_operand.vmem [shape: bf16[16,256], index: 0, kind: input, shape index: {}]
  %s1 = inlined_call_operand.hbm [shape: bf16[256,128], index: 1, kind: input, shape index: {}]
  %s2 = inlined_call_operand.vmem [shape: f32[8,128], index: 2, kind: input, shape index: {}]
  %s3 = inlined_call_operand.vmem [shape: f32[16,128], index: 3, kind: output, shape index: {}]
  %s4 = sld [smem:[#allocation0]]
  $region34: #{squeezenet_forward.37} parent=0
    _
  %s6 = ssub.s32 1, %s4
  %s7 = scalar_select 0, %s6, %s4
  $region1: #{squeezenet_forward.37} parent=0
    #allocation2 [shape = 'u8[65536]{0}', space=vmem, size = 0x10000, scoped, tag = 'input window, operand 1, single buffered']
    #allocation3 [shape = 's32[1]{0}', space=sflag, size = 0x4, scoped, tag = 'scoped memory for squeezenet_forward.37']
    %8 = vsyncpa [#allocation3], 0
    // Predicated region
    $region2: #{squeezenet_forward.37} parent=1 // pred_check
      _
    $region3: #{squeezenet_forward.37} parent=1 // pred_check_branch
      %10 = sbr.rel (0) target = $region5
    $region4: #{squeezenet_forward.37} parent=1 // pred_region
      _
    $region5: #{squeezenet_forward.37} parent=1 // pred_fallthru
      _
    // Predicated region
    $region6: #{squeezenet_forward.37} parent=1 // pred_check
      _
    $region7: #{squeezenet_forward.37} parent=1 // pred_check_branch
      %12 = sbr.rel (0) target = $region9
    $region8: #{squeezenet_forward.37} parent=1 // pred_region
      %s14 = ssub.s32 2048, 2048
      %15 = vsyncadd [#allocation3], %s14
      %s16 = sshll.u32 [#allocation2], 4
      %s17 = int_to_ptr.vmem [resolvable:$true] %s16
      %22 = dma.hbm_to_vmem [thread:$0]  %s1, 2048, %s17, [#allocation3], 64, 64, 4
    $region9: #{squeezenet_forward.37} parent=1 // pred_fallthru
      _
    // Predicated region
    $region10: #{squeezenet_forward.37} parent=1 // pred_check
      _
    $region11: #{squeezenet_forward.37} parent=1 // pred_check_branch
      %24 = sbr.rel (0) target = $region13
    $region12: #{squeezenet_forward.37} parent=1 // pred_region
      _
    $region13: #{squeezenet_forward.37} parent=1 // pred_fallthru
      _
    // Predicated region
    $region14: #{squeezenet_forward.37} parent=1 // pred_check
      _
    $region15: #{squeezenet_forward.37} parent=1 // pred_check_branch
      %26 = sbr.rel (0) target = $region17
    $region16: #{squeezenet_forward.37} parent=1 // pred_region
      %27 = dma.done [#allocation3], 2048
    $region17: #{squeezenet_forward.37} parent=1 // pred_fallthru
      _
    %p29 = scmp.eq.s32.totalorder 0, 0
    // Predicated region
    $region18: #{squeezenet_forward.37} parent=1 // pred_check
      %p30 = pneg %p29
    $region19: #{squeezenet_forward.37} parent=1 // pred_check_branch
      %32 = sbr.rel (%p30) target = $region21
    $region20: #{squeezenet_forward.37} parent=1 // pred_region
      %33 = vst [vmem:[%s3] sm:$0xff] 0.0
      %34 = vst [vmem:[%s3 + $0x8] sm:$0xff] 0.0
    $region21: #{squeezenet_forward.37} parent=1 // pred_fallthru
      _
    %v35 = vld [vmem:[%s3] sm:$0xff]
    %v36 = vld [vmem:[%s3 + $0x8] sm:$0xff]
    %v37 = vld [vmem:[%s0] sm:$0xff]
    %v38 = vld [vmem:[%s0 + $0x8] sm:$0xff]
    %v39 = vld [vmem:[#allocation2] sm:$0xf]
    %v40 = vld [vmem:[#allocation2 + $0x4] sm:$0xf]
    %v41 = vld [vmem:[#allocation2 + $0x8] sm:$0xf]
    %v42 = vld [vmem:[#allocation2 + $0xc] sm:$0xf]
    %v43 = vld [vmem:[#allocation2 + $0x10] sm:$0xf]
    %v44 = vld [vmem:[#allocation2 + $0x14] sm:$0xf]
    %v45 = vld [vmem:[#allocation2 + $0x18] sm:$0xf]
    %v46 = vld [vmem:[#allocation2 + $0x1c] sm:$0xf]
    %v47 = vld [vmem:[#allocation2 + $0x20] sm:$0xf]
    %v48 = vld [vmem:[#allocation2 + $0x24] sm:$0xf]
    %v49 = vld [vmem:[#allocation2 + $0x28] sm:$0xf]
    %v50 = vld [vmem:[#allocation2 + $0x2c] sm:$0xf]
    %v51 = vld [vmem:[#allocation2 + $0x30] sm:$0xf]
    %v52 = vld [vmem:[#allocation2 + $0x34] sm:$0xf]
    %v53 = vld [vmem:[#allocation2 + $0x38] sm:$0xf]
    %v54 = vld [vmem:[#allocation2 + $0x3c] sm:$0xf]
    %v55 = vld [vmem:[#allocation2 + $0x40] sm:$0xf]
    %v56 = vld [vmem:[#allocation2 + $0x44] sm:$0xf]
    %v57 = vld [vmem:[#allocation2 + $0x48] sm:$0xf]
    %v58 = vld [vmem:[#allocation2 + $0x4c] sm:$0xf]
    %v59 = vld [vmem:[#allocation2 + $0x50] sm:$0xf]
    %v60 = vld [vmem:[#allocation2 + $0x54] sm:$0xf]
    %v61 = vld [vmem:[#allocation2 + $0x58] sm:$0xf]
    %v62 = vld [vmem:[#allocation2 + $0x5c] sm:$0xf]
    %v63 = vld [vmem:[#allocation2 + $0x60] sm:$0xf]
    %v64 = vld [vmem:[#allocation2 + $0x64] sm:$0xf]
    %v65 = vld [vmem:[#allocation2 + $0x68] sm:$0xf]
    %v66 = vld [vmem:[#allocation2 + $0x6c] sm:$0xf]
    %v67 = vld [vmem:[#allocation2 + $0x70] sm:$0xf]
    %v68 = vld [vmem:[#allocation2 + $0x74] sm:$0xf]
    %v69 = vld [vmem:[#allocation2 + $0x78] sm:$0xf]
    %v70 = vld [vmem:[#allocation2 + $0x7c] sm:$0xf]
    %v73 = vunpack.c.l.b16 %v37
    %v74 = vunpack.c.h.b16 %v37
    %v75 = vunpack.c.l.b16 %v38
    %v76 = vunpack.c.h.b16 %v38
    %v77 = vpack.c.b16 %v75, %v73
    %v78 = vpack.c.b16 %v76, %v74
    %v113 = vunpack.c.l.b16 %v39
    %v114 = vunpack.c.l.b16 %v40
    %v115 = vunpack.c.l.b16 %v41
    %v116 = vunpack.c.l.b16 %v42
    %v117 = vunpack.c.l.b16 %v43
    %v118 = vunpack.c.l.b16 %v44
    %v119 = vunpack.c.l.b16 %v45
    %v120 = vunpack.c.l.b16 %v46
    %v121 = vunpack.c.l.b16 %v47
    %v122 = vunpack.c.l.b16 %v48
    %v123 = vunpack.c.l.b16 %v49
    %v124 = vunpack.c.l.b16 %v50
    %v125 = vunpack.c.l.b16 %v51
    %v126 = vunpack.c.l.b16 %v52
    %v127 = vunpack.c.l.b16 %v53
    %v128 = vunpack.c.l.b16 %v54
    %v129 = vunpack.c.l.b16 %v55
    %v130 = vunpack.c.l.b16 %v56
    %v131 = vunpack.c.l.b16 %v57
    %v132 = vunpack.c.l.b16 %v58
    %v133 = vunpack.c.l.b16 %v59
    %v134 = vunpack.c.l.b16 %v60
    %v135 = vunpack.c.l.b16 %v61
    %v136 = vunpack.c.l.b16 %v62
    %v137 = vunpack.c.l.b16 %v63
    %v138 = vunpack.c.l.b16 %v64
    %v139 = vunpack.c.l.b16 %v65
    %v140 = vunpack.c.l.b16 %v66
    %v141 = vunpack.c.l.b16 %v67
    %v142 = vunpack.c.l.b16 %v68
    %v143 = vunpack.c.l.b16 %v69
    %v144 = vunpack.c.l.b16 %v70
    %v145 = vpack.c.b16 %v114, %v113
    %v146 = vpack.c.b16 %v116, %v115
    %v147 = vpack.c.b16 %v118, %v117
    %v148 = vpack.c.b16 %v120, %v119
    %v149 = vpack.c.b16 %v122, %v121
    %v150 = vpack.c.b16 %v124, %v123
    %v151 = vpack.c.b16 %v126, %v125
    %v152 = vpack.c.b16 %v128, %v127
    %v153 = vpack.c.b16 %v130, %v129
    %v154 = vpack.c.b16 %v132, %v131
    %v155 = vpack.c.b16 %v134, %v133
    %v156 = vpack.c.b16 %v136, %v135
    %v157 = vpack.c.b16 %v138, %v137
    %v158 = vpack.c.b16 %v140, %v139
    %v159 = vpack.c.b16 %v142, %v141
    %v160 = vpack.c.b16 %v144, %v143
    %177 = vmatprep.subr.bf16.mxu0 0
    %178 = vmatpush1.bf16.msra.mxu0 %v145
    %179 = vmatprep.subr.bf16.mxu0 0
    %180 = vmatpush1.bf16.msra.mxu0 %v146
    %181 = vmatprep.subr.bf16.mxu0 0
    %182 = vmatpush1.bf16.msra.mxu0 %v147
    %183 = vmatprep.subr.bf16.mxu0 0
    %184 = vmatpush1.bf16.msra.mxu0 %v148
    %185 = vmatprep.subr.bf16.mxu0 0
    %186 = vmatpush1.bf16.msra.mxu0 %v149
    %187 = vmatprep.subr.bf16.mxu0 0
    %188 = vmatpush1.bf16.msra.mxu0 %v150
    %189 = vmatprep.subr.bf16.mxu0 0
    %190 = vmatpush1.bf16.msra.mxu0 %v151
    %191 = vmatprep.subr.bf16.mxu0 0
    %192 = vmatpush1.bf16.msra.mxu0 %v152
    %193 = vmatprep.subr.bf16.mxu0 0
    %194 = vmatpush1.bf16.msra.mxu0 %v153
    %195 = vmatprep.subr.bf16.mxu0 0
    %196 = vmatpush1.bf16.msra.mxu0 %v154
    %197 = vmatprep.subr.bf16.mxu0 0
    %198 = vmatpush1.bf16.msra.mxu0 %v155
    %199 = vmatprep.subr.bf16.mxu0 0
    %200 = vmatpush1.bf16.msra.mxu0 %v156
    %201 = vmatprep.subr.bf16.mxu0 0
    %202 = vmatpush1.bf16.msra.mxu0 %v157
    %203 = vmatprep.subr.bf16.mxu0 0
    %204 = vmatpush1.bf16.msra.mxu0 %v158
    %205 = vmatprep.subr.bf16.mxu0 0
    %206 = vmatpush1.bf16.msra.mxu0 %v159
    %207 = vmatprep.subr.bf16.mxu0 0
    %208 = vmatpush1.bf16.msra.mxu0 %v160
    %209 = vmatprep.mubr.bf16.mxu0 %v78
    %210 = vmatmul.mubr.bf16.gmra.mrb[0].mxu0 %v77
    %v211 = vpop.f32.mrb[0].mxu0
    %v212 = vadd.f32 0.0, %v211
    %v213 = vpop.f32.mrb[0].mxu0
    %v214 = vpop.f32.mrb[0].mxu0
    %v215 = vadd.f32 0.0, %v214
    %v216 = vpop.f32.mrb[0].mxu0
    %217 = vdwg.mxu0
    %v218 = vadd.f32 %v35, %v212
    %v219 = vadd.f32 %v36, %v215
    %220 = vst [vmem:[%s3] sm:$0xff] %v218
    %221 = vst [vmem:[%s3 + $0x8] sm:$0xff] %v219
    // Predicated region
    $region22: #{squeezenet_forward.37} parent=1 // pred_check
      %p222 = pneg %p29
    $region23: #{squeezenet_forward.37} parent=1 // pred_check_branch
      %224 = sbr.rel (%p222) target = $region25
    $region24: #{squeezenet_forward.37} parent=1 // pred_region
      %v225 = vld [vmem:[%s3] sm:$0xff]
      %v226 = vld [vmem:[%s3 + $0x8] sm:$0xff]
      %v227 = vld [vmem:[%s2] sm:$0x1]
      %v228 = vlaneseq
      %v229 = vshrl.u32 %v228, 7
      %v230 = vsub.s32 0, %v229
      %v231 = vrot.slane %v227, %v230
      %v232 = vadd.f32 %v225, %v231
      %v233 = vadd.f32 %v226, %v231
      %v234 = vmax.f32 %v232, 0.0
      %v235 = vmax.f32 %v233, 0.0
      %236 = vst [vmem:[%s3] sm:$0xff] %v234
      %237 = vst [vmem:[%s3 + $0x8] sm:$0xff] %v235
    $region25: #{squeezenet_forward.37} parent=1 // pred_fallthru
      _
    // Predicated region
    $region26: #{squeezenet_forward.37} parent=1 // pred_check
      _
    $region27: #{squeezenet_forward.37} parent=1 // pred_check_branch
      %239 = sbr.rel (0) target = $region29
    $region28: #{squeezenet_forward.37} parent=1 // pred_region
      _
    $region29: #{squeezenet_forward.37} parent=1 // pred_fallthru
      _
    // Predicated region
    $region30: #{squeezenet_forward.37} parent=1 // pred_check
      _
    $region31: #{squeezenet_forward.37} parent=1 // pred_check_branch
      %241 = sbr.rel (0) target = $region33
    $region32: #{squeezenet_forward.37} parent=1 // pred_region
      _
    $region33: #{squeezenet_forward.37} parent=1 // pred_fallthru
      _
    %242 = vsyncpa [#allocation3], 1

// kernel: squeezenet_forward.36
$region0: #{squeezenet_forward.36}
  #allocation0 [shape = 'u32[]', space=smem, size = 0x4, offset = 0x4, fixed_abs, tag = 'smem constant byte address 0x4 - core index']
  #allocation1 [shape = 'u32[144,128]{1,0:T(1,128)}', space=vmem, size = 0x12000, scoped, tag = 'internal scratch']
  %s0 = inlined_call_operand.vmem [shape: bf16[16,384], index: 0, kind: input, shape index: {}]
  %s1 = inlined_call_operand.hbm [shape: bf16[384,256], index: 1, kind: input, shape index: {}]
  %s2 = inlined_call_operand.vmem [shape: f32[8,256], index: 2, kind: input, shape index: {}]
  %s3 = inlined_call_operand.vmem [shape: f32[16,256], index: 3, kind: output, shape index: {}]
  %s4 = sld [smem:[#allocation0]]
  $region91: #{squeezenet_forward.36} parent=0
    _
  %s6 = ssub.s32 1, %s4
  %s7 = scalar_select 0, %s6, %s4
  $region1: #{squeezenet_forward.36} parent=0
    #allocation2 [shape = 'u8[196608]{0}', space=vmem, size = 0x30000, scoped, tag = 'input window, operand 1']
    #allocation3 [shape = 's32[2]{0}', space=sflag, size = 0x8, scoped, tag = 'scoped memory for squeezenet_forward.36']
    #allocation4 [shape = 'u8[16384]{0}', space=vmem, size = 0x4000, scoped, tag = 'output window, operand 0']
    %8 = vsyncpa [#allocation3], 0
    %s9 = scalar_lea.sflag [#allocation3], 1
    %10 = vsyncpa %s9, 0
    loop: start=0, step=1, limit=4
    $region2: #{squeezenet_forward.36} parent=1 // loop_pre_header
      _
    $region3: #{squeezenet_forward.36} parent=1 // loop_header
      %s12 = sphi 0, %s16
      %p13 = scmp.ge.s32.totalorder %s12, 4
      %s19 = sphi 0, %s38
      %s20 = sphi 0, %s34
      %s21 = sphi 0, %s30
      %s22 = sphi 0, %s19
      %s23 = sphi 0, %s20
      %s24 = sphi 0, %s21
      %s25 = sphi 0, %s22
      %s26 = sphi 0, %s23
      %s27 = sphi 0, %s24
      %s43 = sphi 0, %s45
      %s46 = sphi 0, %s43
      %s47 = sphi 0, %s46
      %s63 = sphi 0, %s47
      %s71 = sphi 0, %s73
      %s74 = sphi 0, %s71
      %s75 = sphi 0, %s74
      %s91 = sphi 0, %s75
      %s97 = sphi 0, %s99
      %s100 = sphi 0, %s97
      %s101 = sphi 0, %s100
      %s117 = sphi 0, %s101
      %s125 = sphi 0, %s127
      %s128 = sphi 0, %s125
      %s129 = sphi 0, %s128
      %s145 = sphi 0, %s129
    $region4: #{squeezenet_forward.36} parent=1 // loop_header_branch
      %15 = sbr.rel (%p13) target = $region8
    $region5: #{squeezenet_forward.36} parent=1 // loop_body
      %s17 = ssub.s32 %s12, 1
      %s18 = ssub.s32 %s12, 2
      %s28 = sadd.s32 1, %s21
      %p29 = scmp.ge.s32.totalorder %s28, 1
      %s30 = scalar_select %p29, 0, %s28
      %s31 = sadd.s32 1, %s20
      %s32 = scalar_select %p29, %s31, %s20
      %p33 = scmp.ge.s32.totalorder %s32, 2
      %s34 = scalar_select %p33, 0, %s32
      %s35 = sadd.s32 1, %s19
      %s36 = scalar_select %p33, %s35, %s19
      %p37 = scmp.ge.s32.totalorder %s36, 1
      %s38 = scalar_select %p37, 0, %s36
      %s39 = ssub.s32 %s19, %s38
      %s40 = ssub.s32 %s21, %s30
      %s41 = sor.u32 %s39, %s40
      %p42 = scmp.eq.s32.totalorder %s41, 0
      %s44 = sadd.s32 %s43, 1
      %s45 = scalar_select %p42, %s43, %s44
      %p48 = pneg %p42
      %p49 = scmp.eq.s32.totalorder %s12, 1
      %p50 = por %p48, %p49
      %p51 = scmp.ne.s32.totalorder %s43, %s46
      %p52 = scmp.eq.s32.totalorder %s12, 0
      %p53 = por %p51, %p52
      %p54 = scmp.ne.s32.totalorder %s43, %s46
      %p55 = scmp.eq.s32.totalorder %s17, 1
      %p56 = por %p54, %p55
      %p57 = scmp.ne.s32.totalorder %s46, %s47
      %p58 = scmp.eq.s32.totalorder %s17, 0
      %p59 = por %p57, %p58
      %p60 = scmp.ne.s32.totalorder %s46, %s47
      %p61 = scmp.eq.s32.totalorder %s18, 1
      %p62 = por %p60, %p61
      %p64 = scmp.ne.s32.totalorder %s47, %s63
      %p65 = scmp.eq.s32.totalorder %s18, 0
      %p66 = por %p64, %p65
      %s67 = ssub.s32 %s21, %s30
      %s68 = ssub.s32 %s20, %s34
      %s69 = sor.u32 %s67, %s68
      %p70 = scmp.eq.s32.totalorder %s69, 0
      %s72 = sadd.s32 %s71, 1
      %s73 = scalar_select %p70, %s71, %s72
      %p76 = pneg %p70
      %p77 = scmp.eq.s32.totalorder %s12, 1
      %p78 = por %p76, %p77
      %p79 = scmp.ne.s32.totalorder %s71, %s74
      %p80 = scmp.eq.s32.totalorder %s12, 0
      %p81 = por %p79, %p80
      %p82 = scmp.ne.s32.totalorder %s71, %s74
      %p83 = scmp.eq.s32.totalorder %s17, 1
      %p84 = por %p82, %p83
      %p85 = scmp.ne.s32.totalorder %s74, %s75
      %p86 = scmp.eq.s32.totalorder %s17, 0
      %p87 = por %p85, %p86
      %p88 = scmp.ne.s32.totalorder %s74, %s75
      %p89 = scmp.eq.s32.totalorder %s18, 1
      %p90 = por %p88, %p89
      %p92 = scmp.ne.s32.totalorder %s75, %s91
      %p93 = scmp.eq.s32.totalorder %s18, 0
      %p94 = por %p92, %p93
      %s95 = ssub.s32 %s20, %s34
      %p96 = scmp.eq.s32.totalorder %s95, 0
      %s98 = sadd.s32 %s97, 1
      %s99 = scalar_select %p96, %s97, %s98
      %p102 = pneg %p96
      %p103 = scmp.eq.s32.totalorder %s12, 1
      %p104 = por %p102, %p103
      %p105 = scmp.ne.s32.totalorder %s97, %s100
      %p106 = scmp.eq.s32.totalorder %s12, 0
      %p107 = por %p105, %p106
      %p108 = scmp.ne.s32.totalorder %s97, %s100
      %p109 = scmp.eq.s32.totalorder %s17, 1
      %p110 = por %p108, %p109
      %p111 = scmp.ne.s32.totalorder %s100, %s101
      %p112 = scmp.eq.s32.totalorder %s17, 0
      %p113 = por %p111, %p112
      %p114 = scmp.ne.s32.totalorder %s100, %s101
      %p115 = scmp.eq.s32.totalorder %s18, 1
      %p116 = por %p114, %p115
      %p118 = scmp.ne.s32.totalorder %s101, %s117
      %p119 = scmp.eq.s32.totalorder %s18, 0
      %p120 = por %p118, %p119
      %s121 = ssub.s32 %s19, %s38
      %s122 = ssub.s32 %s20, %s34
      %s123 = sor.u32 %s121, %s122
      %p124 = scmp.eq.s32.totalorder %s123, 0
      %s126 = sadd.s32 %s125, 1
      %s127 = scalar_select %p124, %s125, %s126
      %p130 = pneg %p124
      %p131 = scmp.eq.s32.totalorder %s12, 1
      %p132 = por %p130, %p131
      %p133 = scmp.ne.s32.totalorder %s125, %s128
      %p134 = scmp.eq.s32.totalorder %s12, 0
      %p135 = por %p133, %p134
      %p136 = scmp.ne.s32.totalorder %s125, %s128
      %p137 = scmp.eq.s32.totalorder %s17, 1
      %p138 = por %p136, %p137
      %p139 = scmp.ne.s32.totalorder %s128, %s129
      %p140 = scmp.eq.s32.totalorder %s17, 0
      %p141 = por %p139, %p140
      %p142 = scmp.ne.s32.totalorder %s128, %s129
      %p143 = scmp.eq.s32.totalorder %s18, 1
      %p144 = por %p142, %p143
      %p146 = scmp.ne.s32.totalorder %s129, %s145
      %p147 = scmp.eq.s32.totalorder %s18, 0
      %p148 = por %p146, %p147
      %p149 = scmp.le.s32.totalorder 1, %s12
      %p150 = scmp.lt.s32.totalorder %s12, 3
      %p151 = pnand %p149, %p150
      %p152 = pneg %p151
      // Predicated region
      $region9: #{squeezenet_forward.36} parent=5 // pred_check
        _
      $region10: #{squeezenet_forward.36} parent=5 // pred_check_branch
        %154 = sbr.rel (%p151) target = $region12
      $region11: #{squeezenet_forward.36} parent=5 // pred_region
        %s155 = ssub.s32 %s12, 1
        // Predicated region
        $region13: #{squeezenet_forward.36} parent=11 // pred_check
          %p156 = pneg %p59
        $region14: #{squeezenet_forward.36} parent=11 // pred_check_branch
          %158 = sbr.rel (%p156) target = $region16
        $region15: #{squeezenet_forward.36} parent=11 // pred_region
          %s159 = smul.u32 2, %s22
          %s160 = smul.u32 3, %s24
          %p161 = scmp.lt.s32.totalorder %s159, 1
          %s162 = scalar_select %p161, %s159, 1
          %p163 = scmp.lt.s32.totalorder %s160, 2
          %s164 = scalar_select %p163, %s160, 2
          %s165 = smul.addr %s162, 3
          %s166 = sadd.s32 %s164, %s165
          %s167 = smul.addr %s166, 4
          %s168 = scalar_lea.vmem %s0, %s167
          %s169 = smul.u32 2, %s22
          %s170 = smul.u32 3, %s24
        $region16: #{squeezenet_forward.36} parent=11 // pred_fallthru
          _
      $region12: #{squeezenet_forward.36} parent=5 // pred_fallthru
        _
      %p171 = scmp.lt.s32.totalorder %s12, 2
      // Predicated region
      $region17: #{squeezenet_forward.36} parent=5 // pred_check
        %p172 = pneg %p171
      $region18: #{squeezenet_forward.36} parent=5 // pred_check_branch
        %174 = sbr.rel (%p172) target = $region20
      $region19: #{squeezenet_forward.36} parent=5 // pred_region
        // Predicated region
        $region21: #{squeezenet_forward.36} parent=19 // pred_check
          %p175 = pneg %p81
        $region22: #{squeezenet_forward.36} parent=19 // pred_check_branch
          %177 = sbr.rel (%p175) target = $region24
        $region23: #{squeezenet_forward.36} parent=19 // pred_region
          %s178 = sand.u32 %s71, 1
          %s179 = scalar_lea.sflag [#allocation3], %s178
          %s180 = sand.u32 %s71, 1
          %s181 = smul.addr %s180, 192
          %s182 = scalar_lea.vmem [#allocation2], %s181
          %s183 = smul.u32 48, %s21
          %s185 = ssub.s32 3072, 3072
          %186 = vsyncadd %s179, %s185
          %s187 = smul.addr %s183, 2
          %s188 = sadd.s32 %s20, %s187
          %s189 = smul.addr %s188, 64
          %s190 = scalar_lea.hbm %s1, %s189
          %s191 = sshll.u32 %s182, 4
          %s192 = int_to_ptr.vmem [resolvable:$true] %s191
          %197 = dma.hbm_to_vmem [thread:$0]  %s190, 3072, %s192, %s179, 128, 64, 4
        $region24: #{squeezenet_forward.36} parent=19 // pred_fallthru
          _
        // Predicated region
        $region25: #{squeezenet_forward.36} parent=19 // pred_check
          %p198 = pneg %p107
        $region26: #{squeezenet_forward.36} parent=19 // pred_check_branch
          %200 = sbr.rel (%p198) target = $region28
        $region27: #{squeezenet_forward.36} parent=19 // pred_region
          %p201 = scmp.lt.s32.totalorder %s20, 1
          %s202 = scalar_select %p201, %s20, 1
          %s203 = smul.addr %s202, 8
          %s204 = scalar_lea.vmem %s2, %s203
        $region28: #{squeezenet_forward.36} parent=19 // pred_fallthru
          _
      $region20: #{squeezenet_forward.36} parent=5 // pred_fallthru
        _
      %p205 = scmp.le.s32.totalorder 1, %s12
      %p206 = scmp.lt.s32.totalorder %s12, 3
      %p207 = pnand %p205, %p206
      %p208 = pneg %p207
      // Predicated region
      $region29: #{squeezenet_forward.36} parent=5 // pred_check
        _
      $region30: #{squeezenet_forward.36} parent=5 // pred_check_branch
        %210 = sbr.rel (%p207) target = $region32
      $region31: #{squeezenet_forward.36} parent=5 // pred_region
        %s211 = ssub.s32 %s12, 1
        %s212 = sand.u32 %s74, 1
        %s213 = scalar_lea.sflag [#allocation3], %s212
        %s214 = sand.u32 %s74, 1
        %s215 = smul.addr %s214, 192
        %s216 = scalar_lea.vmem [#allocation2], %s215
        // Predicated region
        $region33: #{squeezenet_forward.36} parent=31 // pred_check
          %p217 = pneg %p87
        $region34: #{squeezenet_forward.36} parent=31 // pred_check_branch
          %219 = sbr.rel (%p217) target = $region36
        $region35: #{squeezenet_forward.36} parent=31 // pred_region
          %220 = dma.done %s213, 3072
        $region36: #{squeezenet_forward.36} parent=31 // pred_fallthru
          _
        %s221 = smul.u32 2, %s22
        %s222 = smul.u32 3, %s24
        %p223 = scmp.lt.s32.totalorder %s221, 1
        %s224 = scalar_select %p223, %s221, 1
        %p225 = scmp.lt.s32.totalorder %s222, 2
        %s226 = scalar_select %p225, %s222, 2
        %s227 = smul.addr %s224, 3
        %s228 = sadd.s32 %s226, %s227
        %s229 = smul.addr %s228, 4
        %s230 = scalar_lea.vmem %s0, %s229
        %p231 = pneg %p59
        %p232 = pneg %p56
        %s233 = sand.u32 %s74, 1
        %s234 = scalar_lea.sflag [#allocation3], %s233
        %s235 = sand.u32 %s74, 1
        %s236 = smul.addr %s235, 192
        %s237 = scalar_lea.vmem [#allocation2], %s236
        %p238 = pneg %p87
        %p239 = pneg %p84
        %p240 = scmp.lt.s32.totalorder %s23, 1
        %s241 = scalar_select %p240, %s23, 1
        %s242 = smul.addr %s241, 8
        %s243 = scalar_lea.vmem %s2, %s242
        %p244 = pneg %p113
        %p245 = pneg %p110
        %p246 = pneg %p141
        %p247 = pneg %p138
        %s248 = sand.u32 %s128, 1
        %s249 = sand.u32 %s128, 1
        %s250 = smul.addr %s249, 16
        %s251 = scalar_lea.vmem [#allocation4], %s250
        %s252 = smul.u32 2, %s22
        %s253 = smul.u32 3, %s24
        %p254 = scmp.lt.s32.totalorder %s252, 1
        %s255 = scalar_select %p254, %s252, 1
        %p256 = scmp.lt.s32.totalorder %s253, 2
        %s257 = scalar_select %p256, %s253, 2
        %s258 = smul.addr %s255, 3
        %s259 = sadd.s32 %s257, %s258
        %s260 = smul.addr %s259, 4
        %s261 = scalar_lea.vmem %s0, %s260
        %s262 = smul.u32 2, %s22
        %s263 = smul.u32 3, %s24
        %s264 = smul.u32 48, %s24
        %p265 = scmp.lt.s32.totalorder %s23, 1
        %s266 = scalar_select %p265, %s23, 1
        %s267 = smul.addr %s266, 8
        %s268 = scalar_lea.vmem %s2, %s267
        %s269 = smul.u32 2, %s22
        %p271 = scmp.eq.s32.totalorder %s24, 0
        // Predicated region
        $region37: #{squeezenet_forward.36} parent=31 // pred_check
          %p272 = pneg %p271
        $region38: #{squeezenet_forward.36} parent=31 // pred_check_branch
          %274 = sbr.rel (%p272) target = $region40
        $region39: #{squeezenet_forward.36} parent=31 // pred_region
          %275 = vst [vmem:[%s251] sm:$0xff] 0.0
          %276 = vst [vmem:[%s251 + $0x8] sm:$0xff] 0.0
        $region40: #{squeezenet_forward.36} parent=31 // pred_fallthru
          _
        %v277 = vld [vmem:[%s251] sm:$0xff]
        %v278 = vld [vmem:[%s251 + $0x8] sm:$0xff]
        %v279 = vld [vmem:[%s261] sm:$0xff]
        %v280 = vld [vmem:[%s261 + $0x8] sm:$0xf]
        %v281 = vld [vmem:[%s261 + $0xc] sm:$0xff]
        %v282 = vld [vmem:[%s261 + $0x14] sm:$0xf]
        %v283 = vld [vmem:[%s216] sm:$0xf]
        %v284 = vld [vmem:[%s216 + $0x4] sm:$0xf]
        %v285 = vld [vmem:[%s216 + $0x8] sm:$0xf]
        %v286 = vld [vmem:[%s216 + $0xc] sm:$0xf]
        %v287 = vld [vmem:[%s216 + $0x10] sm:$0xf]
        %v288 = vld [vmem:[%s216 + $0x14] sm:$0xf]
        %v289 = vld [vmem:[%s216 + $0x18] sm:$0xf]
        %v290 = vld [vmem:[%s216 + $0x1c] sm:$0xf]
        %v291 = vld [vmem:[%s216 + $0x20] sm:$0xf]
        %v292 = vld [vmem:[%s216 + $0x24] sm:$0xf]
        %v293 = vld [vmem:[%s216 + $0x28] sm:$0xf]
        %v294 = vld [vmem:[%s216 + $0x2c] sm:$0xf]
        %v295 = vld [vmem:[%s216 + $0x30] sm:$0xf]
        %v296 = vld [vmem:[%s216 + $0x34] sm:$0xf]
        %v297 = vld [vmem:[%s216 + $0x38] sm:$0xf]
        %v298 = vld [vmem:[%s216 + $0x3c] sm:$0xf]
        %v299 = vld [vmem:[%s216 + $0x40] sm:$0xf]
        %v300 = vld [vmem:[%s216 + $0x44] sm:$0xf]
        %v301 = vld [vmem:[%s216 + $0x48] sm:$0xf]
        %v302 = vld [vmem:[%s216 + $0x4c] sm:$0xf]
        %v303 = vld [vmem:[%s216 + $0x50] sm:$0xf]
        %v304 = vld [vmem:[%s216 + $0x54] sm:$0xf]
        %v305 = vld [vmem:[%s216 + $0x58] sm:$0xf]
        %v306 = vld [vmem:[%s216 + $0x5c] sm:$0xf]
        %v307 = vld [vmem:[%s216 + $0x60] sm:$0xf]
        %v308 = vld [vmem:[%s216 + $0x64] sm:$0xf]
        %v309 = vld [vmem:[%s216 + $0x68] sm:$0xf]
        %v310 = vld [vmem:[%s216 + $0x6c] sm:$0xf]
        %v311 = vld [vmem:[%s216 + $0x70] sm:$0xf]
        %v312 = vld [vmem:[%s216 + $0x74] sm:$0xf]
        %v313 = vld [vmem:[%s216 + $0x78] sm:$0xf]
        %v314 = vld [vmem:[%s216 + $0x7c] sm:$0xf]
        %v315 = vld [vmem:[%s216 + $0x80] sm:$0xf]
        %v316 = vld [vmem:[%s216 + $0x84] sm:$0xf]
        %v317 = vld [vmem:[%s216 + $0x88] sm:$0xf]
        %v318 = vld [vmem:[%s216 + $0x8c] sm:$0xf]
        %v319 = vld [vmem:[%s216 + $0x90] sm:$0xf]
        %v320 = vld [vmem:[%s216 + $0x94] sm:$0xf]
        %v321 = vld [vmem:[%s216 + $0x98] sm:$0xf]
        %v322 = vld [vmem:[%s216 + $0x9c] sm:$0xf]
        %v323 = vld [vmem:[%s216 + $0xa0] sm:$0xf]
        %v324 = vld [vmem:[%s216 + $0xa4] sm:$0xf]
        %v325 = vld [vmem:[%s216 + $0xa8] sm:$0xf]
        %v326 = vld [vmem:[%s216 + $0xac] sm:$0xf]
        %v327 = vld [vmem:[%s216 + $0xb0] sm:$0xf]
        %v328 = vld [vmem:[%s216 + $0xb4] sm:$0xf]
        %v329 = vld [vmem:[%s216 + $0xb8] sm:$0xf]
        %v330 = vld [vmem:[%s216 + $0xbc] sm:$0xf]
        %v335 = vunpack.c.l.b16 %v279
        %v336 = vunpack.c.h.b16 %v279
        %v337 = vunpack.c.l.b16 %v280
        %v338 = vunpack.c.l.b16 %v281
        %v339 = vunpack.c.h.b16 %v281
        %v340 = vunpack.c.l.b16 %v282
        %v341 = vpack.c.b16 %v338, %v335
        %v342 = vpack.c.b16 %v339, %v336
        %v343 = vpack.c.b16 %v340, %v337
        %v395 = vunpack.c.l.b16 %v283
        %v396 = vunpack.c.l.b16 %v284
        %v397 = vunpack.c.l.b16 %v285
        %v398 = vunpack.c.l.b16 %v286
        %v399 = vunpack.c.l.b16 %v287
        %v400 = vunpack.c.l.b16 %v288
        %v401 = vunpack.c.l.b16 %v289
        %v402 = vunpack.c.l.b16 %v290
        %v403 = vunpack.c.l.b16 %v291
        %v404 = vunpack.c.l.b16 %v292
        %v405 = vunpack.c.l.b16 %v293
        %v406 = vunpack.c.l.b16 %v294
        %v407 = vunpack.c.l.b16 %v295
        %v408 = vunpack.c.l.b16 %v296
        %v409 = vunpack.c.l.b16 %v297
        %v410 = vunpack.c.l.b16 %v298
        %v411 = vunpack.c.l.b16 %v299
        %v412 = vunpack.c.l.b16 %v300
        %v413 = vunpack.c.l.b16 %v301
        %v414 = vunpack.c.l.b16 %v302
        %v415 = vunpack.c.l.b16 %v303
        %v416 = vunpack.c.l.b16 %v304
        %v417 = vunpack.c.l.b16 %v305
        %v418 = vunpack.c.l.b16 %v306
        %v419 = vunpack.c.l.b16 %v307
        %v420 = vunpack.c.l.b16 %v308
        %v421 = vunpack.c.l.b16 %v309
        %v422 = vunpack.c.l.b16 %v310
        %v423 = vunpack.c.l.b16 %v311
        %v424 = vunpack.c.l.b16 %v312
        %v425 = vunpack.c.l.b16 %v313
        %v426 = vunpack.c.l.b16 %v314
        %v427 = vunpack.c.l.b16 %v315
        %v428 = vunpack.c.l.b16 %v316
        %v429 = vunpack.c.l.b16 %v317
        %v430 = vunpack.c.l.b16 %v318
        %v431 = vunpack.c.l.b16 %v319
        %v432 = vunpack.c.l.b16 %v320
        %v433 = vunpack.c.l.b16 %v321
        %v434 = vunpack.c.l.b16 %v322
        %v435 = vunpack.c.l.b16 %v323
        %v436 = vunpack.c.l.b16 %v324
        %v437 = vunpack.c.l.b16 %v325
        %v438 = vunpack.c.l.b16 %v326
        %v439 = vunpack.c.l.b16 %v327
        %v440 = vunpack.c.l.b16 %v328
        %v441 = vunpack.c.l.b16 %v329
        %v442 = vunpack.c.l.b16 %v330
        %v443 = vpack.c.b16 %v396, %v395
        %v444 = vpack.c.b16 %v398, %v397
        %v445 = vpack.c.b16 %v400, %v399
        %v446 = vpack.c.b16 %v402, %v401
        %v447 = vpack.c.b16 %v404, %v403
        %v448 = vpack.c.b16 %v406, %v405
        %v449 = vpack.c.b16 %v408, %v407
        %v450 = vpack.c.b16 %v410, %v409
        %v451 = vpack.c.b16 %v412, %v411
        %v452 = vpack.c.b16 %v414, %v413
        %v453 = vpack.c.b16 %v416, %v415
        %v454 = vpack.c.b16 %v418, %v417
        %v455 = vpack.c.b16 %v420, %v419
        %v456 = vpack.c.b16 %v422, %v421
        %v457 = vpack.c.b16 %v424, %v423
        %v458 = vpack.c.b16 %v426, %v425
        %v459 = vpack.c.b16 %v428, %v427
        %v460 = vpack.c.b16 %v430, %v429
        %v461 = vpack.c.b16 %v432, %v431
        %v462 = vpack.c.b16 %v434, %v433
        %v463 = vpack.c.b16 %v436, %v435
        %v464 = vpack.c.b16 %v438, %v437
        %v465 = vpack.c.b16 %v440, %v439
        %v466 = vpack.c.b16 %v442, %v441
        %491 = vmatprep.subr.bf16.mxu0 0
        %492 = vmatpush1.bf16.msra.mxu0 %v443
        %493 = vmatprep.subr.bf16.mxu0 0
        %494 = vmatpush1.bf16.msra.mxu0 %v444
        %495 = vmatprep.subr.bf16.mxu0 0
        %496 = vmatpush1.bf16.msra.mxu0 %v445
        %497 = vmatprep.subr.bf16.mxu0 0
        %498 = vmatpush1.bf16.msra.mxu0 %v446
        %499 = vmatprep.subr.bf16.mxu0 0
        %500 = vmatpush1.bf16.msra.mxu0 %v447
        %501 = vmatprep.subr.bf16.mxu0 0
        %502 = vmatpush1.bf16.msra.mxu0 %v448
        %503 = vmatprep.subr.bf16.mxu0 0
        %504 = vmatpush1.bf16.msra.mxu0 %v449
        %505 = vmatprep.subr.bf16.mxu0 0
        %506 = vmatpush1.bf16.msra.mxu0 %v450
        %507 = vmatprep.subr.bf16.mxu0 0
        %508 = vmatpush1.bf16.msra.mxu0 %v451
        %509 = vmatprep.subr.bf16.mxu0 0
        %510 = vmatpush1.bf16.msra.mxu0 %v452
        %511 = vmatprep.subr.bf16.mxu0 0
        %512 = vmatpush1.bf16.msra.mxu0 %v453
        %513 = vmatprep.subr.bf16.mxu0 0
        %514 = vmatpush1.bf16.msra.mxu0 %v454
        %515 = vmatprep.subr.bf16.mxu0 0
        %516 = vmatpush1.bf16.msra.mxu0 %v455
        %517 = vmatprep.subr.bf16.mxu0 0
        %518 = vmatpush1.bf16.msra.mxu0 %v456
        %519 = vmatprep.subr.bf16.mxu0 0
        %520 = vmatpush1.bf16.msra.mxu0 %v457
        %521 = vmatprep.subr.bf16.mxu0 0
        %522 = vmatpush1.bf16.msra.mxu0 %v458
        %523 = vmatprep.mubr.bf16.mxu0 %v342
        %524 = vmatmul.mubr.bf16.gmra.mrb[0].mxu0 %v341
        %v525 = vpop.f32.mrb[0].mxu0
        %v526 = vadd.f32 0.0, %v525
        %v527 = vpop.f32.mrb[0].mxu0
        %v528 = vpop.f32.mrb[0].mxu0
        %v529 = vadd.f32 0.0, %v528
        %v530 = vpop.f32.mrb[0].mxu0
        %531 = vdwg.mxu0
        %532 = vmatprep.subr.bf16.mxu0 0
        %533 = vmatpush1.bf16.msra.mxu0 %v459
        %534 = vmatprep.subr.bf16.mxu0 0
        %535 = vmatpush1.bf16.msra.mxu0 %v460
        %536 = vmatprep.subr.bf16.mxu0 0
        %537 = vmatpush1.bf16.msra.mxu0 %v461
        %538 = vmatprep.subr.bf16.mxu0 0
        %539 = vmatpush1.bf16.msra.mxu0 %v462
        %540 = vmatprep.subr.bf16.mxu0 0
        %541 = vmatpush1.bf16.msra.mxu0 %v463
        %542 = vmatprep.subr.bf16.mxu0 0
        %543 = vmatpush1.bf16.msra.mxu0 %v464
        %544 = vmatprep.subr.bf16.mxu0 0
        %545 = vmatpush1.bf16.msra.mxu0 %v465
        %546 = vmatprep.subr.bf16.mxu0 0
        %547 = vmatpush1.bf16.msra.mxu0 %v466
        %548 = vmatprep.subr.bf16.mxu0 0
        %549 = vmatpush1.bf16.msra.mxu0 0
        %550 = vmatprep.subr.bf16.mxu0 0
        %551 = vmatpush1.bf16.msra.mxu0 0
        %552 = vmatprep.subr.bf16.mxu0 0
        %553 = vmatpush1.bf16.msra.mxu0 0
        %554 = vmatprep.subr.bf16.mxu0 0
        %555 = vmatpush1.bf16.msra.mxu0 0
        %556 = vmatprep.subr.bf16.mxu0 0
        %557 = vmatpush1.bf16.msra.mxu0 0
        %558 = vmatprep.subr.bf16.mxu0 0
        %559 = vmatpush1.bf16.msra.mxu0 0
        %560 = vmatprep.subr.bf16.mxu0 0
        %561 = vmatpush1.bf16.msra.mxu0 0
        %562 = vmatprep.subr.bf16.mxu0 0
        %563 = vmatpush1.bf16.msra.mxu0 0
        %564 = vmatprep.mubr.bf16.mxu0 0
        %565 = vmatmul.mubr.bf16.gmra.mrb[0].mxu0 %v343
        %v566 = vpop.f32.mrb[0].mxu0
        %v567 = vadd.f32 %v526, %v566
        %v568 = vpop.f32.mrb[0].mxu0
        %v569 = vpop.f32.mrb[0].mxu0
        %v570 = vadd.f32 %v529, %v569
        %v571 = vpop.f32.mrb[0].mxu0
        %572 = vdwg.mxu0
        %v573 = vadd.f32 %v277, %v567
        %v574 = vadd.f32 %v278, %v570
        %575 = vst [vmem:[%s251] sm:$0xff] %v573
        %576 = vst [vmem:[%s251 + $0x8] sm:$0xff] %v574
        // Predicated region
        $region41: #{squeezenet_forward.36} parent=31 // pred_check
          %p577 = pneg %p271
        $region42: #{squeezenet_forward.36} parent=31 // pred_check_branch
          %579 = sbr.rel (%p577) target = $region44
        $region43: #{squeezenet_forward.36} parent=31 // pred_region
          %v580 = vld [vmem:[%s251] sm:$0xff]
          %v581 = vld [vmem:[%s251 + $0x8] sm:$0xff]
          %v582 = vld [vmem:[%s268] sm:$0x1]
          %v583 = vlaneseq
          %v584 = vshrl.u32 %v583, 7
          %v585 = vsub.s32 0, %v584
          %v586 = vrot.slane %v582, %v585
          %v587 = vadd.f32 %v580, %v586
          %v588 = vadd.f32 %v581, %v586
          %v589 = vmax.f32 %v587, 0.0
          %v590 = vmax.f32 %v588, 0.0
          %591 = vst [vmem:[%s251] sm:$0xff] %v589
          %592 = vst [vmem:[%s251 + $0x8] sm:$0xff] %v590
        $region44: #{squeezenet_forward.36} parent=31 // pred_fallthru
          _
        %s593 = sand.u32 %s128, 1
        %s594 = sand.u32 %s128, 1
        %s595 = smul.addr %s594, 16
        %s596 = scalar_lea.vmem [#allocation4], %s595
        // Predicated region
        $region45: #{squeezenet_forward.36} parent=31 // pred_check
          %p597 = pneg %p138
        $region46: #{squeezenet_forward.36} parent=31 // pred_check_branch
          %599 = sbr.rel (%p597) target = $region48
        $region47: #{squeezenet_forward.36} parent=31 // pred_region
          %s600 = smul.u32 2, %s22
          %s601 = smul.addr %s600, 2
          %s602 = sadd.s32 %s23, %s601
          %s603 = smul.addr %s602, 8
          %s604 = scalar_lea.vmem %s3, %s603
          // Predicated region
          $region49: #{squeezenet_forward.36} parent=47 // pred_check
            _
          $region50: #{squeezenet_forward.36} parent=47 // pred_check_branch
            %606 = sbr.rel (0) target = $region52
          $region51: #{squeezenet_forward.36} parent=47 // pred_region
            // Predicated region
            $region53: #{squeezenet_forward.36} parent=51 // pred_check
              _
            $region54: #{squeezenet_forward.36} parent=51 // pred_check_branch
              %608 = sbr.rel (0) target = $region56
            $region55: #{squeezenet_forward.36} parent=51 // pred_region
              // Predicated region
              $region68: #{squeezenet_forward.36} parent=55 // pred_check
                _
              $region69: #{squeezenet_forward.36} parent=55 // pred_check_branch
                %625 = sbr.rel (0) target = $region71
              $region70: #{squeezenet_forward.36} parent=55 // pred_region
                loop: start=0, step=1, limit=1
                $region72: #{squeezenet_forward.36} parent=70 // loop_pre_header
                  _
                $region73: #{squeezenet_forward.36} parent=70 // loop_header
                  %s627 = sphi 0, %s631
                  %p628 = scmp.ge.s32.totalorder %s627, 1
                  %s632 = sphi %s596, %s596
                  %s633 = sphi %s604, %s604
                $region74: #{squeezenet_forward.36} parent=70 // loop_header_branch
                  %630 = sbr.rel (%p628) target = $region78
                $region75: #{squeezenet_forward.36} parent=70 // loop_body
                  %v634 = vld [vmem:[%s632] sm:$0xff]
                  %635 = vst [vmem:[%s633] sm:$0xff] %v634
                  %v636 = vld [vmem:[%s632 + $0x8] sm:$0xff]
                  %637 = vst [vmem:[%s633 + $0x10] sm:$0xff] %v636
                $region76: #{squeezenet_forward.36} parent=70 // loop_footer
                  %s631 = sadd.s32 1, %s627
                $region77: #{squeezenet_forward.36} parent=70 // loop_footer_branch
                  %626 = sbr.rel target = $region73
                $region78: #{squeezenet_forward.36} parent=70 // loop_exit
                  _
              $region71: #{squeezenet_forward.36} parent=55 // pred_fallthru
                _
              // Predicated region
              $region79: #{squeezenet_forward.36} parent=55 // pred_check
                _
              $region80: #{squeezenet_forward.36} parent=55 // pred_check_branch
                %639 = sbr.rel target = $region82
              $region81: #{squeezenet_forward.36} parent=55 // pred_region
                _
              $region82: #{squeezenet_forward.36} parent=55 // pred_fallthru
                _
            $region56: #{squeezenet_forward.36} parent=51 // pred_fallthru
              _
            // Predicated region
            $region57: #{squeezenet_forward.36} parent=51 // pred_check
              _
            $region58: #{squeezenet_forward.36} parent=51 // pred_check_branch
              %610 = sbr.rel target = $region60
            $region59: #{squeezenet_forward.36} parent=51 // pred_region
              loop: start=0, step=1, limit=1
              $region61: #{squeezenet_forward.36} parent=59 // loop_pre_header
                _
              $region62: #{squeezenet_forward.36} parent=59 // loop_header
                %s613 = sphi 0, %s617
                %p614 = scmp.ge.s32.totalorder %s613, 1
                %s618 = sphi %s596, %s596
                %s619 = sphi %s604, %s604
              $region63: #{squeezenet_forward.36} parent=59 // loop_header_branch
                %616 = sbr.rel (%p614) target = $region67
              $region64: #{squeezenet_forward.36} parent=59 // loop_body
                %v620 = vld [vmem:[%s618] sm:$0xff]
                %621 = vst [vmem:[%s619] sm:$0xff] %v620
                %v622 = vld [vmem:[%s618 + $0x8] sm:$0xff]
                %623 = vst [vmem:[%s619 + $0x10] sm:$0xff] %v622
              $region65: #{squeezenet_forward.36} parent=59 // loop_footer
                %s617 = sadd.s32 1, %s613
              $region66: #{squeezenet_forward.36} parent=59 // loop_footer_branch
                %612 = sbr.rel target = $region62
              $region67: #{squeezenet_forward.36} parent=59 // loop_exit
                _
            $region60: #{squeezenet_forward.36} parent=51 // pred_fallthru
              _
          $region52: #{squeezenet_forward.36} parent=47 // pred_fallthru
            _
          %640 = vnop
        $region48: #{squeezenet_forward.36} parent=31 // pred_fallthru
          _
      $region32: #{squeezenet_forward.36} parent=5 // pred_fallthru
        _
      %p641 = scmp.le.s32.totalorder 2, %s12
      // Predicated region
      $region83: #{squeezenet_forward.36} parent=5 // pred_check
        %p642 = pneg %p641
      $region84: #{squeezenet_forward.36} parent=5 // pred_check_branch
        %644 = sbr.rel (%p642) target = $region86
      $region85: #{squeezenet_forward.36} parent=5 // pred_region
        %s645 = ssub.s32 %s12, 2
        // Predicated region
        $region87: #{squeezenet_forward.36} parent=85 // pred_check
          %p646 = pneg %p144
        $region88: #{squeezenet_forward.36} parent=85 // pred_check_branch
          %648 = sbr.rel (%p646) target = $region90
        $region89: #{squeezenet_forward.36} parent=85 // pred_region
          %s649 = sand.u32 %s129, 1
          %s650 = sand.u32 %s129, 1
          %s651 = smul.addr %s650, 16
          %s652 = scalar_lea.vmem [#allocation4], %s651
        $region90: #{squeezenet_forward.36} parent=85 // pred_fallthru
          _
      $region86: #{squeezenet_forward.36} parent=5 // pred_fallthru
        _
    $region6: #{squeezenet_forward.36} parent=1 // loop_footer
      %s16 = sadd.s32 1, %s12
    $region7: #{squeezenet_forward.36} parent=1 // loop_footer_branch
      %11 = sbr.rel target = $region3
    $region8: #{squeezenet_forward.36} parent=1 // loop_exit
      _
    %653 = vsyncpa [#allocation3], 1
    %s654 = scalar_lea.sflag [#allocation3], 1
    %655 = vsyncpa %s654, 1

// kernel: squeezenet_forward.39
$region0: #{squeezenet_forward.39}
  #allocation0 [shape = 'u32[]', space=smem, size = 0x4, offset = 0x4, fixed_abs, tag = 'smem constant byte address 0x4 - core index']
  #allocation1 [shape = 'u32[144,128]{1,0:T(1,128)}', space=vmem, size = 0x12000, scoped, tag = 'internal scratch']
  %s0 = inlined_call_operand.vmem [shape: f32[9,256], index: 0, kind: input, shape index: {}]
  %s1 = inlined_call_operand.vmem [shape: f32[1,256], index: 1, kind: output, shape index: {}]
  %s2 = sld [smem:[#allocation0]]
  $region14: #{squeezenet_forward.39} parent=0
    _
  %s4 = ssub.s32 1, %s2
  %s5 = scalar_select 0, %s4, %s2
  // Predicated region
  $region2: #{squeezenet_forward.39} parent=0 // pred_check
    _
  $region3: #{squeezenet_forward.39} parent=0 // pred_check_branch
    %7 = sbr.rel (0) target = $region5
  $region4: #{squeezenet_forward.39} parent=0 // pred_region
    _
  $region5: #{squeezenet_forward.39} parent=0 // pred_fallthru
    _
  %v8 = vld [vmem:[%s0] sm:$0xff]
  %v9 = vld [vmem:[%s0 + $0x8] sm:$0xff]
  %v10 = vld [vmem:[%s0 + $0x10] sm:$0x1]
  %v11 = vld [vmem:[%s0 + $0x18] sm:$0x1]
  %vm12 = vcmask 1040384
  %v13 = vsel %vm12, %v10, -inf
  %v14 = vmax.f32 %v8, %v13
  %v15 = vrot.slane %v14, 4
  %v16 = vmax.f32 %v14, %v15
  %v17 = vrot.slane %v16, 2
  %v18 = vmax.f32 %v16, %v17
  %v19 = vrot.slane %v18, 1
  %v20 = vmax.f32 %v18, %v19
  %v21 = vsel %vm12, %v11, -inf
  %v22 = vmax.f32 %v9, %v21
  %v23 = vrot.slane %v22, 4
  %v24 = vmax.f32 %v22, %v23
  %v25 = vrot.slane %v24, 2
  %v26 = vmax.f32 %v24, %v25
  %v27 = vrot.slane %v26, 1
  %v28 = vmax.f32 %v26, %v27
  %v31 = vcombine.low %v20, %v28
  %v33 = vunpack.c.l.s4 1966171168
  %v34 = vunpack.c.0.s8 %v33
  %v35 = vlaneseq
  %v36 = vshrl.u32 %v35, 7
  %v37 = vsub.s32 %v34, %v36
  %v38 = vrot.slane %v31, %v37
  %v40 = vunpack.c.l.s4 1966171168
  %v41 = vunpack.c.0.s8 %v40
  %v42 = vlaneseq
  %v43 = vshrl.u32 %v42, 7
  %v44 = vsub.s32 %v41, %v43
  %v45 = vrot.slane %v38, %v44
  %v47 = vlaneseq
  %vm48 = vcmp.ge.s32.totalorder %v47, 0
  %vm49 = vcmp.lt.s32.totalorder %v47, 256
  %vm50 = vmand %vm48, %vm49
  %51 = vst.msk [vmem:[%s1] sm:$0x3] %vm50, %v45
  // Predicated region
  $region6: #{squeezenet_forward.39} parent=0 // pred_check
    _
  $region7: #{squeezenet_forward.39} parent=0 // pred_check_branch
    %53 = sbr.rel (0) target = $region9
  $region8: #{squeezenet_forward.39} parent=0 // pred_region
    _
  $region9: #{squeezenet_forward.39} parent=0 // pred_fallthru
    _
  // Predicated region
  $region10: #{squeezenet_forward.39} parent=0 // pred_check
    _
  $region11: #{squeezenet_forward.39} parent=0 // pred_check_branch
    %55 = sbr.rel (0) target = $region13
  $region12: #{squeezenet_forward.39} parent=0 // pred_region
    _
  $region13: #{squeezenet_forward.39} parent=0 // pred_fallthru
    _

// kernel: squeezenet_forward.40
$region0: #{squeezenet_forward.40}
  #allocation0 [shape = 'u32[]', space=smem, size = 0x4, offset = 0x4, fixed_abs, tag = 'smem constant byte address 0x4 - core index']
  #allocation1 [shape = 'u32[144,128]{1,0:T(1,128)}', space=vmem, size = 0x12000, scoped, tag = 'internal scratch']
  %s0 = inlined_call_operand.vmem [shape: bf16[8,256], index: 0, kind: input, shape index: {}]
  %s1 = inlined_call_operand.hbm [shape: bf16[256,128], index: 1, kind: input, shape index: {}]
  %s2 = inlined_call_operand.vmem [shape: f32[8,128], index: 2, kind: input, shape index: {}]
  %s3 = inlined_call_operand.vmem [shape: f32[8,128], index: 3, kind: output, shape index: {}]
  %s4 = sld [smem:[#allocation0]]
  $region34: #{squeezenet_forward.40} parent=0
    _
  %s6 = ssub.s32 1, %s4
  %s7 = scalar_select 0, %s6, %s4
  $region1: #{squeezenet_forward.40} parent=0
    #allocation2 [shape = 'u8[65536]{0}', space=vmem, size = 0x10000, scoped, tag = 'input window, operand 1, single buffered']
    #allocation3 [shape = 's32[1]{0}', space=sflag, size = 0x4, scoped, tag = 'scoped memory for squeezenet_forward.40']
    %8 = vsyncpa [#allocation3], 0
    // Predicated region
    $region2: #{squeezenet_forward.40} parent=1 // pred_check
      _
    $region3: #{squeezenet_forward.40} parent=1 // pred_check_branch
      %10 = sbr.rel (0) target = $region5
    $region4: #{squeezenet_forward.40} parent=1 // pred_region
      _
    $region5: #{squeezenet_forward.40} parent=1 // pred_fallthru
      _
    // Predicated region
    $region6: #{squeezenet_forward.40} parent=1 // pred_check
      _
    $region7: #{squeezenet_forward.40} parent=1 // pred_check_branch
      %12 = sbr.rel (0) target = $region9
    $region8: #{squeezenet_forward.40} parent=1 // pred_region
      %s14 = ssub.s32 2048, 2048
      %15 = vsyncadd [#allocation3], %s14
      %s16 = sshll.u32 [#allocation2], 4
      %s17 = int_to_ptr.vmem [resolvable:$true] %s16
      %22 = dma.hbm_to_vmem [thread:$0]  %s1, 2048, %s17, [#allocation3], 64, 64, 4
    $region9: #{squeezenet_forward.40} parent=1 // pred_fallthru
      _
    // Predicated region
    $region10: #{squeezenet_forward.40} parent=1 // pred_check
      _
    $region11: #{squeezenet_forward.40} parent=1 // pred_check_branch
      %24 = sbr.rel (0) target = $region13
    $region12: #{squeezenet_forward.40} parent=1 // pred_region
      _
    $region13: #{squeezenet_forward.40} parent=1 // pred_fallthru
      _
    // Predicated region
    $region14: #{squeezenet_forward.40} parent=1 // pred_check
      _
    $region15: #{squeezenet_forward.40} parent=1 // pred_check_branch
      %26 = sbr.rel (0) target = $region17
    $region16: #{squeezenet_forward.40} parent=1 // pred_region
      %27 = dma.done [#allocation3], 2048
    $region17: #{squeezenet_forward.40} parent=1 // pred_fallthru
      _
    %p29 = scmp.eq.s32.totalorder 0, 0
    // Predicated region
    $region18: #{squeezenet_forward.40} parent=1 // pred_check
      %p30 = pneg %p29
    $region19: #{squeezenet_forward.40} parent=1 // pred_check_branch
      %32 = sbr.rel (%p30) target = $region21
    $region20: #{squeezenet_forward.40} parent=1 // pred_region
      %33 = vst [vmem:[%s3] sm:$0xff] 0.0
    $region21: #{squeezenet_forward.40} parent=1 // pred_fallthru
      _
    %v34 = vld [vmem:[%s3] sm:$0xff]
    %v35 = vld [vmem:[%s0] sm:$0xff]
    %v36 = vld [vmem:[#allocation2] sm:$0xf]
    %v37 = vld [vmem:[#allocation2 + $0x4] sm:$0xf]
    %v38 = vld [vmem:[#allocation2 + $0x8] sm:$0xf]
    %v39 = vld [vmem:[#allocation2 + $0xc] sm:$0xf]
    %v40 = vld [vmem:[#allocation2 + $0x10] sm:$0xf]
    %v41 = vld [vmem:[#allocation2 + $0x14] sm:$0xf]
    %v42 = vld [vmem:[#allocation2 + $0x18] sm:$0xf]
    %v43 = vld [vmem:[#allocation2 + $0x1c] sm:$0xf]
    %v44 = vld [vmem:[#allocation2 + $0x20] sm:$0xf]
    %v45 = vld [vmem:[#allocation2 + $0x24] sm:$0xf]
    %v46 = vld [vmem:[#allocation2 + $0x28] sm:$0xf]
    %v47 = vld [vmem:[#allocation2 + $0x2c] sm:$0xf]
    %v48 = vld [vmem:[#allocation2 + $0x30] sm:$0xf]
    %v49 = vld [vmem:[#allocation2 + $0x34] sm:$0xf]
    %v50 = vld [vmem:[#allocation2 + $0x38] sm:$0xf]
    %v51 = vld [vmem:[#allocation2 + $0x3c] sm:$0xf]
    %v52 = vld [vmem:[#allocation2 + $0x40] sm:$0xf]
    %v53 = vld [vmem:[#allocation2 + $0x44] sm:$0xf]
    %v54 = vld [vmem:[#allocation2 + $0x48] sm:$0xf]
    %v55 = vld [vmem:[#allocation2 + $0x4c] sm:$0xf]
    %v56 = vld [vmem:[#allocation2 + $0x50] sm:$0xf]
    %v57 = vld [vmem:[#allocation2 + $0x54] sm:$0xf]
    %v58 = vld [vmem:[#allocation2 + $0x58] sm:$0xf]
    %v59 = vld [vmem:[#allocation2 + $0x5c] sm:$0xf]
    %v60 = vld [vmem:[#allocation2 + $0x60] sm:$0xf]
    %v61 = vld [vmem:[#allocation2 + $0x64] sm:$0xf]
    %v62 = vld [vmem:[#allocation2 + $0x68] sm:$0xf]
    %v63 = vld [vmem:[#allocation2 + $0x6c] sm:$0xf]
    %v64 = vld [vmem:[#allocation2 + $0x70] sm:$0xf]
    %v65 = vld [vmem:[#allocation2 + $0x74] sm:$0xf]
    %v66 = vld [vmem:[#allocation2 + $0x78] sm:$0xf]
    %v67 = vld [vmem:[#allocation2 + $0x7c] sm:$0xf]
    %v69 = vunpack.c.l.b16 %v35
    %v70 = vunpack.c.h.b16 %v35
    %v71 = vpack.c.b16 %v69, %v69
    %v72 = vpack.c.b16 %v70, %v70
    %v107 = vunpack.c.l.b16 %v36
    %v108 = vunpack.c.l.b16 %v37
    %v109 = vunpack.c.l.b16 %v38
    %v110 = vunpack.c.l.b16 %v39
    %v111 = vunpack.c.l.b16 %v40
    %v112 = vunpack.c.l.b16 %v41
    %v113 = vunpack.c.l.b16 %v42
    %v114 = vunpack.c.l.b16 %v43
    %v115 = vunpack.c.l.b16 %v44
    %v116 = vunpack.c.l.b16 %v45
    %v117 = vunpack.c.l.b16 %v46
    %v118 = vunpack.c.l.b16 %v47
    %v119 = vunpack.c.l.b16 %v48
    %v120 = vunpack.c.l.b16 %v49
    %v121 = vunpack.c.l.b16 %v50
    %v122 = vunpack.c.l.b16 %v51
    %v123 = vunpack.c.l.b16 %v52
    %v124 = vunpack.c.l.b16 %v53
    %v125 = vunpack.c.l.b16 %v54
    %v126 = vunpack.c.l.b16 %v55
    %v127 = vunpack.c.l.b16 %v56
    %v128 = vunpack.c.l.b16 %v57
    %v129 = vunpack.c.l.b16 %v58
    %v130 = vunpack.c.l.b16 %v59
    %v131 = vunpack.c.l.b16 %v60
    %v132 = vunpack.c.l.b16 %v61
    %v133 = vunpack.c.l.b16 %v62
    %v134 = vunpack.c.l.b16 %v63
    %v135 = vunpack.c.l.b16 %v64
    %v136 = vunpack.c.l.b16 %v65
    %v137 = vunpack.c.l.b16 %v66
    %v138 = vunpack.c.l.b16 %v67
    %v139 = vpack.c.b16 %v108, %v107
    %v140 = vpack.c.b16 %v110, %v109
    %v141 = vpack.c.b16 %v112, %v111
    %v142 = vpack.c.b16 %v114, %v113
    %v143 = vpack.c.b16 %v116, %v115
    %v144 = vpack.c.b16 %v118, %v117
    %v145 = vpack.c.b16 %v120, %v119
    %v146 = vpack.c.b16 %v122, %v121
    %v147 = vpack.c.b16 %v124, %v123
    %v148 = vpack.c.b16 %v126, %v125
    %v149 = vpack.c.b16 %v128, %v127
    %v150 = vpack.c.b16 %v130, %v129
    %v151 = vpack.c.b16 %v132, %v131
    %v152 = vpack.c.b16 %v134, %v133
    %v153 = vpack.c.b16 %v136, %v135
    %v154 = vpack.c.b16 %v138, %v137
    %171 = vmatprep.subr.bf16.mxu0 0
    %172 = vmatpush1.bf16.msra.mxu0 %v139
    %173 = vmatprep.subr.bf16.mxu0 0
    %174 = vmatpush1.bf16.msra.mxu0 %v140
    %175 = vmatprep.subr.bf16.mxu0 0
    %176 = vmatpush1.bf16.msra.mxu0 %v141
    %177 = vmatprep.subr.bf16.mxu0 0
    %178 = vmatpush1.bf16.msra.mxu0 %v142
    %179 = vmatprep.subr.bf16.mxu0 0
    %180 = vmatpush1.bf16.msra.mxu0 %v143
    %181 = vmatprep.subr.bf16.mxu0 0
    %182 = vmatpush1.bf16.msra.mxu0 %v144
    %183 = vmatprep.subr.bf16.mxu0 0
    %184 = vmatpush1.bf16.msra.mxu0 %v145
    %185 = vmatprep.subr.bf16.mxu0 0
    %186 = vmatpush1.bf16.msra.mxu0 %v146
    %187 = vmatprep.subr.bf16.mxu0 0
    %188 = vmatpush1.bf16.msra.mxu0 %v147
    %189 = vmatprep.subr.bf16.mxu0 0
    %190 = vmatpush1.bf16.msra.mxu0 %v148
    %191 = vmatprep.subr.bf16.mxu0 0
    %192 = vmatpush1.bf16.msra.mxu0 %v149
    %193 = vmatprep.subr.bf16.mxu0 0
    %194 = vmatpush1.bf16.msra.mxu0 %v150
    %195 = vmatprep.subr.bf16.mxu0 0
    %196 = vmatpush1.bf16.msra.mxu0 %v151
    %197 = vmatprep.subr.bf16.mxu0 0
    %198 = vmatpush1.bf16.msra.mxu0 %v152
    %199 = vmatprep.subr.bf16.mxu0 0
    %200 = vmatpush1.bf16.msra.mxu0 %v153
    %201 = vmatprep.subr.bf16.mxu0 0
    %202 = vmatpush1.bf16.msra.mxu0 %v154
    %203 = vmatprep.mubr.bf16.mxu0 %v72
    %204 = vmatmul.mubr.bf16.gmra.mrb[0].mxu0 %v71
    %v205 = vpop.f32.mrb[0].mxu0
    %v206 = vadd.f32 0.0, %v205
    %v207 = vpop.f32.mrb[0].mxu0
    %v208 = vpop.f32.mrb[0].mxu0
    %v209 = vpop.f32.mrb[0].mxu0
    %210 = vdwg.mxu0
    %v211 = vadd.f32 %v34, %v206
    %212 = vst [vmem:[%s3] sm:$0xff] %v211
    // Predicated region
    $region22: #{squeezenet_forward.40} parent=1 // pred_check
      %p213 = pneg %p29
    $region23: #{squeezenet_forward.40} parent=1 // pred_check_branch
      %215 = sbr.rel (%p213) target = $region25
    $region24: #{squeezenet_forward.40} parent=1 // pred_region
      %v216 = vld [vmem:[%s3] sm:$0xff]
      %v217 = vld [vmem:[%s2] sm:$0x1]
      %v218 = vlaneseq
      %v219 = vshrl.u32 %v218, 7
      %v220 = vsub.s32 0, %v219
      %v221 = vrot.slane %v217, %v220
      %v222 = vadd.f32 %v216, %v221
      %v223 = vmax.f32 %v222, 0.0
      %224 = vst [vmem:[%s3] sm:$0xff] %v223
    $region25: #{squeezenet_forward.40} parent=1 // pred_fallthru
      _
    // Predicated region
    $region26: #{squeezenet_forward.40} parent=1 // pred_check
      _
    $region27: #{squeezenet_forward.40} parent=1 // pred_check_branch
      %226 = sbr.rel (0) target = $region29
    $region28: #{squeezenet_forward.40} parent=1 // pred_region
      _
    $region29: #{squeezenet_forward.40} parent=1 // pred_fallthru
      _
    // Predicated region
    $region30: #{squeezenet_forward.40} parent=1 // pred_check
      _
    $region31: #{squeezenet_forward.40} parent=1 // pred_check_branch
      %228 = sbr.rel (0) target = $region33
    $region32: #{squeezenet_forward.40} parent=1 // pred_region
      _
    $region33: #{squeezenet_forward.40} parent=1 // pred_fallthru
      _
    %229 = vsyncpa [#allocation3], 1

// kernel: squeezenet_forward.41
$region0: #{squeezenet_forward.41}
  #allocation0 [shape = 'u32[]', space=smem, size = 0x4, offset = 0x4, fixed_abs, tag = 'smem constant byte address 0x4 - core index']
  #allocation1 [shape = 'u32[144,128]{1,0:T(1,128)}', space=vmem, size = 0x12000, scoped, tag = 'internal scratch']
  %s0 = inlined_call_operand.vmem [shape: bf16[8,512], index: 0, kind: input, shape index: {}]
  %s1 = inlined_call_operand.hbm [shape: bf16[512,384], index: 1, kind: input, shape index: {}]
  %s2 = inlined_call_operand.vmem [shape: f32[8,384], index: 2, kind: input, shape index: {}]
  %s3 = inlined_call_operand.vmem [shape: f32[8,384], index: 3, kind: output, shape index: {}]
  %s4 = sld [smem:[#allocation0]]
  $region57: #{squeezenet_forward.41} parent=0
    _
  %s6 = ssub.s32 1, %s4
  %s7 = scalar_select 0, %s6, %s4
  $region1: #{squeezenet_forward.41} parent=0
    #allocation2 [shape = 'u8[262144]{0}', space=vmem, size = 0x40000, scoped, tag = 'input window, operand 1']
    #allocation3 [shape = 's32[2]{0}', space=sflag, size = 0x8, scoped, tag = 'scoped memory for squeezenet_forward.41']
    %8 = vsyncpa [#allocation3], 0
    %s9 = scalar_lea.sflag [#allocation3], 1
    %10 = vsyncpa %s9, 0
    loop: start=0, step=1, limit=5
    $region2: #{squeezenet_forward.41} parent=1 // loop_pre_header
      _
    $region3: #{squeezenet_forward.41} parent=1 // loop_header
      %s12 = sphi 0, %s16
      %p13 = scmp.ge.s32.totalorder %s12, 5
      %s19 = sphi 0, %s38
      %s20 = sphi 0, %s34
      %s21 = sphi 0, %s30
      %s22 = sphi 0, %s19
      %s23 = sphi 0, %s20
      %s24 = sphi 0, %s21
      %s25 = sphi 0, %s22
      %s26 = sphi 0, %s23
      %s27 = sphi 0, %s24
      %s43 = sphi 0, %s45
      %s46 = sphi 0, %s43
      %s47 = sphi 0, %s46
      %s63 = sphi 0, %s47
      %s71 = sphi 0, %s73
      %s74 = sphi 0, %s71
      %s75 = sphi 0, %s74
      %s91 = sphi 0, %s75
      %s97 = sphi 0, %s99
      %s100 = sphi 0, %s97
      %s101 = sphi 0, %s100
      %s117 = sphi 0, %s101
      %s125 = sphi 0, %s127
      %s128 = sphi 0, %s125
      %s129 = sphi 0, %s128
      %s145 = sphi 0, %s129
    $region4: #{squeezenet_forward.41} parent=1 // loop_header_branch
      %15 = sbr.rel (%p13) target = $region8
    $region5: #{squeezenet_forward.41} parent=1 // loop_body
      %s17 = ssub.s32 %s12, 1
      %s18 = ssub.s32 %s12, 2
      %s28 = sadd.s32 1, %s21
      %p29 = scmp.ge.s32.totalorder %s28, 1
      %s30 = scalar_select %p29, 0, %s28
      %s31 = sadd.s32 1, %s20
      %s32 = scalar_select %p29, %s31, %s20
      %p33 = scmp.ge.s32.totalorder %s32, 3
      %s34 = scalar_select %p33, 0, %s32
      %s35 = sadd.s32 1, %s19
      %s36 = scalar_select %p33, %s35, %s19
      %p37 = scmp.ge.s32.totalorder %s36, 1
      %s38 = scalar_select %p37, 0, %s36
      %s39 = ssub.s32 %s19, %s38
      %s40 = ssub.s32 %s21, %s30
      %s41 = sor.u32 %s39, %s40
      %p42 = scmp.eq.s32.totalorder %s41, 0
      %s44 = sadd.s32 %s43, 1
      %s45 = scalar_select %p42, %s43, %s44
      %p48 = pneg %p42
      %p49 = scmp.eq.s32.totalorder %s12, 2
      %p50 = por %p48, %p49
      %p51 = scmp.ne.s32.totalorder %s43, %s46
      %p52 = scmp.eq.s32.totalorder %s12, 0
      %p53 = por %p51, %p52
      %p54 = scmp.ne.s32.totalorder %s43, %s46
      %p55 = scmp.eq.s32.totalorder %s17, 2
      %p56 = por %p54, %p55
      %p57 = scmp.ne.s32.totalorder %s46, %s47
      %p58 = scmp.eq.s32.totalorder %s17, 0
      %p59 = por %p57, %p58
      %p60 = scmp.ne.s32.totalorder %s46, %s47
      %p61 = scmp.eq.s32.totalorder %s18, 2
      %p62 = por %p60, %p61
      %p64 = scmp.ne.s32.totalorder %s47, %s63
      %p65 = scmp.eq.s32.totalorder %s18, 0
      %p66 = por %p64, %p65
      %s67 = ssub.s32 %s21, %s30
      %s68 = ssub.s32 %s20, %s34
      %s69 = sor.u32 %s67, %s68
      %p70 = scmp.eq.s32.totalorder %s69, 0
      %s72 = sadd.s32 %s71, 1
      %s73 = scalar_select %p70, %s71, %s72
      %p76 = pneg %p70
      %p77 = scmp.eq.s32.totalorder %s12, 2
      %p78 = por %p76, %p77
      %p79 = scmp.ne.s32.totalorder %s71, %s74
      %p80 = scmp.eq.s32.totalorder %s12, 0
      %p81 = por %p79, %p80
      %p82 = scmp.ne.s32.totalorder %s71, %s74
      %p83 = scmp.eq.s32.totalorder %s17, 2
      %p84 = por %p82, %p83
      %p85 = scmp.ne.s32.totalorder %s74, %s75
      %p86 = scmp.eq.s32.totalorder %s17, 0
      %p87 = por %p85, %p86
      %p88 = scmp.ne.s32.totalorder %s74, %s75
      %p89 = scmp.eq.s32.totalorder %s18, 2
      %p90 = por %p88, %p89
      %p92 = scmp.ne.s32.totalorder %s75, %s91
      %p93 = scmp.eq.s32.totalorder %s18, 0
      %p94 = por %p92, %p93
      %s95 = ssub.s32 %s20, %s34
      %p96 = scmp.eq.s32.totalorder %s95, 0
      %s98 = sadd.s32 %s97, 1
      %s99 = scalar_select %p96, %s97, %s98
      %p102 = pneg %p96
      %p103 = scmp.eq.s32.totalorder %s12, 2
      %p104 = por %p102, %p103
      %p105 = scmp.ne.s32.totalorder %s97, %s100
      %p106 = scmp.eq.s32.totalorder %s12, 0
      %p107 = por %p105, %p106
      %p108 = scmp.ne.s32.totalorder %s97, %s100
      %p109 = scmp.eq.s32.totalorder %s17, 2
      %p110 = por %p108, %p109
      %p111 = scmp.ne.s32.totalorder %s100, %s101
      %p112 = scmp.eq.s32.totalorder %s17, 0
      %p113 = por %p111, %p112
      %p114 = scmp.ne.s32.totalorder %s100, %s101
      %p115 = scmp.eq.s32.totalorder %s18, 2
      %p116 = por %p114, %p115
      %p118 = scmp.ne.s32.totalorder %s101, %s117
      %p119 = scmp.eq.s32.totalorder %s18, 0
      %p120 = por %p118, %p119
      %s121 = ssub.s32 %s19, %s38
      %s122 = ssub.s32 %s20, %s34
      %s123 = sor.u32 %s121, %s122
      %p124 = scmp.eq.s32.totalorder %s123, 0
      %s126 = sadd.s32 %s125, 1
      %s127 = scalar_select %p124, %s125, %s126
      %p130 = pneg %p124
      %p131 = scmp.eq.s32.totalorder %s12, 2
      %p132 = por %p130, %p131
      %p133 = scmp.ne.s32.totalorder %s125, %s128
      %p134 = scmp.eq.s32.totalorder %s12, 0
      %p135 = por %p133, %p134
      %p136 = scmp.ne.s32.totalorder %s125, %s128
      %p137 = scmp.eq.s32.totalorder %s17, 2
      %p138 = por %p136, %p137
      %p139 = scmp.ne.s32.totalorder %s128, %s129
      %p140 = scmp.eq.s32.totalorder %s17, 0
      %p141 = por %p139, %p140
      %p142 = scmp.ne.s32.totalorder %s128, %s129
      %p143 = scmp.eq.s32.totalorder %s18, 2
      %p144 = por %p142, %p143
      %p146 = scmp.ne.s32.totalorder %s129, %s145
      %p147 = scmp.eq.s32.totalorder %s18, 0
      %p148 = por %p146, %p147
      %p149 = scmp.le.s32.totalorder 1, %s12
      %p150 = scmp.lt.s32.totalorder %s12, 4
      %p151 = pnand %p149, %p150
      %p152 = pneg %p151
      // Predicated region
      $region9: #{squeezenet_forward.41} parent=5 // pred_check
        _
      $region10: #{squeezenet_forward.41} parent=5 // pred_check_branch
        %154 = sbr.rel (%p151) target = $region12
      $region11: #{squeezenet_forward.41} parent=5 // pred_region
        %s155 = ssub.s32 %s12, 1
        // Predicated region
        $region13: #{squeezenet_forward.41} parent=11 // pred_check
          %p156 = pneg %p59
        $region14: #{squeezenet_forward.41} parent=11 // pred_check_branch
          %158 = sbr.rel (%p156) target = $region16
        $region15: #{squeezenet_forward.41} parent=11 // pred_region
          %s159 = smul.u32 4, %s24
          %p160 = scmp.lt.s32.totalorder %s22, 0
          %s161 = scalar_select %p160, %s22, 0
          %p162 = scmp.lt.s32.totalorder %s159, 3
          %s163 = scalar_select %p162, %s159, 3
          %s164 = smul.addr %s161, 4
          %s165 = sadd.s32 %s163, %s164
          %s166 = smul.addr %s165, 4
          %s167 = scalar_lea.vmem %s0, %s166
          %s168 = smul.u32 4, %s24
        $region16: #{squeezenet_forward.41} parent=11 // pred_fallthru
          _
      $region12: #{squeezenet_forward.41} parent=5 // pred_fallthru
        _
      %p169 = scmp.lt.s32.totalorder %s12, 3
      // Predicated region
      $region17: #{squeezenet_forward.41} parent=5 // pred_check
        %p170 = pneg %p169
      $region18: #{squeezenet_forward.41} parent=5 // pred_check_branch
        %172 = sbr.rel (%p170) target = $region20
      $region19: #{squeezenet_forward.41} parent=5 // pred_region
        // Predicated region
        $region21: #{squeezenet_forward.41} parent=19 // pred_check
          %p173 = pneg %p81
        $region22: #{squeezenet_forward.41} parent=19 // pred_check_branch
          %175 = sbr.rel (%p173) target = $region24
        $region23: #{squeezenet_forward.41} parent=19 // pred_region
          %s176 = sand.u32 %s71, 1
          %s177 = scalar_lea.sflag [#allocation3], %s176
          %s178 = sand.u32 %s71, 1
          %s179 = smul.addr %s178, 256
          %s180 = scalar_lea.vmem [#allocation2], %s179
          %s181 = smul.u32 64, %s21
          %s183 = ssub.s32 4096, 4096
          %184 = vsyncadd %s177, %s183
          %s185 = smul.addr %s181, 3
          %s186 = sadd.s32 %s20, %s185
          %s187 = smul.addr %s186, 64
          %s188 = scalar_lea.hbm %s1, %s187
          %s189 = sshll.u32 %s180, 4
          %s190 = int_to_ptr.vmem [resolvable:$true] %s189
          %195 = dma.hbm_to_vmem [thread:$0]  %s188, 4096, %s190, %s177, 192, 64, 4
        $region24: #{squeezenet_forward.41} parent=19 // pred_fallthru
          _
        // Predicated region
        $region25: #{squeezenet_forward.41} parent=19 // pred_check
          %p196 = pneg %p107
        $region26: #{squeezenet_forward.41} parent=19 // pred_check_branch
          %198 = sbr.rel (%p196) target = $region28
        $region27: #{squeezenet_forward.41} parent=19 // pred_region
          %p199 = scmp.lt.s32.totalorder %s20, 2
          %s200 = scalar_select %p199, %s20, 2
          %s201 = smul.addr %s200, 8
          %s202 = scalar_lea.vmem %s2, %s201
        $region28: #{squeezenet_forward.41} parent=19 // pred_fallthru
          _
      $region20: #{squeezenet_forward.41} parent=5 // pred_fallthru
        _
      %p203 = scmp.le.s32.totalorder 1, %s12
      %p204 = scmp.lt.s32.totalorder %s12, 4
      %p205 = pnand %p203, %p204
      %p206 = pneg %p205
      // Predicated region
      $region29: #{squeezenet_forward.41} parent=5 // pred_check
        _
      $region30: #{squeezenet_forward.41} parent=5 // pred_check_branch
        %208 = sbr.rel (%p205) target = $region32
      $region31: #{squeezenet_forward.41} parent=5 // pred_region
        %s209 = ssub.s32 %s12, 1
        %s210 = sand.u32 %s74, 1
        %s211 = scalar_lea.sflag [#allocation3], %s210
        %s212 = sand.u32 %s74, 1
        %s213 = smul.addr %s212, 256
        %s214 = scalar_lea.vmem [#allocation2], %s213
        // Predicated region
        $region33: #{squeezenet_forward.41} parent=31 // pred_check
          %p215 = pneg %p87
        $region34: #{squeezenet_forward.41} parent=31 // pred_check_branch
          %217 = sbr.rel (%p215) target = $region36
        $region35: #{squeezenet_forward.41} parent=31 // pred_region
          %218 = dma.done %s211, 4096
        $region36: #{squeezenet_forward.41} parent=31 // pred_fallthru
          _
        %s219 = smul.u32 4, %s24
        %p220 = scmp.lt.s32.totalorder %s22, 0
        %s221 = scalar_select %p220, %s22, 0
        %p222 = scmp.lt.s32.totalorder %s219, 3
        %s223 = scalar_select %p222, %s219, 3
        %s224 = smul.addr %s221, 4
        %s225 = sadd.s32 %s223, %s224
        %s226 = smul.addr %s225, 4
        %s227 = scalar_lea.vmem %s0, %s226
        %p228 = pneg %p59
        %p229 = pneg %p56
        %s230 = sand.u32 %s74, 1
        %s231 = scalar_lea.sflag [#allocation3], %s230
        %s232 = sand.u32 %s74, 1
        %s233 = smul.addr %s232, 256
        %s234 = scalar_lea.vmem [#allocation2], %s233
        %p235 = pneg %p87
        %p236 = pneg %p84
        %p237 = scmp.lt.s32.totalorder %s23, 2
        %s238 = scalar_select %p237, %s23, 2
        %s239 = smul.addr %s238, 8
        %s240 = scalar_lea.vmem %s2, %s239
        %p241 = pneg %p113
        %p242 = pneg %p110
        %p243 = pneg %p141
        %p244 = pneg %p138
        %p245 = scmp.lt.s32.totalorder %s22, 0
        %s246 = scalar_select %p245, %s22, 0
        %p247 = scmp.lt.s32.totalorder %s23, 2
        %s248 = scalar_select %p247, %s23, 2
        %s249 = smul.addr %s246, 3
        %s250 = sadd.s32 %s248, %s249
        %s251 = smul.addr %s250, 8
        %s252 = scalar_lea.vmem %s3, %s251
        %s253 = smul.u32 4, %s24
        %p254 = scmp.lt.s32.totalorder %s22, 0
        %s255 = scalar_select %p254, %s22, 0
        %p256 = scmp.lt.s32.totalorder %s253, 3
        %s257 = scalar_select %p256, %s253, 3
        %s258 = smul.addr %s255, 4
        %s259 = sadd.s32 %s257, %s258
        %s260 = smul.addr %s259, 4
        %s261 = scalar_lea.vmem %s0, %s260
        %s262 = smul.u32 4, %s24
        %s263 = smul.u32 64, %s24
        %p264 = scmp.lt.s32.totalorder %s23, 2
        %s265 = scalar_select %p264, %s23, 2
        %s266 = smul.addr %s265, 8
        %s267 = scalar_lea.vmem %s2, %s266
        %p268 = scmp.lt.s32.totalorder %s22, 0
        %s269 = scalar_select %p268, %s22, 0
        %p270 = scmp.lt.s32.totalorder %s23, 2
        %s271 = scalar_select %p270, %s23, 2
        %s272 = smul.addr %s269, 3
        %s273 = sadd.s32 %s271, %s272
        %s274 = smul.addr %s273, 8
        %s275 = scalar_lea.vmem %s3, %s274
        %p277 = scmp.eq.s32.totalorder %s24, 0
        // Predicated region
        $region37: #{squeezenet_forward.41} parent=31 // pred_check
          %p278 = pneg %p277
        $region38: #{squeezenet_forward.41} parent=31 // pred_check_branch
          %280 = sbr.rel (%p278) target = $region40
        $region39: #{squeezenet_forward.41} parent=31 // pred_region
          %281 = vst [vmem:[%s275] sm:$0xff] 0.0
        $region40: #{squeezenet_forward.41} parent=31 // pred_fallthru
          _
        %v282 = vld [vmem:[%s275] sm:$0xff]
        %v283 = vld [vmem:[%s261] sm:$0xff]
        %v284 = vld [vmem:[%s261 + $0x8] sm:$0xff]
        %v285 = vld [vmem:[%s214] sm:$0xf]
        %v286 = vld [vmem:[%s214 + $0x4] sm:$0xf]
        %v287 = vld [vmem:[%s214 + $0x8] sm:$0xf]
        %v288 = vld [vmem:[%s214 + $0xc] sm:$0xf]
        %v289 = vld [vmem:[%s214 + $0x10] sm:$0xf]
        %v290 = vld [vmem:[%s214 + $0x14] sm:$0xf]
        %v291 = vld [vmem:[%s214 + $0x18] sm:$0xf]
        %v292 = vld [vmem:[%s214 + $0x1c] sm:$0xf]
        %v293 = vld [vmem:[%s214 + $0x20] sm:$0xf]
        %v294 = vld [vmem:[%s214 + $0x24] sm:$0xf]
        %v295 = vld [vmem:[%s214 + $0x28] sm:$0xf]
        %v296 = vld [vmem:[%s214 + $0x2c] sm:$0xf]
        %v297 = vld [vmem:[%s214 + $0x30] sm:$0xf]
        %v298 = vld [vmem:[%s214 + $0x34] sm:$0xf]
        %v299 = vld [vmem:[%s214 + $0x38] sm:$0xf]
        %v300 = vld [vmem:[%s214 + $0x3c] sm:$0xf]
        %v301 = vld [vmem:[%s214 + $0x40] sm:$0xf]
        %v302 = vld [vmem:[%s214 + $0x44] sm:$0xf]
        %v303 = vld [vmem:[%s214 + $0x48] sm:$0xf]
        %v304 = vld [vmem:[%s214 + $0x4c] sm:$0xf]
        %v305 = vld [vmem:[%s214 + $0x50] sm:$0xf]
        %v306 = vld [vmem:[%s214 + $0x54] sm:$0xf]
        %v307 = vld [vmem:[%s214 + $0x58] sm:$0xf]
        %v308 = vld [vmem:[%s214 + $0x5c] sm:$0xf]
        %v309 = vld [vmem:[%s214 + $0x60] sm:$0xf]
        %v310 = vld [vmem:[%s214 + $0x64] sm:$0xf]
        %v311 = vld [vmem:[%s214 + $0x68] sm:$0xf]
        %v312 = vld [vmem:[%s214 + $0x6c] sm:$0xf]
        %v313 = vld [vmem:[%s214 + $0x70] sm:$0xf]
        %v314 = vld [vmem:[%s214 + $0x74] sm:$0xf]
        %v315 = vld [vmem:[%s214 + $0x78] sm:$0xf]
        %v316 = vld [vmem:[%s214 + $0x7c] sm:$0xf]
        %v317 = vld [vmem:[%s214 + $0x80] sm:$0xf]
        %v318 = vld [vmem:[%s214 + $0x84] sm:$0xf]
        %v319 = vld [vmem:[%s214 + $0x88] sm:$0xf]
        %v320 = vld [vmem:[%s214 + $0x8c] sm:$0xf]
        %v321 = vld [vmem:[%s214 + $0x90] sm:$0xf]
        %v322 = vld [vmem:[%s214 + $0x94] sm:$0xf]
        %v323 = vld [vmem:[%s214 + $0x98] sm:$0xf]
        %v324 = vld [vmem:[%s214 + $0x9c] sm:$0xf]
        %v325 = vld [vmem:[%s214 + $0xa0] sm:$0xf]
        %v326 = vld [vmem:[%s214 + $0xa4] sm:$0xf]
        %v327 = vld [vmem:[%s214 + $0xa8] sm:$0xf]
        %v328 = vld [vmem:[%s214 + $0xac] sm:$0xf]
        %v329 = vld [vmem:[%s214 + $0xb0] sm:$0xf]
        %v330 = vld [vmem:[%s214 + $0xb4] sm:$0xf]
        %v331 = vld [vmem:[%s214 + $0xb8] sm:$0xf]
        %v332 = vld [vmem:[%s214 + $0xbc] sm:$0xf]
        %v333 = vld [vmem:[%s214 + $0xc0] sm:$0xf]
        %v334 = vld [vmem:[%s214 + $0xc4] sm:$0xf]
        %v335 = vld [vmem:[%s214 + $0xc8] sm:$0xf]
        %v336 = vld [vmem:[%s214 + $0xcc] sm:$0xf]
        %v337 = vld [vmem:[%s214 + $0xd0] sm:$0xf]
        %v338 = vld [vmem:[%s214 + $0xd4] sm:$0xf]
        %v339 = vld [vmem:[%s214 + $0xd8] sm:$0xf]
        %v340 = vld [vmem:[%s214 + $0xdc] sm:$0xf]
        %v341 = vld [vmem:[%s214 + $0xe0] sm:$0xf]
        %v342 = vld [vmem:[%s214 + $0xe4] sm:$0xf]
        %v343 = vld [vmem:[%s214 + $0xe8] sm:$0xf]
        %v344 = vld [vmem:[%s214 + $0xec] sm:$0xf]
        %v345 = vld [vmem:[%s214 + $0xf0] sm:$0xf]
        %v346 = vld [vmem:[%s214 + $0xf4] sm:$0xf]
        %v347 = vld [vmem:[%s214 + $0xf8] sm:$0xf]
        %v348 = vld [vmem:[%s214 + $0xfc] sm:$0xf]
        %v351 = vunpack.c.l.b16 %v283
        %v352 = vunpack.c.h.b16 %v283
        %v353 = vunpack.c.l.b16 %v284
        %v354 = vunpack.c.h.b16 %v284
        %v355 = vpack.c.b16 %v351, %v351
        %v356 = vpack.c.b16 %v352, %v352
        %v357 = vpack.c.b16 %v353, %v353
        %v358 = vpack.c.b16 %v354, %v354
        %v427 = vunpack.c.l.b16 %v285
        %v428 = vunpack.c.l.b16 %v286
        %v429 = vunpack.c.l.b16 %v287
        %v430 = vunpack.c.l.b16 %v288
        %v431 = vunpack.c.l.b16 %v289
        %v432 = vunpack.c.l.b16 %v290
        %v433 = vunpack.c.l.b16 %v291
        %v434 = vunpack.c.l.b16 %v292
        %v435 = vunpack.c.l.b16 %v293
        %v436 = vunpack.c.l.b16 %v294
        %v437 = vunpack.c.l.b16 %v295
        %v438 = vunpack.c.l.b16 %v296
        %v439 = vunpack.c.l.b16 %v297
        %v440 = vunpack.c.l.b16 %v298
        %v441 = vunpack.c.l.b16 %v299
        %v442 = vunpack.c.l.b16 %v300
        %v443 = vunpack.c.l.b16 %v301
        %v444 = vunpack.c.l.b16 %v302
        %v445 = vunpack.c.l.b16 %v303
        %v446 = vunpack.c.l.b16 %v304
        %v447 = vunpack.c.l.b16 %v305
        %v448 = vunpack.c.l.b16 %v306
        %v449 = vunpack.c.l.b16 %v307
        %v450 = vunpack.c.l.b16 %v308
        %v451 = vunpack.c.l.b16 %v309
        %v452 = vunpack.c.l.b16 %v310
        %v453 = vunpack.c.l.b16 %v311
        %v454 = vunpack.c.l.b16 %v312
        %v455 = vunpack.c.l.b16 %v313
        %v456 = vunpack.c.l.b16 %v314
        %v457 = vunpack.c.l.b16 %v315
        %v458 = vunpack.c.l.b16 %v316
        %v459 = vunpack.c.l.b16 %v317
        %v460 = vunpack.c.l.b16 %v318
        %v461 = vunpack.c.l.b16 %v319
        %v462 = vunpack.c.l.b16 %v320
        %v463 = vunpack.c.l.b16 %v321
        %v464 = vunpack.c.l.b16 %v322
        %v465 = vunpack.c.l.b16 %v323
        %v466 = vunpack.c.l.b16 %v324
        %v467 = vunpack.c.l.b16 %v325
        %v468 = vunpack.c.l.b16 %v326
        %v469 = vunpack.c.l.b16 %v327
        %v470 = vunpack.c.l.b16 %v328
        %v471 = vunpack.c.l.b16 %v329
        %v472 = vunpack.c.l.b16 %v330
        %v473 = vunpack.c.l.b16 %v331
        %v474 = vunpack.c.l.b16 %v332
        %v475 = vunpack.c.l.b16 %v333
        %v476 = vunpack.c.l.b16 %v334
        %v477 = vunpack.c.l.b16 %v335
        %v478 = vunpack.c.l.b16 %v336
        %v479 = vunpack.c.l.b16 %v337
        %v480 = vunpack.c.l.b16 %v338
        %v481 = vunpack.c.l.b16 %v339
        %v482 = vunpack.c.l.b16 %v340
        %v483 = vunpack.c.l.b16 %v341
        %v484 = vunpack.c.l.b16 %v342
        %v485 = vunpack.c.l.b16 %v343
        %v486 = vunpack.c.l.b16 %v344
        %v487 = vunpack.c.l.b16 %v345
        %v488 = vunpack.c.l.b16 %v346
        %v489 = vunpack.c.l.b16 %v347
        %v490 = vunpack.c.l.b16 %v348
        %v491 = vpack.c.b16 %v428, %v427
        %v492 = vpack.c.b16 %v430, %v429
        %v493 = vpack.c.b16 %v432, %v431
        %v494 = vpack.c.b16 %v434, %v433
        %v495 = vpack.c.b16 %v436, %v435
        %v496 = vpack.c.b16 %v438, %v437
        %v497 = vpack.c.b16 %v440, %v439
        %v498 = vpack.c.b16 %v442, %v441
        %v499 = vpack.c.b16 %v444, %v443
        %v500 = vpack.c.b16 %v446, %v445
        %v501 = vpack.c.b16 %v448, %v447
        %v502 = vpack.c.b16 %v450, %v449
        %v503 = vpack.c.b16 %v452, %v451
        %v504 = vpack.c.b16 %v454, %v453
        %v505 = vpack.c.b16 %v456, %v455
        %v506 = vpack.c.b16 %v458, %v457
        %v507 = vpack.c.b16 %v460, %v459
        %v508 = vpack.c.b16 %v462, %v461
        %v509 = vpack.c.b16 %v464, %v463
        %v510 = vpack.c.b16 %v466, %v465
        %v511 = vpack.c.b16 %v468, %v467
        %v512 = vpack.c.b16 %v470, %v469
        %v513 = vpack.c.b16 %v472, %v471
        %v514 = vpack.c.b16 %v474, %v473
        %v515 = vpack.c.b16 %v476, %v475
        %v516 = vpack.c.b16 %v478, %v477
        %v517 = vpack.c.b16 %v480, %v479
        %v518 = vpack.c.b16 %v482, %v481
        %v519 = vpack.c.b16 %v484, %v483
        %v520 = vpack.c.b16 %v486, %v485
        %v521 = vpack.c.b16 %v488, %v487
        %v522 = vpack.c.b16 %v490, %v489
        %555 = vmatprep.subr.bf16.mxu0 0
        %556 = vmatpush1.bf16.msra.mxu0 %v491
        %557 = vmatprep.subr.bf16.mxu0 0
        %558 = vmatpush1.bf16.msra.mxu0 %v492
        %559 = vmatprep.subr.bf16.mxu0 0
        %560 = vmatpush1.bf16.msra.mxu0 %v493
        %561 = vmatprep.subr.bf16.mxu0 0
        %562 = vmatpush1.bf16.msra.mxu0 %v494
        %563 = vmatprep.subr.bf16.mxu0 0
        %564 = vmatpush1.bf16.msra.mxu0 %v495
        %565 = vmatprep.subr.bf16.mxu0 0
        %566 = vmatpush1.bf16.msra.mxu0 %v496
        %567 = vmatprep.subr.bf16.mxu0 0
        %568 = vmatpush1.bf16.msra.mxu0 %v497
        %569 = vmatprep.subr.bf16.mxu0 0
        %570 = vmatpush1.bf16.msra.mxu0 %v498
        %571 = vmatprep.subr.bf16.mxu0 0
        %572 = vmatpush1.bf16.msra.mxu0 %v499
        %573 = vmatprep.subr.bf16.mxu0 0
        %574 = vmatpush1.bf16.msra.mxu0 %v500
        %575 = vmatprep.subr.bf16.mxu0 0
        %576 = vmatpush1.bf16.msra.mxu0 %v501
        %577 = vmatprep.subr.bf16.mxu0 0
        %578 = vmatpush1.bf16.msra.mxu0 %v502
        %579 = vmatprep.subr.bf16.mxu0 0
        %580 = vmatpush1.bf16.msra.mxu0 %v503
        %581 = vmatprep.subr.bf16.mxu0 0
        %582 = vmatpush1.bf16.msra.mxu0 %v504
        %583 = vmatprep.subr.bf16.mxu0 0
        %584 = vmatpush1.bf16.msra.mxu0 %v505
        %585 = vmatprep.subr.bf16.mxu0 0
        %586 = vmatpush1.bf16.msra.mxu0 %v506
        %587 = vmatprep.mubr.bf16.mxu0 %v356
        %588 = vmatmul.mubr.bf16.gmra.mrb[0].mxu0 %v355
        %v589 = vpop.f32.mrb[0].mxu0
        %v590 = vadd.f32 0.0, %v589
        %v591 = vpop.f32.mrb[0].mxu0
        %v592 = vpop.f32.mrb[0].mxu0
        %v593 = vpop.f32.mrb[0].mxu0
        %594 = vdwg.mxu0
        %595 = vmatprep.subr.bf16.mxu0 0
        %596 = vmatpush1.bf16.msra.mxu0 %v507
        %597 = vmatprep.subr.bf16.mxu0 0
        %598 = vmatpush1.bf16.msra.mxu0 %v508
        %599 = vmatprep.subr.bf16.mxu0 0
        %600 = vmatpush1.bf16.msra.mxu0 %v509
        %601 = vmatprep.subr.bf16.mxu0 0
        %602 = vmatpush1.bf16.msra.mxu0 %v510
        %603 = vmatprep.subr.bf16.mxu0 0
        %604 = vmatpush1.bf16.msra.mxu0 %v511
        %605 = vmatprep.subr.bf16.mxu0 0
        %606 = vmatpush1.bf16.msra.mxu0 %v512
        %607 = vmatprep.subr.bf16.mxu0 0
        %608 = vmatpush1.bf16.msra.mxu0 %v513
        %609 = vmatprep.subr.bf16.mxu0 0
        %610 = vmatpush1.bf16.msra.mxu0 %v514
        %611 = vmatprep.subr.bf16.mxu0 0
        %612 = vmatpush1.bf16.msra.mxu0 %v515
        %613 = vmatprep.subr.bf16.mxu0 0
        %614 = vmatpush1.bf16.msra.mxu0 %v516
        %615 = vmatprep.subr.bf16.mxu0 0
        %616 = vmatpush1.bf16.msra.mxu0 %v517
        %617 = vmatprep.subr.bf16.mxu0 0
        %618 = vmatpush1.bf16.msra.mxu0 %v518
        %619 = vmatprep.subr.bf16.mxu0 0
        %620 = vmatpush1.bf16.msra.mxu0 %v519
        %621 = vmatprep.subr.bf16.mxu0 0
        %622 = vmatpush1.bf16.msra.mxu0 %v520
        %623 = vmatprep.subr.bf16.mxu0 0
        %624 = vmatpush1.bf16.msra.mxu0 %v521
        %625 = vmatprep.subr.bf16.mxu0 0
        %626 = vmatpush1.bf16.msra.mxu0 %v522
        %627 = vmatprep.mubr.bf16.mxu0 %v358
        %628 = vmatmul.mubr.bf16.gmra.mrb[0].mxu0 %v357
        %v629 = vpop.f32.mrb[0].mxu0
        %v630 = vadd.f32 %v590, %v629
        %v631 = vpop.f32.mrb[0].mxu0
        %v632 = vpop.f32.mrb[0].mxu0
        %v633 = vpop.f32.mrb[0].mxu0
        %634 = vdwg.mxu0
        %v635 = vadd.f32 %v282, %v630
        %636 = vst [vmem:[%s275] sm:$0xff] %v635
        // Predicated region
        $region41: #{squeezenet_forward.41} parent=31 // pred_check
          %p637 = pneg %p277
        $region42: #{squeezenet_forward.41} parent=31 // pred_check_branch
          %639 = sbr.rel (%p637) target = $region44
        $region43: #{squeezenet_forward.41} parent=31 // pred_region
          %v640 = vld [vmem:[%s275] sm:$0xff]
          %v641 = vld [vmem:[%s267] sm:$0x1]
          %v642 = vlaneseq
          %v643 = vshrl.u32 %v642, 7
          %v644 = vsub.s32 0, %v643
          %v645 = vrot.slane %v641, %v644
          %v646 = vadd.f32 %v640, %v645
          %v647 = vmax.f32 %v646, 0.0
          %648 = vst [vmem:[%s275] sm:$0xff] %v647
        $region44: #{squeezenet_forward.41} parent=31 // pred_fallthru
          _
        %p649 = scmp.lt.s32.totalorder %s22, 0
        %s650 = scalar_select %p649, %s22, 0
        %p651 = scmp.lt.s32.totalorder %s23, 2
        %s652 = scalar_select %p651, %s23, 2
        %s653 = smul.addr %s650, 3
        %s654 = sadd.s32 %s652, %s653
        %s655 = smul.addr %s654, 8
        %s656 = scalar_lea.vmem %s3, %s655
        // Predicated region
        $region45: #{squeezenet_forward.41} parent=31 // pred_check
          %p657 = pneg %p138
        $region46: #{squeezenet_forward.41} parent=31 // pred_check_branch
          %659 = sbr.rel (%p657) target = $region48
        $region47: #{squeezenet_forward.41} parent=31 // pred_region
          _
        $region48: #{squeezenet_forward.41} parent=31 // pred_fallthru
          _
      $region32: #{squeezenet_forward.41} parent=5 // pred_fallthru
        _
      %p660 = scmp.le.s32.totalorder 2, %s12
      // Predicated region
      $region49: #{squeezenet_forward.41} parent=5 // pred_check
        %p661 = pneg %p660
      $region50: #{squeezenet_forward.41} parent=5 // pred_check_branch
        %663 = sbr.rel (%p661) target = $region52
      $region51: #{squeezenet_forward.41} parent=5 // pred_region
        %s664 = ssub.s32 %s12, 2
        // Predicated region
        $region53: #{squeezenet_forward.41} parent=51 // pred_check
          %p665 = pneg %p144
        $region54: #{squeezenet_forward.41} parent=51 // pred_check_branch
          %667 = sbr.rel (%p665) target = $region56
        $region55: #{squeezenet_forward.41} parent=51 // pred_region
          %p668 = scmp.lt.s32.totalorder %s25, 0
          %s669 = scalar_select %p668, %s25, 0
          %p670 = scmp.lt.s32.totalorder %s26, 2
          %s671 = scalar_select %p670, %s26, 2
          %s672 = smul.addr %s669, 3
          %s673 = sadd.s32 %s671, %s672
          %s674 = smul.addr %s673, 8
          %s675 = scalar_lea.vmem %s3, %s674
        $region56: #{squeezenet_forward.41} parent=51 // pred_fallthru
          _
      $region52: #{squeezenet_forward.41} parent=5 // pred_fallthru
        _
    $region6: #{squeezenet_forward.41} parent=1 // loop_footer
      %s16 = sadd.s32 1, %s12
    $region7: #{squeezenet_forward.41} parent=1 // loop_footer_branch
      %11 = sbr.rel target = $region3
    $region8: #{squeezenet_forward.41} parent=1 // loop_exit
      _
    %676 = vsyncpa [#allocation3], 1
    %s677 = scalar_lea.sflag [#allocation3], 1
    %678 = vsyncpa %s677, 1

// kernel: squeezenet_forward.42
$region0: #{squeezenet_forward.42}
  #allocation0 [shape = 'u32[]', space=smem, size = 0x4, offset = 0x4, fixed_abs, tag = 'smem constant byte address 0x4 - core index']
  #allocation1 [shape = 'u32[144,128]{1,0:T(1,128)}', space=vmem, size = 0x12000, scoped, tag = 'internal scratch']
  %s0 = inlined_call_operand.vmem [shape: bf16[8,384], index: 0, kind: input, shape index: {}]
  %s1 = inlined_call_operand.hbm [shape: bf16[384,128], index: 1, kind: input, shape index: {}]
  %s2 = inlined_call_operand.vmem [shape: f32[8,128], index: 2, kind: input, shape index: {}]
  %s3 = inlined_call_operand.vmem [shape: f32[8,128], index: 3, kind: output, shape index: {}]
  %s4 = sld [smem:[#allocation0]]
  $region34: #{squeezenet_forward.42} parent=0
    _
  %s6 = ssub.s32 1, %s4
  %s7 = scalar_select 0, %s6, %s4
  $region1: #{squeezenet_forward.42} parent=0
    #allocation2 [shape = 'u8[98304]{0}', space=vmem, size = 0x18000, scoped, tag = 'input window, operand 1, single buffered']
    #allocation3 [shape = 's32[1]{0}', space=sflag, size = 0x4, scoped, tag = 'scoped memory for squeezenet_forward.42']
    %8 = vsyncpa [#allocation3], 0
    // Predicated region
    $region2: #{squeezenet_forward.42} parent=1 // pred_check
      _
    $region3: #{squeezenet_forward.42} parent=1 // pred_check_branch
      %10 = sbr.rel (0) target = $region5
    $region4: #{squeezenet_forward.42} parent=1 // pred_region
      _
    $region5: #{squeezenet_forward.42} parent=1 // pred_fallthru
      _
    // Predicated region
    $region6: #{squeezenet_forward.42} parent=1 // pred_check
      _
    $region7: #{squeezenet_forward.42} parent=1 // pred_check_branch
      %12 = sbr.rel (0) target = $region9
    $region8: #{squeezenet_forward.42} parent=1 // pred_region
      %s14 = ssub.s32 3072, 3072
      %15 = vsyncadd [#allocation3], %s14
      %s16 = sshll.u32 [#allocation2], 4
      %s17 = int_to_ptr.vmem [resolvable:$true] %s16
      %22 = dma.hbm_to_vmem [thread:$0]  %s1, 3072, %s17, [#allocation3], 64, 64, 4
    $region9: #{squeezenet_forward.42} parent=1 // pred_fallthru
      _
    // Predicated region
    $region10: #{squeezenet_forward.42} parent=1 // pred_check
      _
    $region11: #{squeezenet_forward.42} parent=1 // pred_check_branch
      %24 = sbr.rel (0) target = $region13
    $region12: #{squeezenet_forward.42} parent=1 // pred_region
      _
    $region13: #{squeezenet_forward.42} parent=1 // pred_fallthru
      _
    // Predicated region
    $region14: #{squeezenet_forward.42} parent=1 // pred_check
      _
    $region15: #{squeezenet_forward.42} parent=1 // pred_check_branch
      %26 = sbr.rel (0) target = $region17
    $region16: #{squeezenet_forward.42} parent=1 // pred_region
      %27 = dma.done [#allocation3], 3072
    $region17: #{squeezenet_forward.42} parent=1 // pred_fallthru
      _
    %p29 = scmp.eq.s32.totalorder 0, 0
    // Predicated region
    $region18: #{squeezenet_forward.42} parent=1 // pred_check
      %p30 = pneg %p29
    $region19: #{squeezenet_forward.42} parent=1 // pred_check_branch
      %32 = sbr.rel (%p30) target = $region21
    $region20: #{squeezenet_forward.42} parent=1 // pred_region
      %33 = vst [vmem:[%s3] sm:$0xff] 0.0
    $region21: #{squeezenet_forward.42} parent=1 // pred_fallthru
      _
    %v34 = vld [vmem:[%s3] sm:$0xff]
    %v35 = vld [vmem:[%s0] sm:$0xff]
    %v36 = vld [vmem:[%s0 + $0x8] sm:$0xf]
    %v37 = vld [vmem:[#allocation2] sm:$0xf]
    %v38 = vld [vmem:[#allocation2 + $0x4] sm:$0xf]
    %v39 = vld [vmem:[#allocation2 + $0x8] sm:$0xf]
    %v40 = vld [vmem:[#allocation2 + $0xc] sm:$0xf]
    %v41 = vld [vmem:[#allocation2 + $0x10] sm:$0xf]
    %v42 = vld [vmem:[#allocation2 + $0x14] sm:$0xf]
    %v43 = vld [vmem:[#allocation2 + $0x18] sm:$0xf]
    %v44 = vld [vmem:[#allocation2 + $0x1c] sm:$0xf]
    %v45 = vld [vmem:[#allocation2 + $0x20] sm:$0xf]
    %v46 = vld [vmem:[#allocation2 + $0x24] sm:$0xf]
    %v47 = vld [vmem:[#allocation2 + $0x28] sm:$0xf]
    %v48 = vld [vmem:[#allocation2 + $0x2c] sm:$0xf]
    %v49 = vld [vmem:[#allocation2 + $0x30] sm:$0xf]
    %v50 = vld [vmem:[#allocation2 + $0x34] sm:$0xf]
    %v51 = vld [vmem:[#allocation2 + $0x38] sm:$0xf]
    %v52 = vld [vmem:[#allocation2 + $0x3c] sm:$0xf]
    %v53 = vld [vmem:[#allocation2 + $0x40] sm:$0xf]
    %v54 = vld [vmem:[#allocation2 + $0x44] sm:$0xf]
    %v55 = vld [vmem:[#allocation2 + $0x48] sm:$0xf]
    %v56 = vld [vmem:[#allocation2 + $0x4c] sm:$0xf]
    %v57 = vld [vmem:[#allocation2 + $0x50] sm:$0xf]
    %v58 = vld [vmem:[#allocation2 + $0x54] sm:$0xf]
    %v59 = vld [vmem:[#allocation2 + $0x58] sm:$0xf]
    %v60 = vld [vmem:[#allocation2 + $0x5c] sm:$0xf]
    %v61 = vld [vmem:[#allocation2 + $0x60] sm:$0xf]
    %v62 = vld [vmem:[#allocation2 + $0x64] sm:$0xf]
    %v63 = vld [vmem:[#allocation2 + $0x68] sm:$0xf]
    %v64 = vld [vmem:[#allocation2 + $0x6c] sm:$0xf]
    %v65 = vld [vmem:[#allocation2 + $0x70] sm:$0xf]
    %v66 = vld [vmem:[#allocation2 + $0x74] sm:$0xf]
    %v67 = vld [vmem:[#allocation2 + $0x78] sm:$0xf]
    %v68 = vld [vmem:[#allocation2 + $0x7c] sm:$0xf]
    %v69 = vld [vmem:[#allocation2 + $0x80] sm:$0xf]
    %v70 = vld [vmem:[#allocation2 + $0x84] sm:$0xf]
    %v71 = vld [vmem:[#allocation2 + $0x88] sm:$0xf]
    %v72 = vld [vmem:[#allocation2 + $0x8c] sm:$0xf]
    %v73 = vld [vmem:[#allocation2 + $0x90] sm:$0xf]
    %v74 = vld [vmem:[#allocation2 + $0x94] sm:$0xf]
    %v75 = vld [vmem:[#allocation2 + $0x98] sm:$0xf]
    %v76 = vld [vmem:[#allocation2 + $0x9c] sm:$0xf]
    %v77 = vld [vmem:[#allocation2 + $0xa0] sm:$0xf]
    %v78 = vld [vmem:[#allocation2 + $0xa4] sm:$0xf]
    %v79 = vld [vmem:[#allocation2 + $0xa8] sm:$0xf]
    %v80 = vld [vmem:[#allocation2 + $0xac] sm:$0xf]
    %v81 = vld [vmem:[#allocation2 + $0xb0] sm:$0xf]
    %v82 = vld [vmem:[#allocation2 + $0xb4] sm:$0xf]
    %v83 = vld [vmem:[#allocation2 + $0xb8] sm:$0xf]
    %v84 = vld [vmem:[#allocation2 + $0xbc] sm:$0xf]
    %v87 = vunpack.c.l.b16 %v35
    %v88 = vunpack.c.h.b16 %v35
    %v89 = vunpack.c.l.b16 %v36
    %v90 = vpack.c.b16 %v87, %v87
    %v91 = vpack.c.b16 %v88, %v88
    %v92 = vpack.c.b16 %v89, %v89
    %v144 = vunpack.c.l.b16 %v37
    %v145 = vunpack.c.l.b16 %v38
    %v146 = vunpack.c.l.b16 %v39
    %v147 = vunpack.c.l.b16 %v40
    %v148 = vunpack.c.l.b16 %v41
    %v149 = vunpack.c.l.b16 %v42
    %v150 = vunpack.c.l.b16 %v43
    %v151 = vunpack.c.l.b16 %v44
    %v152 = vunpack.c.l.b16 %v45
    %v153 = vunpack.c.l.b16 %v46
    %v154 = vunpack.c.l.b16 %v47
    %v155 = vunpack.c.l.b16 %v48
    %v156 = vunpack.c.l.b16 %v49
    %v157 = vunpack.c.l.b16 %v50
    %v158 = vunpack.c.l.b16 %v51
    %v159 = vunpack.c.l.b16 %v52
    %v160 = vunpack.c.l.b16 %v53
    %v161 = vunpack.c.l.b16 %v54
    %v162 = vunpack.c.l.b16 %v55
    %v163 = vunpack.c.l.b16 %v56
    %v164 = vunpack.c.l.b16 %v57
    %v165 = vunpack.c.l.b16 %v58
    %v166 = vunpack.c.l.b16 %v59
    %v167 = vunpack.c.l.b16 %v60
    %v168 = vunpack.c.l.b16 %v61
    %v169 = vunpack.c.l.b16 %v62
    %v170 = vunpack.c.l.b16 %v63
    %v171 = vunpack.c.l.b16 %v64
    %v172 = vunpack.c.l.b16 %v65
    %v173 = vunpack.c.l.b16 %v66
    %v174 = vunpack.c.l.b16 %v67
    %v175 = vunpack.c.l.b16 %v68
    %v176 = vunpack.c.l.b16 %v69
    %v177 = vunpack.c.l.b16 %v70
    %v178 = vunpack.c.l.b16 %v71
    %v179 = vunpack.c.l.b16 %v72
    %v180 = vunpack.c.l.b16 %v73
    %v181 = vunpack.c.l.b16 %v74
    %v182 = vunpack.c.l.b16 %v75
    %v183 = vunpack.c.l.b16 %v76
    %v184 = vunpack.c.l.b16 %v77
    %v185 = vunpack.c.l.b16 %v78
    %v186 = vunpack.c.l.b16 %v79
    %v187 = vunpack.c.l.b16 %v80
    %v188 = vunpack.c.l.b16 %v81
    %v189 = vunpack.c.l.b16 %v82
    %v190 = vunpack.c.l.b16 %v83
    %v191 = vunpack.c.l.b16 %v84
    %v192 = vpack.c.b16 %v145, %v144
    %v193 = vpack.c.b16 %v147, %v146
    %v194 = vpack.c.b16 %v149, %v148
    %v195 = vpack.c.b16 %v151, %v150
    %v196 = vpack.c.b16 %v153, %v152
    %v197 = vpack.c.b16 %v155, %v154
    %v198 = vpack.c.b16 %v157, %v156
    %v199 = vpack.c.b16 %v159, %v158
    %v200 = vpack.c.b16 %v161, %v160
    %v201 = vpack.c.b16 %v163, %v162
    %v202 = vpack.c.b16 %v165, %v164
    %v203 = vpack.c.b16 %v167, %v166
    %v204 = vpack.c.b16 %v169, %v168
    %v205 = vpack.c.b16 %v171, %v170
    %v206 = vpack.c.b16 %v173, %v172
    %v207 = vpack.c.b16 %v175, %v174
    %v208 = vpack.c.b16 %v177, %v176
    %v209 = vpack.c.b16 %v179, %v178
    %v210 = vpack.c.b16 %v181, %v180
    %v211 = vpack.c.b16 %v183, %v182
    %v212 = vpack.c.b16 %v185, %v184
    %v213 = vpack.c.b16 %v187, %v186
    %v214 = vpack.c.b16 %v189, %v188
    %v215 = vpack.c.b16 %v191, %v190
    %240 = vmatprep.subr.bf16.mxu0 0
    %241 = vmatpush1.bf16.msra.mxu0 %v192
    %242 = vmatprep.subr.bf16.mxu0 0
    %243 = vmatpush1.bf16.msra.mxu0 %v193
    %244 = vmatprep.subr.bf16.mxu0 0
    %245 = vmatpush1.bf16.msra.mxu0 %v194
    %246 = vmatprep.subr.bf16.mxu0 0
    %247 = vmatpush1.bf16.msra.mxu0 %v195
    %248 = vmatprep.subr.bf16.mxu0 0
    %249 = vmatpush1.bf16.msra.mxu0 %v196
    %250 = vmatprep.subr.bf16.mxu0 0
    %251 = vmatpush1.bf16.msra.mxu0 %v197
    %252 = vmatprep.subr.bf16.mxu0 0
    %253 = vmatpush1.bf16.msra.mxu0 %v198
    %254 = vmatprep.subr.bf16.mxu0 0
    %255 = vmatpush1.bf16.msra.mxu0 %v199
    %256 = vmatprep.subr.bf16.mxu0 0
    %257 = vmatpush1.bf16.msra.mxu0 %v200
    %258 = vmatprep.subr.bf16.mxu0 0
    %259 = vmatpush1.bf16.msra.mxu0 %v201
    %260 = vmatprep.subr.bf16.mxu0 0
    %261 = vmatpush1.bf16.msra.mxu0 %v202
    %262 = vmatprep.subr.bf16.mxu0 0
    %263 = vmatpush1.bf16.msra.mxu0 %v203
    %264 = vmatprep.subr.bf16.mxu0 0
    %265 = vmatpush1.bf16.msra.mxu0 %v204
    %266 = vmatprep.subr.bf16.mxu0 0
    %267 = vmatpush1.bf16.msra.mxu0 %v205
    %268 = vmatprep.subr.bf16.mxu0 0
    %269 = vmatpush1.bf16.msra.mxu0 %v206
    %270 = vmatprep.subr.bf16.mxu0 0
    %271 = vmatpush1.bf16.msra.mxu0 %v207
    %272 = vmatprep.mubr.bf16.mxu0 %v91
    %273 = vmatmul.mubr.bf16.gmra.mrb[0].mxu0 %v90
    %v274 = vpop.f32.mrb[0].mxu0
    %v275 = vadd.f32 0.0, %v274
    %v276 = vpop.f32.mrb[0].mxu0
    %v277 = vpop.f32.mrb[0].mxu0
    %v278 = vpop.f32.mrb[0].mxu0
    %279 = vdwg.mxu0
    %280 = vmatprep.subr.bf16.mxu0 0
    %281 = vmatpush1.bf16.msra.mxu0 %v208
    %282 = vmatprep.subr.bf16.mxu0 0
    %283 = vmatpush1.bf16.msra.mxu0 %v209
    %284 = vmatprep.subr.bf16.mxu0 0
    %285 = vmatpush1.bf16.msra.mxu0 %v210
    %286 = vmatprep.subr.bf16.mxu0 0
    %287 = vmatpush1.bf16.msra.mxu0 %v211
    %288 = vmatprep.subr.bf16.mxu0 0
    %289 = vmatpush1.bf16.msra.mxu0 %v212
    %290 = vmatprep.subr.bf16.mxu0 0
    %291 = vmatpush1.bf16.msra.mxu0 %v213
    %292 = vmatprep.subr.bf16.mxu0 0
    %293 = vmatpush1.bf16.msra.mxu0 %v214
    %294 = vmatprep.subr.bf16.mxu0 0
    %295 = vmatpush1.bf16.msra.mxu0 %v215
    %296 = vmatprep.subr.bf16.mxu0 0
    %297 = vmatpush1.bf16.msra.mxu0 0
    %298 = vmatprep.subr.bf16.mxu0 0
    %299 = vmatpush1.bf16.msra.mxu0 0
    %300 = vmatprep.subr.bf16.mxu0 0
    %301 = vmatpush1.bf16.msra.mxu0 0
    %302 = vmatprep.subr.bf16.mxu0 0
    %303 = vmatpush1.bf16.msra.mxu0 0
    %304 = vmatprep.subr.bf16.mxu0 0
    %305 = vmatpush1.bf16.msra.mxu0 0
    %306 = vmatprep.subr.bf16.mxu0 0
    %307 = vmatpush1.bf16.msra.mxu0 0
    %308 = vmatprep.subr.bf16.mxu0 0
    %309 = vmatpush1.bf16.msra.mxu0 0
    %310 = vmatprep.subr.bf16.mxu0 0
    %311 = vmatpush1.bf16.msra.mxu0 0
    %312 = vmatprep.mubr.bf16.mxu0 0
    %313 = vmatmul.mubr.bf16.gmra.mrb[0].mxu0 %v92
    %v314 = vpop.f32.mrb[0].mxu0
    %v315 = vadd.f32 %v275, %v314
    %v316 = vpop.f32.mrb[0].mxu0
    %v317 = vpop.f32.mrb[0].mxu0
    %v318 = vpop.f32.mrb[0].mxu0
    %319 = vdwg.mxu0
    %v320 = vadd.f32 %v34, %v315
    %321 = vst [vmem:[%s3] sm:$0xff] %v320
    // Predicated region
    $region22: #{squeezenet_forward.42} parent=1 // pred_check
      %p322 = pneg %p29
    $region23: #{squeezenet_forward.42} parent=1 // pred_check_branch
      %324 = sbr.rel (%p322) target = $region25
    $region24: #{squeezenet_forward.42} parent=1 // pred_region
      %v325 = vld [vmem:[%s3] sm:$0xff]
      %v326 = vld [vmem:[%s2] sm:$0x1]
      %v327 = vlaneseq
      %v328 = vshrl.u32 %v327, 7
      %v329 = vsub.s32 0, %v328
      %v330 = vrot.slane %v326, %v329
      %v331 = vadd.f32 %v325, %v330
      %v332 = vmax.f32 %v331, 0.0
      %333 = vst [vmem:[%s3] sm:$0xff] %v332
    $region25: #{squeezenet_forward.42} parent=1 // pred_fallthru
      _
    // Predicated region
    $region26: #{squeezenet_forward.42} parent=1 // pred_check
      _
    $region27: #{squeezenet_forward.42} parent=1 // pred_check_branch
      %335 = sbr.rel (0) target = $region29
    $region28: #{squeezenet_forward.42} parent=1 // pred_region
      _
    $region29: #{squeezenet_forward.42} parent=1 // pred_fallthru
      _
    // Predicated region
    $region30: #{squeezenet_forward.42} parent=1 // pred_check
      _
    $region31: #{squeezenet_forward.42} parent=1 // pred_check_branch
      %337 = sbr.rel (0) target = $region33
    $region32: #{squeezenet_forward.42} parent=1 // pred_region
      _
    $region33: #{squeezenet_forward.42} parent=1 // pred_fallthru
      _
    %338 = vsyncpa [#allocation3], 1

// kernel: squeezenet_forward.45
$region0: #{squeezenet_forward.45}
  #allocation0 [shape = 'u32[]', space=smem, size = 0x4, offset = 0x4, fixed_abs, tag = 'smem constant byte address 0x4 - core index']
  #allocation1 [shape = 'u32[144,128]{1,0:T(1,128)}', space=vmem, size = 0x12000, scoped, tag = 'internal scratch']
  %s0 = inlined_call_operand.vmem [shape: bf16[8,640], index: 0, kind: input, shape index: {}]
  %s1 = inlined_call_operand.vmem [shape: bf16[640,512], index: 1, kind: input, shape index: {}]
  %s2 = inlined_call_operand.vmem [shape: f32[8,512], index: 2, kind: input, shape index: {}]
  %s3 = inlined_call_operand.vmem [shape: f32[8,512], index: 3, kind: output, shape index: {}]
  %s4 = sld [smem:[#allocation0]]
  $region94: #{squeezenet_forward.45} parent=0
    _
  %s6 = ssub.s32 1, %s4
  %s7 = scalar_select 0, %s6, %s4
  $region1: #{squeezenet_forward.45} parent=0
    #allocation2 [shape = 'u8[65536]{0}', space=vmem, size = 0x10000, scoped, tag = 'input window, operand 1']
    loop: start=0, step=1, limit=22
    $region2: #{squeezenet_forward.45} parent=1 // loop_pre_header
      _
    $region3: #{squeezenet_forward.45} parent=1 // loop_header
      %s9 = sphi 0, %s13
      %p10 = scmp.ge.s32.totalorder %s9, 22
      %s16 = sphi 0, %s35
      %s17 = sphi 0, %s31
      %s18 = sphi 0, %s27
      %s19 = sphi 0, %s16
      %s20 = sphi 0, %s17
      %s21 = sphi 0, %s18
      %s22 = sphi 0, %s19
      %s23 = sphi 0, %s20
      %s24 = sphi 0, %s21
      %s40 = sphi 0, %s42
      %s43 = sphi 0, %s40
      %s44 = sphi 0, %s43
      %s60 = sphi 0, %s44
      %s68 = sphi 0, %s70
      %s71 = sphi 0, %s68
      %s72 = sphi 0, %s71
      %s88 = sphi 0, %s72
      %s94 = sphi 0, %s96
      %s97 = sphi 0, %s94
      %s98 = sphi 0, %s97
      %s114 = sphi 0, %s98
      %s122 = sphi 0, %s124
      %s125 = sphi 0, %s122
      %s126 = sphi 0, %s125
      %s142 = sphi 0, %s126
    $region4: #{squeezenet_forward.45} parent=1 // loop_header_branch
      %12 = sbr.rel (%p10) target = $region8
    $region5: #{squeezenet_forward.45} parent=1 // loop_body
      %s14 = ssub.s32 %s9, 1
      %s15 = ssub.s32 %s9, 2
      %s25 = sadd.s32 1, %s18
      %p26 = scmp.ge.s32.totalorder %s25, 5
      %s27 = scalar_select %p26, 0, %s25
      %s28 = sadd.s32 1, %s17
      %s29 = scalar_select %p26, %s28, %s17
      %p30 = scmp.ge.s32.totalorder %s29, 4
      %s31 = scalar_select %p30, 0, %s29
      %s32 = sadd.s32 1, %s16
      %s33 = scalar_select %p30, %s32, %s16
      %p34 = scmp.ge.s32.totalorder %s33, 1
      %s35 = scalar_select %p34, 0, %s33
      %s36 = ssub.s32 %s16, %s35
      %s37 = ssub.s32 %s18, %s27
      %s38 = sor.u32 %s36, %s37
      %p39 = scmp.eq.s32.totalorder %s38, 0
      %s41 = sadd.s32 %s40, 1
      %s42 = scalar_select %p39, %s40, %s41
      %p45 = pneg %p39
      %p46 = scmp.eq.s32.totalorder %s9, 19
      %p47 = por %p45, %p46
      %p48 = scmp.ne.s32.totalorder %s40, %s43
      %p49 = scmp.eq.s32.totalorder %s9, 0
      %p50 = por %p48, %p49
      %p51 = scmp.ne.s32.totalorder %s40, %s43
      %p52 = scmp.eq.s32.totalorder %s14, 19
      %p53 = por %p51, %p52
      %p54 = scmp.ne.s32.totalorder %s43, %s44
      %p55 = scmp.eq.s32.totalorder %s14, 0
      %p56 = por %p54, %p55
      %p57 = scmp.ne.s32.totalorder %s43, %s44
      %p58 = scmp.eq.s32.totalorder %s15, 19
      %p59 = por %p57, %p58
      %p61 = scmp.ne.s32.totalorder %s44, %s60
      %p62 = scmp.eq.s32.totalorder %s15, 0
      %p63 = por %p61, %p62
      %s64 = ssub.s32 %s18, %s27
      %s65 = ssub.s32 %s17, %s31
      %s66 = sor.u32 %s64, %s65
      %p67 = scmp.eq.s32.totalorder %s66, 0
      %s69 = sadd.s32 %s68, 1
      %s70 = scalar_select %p67, %s68, %s69
      %p73 = pneg %p67
      %p74 = scmp.eq.s32.totalorder %s9, 19
      %p75 = por %p73, %p74
      %p76 = scmp.ne.s32.totalorder %s68, %s71
      %p77 = scmp.eq.s32.totalorder %s9, 0
      %p78 = por %p76, %p77
      %p79 = scmp.ne.s32.totalorder %s68, %s71
      %p80 = scmp.eq.s32.totalorder %s14, 19
      %p81 = por %p79, %p80
      %p82 = scmp.ne.s32.totalorder %s71, %s72
      %p83 = scmp.eq.s32.totalorder %s14, 0
      %p84 = por %p82, %p83
      %p85 = scmp.ne.s32.totalorder %s71, %s72
      %p86 = scmp.eq.s32.totalorder %s15, 19
      %p87 = por %p85, %p86
      %p89 = scmp.ne.s32.totalorder %s72, %s88
      %p90 = scmp.eq.s32.totalorder %s15, 0
      %p91 = por %p89, %p90
      %s92 = ssub.s32 %s17, %s31
      %p93 = scmp.eq.s32.totalorder %s92, 0
      %s95 = sadd.s32 %s94, 1
      %s96 = scalar_select %p93, %s94, %s95
      %p99 = pneg %p93
      %p100 = scmp.eq.s32.totalorder %s9, 19
      %p101 = por %p99, %p100
      %p102 = scmp.ne.s32.totalorder %s94, %s97
      %p103 = scmp.eq.s32.totalorder %s9, 0
      %p104 = por %p102, %p103
      %p105 = scmp.ne.s32.totalorder %s94, %s97
      %p106 = scmp.eq.s32.totalorder %s14, 19
      %p107 = por %p105, %p106
      %p108 = scmp.ne.s32.totalorder %s97, %s98
      %p109 = scmp.eq.s32.totalorder %s14, 0
      %p110 = por %p108, %p109
      %p111 = scmp.ne.s32.totalorder %s97, %s98
      %p112 = scmp.eq.s32.totalorder %s15, 19
      %p113 = por %p111, %p112
      %p115 = scmp.ne.s32.totalorder %s98, %s114
      %p116 = scmp.eq.s32.totalorder %s15, 0
      %p117 = por %p115, %p116
      %s118 = ssub.s32 %s16, %s35
      %s119 = ssub.s32 %s17, %s31
      %s120 = sor.u32 %s118, %s119
      %p121 = scmp.eq.s32.totalorder %s120, 0
      %s123 = sadd.s32 %s122, 1
      %s124 = scalar_select %p121, %s122, %s123
      %p127 = pneg %p121
      %p128 = scmp.eq.s32.totalorder %s9, 19
      %p129 = por %p127, %p128
      %p130 = scmp.ne.s32.totalorder %s122, %s125
      %p131 = scmp.eq.s32.totalorder %s9, 0
      %p132 = por %p130, %p131
      %p133 = scmp.ne.s32.totalorder %s122, %s125
      %p134 = scmp.eq.s32.totalorder %s14, 19
      %p135 = por %p133, %p134
      %p136 = scmp.ne.s32.totalorder %s125, %s126
      %p137 = scmp.eq.s32.totalorder %s14, 0
      %p138 = por %p136, %p137
      %p139 = scmp.ne.s32.totalorder %s125, %s126
      %p140 = scmp.eq.s32.totalorder %s15, 19
      %p141 = por %p139, %p140
      %p143 = scmp.ne.s32.totalorder %s126, %s142
      %p144 = scmp.eq.s32.totalorder %s15, 0
      %p145 = por %p143, %p144
      %p146 = scmp.le.s32.totalorder 1, %s9
      %p147 = scmp.lt.s32.totalorder %s9, 21
      %p148 = pnand %p146, %p147
      %p149 = pneg %p148
      // Predicated region
      $region9: #{squeezenet_forward.45} parent=5 // pred_check
        _
      $region10: #{squeezenet_forward.45} parent=5 // pred_check_branch
        %151 = sbr.rel (%p148) target = $region12
      $region11: #{squeezenet_forward.45} parent=5 // pred_region
        %s152 = ssub.s32 %s9, 1
      $region12: #{squeezenet_forward.45} parent=5 // pred_fallthru
        _
      %p153 = scmp.lt.s32.totalorder %s9, 20
      // Predicated region
      $region13: #{squeezenet_forward.45} parent=5 // pred_check
        %p154 = pneg %p153
      $region14: #{squeezenet_forward.45} parent=5 // pred_check_branch
        %156 = sbr.rel (%p154) target = $region16
      $region15: #{squeezenet_forward.45} parent=5 // pred_region
        // Predicated region
        $region17: #{squeezenet_forward.45} parent=15 // pred_check
          %p157 = pneg %p50
        $region18: #{squeezenet_forward.45} parent=15 // pred_check_branch
          %159 = sbr.rel (%p157) target = $region20
        $region19: #{squeezenet_forward.45} parent=15 // pred_region
          %p160 = scmp.lt.s32.totalorder %s16, 0
          %s161 = scalar_select %p160, %s16, 0
          %p162 = scmp.lt.s32.totalorder %s18, 4
          %s163 = scalar_select %p162, %s18, 4
          %s164 = smul.addr %s161, 5
          %s165 = sadd.s32 %s163, %s164
          %s166 = smul.addr %s165, 4
          %s167 = scalar_lea.vmem %s0, %s166
        $region20: #{squeezenet_forward.45} parent=15 // pred_fallthru
          _
        // Predicated region
        $region21: #{squeezenet_forward.45} parent=15 // pred_check
          %p168 = pneg %p78
        $region22: #{squeezenet_forward.45} parent=15 // pred_check_branch
          %170 = sbr.rel (%p168) target = $region24
        $region23: #{squeezenet_forward.45} parent=15 // pred_region
          %s171 = sand.u32 %s68, 1
          %s172 = sand.u32 %s68, 1
          %s173 = smul.addr %s172, 64
          %s174 = scalar_lea.vmem [#allocation2], %s173
          %s175 = smul.u32 16, %s18
          %s176 = smul.addr %s175, 4
          %s177 = sadd.s32 %s17, %s176
          %s178 = smul.addr %s177, 4
          %s179 = scalar_lea.vmem %s1, %s178
          // Predicated region
          $region25: #{squeezenet_forward.45} parent=23 // pred_check
            _
          $region26: #{squeezenet_forward.45} parent=23 // pred_check_branch
            %181 = sbr.rel (0) target = $region28
          $region27: #{squeezenet_forward.45} parent=23 // pred_region
            // Predicated region
            $region29: #{squeezenet_forward.45} parent=27 // pred_check
              _
            $region30: #{squeezenet_forward.45} parent=27 // pred_check_branch
              %183 = sbr.rel target = $region32
            $region31: #{squeezenet_forward.45} parent=27 // pred_region
              // Predicated region
              $region44: #{squeezenet_forward.45} parent=31 // pred_check
                _
              $region45: #{squeezenet_forward.45} parent=31 // pred_check_branch
                %228 = sbr.rel (0) target = $region47
              $region46: #{squeezenet_forward.45} parent=31 // pred_region
                loop: start=0, step=1, limit=1
                $region48: #{squeezenet_forward.45} parent=46 // loop_pre_header
                  _
                $region49: #{squeezenet_forward.45} parent=46 // loop_header
                  %s230 = sphi 0, %s234
                  %p231 = scmp.ge.s32.totalorder %s230, 1
                  %s235 = sphi %s179, %s179
                  %s236 = sphi %s174, %s174
                $region50: #{squeezenet_forward.45} parent=46 // loop_header_branch
                  %233 = sbr.rel (%p231) target = $region54
                $region51: #{squeezenet_forward.45} parent=46 // loop_body
                  _
                $region52: #{squeezenet_forward.45} parent=46 // loop_footer
                  %s234 = sadd.s32 1, %s230
                $region53: #{squeezenet_forward.45} parent=46 // loop_footer_branch
                  %229 = sbr.rel target = $region49
                $region54: #{squeezenet_forward.45} parent=46 // loop_exit
                  _
                loop: start=0, step=1, limit=1
                $region55: #{squeezenet_forward.45} parent=46 // loop_pre_header
                  _
                $region56: #{squeezenet_forward.45} parent=46 // loop_header
                  %s239 = sphi 0, %s243
                  %p240 = scmp.ge.s32.totalorder %s239, 1
                  %s244 = sphi %s179, %s179
                  %s245 = sphi %s174, %s174
                $region57: #{squeezenet_forward.45} parent=46 // loop_header_branch
                  %242 = sbr.rel (%p240) target = $region61
                $region58: #{squeezenet_forward.45} parent=46 // loop_body
                  %v246 = vld [vmem:[%s244] sm:$0xf]
                  %247 = vst [vmem:[%s245] sm:$0xf] %v246
                  %v248 = vld [vmem:[%s244 + $0x10] sm:$0xf]
                  %249 = vst [vmem:[%s245 + $0x4] sm:$0xf] %v248
                  %v250 = vld [vmem:[%s244 + $0x20] sm:$0xf]
                  %251 = vst [vmem:[%s245 + $0x8] sm:$0xf] %v250
                  %v252 = vld [vmem:[%s244 + $0x30] sm:$0xf]
                  %253 = vst [vmem:[%s245 + $0xc] sm:$0xf] %v252
                  %v254 = vld [vmem:[%s244 + $0x40] sm:$0xf]
                  %255 = vst [vmem:[%s245 + $0x10] sm:$0xf] %v254
                  %v256 = vld [vmem:[%s244 + $0x50] sm:$0xf]
                  %257 = vst [vmem:[%s245 + $0x14] sm:$0xf] %v256
                  %v258 = vld [vmem:[%s244 + $0x60] sm:$0xf]
                  %259 = vst [vmem:[%s245 + $0x18] sm:$0xf] %v258
                  %v260 = vld [vmem:[%s244 + $0x70] sm:$0xf]
                  %261 = vst [vmem:[%s245 + $0x1c] sm:$0xf] %v260
                  %v262 = vld [vmem:[%s244 + $0x80] sm:$0xf]
                  %263 = vst [vmem:[%s245 + $0x20] sm:$0xf] %v262
                  %v264 = vld [vmem:[%s244 + $0x90] sm:$0xf]
                  %265 = vst [vmem:[%s245 + $0x24] sm:$0xf] %v264
                  %v266 = vld [vmem:[%s244 + $0xa0] sm:$0xf]
                  %267 = vst [vmem:[%s245 + $0x28] sm:$0xf] %v266
                  %v268 = vld [vmem:[%s244 + $0xb0] sm:$0xf]
                  %269 = vst [vmem:[%s245 + $0x2c] sm:$0xf] %v268
                  %v270 = vld [vmem:[%s244 + $0xc0] sm:$0xf]
                  %271 = vst [vmem:[%s245 + $0x30] sm:$0xf] %v270
                  %v272 = vld [vmem:[%s244 + $0xd0] sm:$0xf]
                  %273 = vst [vmem:[%s245 + $0x34] sm:$0xf] %v272
                  %v274 = vld [vmem:[%s244 + $0xe0] sm:$0xf]
                  %275 = vst [vmem:[%s245 + $0x38] sm:$0xf] %v274
                  %v276 = vld [vmem:[%s244 + $0xf0] sm:$0xf]
                  %277 = vst [vmem:[%s245 + $0x3c] sm:$0xf] %v276
                $region59: #{squeezenet_forward.45} parent=46 // loop_footer
                  %s243 = sadd.s32 1, %s239
                $region60: #{squeezenet_forward.45} parent=46 // loop_footer_branch
                  %238 = sbr.rel target = $region56
                $region61: #{squeezenet_forward.45} parent=46 // loop_exit
                  _
              $region47: #{squeezenet_forward.45} parent=31 // pred_fallthru
                _
            $region32: #{squeezenet_forward.45} parent=27 // pred_fallthru
              _
            // Predicated region
            $region33: #{squeezenet_forward.45} parent=27 // pred_check
              _
            $region34: #{squeezenet_forward.45} parent=27 // pred_check_branch
              %185 = sbr.rel (0) target = $region36
            $region35: #{squeezenet_forward.45} parent=27 // pred_region
              loop: start=0, step=1, limit=1
              $region37: #{squeezenet_forward.45} parent=35 // loop_pre_header
                _
              $region38: #{squeezenet_forward.45} parent=35 // loop_header
                %s188 = sphi 0, %s192
                %p189 = scmp.ge.s32.totalorder %s188, 1
                %s193 = sphi %s179, %s179
                %s194 = sphi %s174, %s174
              $region39: #{squeezenet_forward.45} parent=35 // loop_header_branch
                %191 = sbr.rel (%p189) target = $region43
              $region40: #{squeezenet_forward.45} parent=35 // loop_body
                %v195 = vld [vmem:[%s193] sm:$0xf]
                %196 = vst [vmem:[%s194] sm:$0xf] %v195
                %v197 = vld [vmem:[%s193 + $0x10] sm:$0xf]
                %198 = vst [vmem:[%s194 + $0x4] sm:$0xf] %v197
                %v199 = vld [vmem:[%s193 + $0x20] sm:$0xf]
                %200 = vst [vmem:[%s194 + $0x8] sm:$0xf] %v199
                %v201 = vld [vmem:[%s193 + $0x30] sm:$0xf]
                %202 = vst [vmem:[%s194 + $0xc] sm:$0xf] %v201
                %v203 = vld [vmem:[%s193 + $0x40] sm:$0xf]
                %204 = vst [vmem:[%s194 + $0x10] sm:$0xf] %v203
                %v205 = vld [vmem:[%s193 + $0x50] sm:$0xf]
                %206 = vst [vmem:[%s194 + $0x14] sm:$0xf] %v205
                %v207 = vld [vmem:[%s193 + $0x60] sm:$0xf]
                %208 = vst [vmem:[%s194 + $0x18] sm:$0xf] %v207
                %v209 = vld [vmem:[%s193 + $0x70] sm:$0xf]
                %210 = vst [vmem:[%s194 + $0x1c] sm:$0xf] %v209
                %v211 = vld [vmem:[%s193 + $0x80] sm:$0xf]
                %212 = vst [vmem:[%s194 + $0x20] sm:$0xf] %v211
                %v213 = vld [vmem:[%s193 + $0x90] sm:$0xf]
                %214 = vst [vmem:[%s194 + $0x24] sm:$0xf] %v213
                %v215 = vld [vmem:[%s193 + $0xa0] sm:$0xf]
                %216 = vst [vmem:[%s194 + $0x28] sm:$0xf] %v215
                %v217 = vld [vmem:[%s193 + $0xb0] sm:$0xf]
                %218 = vst [vmem:[%s194 + $0x2c] sm:$0xf] %v217
                %v219 = vld [vmem:[%s193 + $0xc0] sm:$0xf]
                %220 = vst [vmem:[%s194 + $0x30] sm:$0xf] %v219
                %v221 = vld [vmem:[%s193 + $0xd0] sm:$0xf]
                %222 = vst [vmem:[%s194 + $0x34] sm:$0xf] %v221
                %v223 = vld [vmem:[%s193 + $0xe0] sm:$0xf]
                %224 = vst [vmem:[%s194 + $0x38] sm:$0xf] %v223
                %v225 = vld [vmem:[%s193 + $0xf0] sm:$0xf]
                %226 = vst [vmem:[%s194 + $0x3c] sm:$0xf] %v225
              $region41: #{squeezenet_forward.45} parent=35 // loop_footer
                %s192 = sadd.s32 1, %s188
              $region42: #{squeezenet_forward.45} parent=35 // loop_footer_branch
                %187 = sbr.rel target = $region38
              $region43: #{squeezenet_forward.45} parent=35 // loop_exit
                _
            $region36: #{squeezenet_forward.45} parent=27 // pred_fallthru
              _
          $region28: #{squeezenet_forward.45} parent=23 // pred_fallthru
            _
          %278 = vnop
        $region24: #{squeezenet_forward.45} parent=15 // pred_fallthru
          _
        // Predicated region
        $region62: #{squeezenet_forward.45} parent=15 // pred_check
          %p279 = pneg %p104
        $region63: #{squeezenet_forward.45} parent=15 // pred_check_branch
          %281 = sbr.rel (%p279) target = $region65
        $region64: #{squeezenet_forward.45} parent=15 // pred_region
          %p282 = scmp.lt.s32.totalorder %s17, 3
          %s283 = scalar_select %p282, %s17, 3
          %s284 = smul.addr %s283, 8
          %s285 = scalar_lea.vmem %s2, %s284
        $region65: #{squeezenet_forward.45} parent=15 // pred_fallthru
          _
      $region16: #{squeezenet_forward.45} parent=5 // pred_fallthru
        _
      %p286 = scmp.le.s32.totalorder 1, %s9
      %p287 = scmp.lt.s32.totalorder %s9, 21
      %p288 = pnand %p286, %p287
      %p289 = pneg %p288
      // Predicated region
      $region66: #{squeezenet_forward.45} parent=5 // pred_check
        _
      $region67: #{squeezenet_forward.45} parent=5 // pred_check_branch
        %291 = sbr.rel (%p288) target = $region69
      $region68: #{squeezenet_forward.45} parent=5 // pred_region
        %s292 = ssub.s32 %s9, 1
        %s293 = sand.u32 %s71, 1
        %s294 = sand.u32 %s71, 1
        %s295 = smul.addr %s294, 64
        %s296 = scalar_lea.vmem [#allocation2], %s295
        // Predicated region
        $region70: #{squeezenet_forward.45} parent=68 // pred_check
          %p297 = pneg %p84
        $region71: #{squeezenet_forward.45} parent=68 // pred_check_branch
          %299 = sbr.rel (%p297) target = $region73
        $region72: #{squeezenet_forward.45} parent=68 // pred_region
          _
        $region73: #{squeezenet_forward.45} parent=68 // pred_fallthru
          _
        %p300 = scmp.lt.s32.totalorder %s19, 0
        %s301 = scalar_select %p300, %s19, 0
        %p302 = scmp.lt.s32.totalorder %s21, 4
        %s303 = scalar_select %p302, %s21, 4
        %s304 = smul.addr %s301, 5
        %s305 = sadd.s32 %s303, %s304
        %s306 = smul.addr %s305, 4
        %s307 = scalar_lea.vmem %s0, %s306
        %p308 = pneg %p56
        %p309 = pneg %p53
        %s310 = sand.u32 %s71, 1
        %s311 = sand.u32 %s71, 1
        %s312 = smul.addr %s311, 64
        %s313 = scalar_lea.vmem [#allocation2], %s312
        %p314 = pneg %p84
        %p315 = pneg %p81
        %p316 = scmp.lt.s32.totalorder %s20, 3
        %s317 = scalar_select %p316, %s20, 3
        %s318 = smul.addr %s317, 8
        %s319 = scalar_lea.vmem %s2, %s318
        %p320 = pneg %p110
        %p321 = pneg %p107
        %p322 = pneg %p138
        %p323 = pneg %p135
        %p324 = scmp.lt.s32.totalorder %s19, 0
        %s325 = scalar_select %p324, %s19, 0
        %p326 = scmp.lt.s32.totalorder %s20, 3
        %s327 = scalar_select %p326, %s20, 3
        %s328 = smul.addr %s325, 4
        %s329 = sadd.s32 %s327, %s328
        %s330 = smul.addr %s329, 8
        %s331 = scalar_lea.vmem %s3, %s330
        %p332 = scmp.lt.s32.totalorder %s19, 0
        %s333 = scalar_select %p332, %s19, 0
        %p334 = scmp.lt.s32.totalorder %s21, 4
        %s335 = scalar_select %p334, %s21, 4
        %s336 = smul.addr %s333, 5
        %s337 = sadd.s32 %s335, %s336
        %s338 = smul.addr %s337, 4
        %s339 = scalar_lea.vmem %s0, %s338
        %s340 = smul.u32 16, %s21
        %p341 = scmp.lt.s32.totalorder %s20, 3
        %s342 = scalar_select %p341, %s20, 3
        %s343 = smul.addr %s342, 8
        %s344 = scalar_lea.vmem %s2, %s343
        %p345 = scmp.lt.s32.totalorder %s19, 0
        %s346 = scalar_select %p345, %s19, 0
        %p347 = scmp.lt.s32.totalorder %s20, 3
        %s348 = scalar_select %p347, %s20, 3
        %s349 = smul.addr %s346, 4
        %s350 = sadd.s32 %s348, %s349
        %s351 = smul.addr %s350, 8
        %s352 = scalar_lea.vmem %s3, %s351
        %p354 = scmp.eq.s32.totalorder %s21, 0
        // Predicated region
        $region74: #{squeezenet_forward.45} parent=68 // pred_check
          %p355 = pneg %p354
        $region75: #{squeezenet_forward.45} parent=68 // pred_check_branch
          %357 = sbr.rel (%p355) target = $region77
        $region76: #{squeezenet_forward.45} parent=68 // pred_region
          %358 = vst [vmem:[%s352] sm:$0xff] 0.0
        $region77: #{squeezenet_forward.45} parent=68 // pred_fallthru
          _
        %v359 = vld [vmem:[%s352] sm:$0xff]
        %v360 = vld [vmem:[%s339] sm:$0xf]
        %v361 = vld [vmem:[%s296] sm:$0xf]
        %v362 = vld [vmem:[%s296 + $0x4] sm:$0xf]
        %v363 = vld [vmem:[%s296 + $0x8] sm:$0xf]
        %v364 = vld [vmem:[%s296 + $0xc] sm:$0xf]
        %v365 = vld [vmem:[%s296 + $0x10] sm:$0xf]
        %v366 = vld [vmem:[%s296 + $0x14] sm:$0xf]
        %v367 = vld [vmem:[%s296 + $0x18] sm:$0xf]
        %v368 = vld [vmem:[%s296 + $0x1c] sm:$0xf]
        %v369 = vld [vmem:[%s296 + $0x20] sm:$0xf]
        %v370 = vld [vmem:[%s296 + $0x24] sm:$0xf]
        %v371 = vld [vmem:[%s296 + $0x28] sm:$0xf]
        %v372 = vld [vmem:[%s296 + $0x2c] sm:$0xf]
        %v373 = vld [vmem:[%s296 + $0x30] sm:$0xf]
        %v374 = vld [vmem:[%s296 + $0x34] sm:$0xf]
        %v375 = vld [vmem:[%s296 + $0x38] sm:$0xf]
        %v376 = vld [vmem:[%s296 + $0x3c] sm:$0xf]
        %v393 = vunpack.c.l.b16 %v361
        %v394 = vunpack.c.l.b16 %v362
        %v395 = vunpack.c.l.b16 %v363
        %v396 = vunpack.c.l.b16 %v364
        %v397 = vunpack.c.l.b16 %v365
        %v398 = vunpack.c.l.b16 %v366
        %v399 = vunpack.c.l.b16 %v367
        %v400 = vunpack.c.l.b16 %v368
        %v401 = vunpack.c.l.b16 %v369
        %v402 = vunpack.c.l.b16 %v370
        %v403 = vunpack.c.l.b16 %v371
        %v404 = vunpack.c.l.b16 %v372
        %v405 = vunpack.c.l.b16 %v373
        %v406 = vunpack.c.l.b16 %v374
        %v407 = vunpack.c.l.b16 %v375
        %v408 = vunpack.c.l.b16 %v376
        %v409 = vpack.c.b16 %v394, %v393
        %v410 = vpack.c.b16 %v396, %v395
        %v411 = vpack.c.b16 %v398, %v397
        %v412 = vpack.c.b16 %v400, %v399
        %v413 = vpack.c.b16 %v402, %v401
        %v414 = vpack.c.b16 %v404, %v403
        %v415 = vpack.c.b16 %v406, %v405
        %v416 = vpack.c.b16 %v408, %v407
        %425 = vmatprep.subr.bf16.mxu0 0
        %426 = vmatpush1.bf16.msra.mxu0 %v409
        %427 = vmatprep.subr.bf16.mxu0 0
        %428 = vmatpush1.bf16.msra.mxu0 %v410
        %429 = vmatprep.subr.bf16.mxu0 0
        %430 = vmatpush1.bf16.msra.mxu0 %v411
        %431 = vmatprep.subr.bf16.mxu0 0
        %432 = vmatpush1.bf16.msra.mxu0 %v412
        %433 = vmatprep.subr.bf16.mxu0 0
        %434 = vmatpush1.bf16.msra.mxu0 %v413
        %435 = vmatprep.subr.bf16.mxu0 0
        %436 = vmatpush1.bf16.msra.mxu0 %v414
        %437 = vmatprep.subr.bf16.mxu0 0
        %438 = vmatpush1.bf16.msra.mxu0 %v415
        %439 = vmatprep.subr.bf16.mxu0 0
        %440 = vmatpush1.bf16.msra.mxu0 %v416
        %441 = vmatprep.subr.bf16.mxu0 0
        %442 = vmatpush1.bf16.msra.mxu0 0
        %443 = vmatprep.subr.bf16.mxu0 0
        %444 = vmatpush1.bf16.msra.mxu0 0
        %445 = vmatprep.subr.bf16.mxu0 0
        %446 = vmatpush1.bf16.msra.mxu0 0
        %447 = vmatprep.subr.bf16.mxu0 0
        %448 = vmatpush1.bf16.msra.mxu0 0
        %449 = vmatprep.subr.bf16.mxu0 0
        %450 = vmatpush1.bf16.msra.mxu0 0
        %451 = vmatprep.subr.bf16.mxu0 0
        %452 = vmatpush1.bf16.msra.mxu0 0
        %453 = vmatprep.subr.bf16.mxu0 0
        %454 = vmatpush1.bf16.msra.mxu0 0
        %455 = vmatprep.subr.bf16.mxu0 0
        %456 = vmatpush1.bf16.msra.mxu0 0
        %457 = vmatprep.mubr.bf16.mxu0 0
        %458 = vmatmul.mubr.bf16.gmra.mrb[0].mxu0 %v360
        %v459 = vpop.f32.mrb[0].mxu0
        %v460 = vadd.f32 0.0, %v459
        %v461 = vpop.f32.mrb[0].mxu0
        %v462 = vpop.f32.mrb[0].mxu0
        %v463 = vpop.f32.mrb[0].mxu0
        %464 = vdwg.mxu0
        %v465 = vadd.f32 %v359, %v460
        %466 = vst [vmem:[%s352] sm:$0xff] %v465
        %p467 = scmp.eq.s32.totalorder %s21, 4
        // Predicated region
        $region78: #{squeezenet_forward.45} parent=68 // pred_check
          %p468 = pneg %p467
        $region79: #{squeezenet_forward.45} parent=68 // pred_check_branch
          %470 = sbr.rel (%p468) target = $region81
        $region80: #{squeezenet_forward.45} parent=68 // pred_region
          %v471 = vld [vmem:[%s352] sm:$0xff]
          %v472 = vld [vmem:[%s344] sm:$0x1]
          %v473 = vlaneseq
          %v474 = vshrl.u32 %v473, 7
          %v475 = vsub.s32 0, %v474
          %v476 = vrot.slane %v472, %v475
          %v477 = vadd.f32 %v471, %v476
          %v478 = vmax.f32 %v477, 0.0
          %479 = vst [vmem:[%s352] sm:$0xff] %v478
        $region81: #{squeezenet_forward.45} parent=68 // pred_fallthru
          _
        %p480 = scmp.lt.s32.totalorder %s19, 0
        %s481 = scalar_select %p480, %s19, 0
        %p482 = scmp.lt.s32.totalorder %s20, 3
        %s483 = scalar_select %p482, %s20, 3
        %s484 = smul.addr %s481, 4
        %s485 = sadd.s32 %s483, %s484
        %s486 = smul.addr %s485, 8
        %s487 = scalar_lea.vmem %s3, %s486
        // Predicated region
        $region82: #{squeezenet_forward.45} parent=68 // pred_check
          %p488 = pneg %p135
        $region83: #{squeezenet_forward.45} parent=68 // pred_check_branch
          %490 = sbr.rel (%p488) target = $region85
        $region84: #{squeezenet_forward.45} parent=68 // pred_region
          _
        $region85: #{squeezenet_forward.45} parent=68 // pred_fallthru
          _
      $region69: #{squeezenet_forward.45} parent=5 // pred_fallthru
        _
      %p491 = scmp.le.s32.totalorder 2, %s9
      // Predicated region
      $region86: #{squeezenet_forward.45} parent=5 // pred_check
        %p492 = pneg %p491
      $region87: #{squeezenet_forward.45} parent=5 // pred_check_branch
        %494 = sbr.rel (%p492) target = $region89
      $region88: #{squeezenet_forward.45} parent=5 // pred_region
        %s495 = ssub.s32 %s9, 2
        // Predicated region
        $region90: #{squeezenet_forward.45} parent=88 // pred_check
          %p496 = pneg %p141
        $region91: #{squeezenet_forward.45} parent=88 // pred_check_branch
          %498 = sbr.rel (%p496) target = $region93
        $region92: #{squeezenet_forward.45} parent=88 // pred_region
          %p499 = scmp.lt.s32.totalorder %s22, 0
          %s500 = scalar_select %p499, %s22, 0
          %p501 = scmp.lt.s32.totalorder %s23, 3
          %s502 = scalar_select %p501, %s23, 3
          %s503 = smul.addr %s500, 4
          %s504 = sadd.s32 %s502, %s503
          %s505 = smul.addr %s504, 8
          %s506 = scalar_lea.vmem %s3, %s505
        $region93: #{squeezenet_forward.45} parent=88 // pred_fallthru
          _
      $region89: #{squeezenet_forward.45} parent=5 // pred_fallthru
        _
    $region6: #{squeezenet_forward.45} parent=1 // loop_footer
      %s13 = sadd.s32 1, %s9
    $region7: #{squeezenet_forward.45} parent=1 // loop_footer_branch
      %8 = sbr.rel target = $region3
    $region8: #{squeezenet_forward.45} parent=1 // loop_exit
      _

// kernel: squeezenet_forward.46
$region0: #{squeezenet_forward.46}
  #allocation0 [shape = 'u32[]', space=smem, size = 0x4, offset = 0x4, fixed_abs, tag = 'smem constant byte address 0x4 - core index']
  #allocation1 [shape = 'u32[144,128]{1,0:T(1,128)}', space=vmem, size = 0x12000, scoped, tag = 'internal scratch']
  %s0 = inlined_call_operand.vmem [shape: bf16[8,512], index: 0, kind: input, shape index: {}]
  %s1 = inlined_call_operand.vmem [shape: bf16[512,128], index: 1, kind: input, shape index: {}]
  %s2 = inlined_call_operand.vmem [shape: f32[8,128], index: 2, kind: input, shape index: {}]
  %s3 = inlined_call_operand.vmem [shape: f32[8,128], index: 3, kind: output, shape index: {}]
  %s4 = sld [smem:[#allocation0]]
  $region30: #{squeezenet_forward.46} parent=0
    _
  %s6 = ssub.s32 1, %s4
  %s7 = scalar_select 0, %s6, %s4
  // Predicated region
  $region2: #{squeezenet_forward.46} parent=0 // pred_check
    _
  $region3: #{squeezenet_forward.46} parent=0 // pred_check_branch
    %9 = sbr.rel (0) target = $region5
  $region4: #{squeezenet_forward.46} parent=0 // pred_region
    _
  $region5: #{squeezenet_forward.46} parent=0 // pred_fallthru
    _
  // Predicated region
  $region6: #{squeezenet_forward.46} parent=0 // pred_check
    _
  $region7: #{squeezenet_forward.46} parent=0 // pred_check_branch
    %11 = sbr.rel (0) target = $region9
  $region8: #{squeezenet_forward.46} parent=0 // pred_region
    _
  $region9: #{squeezenet_forward.46} parent=0 // pred_fallthru
    _
  // Predicated region
  $region10: #{squeezenet_forward.46} parent=0 // pred_check
    _
  $region11: #{squeezenet_forward.46} parent=0 // pred_check_branch
    %13 = sbr.rel (0) target = $region13
  $region12: #{squeezenet_forward.46} parent=0 // pred_region
    _
  $region13: #{squeezenet_forward.46} parent=0 // pred_fallthru
    _
  %p15 = scmp.eq.s32.totalorder 0, 0
  // Predicated region
  $region14: #{squeezenet_forward.46} parent=0 // pred_check
    %p16 = pneg %p15
  $region15: #{squeezenet_forward.46} parent=0 // pred_check_branch
    %18 = sbr.rel (%p16) target = $region17
  $region16: #{squeezenet_forward.46} parent=0 // pred_region
    %19 = vst [vmem:[%s3] sm:$0xff] 0.0
  $region17: #{squeezenet_forward.46} parent=0 // pred_fallthru
    _
  %v20 = vld [vmem:[%s3] sm:$0xff]
  %v21 = vld [vmem:[%s0] sm:$0xff]
  %v22 = vld [vmem:[%s0 + $0x8] sm:$0xff]
  %v23 = vld [vmem:[%s1] sm:$0xf]
  %v24 = vld [vmem:[%s1 + $0x4] sm:$0xf]
  %v25 = vld [vmem:[%s1 + $0x8] sm:$0xf]
  %v26 = vld [vmem:[%s1 + $0xc] sm:$0xf]
  %v27 = vld [vmem:[%s1 + $0x10] sm:$0xf]
  %v28 = vld [vmem:[%s1 + $0x14] sm:$0xf]
  %v29 = vld [vmem:[%s1 + $0x18] sm:$0xf]
  %v30 = vld [vmem:[%s1 + $0x1c] sm:$0xf]
  %v31 = vld [vmem:[%s1 + $0x20] sm:$0xf]
  %v32 = vld [vmem:[%s1 + $0x24] sm:$0xf]
  %v33 = vld [vmem:[%s1 + $0x28] sm:$0xf]
  %v34 = vld [vmem:[%s1 + $0x2c] sm:$0xf]
  %v35 = vld [vmem:[%s1 + $0x30] sm:$0xf]
  %v36 = vld [vmem:[%s1 + $0x34] sm:$0xf]
  %v37 = vld [vmem:[%s1 + $0x38] sm:$0xf]
  %v38 = vld [vmem:[%s1 + $0x3c] sm:$0xf]
  %v39 = vld [vmem:[%s1 + $0x40] sm:$0xf]
  %v40 = vld [vmem:[%s1 + $0x44] sm:$0xf]
  %v41 = vld [vmem:[%s1 + $0x48] sm:$0xf]
  %v42 = vld [vmem:[%s1 + $0x4c] sm:$0xf]
  %v43 = vld [vmem:[%s1 + $0x50] sm:$0xf]
  %v44 = vld [vmem:[%s1 + $0x54] sm:$0xf]
  %v45 = vld [vmem:[%s1 + $0x58] sm:$0xf]
  %v46 = vld [vmem:[%s1 + $0x5c] sm:$0xf]
  %v47 = vld [vmem:[%s1 + $0x60] sm:$0xf]
  %v48 = vld [vmem:[%s1 + $0x64] sm:$0xf]
  %v49 = vld [vmem:[%s1 + $0x68] sm:$0xf]
  %v50 = vld [vmem:[%s1 + $0x6c] sm:$0xf]
  %v51 = vld [vmem:[%s1 + $0x70] sm:$0xf]
  %v52 = vld [vmem:[%s1 + $0x74] sm:$0xf]
  %v53 = vld [vmem:[%s1 + $0x78] sm:$0xf]
  %v54 = vld [vmem:[%s1 + $0x7c] sm:$0xf]
  %v55 = vld [vmem:[%s1 + $0x80] sm:$0xf]
  %v56 = vld [vmem:[%s1 + $0x84] sm:$0xf]
  %v57 = vld [vmem:[%s1 + $0x88] sm:$0xf]
  %v58 = vld [vmem:[%s1 + $0x8c] sm:$0xf]
  %v59 = vld [vmem:[%s1 + $0x90] sm:$0xf]
  %v60 = vld [vmem:[%s1 + $0x94] sm:$0xf]
  %v61 = vld [vmem:[%s1 + $0x98] sm:$0xf]
  %v62 = vld [vmem:[%s1 + $0x9c] sm:$0xf]
  %v63 = vld [vmem:[%s1 + $0xa0] sm:$0xf]
  %v64 = vld [vmem:[%s1 + $0xa4] sm:$0xf]
  %v65 = vld [vmem:[%s1 + $0xa8] sm:$0xf]
  %v66 = vld [vmem:[%s1 + $0xac] sm:$0xf]
  %v67 = vld [vmem:[%s1 + $0xb0] sm:$0xf]
  %v68 = vld [vmem:[%s1 + $0xb4] sm:$0xf]
  %v69 = vld [vmem:[%s1 + $0xb8] sm:$0xf]
  %v70 = vld [vmem:[%s1 + $0xbc] sm:$0xf]
  %v71 = vld [vmem:[%s1 + $0xc0] sm:$0xf]
  %v72 = vld [vmem:[%s1 + $0xc4] sm:$0xf]
  %v73 = vld [vmem:[%s1 + $0xc8] sm:$0xf]
  %v74 = vld [vmem:[%s1 + $0xcc] sm:$0xf]
  %v75 = vld [vmem:[%s1 + $0xd0] sm:$0xf]
  %v76 = vld [vmem:[%s1 + $0xd4] sm:$0xf]
  %v77 = vld [vmem:[%s1 + $0xd8] sm:$0xf]
  %v78 = vld [vmem:[%s1 + $0xdc] sm:$0xf]
  %v79 = vld [vmem:[%s1 + $0xe0] sm:$0xf]
  %v80 = vld [vmem:[%s1 + $0xe4] sm:$0xf]
  %v81 = vld [vmem:[%s1 + $0xe8] sm:$0xf]
  %v82 = vld [vmem:[%s1 + $0xec] sm:$0xf]
  %v83 = vld [vmem:[%s1 + $0xf0] sm:$0xf]
  %v84 = vld [vmem:[%s1 + $0xf4] sm:$0xf]
  %v85 = vld [vmem:[%s1 + $0xf8] sm:$0xf]
  %v86 = vld [vmem:[%s1 + $0xfc] sm:$0xf]
  %v89 = vunpack.c.l.b16 %v21
  %v90 = vunpack.c.h.b16 %v21
  %v91 = vunpack.c.l.b16 %v22
  %v92 = vunpack.c.h.b16 %v22
  %v93 = vpack.c.b16 %v89, %v89
  %v94 = vpack.c.b16 %v90, %v90
  %v95 = vpack.c.b16 %v91, %v91
  %v96 = vpack.c.b16 %v92, %v92
  %v165 = vunpack.c.l.b16 %v23
  %v166 = vunpack.c.l.b16 %v24
  %v167 = vunpack.c.l.b16 %v25
  %v168 = vunpack.c.l.b16 %v26
  %v169 = vunpack.c.l.b16 %v27
  %v170 = vunpack.c.l.b16 %v28
  %v171 = vunpack.c.l.b16 %v29
  %v172 = vunpack.c.l.b16 %v30
  %v173 = vunpack.c.l.b16 %v31
  %v174 = vunpack.c.l.b16 %v32
  %v175 = vunpack.c.l.b16 %v33
  %v176 = vunpack.c.l.b16 %v34
  %v177 = vunpack.c.l.b16 %v35
  %v178 = vunpack.c.l.b16 %v36
  %v179 = vunpack.c.l.b16 %v37
  %v180 = vunpack.c.l.b16 %v38
  %v181 = vunpack.c.l.b16 %v39
  %v182 = vunpack.c.l.b16 %v40
  %v183 = vunpack.c.l.b16 %v41
  %v184 = vunpack.c.l.b16 %v42
  %v185 = vunpack.c.l.b16 %v43
  %v186 = vunpack.c.l.b16 %v44
  %v187 = vunpack.c.l.b16 %v45
  %v188 = vunpack.c.l.b16 %v46
  %v189 = vunpack.c.l.b16 %v47
  %v190 = vunpack.c.l.b16 %v48
  %v191 = vunpack.c.l.b16 %v49
  %v192 = vunpack.c.l.b16 %v50
  %v193 = vunpack.c.l.b16 %v51
  %v194 = vunpack.c.l.b16 %v52
  %v195 = vunpack.c.l.b16 %v53
  %v196 = vunpack.c.l.b16 %v54
  %v197 = vunpack.c.l.b16 %v55
  %v198 = vunpack.c.l.b16 %v56
  %v199 = vunpack.c.l.b16 %v57
  %v200 = vunpack.c.l.b16 %v58
  %v201 = vunpack.c.l.b16 %v59
  %v202 = vunpack.c.l.b16 %v60
  %v203 = vunpack.c.l.b16 %v61
  %v204 = vunpack.c.l.b16 %v62
  %v205 = vunpack.c.l.b16 %v63
  %v206 = vunpack.c.l.b16 %v64
  %v207 = vunpack.c.l.b16 %v65
  %v208 = vunpack.c.l.b16 %v66
  %v209 = vunpack.c.l.b16 %v67
  %v210 = vunpack.c.l.b16 %v68
  %v211 = vunpack.c.l.b16 %v69
  %v212 = vunpack.c.l.b16 %v70
  %v213 = vunpack.c.l.b16 %v71
  %v214 = vunpack.c.l.b16 %v72
  %v215 = vunpack.c.l.b16 %v73
  %v216 = vunpack.c.l.b16 %v74
  %v217 = vunpack.c.l.b16 %v75
  %v218 = vunpack.c.l.b16 %v76
  %v219 = vunpack.c.l.b16 %v77
  %v220 = vunpack.c.l.b16 %v78
  %v221 = vunpack.c.l.b16 %v79
  %v222 = vunpack.c.l.b16 %v80
  %v223 = vunpack.c.l.b16 %v81
  %v224 = vunpack.c.l.b16 %v82
  %v225 = vunpack.c.l.b16 %v83
  %v226 = vunpack.c.l.b16 %v84
  %v227 = vunpack.c.l.b16 %v85
  %v228 = vunpack.c.l.b16 %v86
  %v229 = vpack.c.b16 %v166, %v165
  %v230 = vpack.c.b16 %v168, %v167
  %v231 = vpack.c.b16 %v170, %v169
  %v232 = vpack.c.b16 %v172, %v171
  %v233 = vpack.c.b16 %v174, %v173
  %v234 = vpack.c.b16 %v176, %v175
  %v235 = vpack.c.b16 %v178, %v177
  %v236 = vpack.c.b16 %v180, %v179
  %v237 = vpack.c.b16 %v182, %v181
  %v238 = vpack.c.b16 %v184, %v183
  %v239 = vpack.c.b16 %v186, %v185
  %v240 = vpack.c.b16 %v188, %v187
  %v241 = vpack.c.b16 %v190, %v189
  %v242 = vpack.c.b16 %v192, %v191
  %v243 = vpack.c.b16 %v194, %v193
  %v244 = vpack.c.b16 %v196, %v195
  %v245 = vpack.c.b16 %v198, %v197
  %v246 = vpack.c.b16 %v200, %v199
  %v247 = vpack.c.b16 %v202, %v201
  %v248 = vpack.c.b16 %v204, %v203
  %v249 = vpack.c.b16 %v206, %v205
  %v250 = vpack.c.b16 %v208, %v207
  %v251 = vpack.c.b16 %v210, %v209
  %v252 = vpack.c.b16 %v212, %v211
  %v253 = vpack.c.b16 %v214, %v213
  %v254 = vpack.c.b16 %v216, %v215
  %v255 = vpack.c.b16 %v218, %v217
  %v256 = vpack.c.b16 %v220, %v219
  %v257 = vpack.c.b16 %v222, %v221
  %v258 = vpack.c.b16 %v224, %v223
  %v259 = vpack.c.b16 %v226, %v225
  %v260 = vpack.c.b16 %v228, %v227
  %293 = vmatprep.subr.bf16.mxu0 0
  %294 = vmatpush1.bf16.msra.mxu0 %v229
  %295 = vmatprep.subr.bf16.mxu0 0
  %296 = vmatpush1.bf16.msra.mxu0 %v230
  %297 = vmatprep.subr.bf16.mxu0 0
  %298 = vmatpush1.bf16.msra.mxu0 %v231
  %299 = vmatprep.subr.bf16.mxu0 0
  %300 = vmatpush1.bf16.msra.mxu0 %v232
  %301 = vmatprep.subr.bf16.mxu0 0
  %302 = vmatpush1.bf16.msra.mxu0 %v233
  %303 = vmatprep.subr.bf16.mxu0 0
  %304 = vmatpush1.bf16.msra.mxu0 %v234
  %305 = vmatprep.subr.bf16.mxu0 0
  %306 = vmatpush1.bf16.msra.mxu0 %v235
  %307 = vmatprep.subr.bf16.mxu0 0
  %308 = vmatpush1.bf16.msra.mxu0 %v236
  %309 = vmatprep.subr.bf16.mxu0 0
  %310 = vmatpush1.bf16.msra.mxu0 %v237
  %311 = vmatprep.subr.bf16.mxu0 0
  %312 = vmatpush1.bf16.msra.mxu0 %v238
  %313 = vmatprep.subr.bf16.mxu0 0
  %314 = vmatpush1.bf16.msra.mxu0 %v239
  %315 = vmatprep.subr.bf16.mxu0 0
  %316 = vmatpush1.bf16.msra.mxu0 %v240
  %317 = vmatprep.subr.bf16.mxu0 0
  %318 = vmatpush1.bf16.msra.mxu0 %v241
  %319 = vmatprep.subr.bf16.mxu0 0
  %320 = vmatpush1.bf16.msra.mxu0 %v242
  %321 = vmatprep.subr.bf16.mxu0 0
  %322 = vmatpush1.bf16.msra.mxu0 %v243
  %323 = vmatprep.subr.bf16.mxu0 0
  %324 = vmatpush1.bf16.msra.mxu0 %v244
  %325 = vmatprep.mubr.bf16.mxu0 %v94
  %326 = vmatmul.mubr.bf16.gmra.mrb[0].mxu0 %v93
  %v327 = vpop.f32.mrb[0].mxu0
  %v328 = vadd.f32 0.0, %v327
  %v329 = vpop.f32.mrb[0].mxu0
  %v330 = vpop.f32.mrb[0].mxu0
  %v331 = vpop.f32.mrb[0].mxu0
  %332 = vdwg.mxu0
  %333 = vmatprep.subr.bf16.mxu0 0
  %334 = vmatpush1.bf16.msra.mxu0 %v245
  %335 = vmatprep.subr.bf16.mxu0 0
  %336 = vmatpush1.bf16.msra.mxu0 %v246
  %337 = vmatprep.subr.bf16.mxu0 0
  %338 = vmatpush1.bf16.msra.mxu0 %v247
  %339 = vmatprep.subr.bf16.mxu0 0
  %340 = vmatpush1.bf16.msra.mxu0 %v248
  %341 = vmatprep.subr.bf16.mxu0 0
  %342 = vmatpush1.bf16.msra.mxu0 %v249
  %343 = vmatprep.subr.bf16.mxu0 0
  %344 = vmatpush1.bf16.msra.mxu0 %v250
  %345 = vmatprep.subr.bf16.mxu0 0
  %346 = vmatpush1.bf16.msra.mxu0 %v251
  %347 = vmatprep.subr.bf16.mxu0 0
  %348 = vmatpush1.bf16.msra.mxu0 %v252
  %349 = vmatprep.subr.bf16.mxu0 0
  %350 = vmatpush1.bf16.msra.mxu0 %v253
  %351 = vmatprep.subr.bf16.mxu0 0
  %352 = vmatpush1.bf16.msra.mxu0 %v254
  %353 = vmatprep.subr.bf16.mxu0 0
  %354 = vmatpush1.bf16.msra.mxu0 %v255
  %355 = vmatprep.subr.bf16.mxu0 0
  %356 = vmatpush1.bf16.msra.mxu0 %v256
  %357 = vmatprep.subr.bf16.mxu0 0
  %358 = vmatpush1.bf16.msra.mxu0 %v257
  %359 = vmatprep.subr.bf16.mxu0 0
  %360 = vmatpush1.bf16.msra.mxu0 %v258
  %361 = vmatprep.subr.bf16.mxu0 0
  %362 = vmatpush1.bf16.msra.mxu0 %v259
  %363 = vmatprep.subr.bf16.mxu0 0
  %364 = vmatpush1.bf16.msra.mxu0 %v260
  %365 = vmatprep.mubr.bf16.mxu0 %v96
  %366 = vmatmul.mubr.bf16.gmra.mrb[0].mxu0 %v95
  %v367 = vpop.f32.mrb[0].mxu0
  %v368 = vadd.f32 %v328, %v367
  %v369 = vpop.f32.mrb[0].mxu0
  %v370 = vpop.f32.mrb[0].mxu0
  %v371 = vpop.f32.mrb[0].mxu0
  %372 = vdwg.mxu0
  %v373 = vadd.f32 %v20, %v368
  %374 = vst [vmem:[%s3] sm:$0xff] %v373
  // Predicated region
  $region18: #{squeezenet_forward.46} parent=0 // pred_check
    %p375 = pneg %p15
  $region19: #{squeezenet_forward.46} parent=0 // pred_check_branch
    %377 = sbr.rel (%p375) target = $region21
  $region20: #{squeezenet_forward.46} parent=0 // pred_region
    %v378 = vld [vmem:[%s3] sm:$0xff]
    %v379 = vld [vmem:[%s2] sm:$0x1]
    %v380 = vlaneseq
    %v381 = vshrl.u32 %v380, 7
    %v382 = vsub.s32 0, %v381
    %v383 = vrot.slane %v379, %v382
    %v384 = vadd.f32 %v378, %v383
    %v385 = vmax.f32 %v384, 0.0
    %386 = vst [vmem:[%s3] sm:$0xff] %v385
  $region21: #{squeezenet_forward.46} parent=0 // pred_fallthru
    _
  // Predicated region
  $region22: #{squeezenet_forward.46} parent=0 // pred_check
    _
  $region23: #{squeezenet_forward.46} parent=0 // pred_check_branch
    %388 = sbr.rel (0) target = $region25
  $region24: #{squeezenet_forward.46} parent=0 // pred_region
    _
  $region25: #{squeezenet_forward.46} parent=0 // pred_fallthru
    _
  // Predicated region
  $region26: #{squeezenet_forward.46} parent=0 // pred_check
    _
  $region27: #{squeezenet_forward.46} parent=0 // pred_check_branch
    %390 = sbr.rel (0) target = $region29
  $region28: #{squeezenet_forward.46} parent=0 // pred_region
    _
  $region29: #{squeezenet_forward.46} parent=0 // pred_fallthru
    _

// kernel: squeezenet_forward.48
$region0: #{squeezenet_forward.48}
  #allocation0 [shape = 'u32[]', space=smem, size = 0x4, offset = 0x4, fixed_abs, tag = 'smem constant byte address 0x4 - core index']
  #allocation1 [shape = 'u32[144,128]{1,0:T(1,128)}', space=vmem, size = 0x12000, scoped, tag = 'internal scratch']
  %s0 = inlined_call_operand.vmem [shape: bf16[8,512], index: 0, kind: input, shape index: {}]
  %s1 = inlined_call_operand.vmem [shape: bf16[512,512], index: 1, kind: input, shape index: {}]
  %s2 = inlined_call_operand.vmem [shape: f32[8,512], index: 2, kind: input, shape index: {}]
  %s3 = inlined_call_operand.vmem [shape: f32[8,512], index: 3, kind: output, shape index: {}]
  %s4 = sld [smem:[#allocation0]]
  $region94: #{squeezenet_forward.48} parent=0
    _
  %s6 = ssub.s32 1, %s4
  %s7 = scalar_select 0, %s6, %s4
  $region1: #{squeezenet_forward.48} parent=0
    #allocation2 [shape = 'u8[262144]{0}', space=vmem, size = 0x40000, scoped, tag = 'input window, operand 1']
    loop: start=0, step=1, limit=6
    $region2: #{squeezenet_forward.48} parent=1 // loop_pre_header
      _
    $region3: #{squeezenet_forward.48} parent=1 // loop_header
      %s9 = sphi 0, %s13
      %p10 = scmp.ge.s32.totalorder %s9, 6
      %s16 = sphi 0, %s35
      %s17 = sphi 0, %s31
      %s18 = sphi 0, %s27
      %s19 = sphi 0, %s16
      %s20 = sphi 0, %s17
      %s21 = sphi 0, %s18
      %s22 = sphi 0, %s19
      %s23 = sphi 0, %s20
      %s24 = sphi 0, %s21
      %s40 = sphi 0, %s42
      %s43 = sphi 0, %s40
      %s44 = sphi 0, %s43
      %s60 = sphi 0, %s44
      %s68 = sphi 0, %s70
      %s71 = sphi 0, %s68
      %s72 = sphi 0, %s71
      %s88 = sphi 0, %s72
      %s94 = sphi 0, %s96
      %s97 = sphi 0, %s94
      %s98 = sphi 0, %s97
      %s114 = sphi 0, %s98
      %s122 = sphi 0, %s124
      %s125 = sphi 0, %s122
      %s126 = sphi 0, %s125
      %s142 = sphi 0, %s126
    $region4: #{squeezenet_forward.48} parent=1 // loop_header_branch
      %12 = sbr.rel (%p10) target = $region8
    $region5: #{squeezenet_forward.48} parent=1 // loop_body
      %s14 = ssub.s32 %s9, 1
      %s15 = ssub.s32 %s9, 2
      %s25 = sadd.s32 1, %s18
      %p26 = scmp.ge.s32.totalorder %s25, 1
      %s27 = scalar_select %p26, 0, %s25
      %s28 = sadd.s32 1, %s17
      %s29 = scalar_select %p26, %s28, %s17
      %p30 = scmp.ge.s32.totalorder %s29, 4
      %s31 = scalar_select %p30, 0, %s29
      %s32 = sadd.s32 1, %s16
      %s33 = scalar_select %p30, %s32, %s16
      %p34 = scmp.ge.s32.totalorder %s33, 1
      %s35 = scalar_select %p34, 0, %s33
      %s36 = ssub.s32 %s16, %s35
      %s37 = ssub.s32 %s18, %s27
      %s38 = sor.u32 %s36, %s37
      %p39 = scmp.eq.s32.totalorder %s38, 0
      %s41 = sadd.s32 %s40, 1
      %s42 = scalar_select %p39, %s40, %s41
      %p45 = pneg %p39
      %p46 = scmp.eq.s32.totalorder %s9, 3
      %p47 = por %p45, %p46
      %p48 = scmp.ne.s32.totalorder %s40, %s43
      %p49 = scmp.eq.s32.totalorder %s9, 0
      %p50 = por %p48, %p49
      %p51 = scmp.ne.s32.totalorder %s40, %s43
      %p52 = scmp.eq.s32.totalorder %s14, 3
      %p53 = por %p51, %p52
      %p54 = scmp.ne.s32.totalorder %s43, %s44
      %p55 = scmp.eq.s32.totalorder %s14, 0
      %p56 = por %p54, %p55
      %p57 = scmp.ne.s32.totalorder %s43, %s44
      %p58 = scmp.eq.s32.totalorder %s15, 3
      %p59 = por %p57, %p58
      %p61 = scmp.ne.s32.totalorder %s44, %s60
      %p62 = scmp.eq.s32.totalorder %s15, 0
      %p63 = por %p61, %p62
      %s64 = ssub.s32 %s18, %s27
      %s65 = ssub.s32 %s17, %s31
      %s66 = sor.u32 %s64, %s65
      %p67 = scmp.eq.s32.totalorder %s66, 0
      %s69 = sadd.s32 %s68, 1
      %s70 = scalar_select %p67, %s68, %s69
      %p73 = pneg %p67
      %p74 = scmp.eq.s32.totalorder %s9, 3
      %p75 = por %p73, %p74
      %p76 = scmp.ne.s32.totalorder %s68, %s71
      %p77 = scmp.eq.s32.totalorder %s9, 0
      %p78 = por %p76, %p77
      %p79 = scmp.ne.s32.totalorder %s68, %s71
      %p80 = scmp.eq.s32.totalorder %s14, 3
      %p81 = por %p79, %p80
      %p82 = scmp.ne.s32.totalorder %s71, %s72
      %p83 = scmp.eq.s32.totalorder %s14, 0
      %p84 = por %p82, %p83
      %p85 = scmp.ne.s32.totalorder %s71, %s72
      %p86 = scmp.eq.s32.totalorder %s15, 3
      %p87 = por %p85, %p86
      %p89 = scmp.ne.s32.totalorder %s72, %s88
      %p90 = scmp.eq.s32.totalorder %s15, 0
      %p91 = por %p89, %p90
      %s92 = ssub.s32 %s17, %s31
      %p93 = scmp.eq.s32.totalorder %s92, 0
      %s95 = sadd.s32 %s94, 1
      %s96 = scalar_select %p93, %s94, %s95
      %p99 = pneg %p93
      %p100 = scmp.eq.s32.totalorder %s9, 3
      %p101 = por %p99, %p100
      %p102 = scmp.ne.s32.totalorder %s94, %s97
      %p103 = scmp.eq.s32.totalorder %s9, 0
      %p104 = por %p102, %p103
      %p105 = scmp.ne.s32.totalorder %s94, %s97
      %p106 = scmp.eq.s32.totalorder %s14, 3
      %p107 = por %p105, %p106
      %p108 = scmp.ne.s32.totalorder %s97, %s98
      %p109 = scmp.eq.s32.totalorder %s14, 0
      %p110 = por %p108, %p109
      %p111 = scmp.ne.s32.totalorder %s97, %s98
      %p112 = scmp.eq.s32.totalorder %s15, 3
      %p113 = por %p111, %p112
      %p115 = scmp.ne.s32.totalorder %s98, %s114
      %p116 = scmp.eq.s32.totalorder %s15, 0
      %p117 = por %p115, %p116
      %s118 = ssub.s32 %s16, %s35
      %s119 = ssub.s32 %s17, %s31
      %s120 = sor.u32 %s118, %s119
      %p121 = scmp.eq.s32.totalorder %s120, 0
      %s123 = sadd.s32 %s122, 1
      %s124 = scalar_select %p121, %s122, %s123
      %p127 = pneg %p121
      %p128 = scmp.eq.s32.totalorder %s9, 3
      %p129 = por %p127, %p128
      %p130 = scmp.ne.s32.totalorder %s122, %s125
      %p131 = scmp.eq.s32.totalorder %s9, 0
      %p132 = por %p130, %p131
      %p133 = scmp.ne.s32.totalorder %s122, %s125
      %p134 = scmp.eq.s32.totalorder %s14, 3
      %p135 = por %p133, %p134
      %p136 = scmp.ne.s32.totalorder %s125, %s126
      %p137 = scmp.eq.s32.totalorder %s14, 0
      %p138 = por %p136, %p137
      %p139 = scmp.ne.s32.totalorder %s125, %s126
      %p140 = scmp.eq.s32.totalorder %s15, 3
      %p141 = por %p139, %p140
      %p143 = scmp.ne.s32.totalorder %s126, %s142
      %p144 = scmp.eq.s32.totalorder %s15, 0
      %p145 = por %p143, %p144
      %p146 = scmp.le.s32.totalorder 1, %s9
      %p147 = scmp.lt.s32.totalorder %s9, 5
      %p148 = pnand %p146, %p147
      %p149 = pneg %p148
      // Predicated region
      $region9: #{squeezenet_forward.48} parent=5 // pred_check
        _
      $region10: #{squeezenet_forward.48} parent=5 // pred_check_branch
        %151 = sbr.rel (%p148) target = $region12
      $region11: #{squeezenet_forward.48} parent=5 // pred_region
        %s152 = ssub.s32 %s9, 1
        // Predicated region
        $region13: #{squeezenet_forward.48} parent=11 // pred_check
          %p153 = pneg %p56
        $region14: #{squeezenet_forward.48} parent=11 // pred_check_branch
          %155 = sbr.rel (%p153) target = $region16
        $region15: #{squeezenet_forward.48} parent=11 // pred_region
          %s156 = smul.u32 4, %s21
          %p157 = scmp.lt.s32.totalorder %s19, 0
          %s158 = scalar_select %p157, %s19, 0
          %p159 = scmp.lt.s32.totalorder %s156, 3
          %s160 = scalar_select %p159, %s156, 3
          %s161 = smul.addr %s158, 4
          %s162 = sadd.s32 %s160, %s161
          %s163 = smul.addr %s162, 4
          %s164 = scalar_lea.vmem %s0, %s163
          %s165 = smul.u32 4, %s21
        $region16: #{squeezenet_forward.48} parent=11 // pred_fallthru
          _
      $region12: #{squeezenet_forward.48} parent=5 // pred_fallthru
        _
      %p166 = scmp.lt.s32.totalorder %s9, 4
      // Predicated region
      $region17: #{squeezenet_forward.48} parent=5 // pred_check
        %p167 = pneg %p166
      $region18: #{squeezenet_forward.48} parent=5 // pred_check_branch
        %169 = sbr.rel (%p167) target = $region20
      $region19: #{squeezenet_forward.48} parent=5 // pred_region
        // Predicated region
        $region21: #{squeezenet_forward.48} parent=19 // pred_check
          %p170 = pneg %p78
        $region22: #{squeezenet_forward.48} parent=19 // pred_check_branch
          %172 = sbr.rel (%p170) target = $region24
        $region23: #{squeezenet_forward.48} parent=19 // pred_region
          %s173 = sand.u32 %s68, 1
          %s174 = sand.u32 %s68, 1
          %s175 = smul.addr %s174, 256
          %s176 = scalar_lea.vmem [#allocation2], %s175
          %s177 = smul.u32 64, %s18
          %s178 = smul.addr %s177, 4
          %s179 = sadd.s32 %s17, %s178
          %s180 = smul.addr %s179, 4
          %s181 = scalar_lea.vmem %s1, %s180
          // Predicated region
          $region25: #{squeezenet_forward.48} parent=23 // pred_check
            _
          $region26: #{squeezenet_forward.48} parent=23 // pred_check_branch
            %183 = sbr.rel (0) target = $region28
          $region27: #{squeezenet_forward.48} parent=23 // pred_region
            // Predicated region
            $region29: #{squeezenet_forward.48} parent=27 // pred_check
              _
            $region30: #{squeezenet_forward.48} parent=27 // pred_check_branch
              %185 = sbr.rel target = $region32
            $region31: #{squeezenet_forward.48} parent=27 // pred_region
              // Predicated region
              $region44: #{squeezenet_forward.48} parent=31 // pred_check
                _
              $region45: #{squeezenet_forward.48} parent=31 // pred_check_branch
                %326 = sbr.rel (0) target = $region47
              $region46: #{squeezenet_forward.48} parent=31 // pred_region
                loop: start=0, step=1, limit=1
                $region48: #{squeezenet_forward.48} parent=46 // loop_pre_header
                  _
                $region49: #{squeezenet_forward.48} parent=46 // loop_header
                  %s328 = sphi 0, %s332
                  %p329 = scmp.ge.s32.totalorder %s328, 1
                  %s333 = sphi %s181, %s181
                  %s334 = sphi %s176, %s176
                $region50: #{squeezenet_forward.48} parent=46 // loop_header_branch
                  %331 = sbr.rel (%p329) target = $region54
                $region51: #{squeezenet_forward.48} parent=46 // loop_body
                  _
                $region52: #{squeezenet_forward.48} parent=46 // loop_footer
                  %s332 = sadd.s32 1, %s328
                $region53: #{squeezenet_forward.48} parent=46 // loop_footer_branch
                  %327 = sbr.rel target = $region49
                $region54: #{squeezenet_forward.48} parent=46 // loop_exit
                  _
                loop: start=0, step=1, limit=1
                $region55: #{squeezenet_forward.48} parent=46 // loop_pre_header
                  _
                $region56: #{squeezenet_forward.48} parent=46 // loop_header
                  %s337 = sphi 0, %s341
                  %p338 = scmp.ge.s32.totalorder %s337, 1
                  %s342 = sphi %s181, %s181
                  %s343 = sphi %s176, %s176
                $region57: #{squeezenet_forward.48} parent=46 // loop_header_branch
                  %340 = sbr.rel (%p338) target = $region61
                $region58: #{squeezenet_forward.48} parent=46 // loop_body
                  %v344 = vld [vmem:[%s342] sm:$0xf]
                  %345 = vst [vmem:[%s343] sm:$0xf] %v344
                  %v346 = vld [vmem:[%s342 + $0x10] sm:$0xf]
                  %347 = vst [vmem:[%s343 + $0x4] sm:$0xf] %v346
                  %v348 = vld [vmem:[%s342 + $0x20] sm:$0xf]
                  %349 = vst [vmem:[%s343 + $0x8] sm:$0xf] %v348
                  %v350 = vld [vmem:[%s342 + $0x30] sm:$0xf]
                  %351 = vst [vmem:[%s343 + $0xc] sm:$0xf] %v350
                  %v352 = vld [vmem:[%s342 + $0x40] sm:$0xf]
                  %353 = vst [vmem:[%s343 + $0x10] sm:$0xf] %v352
                  %v354 = vld [vmem:[%s342 + $0x50] sm:$0xf]
                  %355 = vst [vmem:[%s343 + $0x14] sm:$0xf] %v354
                  %v356 = vld [vmem:[%s342 + $0x60] sm:$0xf]
                  %357 = vst [vmem:[%s343 + $0x18] sm:$0xf] %v356
                  %v358 = vld [vmem:[%s342 + $0x70] sm:$0xf]
                  %359 = vst [vmem:[%s343 + $0x1c] sm:$0xf] %v358
                  %v360 = vld [vmem:[%s342 + $0x80] sm:$0xf]
                  %361 = vst [vmem:[%s343 + $0x20] sm:$0xf] %v360
                  %v362 = vld [vmem:[%s342 + $0x90] sm:$0xf]
                  %363 = vst [vmem:[%s343 + $0x24] sm:$0xf] %v362
                  %v364 = vld [vmem:[%s342 + $0xa0] sm:$0xf]
                  %365 = vst [vmem:[%s343 + $0x28] sm:$0xf] %v364
                  %v366 = vld [vmem:[%s342 + $0xb0] sm:$0xf]
                  %367 = vst [vmem:[%s343 + $0x2c] sm:$0xf] %v366
                  %v368 = vld [vmem:[%s342 + $0xc0] sm:$0xf]
                  %369 = vst [vmem:[%s343 + $0x30] sm:$0xf] %v368
                  %v370 = vld [vmem:[%s342 + $0xd0] sm:$0xf]
                  %371 = vst [vmem:[%s343 + $0x34] sm:$0xf] %v370
                  %v372 = vld [vmem:[%s342 + $0xe0] sm:$0xf]
                  %373 = vst [vmem:[%s343 + $0x38] sm:$0xf] %v372
                  %v374 = vld [vmem:[%s342 + $0xf0] sm:$0xf]
                  %375 = vst [vmem:[%s343 + $0x3c] sm:$0xf] %v374
                  %v376 = vld [vmem:[%s342 + $0x100] sm:$0xf]
                  %377 = vst [vmem:[%s343 + $0x40] sm:$0xf] %v376
                  %v378 = vld [vmem:[%s342 + $0x110] sm:$0xf]
                  %379 = vst [vmem:[%s343 + $0x44] sm:$0xf] %v378
                  %v380 = vld [vmem:[%s342 + $0x120] sm:$0xf]
                  %381 = vst [vmem:[%s343 + $0x48] sm:$0xf] %v380
                  %v382 = vld [vmem:[%s342 + $0x130] sm:$0xf]
                  %383 = vst [vmem:[%s343 + $0x4c] sm:$0xf] %v382
                  %v384 = vld [vmem:[%s342 + $0x140] sm:$0xf]
                  %385 = vst [vmem:[%s343 + $0x50] sm:$0xf] %v384
                  %v386 = vld [vmem:[%s342 + $0x150] sm:$0xf]
                  %387 = vst [vmem:[%s343 + $0x54] sm:$0xf] %v386
                  %v388 = vld [vmem:[%s342 + $0x160] sm:$0xf]
                  %389 = vst [vmem:[%s343 + $0x58] sm:$0xf] %v388
                  %v390 = vld [vmem:[%s342 + $0x170] sm:$0xf]
                  %391 = vst [vmem:[%s343 + $0x5c] sm:$0xf] %v390
                  %v392 = vld [vmem:[%s342 + $0x180] sm:$0xf]
                  %393 = vst [vmem:[%s343 + $0x60] sm:$0xf] %v392
                  %v394 = vld [vmem:[%s342 + $0x190] sm:$0xf]
                  %395 = vst [vmem:[%s343 + $0x64] sm:$0xf] %v394
                  %v396 = vld [vmem:[%s342 + $0x1a0] sm:$0xf]
                  %397 = vst [vmem:[%s343 + $0x68] sm:$0xf] %v396
                  %v398 = vld [vmem:[%s342 + $0x1b0] sm:$0xf]
                  %399 = vst [vmem:[%s343 + $0x6c] sm:$0xf] %v398
                  %v400 = vld [vmem:[%s342 + $0x1c0] sm:$0xf]
                  %401 = vst [vmem:[%s343 + $0x70] sm:$0xf] %v400
                  %v402 = vld [vmem:[%s342 + $0x1d0] sm:$0xf]
                  %403 = vst [vmem:[%s343 + $0x74] sm:$0xf] %v402
                  %v404 = vld [vmem:[%s342 + $0x1e0] sm:$0xf]
                  %405 = vst [vmem:[%s343 + $0x78] sm:$0xf] %v404
                  %v406 = vld [vmem:[%s342 + $0x1f0] sm:$0xf]
                  %407 = vst [vmem:[%s343 + $0x7c] sm:$0xf] %v406
                  %v408 = vld [vmem:[%s342 + $0x200] sm:$0xf]
                  %409 = vst [vmem:[%s343 + $0x80] sm:$0xf] %v408
                  %v410 = vld [vmem:[%s342 + $0x210] sm:$0xf]
                  %411 = vst [vmem:[%s343 + $0x84] sm:$0xf] %v410
                  %v412 = vld [vmem:[%s342 + $0x220] sm:$0xf]
                  %413 = vst [vmem:[%s343 + $0x88] sm:$0xf] %v412
                  %v414 = vld [vmem:[%s342 + $0x230] sm:$0xf]
                  %415 = vst [vmem:[%s343 + $0x8c] sm:$0xf] %v414
                  %v416 = vld [vmem:[%s342 + $0x240] sm:$0xf]
                  %417 = vst [vmem:[%s343 + $0x90] sm:$0xf] %v416
                  %v418 = vld [vmem:[%s342 + $0x250] sm:$0xf]
                  %419 = vst [vmem:[%s343 + $0x94] sm:$0xf] %v418
                  %v420 = vld [vmem:[%s342 + $0x260] sm:$0xf]
                  %421 = vst [vmem:[%s343 + $0x98] sm:$0xf] %v420
                  %v422 = vld [vmem:[%s342 + $0x270] sm:$0xf]
                  %423 = vst [vmem:[%s343 + $0x9c] sm:$0xf] %v422
                  %v424 = vld [vmem:[%s342 + $0x280] sm:$0xf]
                  %425 = vst [vmem:[%s343 + $0xa0] sm:$0xf] %v424
                  %v426 = vld [vmem:[%s342 + $0x290] sm:$0xf]
                  %427 = vst [vmem:[%s343 + $0xa4] sm:$0xf] %v426
                  %v428 = vld [vmem:[%s342 + $0x2a0] sm:$0xf]
                  %429 = vst [vmem:[%s343 + $0xa8] sm:$0xf] %v428
                  %v430 = vld [vmem:[%s342 + $0x2b0] sm:$0xf]
                  %431 = vst [vmem:[%s343 + $0xac] sm:$0xf] %v430
                  %v432 = vld [vmem:[%s342 + $0x2c0] sm:$0xf]
                  %433 = vst [vmem:[%s343 + $0xb0] sm:$0xf] %v432
                  %v434 = vld [vmem:[%s342 + $0x2d0] sm:$0xf]
                  %435 = vst [vmem:[%s343 + $0xb4] sm:$0xf] %v434
                  %v436 = vld [vmem:[%s342 + $0x2e0] sm:$0xf]
                  %437 = vst [vmem:[%s343 + $0xb8] sm:$0xf] %v436
                  %v438 = vld [vmem:[%s342 + $0x2f0] sm:$0xf]
                  %439 = vst [vmem:[%s343 + $0xbc] sm:$0xf] %v438
                  %v440 = vld [vmem:[%s342 + $0x300] sm:$0xf]
                  %441 = vst [vmem:[%s343 + $0xc0] sm:$0xf] %v440
                  %v442 = vld [vmem:[%s342 + $0x310] sm:$0xf]
                  %443 = vst [vmem:[%s343 + $0xc4] sm:$0xf] %v442
                  %v444 = vld [vmem:[%s342 + $0x320] sm:$0xf]
                  %445 = vst [vmem:[%s343 + $0xc8] sm:$0xf] %v444
                  %v446 = vld [vmem:[%s342 + $0x330] sm:$0xf]
                  %447 = vst [vmem:[%s343 + $0xcc] sm:$0xf] %v446
                  %v448 = vld [vmem:[%s342 + $0x340] sm:$0xf]
                  %449 = vst [vmem:[%s343 + $0xd0] sm:$0xf] %v448
                  %v450 = vld [vmem:[%s342 + $0x350] sm:$0xf]
                  %451 = vst [vmem:[%s343 + $0xd4] sm:$0xf] %v450
                  %v452 = vld [vmem:[%s342 + $0x360] sm:$0xf]
                  %453 = vst [vmem:[%s343 + $0xd8] sm:$0xf] %v452
                  %v454 = vld [vmem:[%s342 + $0x370] sm:$0xf]
                  %455 = vst [vmem:[%s343 + $0xdc] sm:$0xf] %v454
                  %v456 = vld [vmem:[%s342 + $0x380] sm:$0xf]
                  %457 = vst [vmem:[%s343 + $0xe0] sm:$0xf] %v456
                  %v458 = vld [vmem:[%s342 + $0x390] sm:$0xf]
                  %459 = vst [vmem:[%s343 + $0xe4] sm:$0xf] %v458
                  %v460 = vld [vmem:[%s342 + $0x3a0] sm:$0xf]
                  %461 = vst [vmem:[%s343 + $0xe8] sm:$0xf] %v460
                  %v462 = vld [vmem:[%s342 + $0x3b0] sm:$0xf]
                  %463 = vst [vmem:[%s343 + $0xec] sm:$0xf] %v462
                  %v464 = vld [vmem:[%s342 + $0x3c0] sm:$0xf]
                  %465 = vst [vmem:[%s343 + $0xf0] sm:$0xf] %v464
                  %v466 = vld [vmem:[%s342 + $0x3d0] sm:$0xf]
                  %467 = vst [vmem:[%s343 + $0xf4] sm:$0xf] %v466
                  %v468 = vld [vmem:[%s342 + $0x3e0] sm:$0xf]
                  %469 = vst [vmem:[%s343 + $0xf8] sm:$0xf] %v468
                  %v470 = vld [vmem:[%s342 + $0x3f0] sm:$0xf]
                  %471 = vst [vmem:[%s343 + $0xfc] sm:$0xf] %v470
                $region59: #{squeezenet_forward.48} parent=46 // loop_footer
                  %s341 = sadd.s32 1, %s337
                $region60: #{squeezenet_forward.48} parent=46 // loop_footer_branch
                  %336 = sbr.rel target = $region56
                $region61: #{squeezenet_forward.48} parent=46 // loop_exit
                  _
              $region47: #{squeezenet_forward.48} parent=31 // pred_fallthru
                _
            $region32: #{squeezenet_forward.48} parent=27 // pred_fallthru
              _
            // Predicated region
            $region33: #{squeezenet_forward.48} parent=27 // pred_check
              _
            $region34: #{squeezenet_forward.48} parent=27 // pred_check_branch
              %187 = sbr.rel (0) target = $region36
            $region35: #{squeezenet_forward.48} parent=27 // pred_region
              loop: start=0, step=1, limit=1
              $region37: #{squeezenet_forward.48} parent=35 // loop_pre_header
                _
              $region38: #{squeezenet_forward.48} parent=35 // loop_header
                %s190 = sphi 0, %s194
                %p191 = scmp.ge.s32.totalorder %s190, 1
                %s195 = sphi %s181, %s181
                %s196 = sphi %s176, %s176
              $region39: #{squeezenet_forward.48} parent=35 // loop_header_branch
                %193 = sbr.rel (%p191) target = $region43
              $region40: #{squeezenet_forward.48} parent=35 // loop_body
                %v197 = vld [vmem:[%s195] sm:$0xf]
                %198 = vst [vmem:[%s196] sm:$0xf] %v197
                %v199 = vld [vmem:[%s195 + $0x10] sm:$0xf]
                %200 = vst [vmem:[%s196 + $0x4] sm:$0xf] %v199
                %v201 = vld [vmem:[%s195 + $0x20] sm:$0xf]
                %202 = vst [vmem:[%s196 + $0x8] sm:$0xf] %v201
                %v203 = vld [vmem:[%s195 + $0x30] sm:$0xf]
                %204 = vst [vmem:[%s196 + $0xc] sm:$0xf] %v203
                %v205 = vld [vmem:[%s195 + $0x40] sm:$0xf]
                %206 = vst [vmem:[%s196 + $0x10] sm:$0xf] %v205
                %v207 = vld [vmem:[%s195 + $0x50] sm:$0xf]
                %208 = vst [vmem:[%s196 + $0x14] sm:$0xf] %v207
                %v209 = vld [vmem:[%s195 + $0x60] sm:$0xf]
                %210 = vst [vmem:[%s196 + $0x18] sm:$0xf] %v209
                %v211 = vld [vmem:[%s195 + $0x70] sm:$0xf]
                %212 = vst [vmem:[%s196 + $0x1c] sm:$0xf] %v211
                %v213 = vld [vmem:[%s195 + $0x80] sm:$0xf]
                %214 = vst [vmem:[%s196 + $0x20] sm:$0xf] %v213
                %v215 = vld [vmem:[%s195 + $0x90] sm:$0xf]
                %216 = vst [vmem:[%s196 + $0x24] sm:$0xf] %v215
                %v217 = vld [vmem:[%s195 + $0xa0] sm:$0xf]
                %218 = vst [vmem:[%s196 + $0x28] sm:$0xf] %v217
                %v219 = vld [vmem:[%s195 + $0xb0] sm:$0xf]
                %220 = vst [vmem:[%s196 + $0x2c] sm:$0xf] %v219
                %v221 = vld [vmem:[%s195 + $0xc0] sm:$0xf]
                %222 = vst [vmem:[%s196 + $0x30] sm:$0xf] %v221
                %v223 = vld [vmem:[%s195 + $0xd0] sm:$0xf]
                %224 = vst [vmem:[%s196 + $0x34] sm:$0xf] %v223
                %v225 = vld [vmem:[%s195 + $0xe0] sm:$0xf]
                %226 = vst [vmem:[%s196 + $0x38] sm:$0xf] %v225
                %v227 = vld [vmem:[%s195 + $0xf0] sm:$0xf]
                %228 = vst [vmem:[%s196 + $0x3c] sm:$0xf] %v227
                %v229 = vld [vmem:[%s195 + $0x100] sm:$0xf]
                %230 = vst [vmem:[%s196 + $0x40] sm:$0xf] %v229
                %v231 = vld [vmem:[%s195 + $0x110] sm:$0xf]
                %232 = vst [vmem:[%s196 + $0x44] sm:$0xf] %v231
                %v233 = vld [vmem:[%s195 + $0x120] sm:$0xf]
                %234 = vst [vmem:[%s196 + $0x48] sm:$0xf] %v233
                %v235 = vld [vmem:[%s195 + $0x130] sm:$0xf]
                %236 = vst [vmem:[%s196 + $0x4c] sm:$0xf] %v235
                %v237 = vld [vmem:[%s195 + $0x140] sm:$0xf]
                %238 = vst [vmem:[%s196 + $0x50] sm:$0xf] %v237
                %v239 = vld [vmem:[%s195 + $0x150] sm:$0xf]
                %240 = vst [vmem:[%s196 + $0x54] sm:$0xf] %v239
                %v241 = vld [vmem:[%s195 + $0x160] sm:$0xf]
                %242 = vst [vmem:[%s196 + $0x58] sm:$0xf] %v241
                %v243 = vld [vmem:[%s195 + $0x170] sm:$0xf]
                %244 = vst [vmem:[%s196 + $0x5c] sm:$0xf] %v243
                %v245 = vld [vmem:[%s195 + $0x180] sm:$0xf]
                %246 = vst [vmem:[%s196 + $0x60] sm:$0xf] %v245
                %v247 = vld [vmem:[%s195 + $0x190] sm:$0xf]
                %248 = vst [vmem:[%s196 + $0x64] sm:$0xf] %v247
                %v249 = vld [vmem:[%s195 + $0x1a0] sm:$0xf]
                %250 = vst [vmem:[%s196 + $0x68] sm:$0xf] %v249
                %v251 = vld [vmem:[%s195 + $0x1b0] sm:$0xf]
                %252 = vst [vmem:[%s196 + $0x6c] sm:$0xf] %v251
                %v253 = vld [vmem:[%s195 + $0x1c0] sm:$0xf]
                %254 = vst [vmem:[%s196 + $0x70] sm:$0xf] %v253
                %v255 = vld [vmem:[%s195 + $0x1d0] sm:$0xf]
                %256 = vst [vmem:[%s196 + $0x74] sm:$0xf] %v255
                %v257 = vld [vmem:[%s195 + $0x1e0] sm:$0xf]
                %258 = vst [vmem:[%s196 + $0x78] sm:$0xf] %v257
                %v259 = vld [vmem:[%s195 + $0x1f0] sm:$0xf]
                %260 = vst [vmem:[%s196 + $0x7c] sm:$0xf] %v259
                %v261 = vld [vmem:[%s195 + $0x200] sm:$0xf]
                %262 = vst [vmem:[%s196 + $0x80] sm:$0xf] %v261
                %v263 = vld [vmem:[%s195 + $0x210] sm:$0xf]
                %264 = vst [vmem:[%s196 + $0x84] sm:$0xf] %v263
                %v265 = vld [vmem:[%s195 + $0x220] sm:$0xf]
                %266 = vst [vmem:[%s196 + $0x88] sm:$0xf] %v265
                %v267 = vld [vmem:[%s195 + $0x230] sm:$0xf]
                %268 = vst [vmem:[%s196 + $0x8c] sm:$0xf] %v267
                %v269 = vld [vmem:[%s195 + $0x240] sm:$0xf]
                %270 = vst [vmem:[%s196 + $0x90] sm:$0xf] %v269
                %v271 = vld [vmem:[%s195 + $0x250] sm:$0xf]
                %272 = vst [vmem:[%s196 + $0x94] sm:$0xf] %v271
                %v273 = vld [vmem:[%s195 + $0x260] sm:$0xf]
                %274 = vst [vmem:[%s196 + $0x98] sm:$0xf] %v273
                %v275 = vld [vmem:[%s195 + $0x270] sm:$0xf]
                %276 = vst [vmem:[%s196 + $0x9c] sm:$0xf] %v275
                %v277 = vld [vmem:[%s195 + $0x280] sm:$0xf]
                %278 = vst [vmem:[%s196 + $0xa0] sm:$0xf] %v277
                %v279 = vld [vmem:[%s195 + $0x290] sm:$0xf]
                %280 = vst [vmem:[%s196 + $0xa4] sm:$0xf] %v279
                %v281 = vld [vmem:[%s195 + $0x2a0] sm:$0xf]
                %282 = vst [vmem:[%s196 + $0xa8] sm:$0xf] %v281
                %v283 = vld [vmem:[%s195 + $0x2b0] sm:$0xf]
                %284 = vst [vmem:[%s196 + $0xac] sm:$0xf] %v283
                %v285 = vld [vmem:[%s195 + $0x2c0] sm:$0xf]
                %286 = vst [vmem:[%s196 + $0xb0] sm:$0xf] %v285
                %v287 = vld [vmem:[%s195 + $0x2d0] sm:$0xf]
                %288 = vst [vmem:[%s196 + $0xb4] sm:$0xf] %v287
                %v289 = vld [vmem:[%s195 + $0x2e0] sm:$0xf]
                %290 = vst [vmem:[%s196 + $0xb8] sm:$0xf] %v289
                %v291 = vld [vmem:[%s195 + $0x2f0] sm:$0xf]
                %292 = vst [vmem:[%s196 + $0xbc] sm:$0xf] %v291
                %v293 = vld [vmem:[%s195 + $0x300] sm:$0xf]
                %294 = vst [vmem:[%s196 + $0xc0] sm:$0xf] %v293
                %v295 = vld [vmem:[%s195 + $0x310] sm:$0xf]
                %296 = vst [vmem:[%s196 + $0xc4] sm:$0xf] %v295
                %v297 = vld [vmem:[%s195 + $0x320] sm:$0xf]
                %298 = vst [vmem:[%s196 + $0xc8] sm:$0xf] %v297
                %v299 = vld [vmem:[%s195 + $0x330] sm:$0xf]
                %300 = vst [vmem:[%s196 + $0xcc] sm:$0xf] %v299
                %v301 = vld [vmem:[%s195 + $0x340] sm:$0xf]
                %302 = vst [vmem:[%s196 + $0xd0] sm:$0xf] %v301
                %v303 = vld [vmem:[%s195 + $0x350] sm:$0xf]
                %304 = vst [vmem:[%s196 + $0xd4] sm:$0xf] %v303
                %v305 = vld [vmem:[%s195 + $0x360] sm:$0xf]
                %306 = vst [vmem:[%s196 + $0xd8] sm:$0xf] %v305
                %v307 = vld [vmem:[%s195 + $0x370] sm:$0xf]
                %308 = vst [vmem:[%s196 + $0xdc] sm:$0xf] %v307
                %v309 = vld [vmem:[%s195 + $0x380] sm:$0xf]
                %310 = vst [vmem:[%s196 + $0xe0] sm:$0xf] %v309
                %v311 = vld [vmem:[%s195 + $0x390] sm:$0xf]
                %312 = vst [vmem:[%s196 + $0xe4] sm:$0xf] %v311
                %v313 = vld [vmem:[%s195 + $0x3a0] sm:$0xf]
                %314 = vst [vmem:[%s196 + $0xe8] sm:$0xf] %v313
                %v315 = vld [vmem:[%s195 + $0x3b0] sm:$0xf]
                %316 = vst [vmem:[%s196 + $0xec] sm:$0xf] %v315
                %v317 = vld [vmem:[%s195 + $0x3c0] sm:$0xf]
                %318 = vst [vmem:[%s196 + $0xf0] sm:$0xf] %v317
                %v319 = vld [vmem:[%s195 + $0x3d0] sm:$0xf]
                %320 = vst [vmem:[%s196 + $0xf4] sm:$0xf] %v319
                %v321 = vld [vmem:[%s195 + $0x3e0] sm:$0xf]
                %322 = vst [vmem:[%s196 + $0xf8] sm:$0xf] %v321
                %v323 = vld [vmem:[%s195 + $0x3f0] sm:$0xf]
                %324 = vst [vmem:[%s196 + $0xfc] sm:$0xf] %v323
              $region41: #{squeezenet_forward.48} parent=35 // loop_footer
                %s194 = sadd.s32 1, %s190
              $region42: #{squeezenet_forward.48} parent=35 // loop_footer_branch
                %189 = sbr.rel target = $region38
              $region43: #{squeezenet_forward.48} parent=35 // loop_exit
                _
            $region36: #{squeezenet_forward.48} parent=27 // pred_fallthru
              _
          $region28: #{squeezenet_forward.48} parent=23 // pred_fallthru
            _
          %472 = vnop
        $region24: #{squeezenet_forward.48} parent=19 // pred_fallthru
          _
        // Predicated region
        $region62: #{squeezenet_forward.48} parent=19 // pred_check
          %p473 = pneg %p104
        $region63: #{squeezenet_forward.48} parent=19 // pred_check_branch
          %475 = sbr.rel (%p473) target = $region65
        $region64: #{squeezenet_forward.48} parent=19 // pred_region
          %p476 = scmp.lt.s32.totalorder %s17, 3
          %s477 = scalar_select %p476, %s17, 3
          %s478 = smul.addr %s477, 8
          %s479 = scalar_lea.vmem %s2, %s478
        $region65: #{squeezenet_forward.48} parent=19 // pred_fallthru
          _
      $region20: #{squeezenet_forward.48} parent=5 // pred_fallthru
        _
      %p480 = scmp.le.s32.totalorder 1, %s9
      %p481 = scmp.lt.s32.totalorder %s9, 5
      %p482 = pnand %p480, %p481
      %p483 = pneg %p482
      // Predicated region
      $region66: #{squeezenet_forward.48} parent=5 // pred_check
        _
      $region67: #{squeezenet_forward.48} parent=5 // pred_check_branch
        %485 = sbr.rel (%p482) target = $region69
      $region68: #{squeezenet_forward.48} parent=5 // pred_region
        %s486 = ssub.s32 %s9, 1
        %s487 = sand.u32 %s71, 1
        %s488 = sand.u32 %s71, 1
        %s489 = smul.addr %s488, 256
        %s490 = scalar_lea.vmem [#allocation2], %s489
        // Predicated region
        $region70: #{squeezenet_forward.48} parent=68 // pred_check
          %p491 = pneg %p84
        $region71: #{squeezenet_forward.48} parent=68 // pred_check_branch
          %493 = sbr.rel (%p491) target = $region73
        $region72: #{squeezenet_forward.48} parent=68 // pred_region
          _
        $region73: #{squeezenet_forward.48} parent=68 // pred_fallthru
          _
        %s494 = smul.u32 4, %s21
        %p495 = scmp.lt.s32.totalorder %s19, 0
        %s496 = scalar_select %p495, %s19, 0
        %p497 = scmp.lt.s32.totalorder %s494, 3
        %s498 = scalar_select %p497, %s494, 3
        %s499 = smul.addr %s496, 4
        %s500 = sadd.s32 %s498, %s499
        %s501 = smul.addr %s500, 4
        %s502 = scalar_lea.vmem %s0, %s501
        %p503 = pneg %p56
        %p504 = pneg %p53
        %s505 = sand.u32 %s71, 1
        %s506 = sand.u32 %s71, 1
        %s507 = smul.addr %s506, 256
        %s508 = scalar_lea.vmem [#allocation2], %s507
        %p509 = pneg %p84
        %p510 = pneg %p81
        %p511 = scmp.lt.s32.totalorder %s20, 3
        %s512 = scalar_select %p511, %s20, 3
        %s513 = smul.addr %s512, 8
        %s514 = scalar_lea.vmem %s2, %s513
        %p515 = pneg %p110
        %p516 = pneg %p107
        %p517 = pneg %p138
        %p518 = pneg %p135
        %p519 = scmp.lt.s32.totalorder %s19, 0
        %s520 = scalar_select %p519, %s19, 0
        %p521 = scmp.lt.s32.totalorder %s20, 3
        %s522 = scalar_select %p521, %s20, 3
        %s523 = smul.addr %s520, 4
        %s524 = sadd.s32 %s522, %s523
        %s525 = smul.addr %s524, 8
        %s526 = scalar_lea.vmem %s3, %s525
        %s527 = smul.u32 4, %s21
        %p528 = scmp.lt.s32.totalorder %s19, 0
        %s529 = scalar_select %p528, %s19, 0
        %p530 = scmp.lt.s32.totalorder %s527, 3
        %s531 = scalar_select %p530, %s527, 3
        %s532 = smul.addr %s529, 4
        %s533 = sadd.s32 %s531, %s532
        %s534 = smul.addr %s533, 4
        %s535 = scalar_lea.vmem %s0, %s534
        %s536 = smul.u32 4, %s21
        %s537 = smul.u32 64, %s21
        %p538 = scmp.lt.s32.totalorder %s20, 3
        %s539 = scalar_select %p538, %s20, 3
        %s540 = smul.addr %s539, 8
        %s541 = scalar_lea.vmem %s2, %s540
        %p542 = scmp.lt.s32.totalorder %s19, 0
        %s543 = scalar_select %p542, %s19, 0
        %p544 = scmp.lt.s32.totalorder %s20, 3
        %s545 = scalar_select %p544, %s20, 3
        %s546 = smul.addr %s543, 4
        %s547 = sadd.s32 %s545, %s546
        %s548 = smul.addr %s547, 8
        %s549 = scalar_lea.vmem %s3, %s548
        %p551 = scmp.eq.s32.totalorder %s21, 0
        // Predicated region
        $region74: #{squeezenet_forward.48} parent=68 // pred_check
          %p552 = pneg %p551
        $region75: #{squeezenet_forward.48} parent=68 // pred_check_branch
          %554 = sbr.rel (%p552) target = $region77
        $region76: #{squeezenet_forward.48} parent=68 // pred_region
          %555 = vst [vmem:[%s549] sm:$0xff] 0.0
        $region77: #{squeezenet_forward.48} parent=68 // pred_fallthru
          _
        %v556 = vld [vmem:[%s549] sm:$0xff]
        %v557 = vld [vmem:[%s535] sm:$0xff]
        %v558 = vld [vmem:[%s535 + $0x8] sm:$0xff]
        %v559 = vld [vmem:[%s490] sm:$0xf]
        %v560 = vld [vmem:[%s490 + $0x4] sm:$0xf]
        %v561 = vld [vmem:[%s490 + $0x8] sm:$0xf]
        %v562 = vld [vmem:[%s490 + $0xc] sm:$0xf]
        %v563 = vld [vmem:[%s490 + $0x10] sm:$0xf]
        %v564 = vld [vmem:[%s490 + $0x14] sm:$0xf]
        %v565 = vld [vmem:[%s490 + $0x18] sm:$0xf]
        %v566 = vld [vmem:[%s490 + $0x1c] sm:$0xf]
        %v567 = vld [vmem:[%s490 + $0x20] sm:$0xf]
        %v568 = vld [vmem:[%s490 + $0x24] sm:$0xf]
        %v569 = vld [vmem:[%s490 + $0x28] sm:$0xf]
        %v570 = vld [vmem:[%s490 + $0x2c] sm:$0xf]
        %v571 = vld [vmem:[%s490 + $0x30] sm:$0xf]
        %v572 = vld [vmem:[%s490 + $0x34] sm:$0xf]
        %v573 = vld [vmem:[%s490 + $0x38] sm:$0xf]
        %v574 = vld [vmem:[%s490 + $0x3c] sm:$0xf]
        %v575 = vld [vmem:[%s490 + $0x40] sm:$0xf]
        %v576 = vld [vmem:[%s490 + $0x44] sm:$0xf]
        %v577 = vld [vmem:[%s490 + $0x48] sm:$0xf]
        %v578 = vld [vmem:[%s490 + $0x4c] sm:$0xf]
        %v579 = vld [vmem:[%s490 + $0x50] sm:$0xf]
        %v580 = vld [vmem:[%s490 + $0x54] sm:$0xf]
        %v581 = vld [vmem:[%s490 + $0x58] sm:$0xf]
        %v582 = vld [vmem:[%s490 + $0x5c] sm:$0xf]
        %v583 = vld [vmem:[%s490 + $0x60] sm:$0xf]
        %v584 = vld [vmem:[%s490 + $0x64] sm:$0xf]
        %v585 = vld [vmem:[%s490 + $0x68] sm:$0xf]
        %v586 = vld [vmem:[%s490 + $0x6c] sm:$0xf]
        %v587 = vld [vmem:[%s490 + $0x70] sm:$0xf]
        %v588 = vld [vmem:[%s490 + $0x74] sm:$0xf]
        %v589 = vld [vmem:[%s490 + $0x78] sm:$0xf]
        %v590 = vld [vmem:[%s490 + $0x7c] sm:$0xf]
        %v591 = vld [vmem:[%s490 + $0x80] sm:$0xf]
        %v592 = vld [vmem:[%s490 + $0x84] sm:$0xf]
        %v593 = vld [vmem:[%s490 + $0x88] sm:$0xf]
        %v594 = vld [vmem:[%s490 + $0x8c] sm:$0xf]
        %v595 = vld [vmem:[%s490 + $0x90] sm:$0xf]
        %v596 = vld [vmem:[%s490 + $0x94] sm:$0xf]
        %v597 = vld [vmem:[%s490 + $0x98] sm:$0xf]
        %v598 = vld [vmem:[%s490 + $0x9c] sm:$0xf]
        %v599 = vld [vmem:[%s490 + $0xa0] sm:$0xf]
        %v600 = vld [vmem:[%s490 + $0xa4] sm:$0xf]
        %v601 = vld [vmem:[%s490 + $0xa8] sm:$0xf]
        %v602 = vld [vmem:[%s490 + $0xac] sm:$0xf]
        %v603 = vld [vmem:[%s490 + $0xb0] sm:$0xf]
        %v604 = vld [vmem:[%s490 + $0xb4] sm:$0xf]
        %v605 = vld [vmem:[%s490 + $0xb8] sm:$0xf]
        %v606 = vld [vmem:[%s490 + $0xbc] sm:$0xf]
        %v607 = vld [vmem:[%s490 + $0xc0] sm:$0xf]
        %v608 = vld [vmem:[%s490 + $0xc4] sm:$0xf]
        %v609 = vld [vmem:[%s490 + $0xc8] sm:$0xf]
        %v610 = vld [vmem:[%s490 + $0xcc] sm:$0xf]
        %v611 = vld [vmem:[%s490 + $0xd0] sm:$0xf]
        %v612 = vld [vmem:[%s490 + $0xd4] sm:$0xf]
        %v613 = vld [vmem:[%s490 + $0xd8] sm:$0xf]
        %v614 = vld [vmem:[%s490 + $0xdc] sm:$0xf]
        %v615 = vld [vmem:[%s490 + $0xe0] sm:$0xf]
        %v616 = vld [vmem:[%s490 + $0xe4] sm:$0xf]
        %v617 = vld [vmem:[%s490 + $0xe8] sm:$0xf]
        %v618 = vld [vmem:[%s490 + $0xec] sm:$0xf]
        %v619 = vld [vmem:[%s490 + $0xf0] sm:$0xf]
        %v620 = vld [vmem:[%s490 + $0xf4] sm:$0xf]
        %v621 = vld [vmem:[%s490 + $0xf8] sm:$0xf]
        %v622 = vld [vmem:[%s490 + $0xfc] sm:$0xf]
        %v625 = vunpack.c.l.b16 %v557
        %v626 = vunpack.c.h.b16 %v557
        %v627 = vunpack.c.l.b16 %v558
        %v628 = vunpack.c.h.b16 %v558
        %v629 = vpack.c.b16 %v625, %v625
        %v630 = vpack.c.b16 %v626, %v626
        %v631 = vpack.c.b16 %v627, %v627
        %v632 = vpack.c.b16 %v628, %v628
        %v701 = vunpack.c.l.b16 %v559
        %v702 = vunpack.c.l.b16 %v560
        %v703 = vunpack.c.l.b16 %v561
        %v704 = vunpack.c.l.b16 %v562
        %v705 = vunpack.c.l.b16 %v563
        %v706 = vunpack.c.l.b16 %v564
        %v707 = vunpack.c.l.b16 %v565
        %v708 = vunpack.c.l.b16 %v566
        %v709 = vunpack.c.l.b16 %v567
        %v710 = vunpack.c.l.b16 %v568
        %v711 = vunpack.c.l.b16 %v569
        %v712 = vunpack.c.l.b16 %v570
        %v713 = vunpack.c.l.b16 %v571
        %v714 = vunpack.c.l.b16 %v572
        %v715 = vunpack.c.l.b16 %v573
        %v716 = vunpack.c.l.b16 %v574
        %v717 = vunpack.c.l.b16 %v575
        %v718 = vunpack.c.l.b16 %v576
        %v719 = vunpack.c.l.b16 %v577
        %v720 = vunpack.c.l.b16 %v578
        %v721 = vunpack.c.l.b16 %v579
        %v722 = vunpack.c.l.b16 %v580
        %v723 = vunpack.c.l.b16 %v581
        %v724 = vunpack.c.l.b16 %v582
        %v725 = vunpack.c.l.b16 %v583
        %v726 = vunpack.c.l.b16 %v584
        %v727 = vunpack.c.l.b16 %v585
        %v728 = vunpack.c.l.b16 %v586
        %v729 = vunpack.c.l.b16 %v587
        %v730 = vunpack.c.l.b16 %v588
        %v731 = vunpack.c.l.b16 %v589
        %v732 = vunpack.c.l.b16 %v590
        %v733 = vunpack.c.l.b16 %v591
        %v734 = vunpack.c.l.b16 %v592
        %v735 = vunpack.c.l.b16 %v593
        %v736 = vunpack.c.l.b16 %v594
        %v737 = vunpack.c.l.b16 %v595
        %v738 = vunpack.c.l.b16 %v596
        %v739 = vunpack.c.l.b16 %v597
        %v740 = vunpack.c.l.b16 %v598
        %v741 = vunpack.c.l.b16 %v599
        %v742 = vunpack.c.l.b16 %v600
        %v743 = vunpack.c.l.b16 %v601
        %v744 = vunpack.c.l.b16 %v602
        %v745 = vunpack.c.l.b16 %v603
        %v746 = vunpack.c.l.b16 %v604
        %v747 = vunpack.c.l.b16 %v605
        %v748 = vunpack.c.l.b16 %v606
        %v749 = vunpack.c.l.b16 %v607
        %v750 = vunpack.c.l.b16 %v608
        %v751 = vunpack.c.l.b16 %v609
        %v752 = vunpack.c.l.b16 %v610
        %v753 = vunpack.c.l.b16 %v611
        %v754 = vunpack.c.l.b16 %v612
        %v755 = vunpack.c.l.b16 %v613
        %v756 = vunpack.c.l.b16 %v614
        %v757 = vunpack.c.l.b16 %v615
        %v758 = vunpack.c.l.b16 %v616
        %v759 = vunpack.c.l.b16 %v617
        %v760 = vunpack.c.l.b16 %v618
        %v761 = vunpack.c.l.b16 %v619
        %v762 = vunpack.c.l.b16 %v620
        %v763 = vunpack.c.l.b16 %v621
        %v764 = vunpack.c.l.b16 %v622
        %v765 = vpack.c.b16 %v702, %v701
        %v766 = vpack.c.b16 %v704, %v703
        %v767 = vpack.c.b16 %v706, %v705
        %v768 = vpack.c.b16 %v708, %v707
        %v769 = vpack.c.b16 %v710, %v709
        %v770 = vpack.c.b16 %v712, %v711
        %v771 = vpack.c.b16 %v714, %v713
        %v772 = vpack.c.b16 %v716, %v715
        %v773 = vpack.c.b16 %v718, %v717
        %v774 = vpack.c.b16 %v720, %v719
        %v775 = vpack.c.b16 %v722, %v721
        %v776 = vpack.c.b16 %v724, %v723
        %v777 = vpack.c.b16 %v726, %v725
        %v778 = vpack.c.b16 %v728, %v727
        %v779 = vpack.c.b16 %v730, %v729
        %v780 = vpack.c.b16 %v732, %v731
        %v781 = vpack.c.b16 %v734, %v733
        %v782 = vpack.c.b16 %v736, %v735
        %v783 = vpack.c.b16 %v738, %v737
        %v784 = vpack.c.b16 %v740, %v739
        %v785 = vpack.c.b16 %v742, %v741
        %v786 = vpack.c.b16 %v744, %v743
        %v787 = vpack.c.b16 %v746, %v745
        %v788 = vpack.c.b16 %v748, %v747
        %v789 = vpack.c.b16 %v750, %v749
        %v790 = vpack.c.b16 %v752, %v751
        %v791 = vpack.c.b16 %v754, %v753
        %v792 = vpack.c.b16 %v756, %v755
        %v793 = vpack.c.b16 %v758, %v757
        %v794 = vpack.c.b16 %v760, %v759
        %v795 = vpack.c.b16 %v762, %v761
        %v796 = vpack.c.b16 %v764, %v763
        %829 = vmatprep.subr.bf16.mxu0 0
        %830 = vmatpush1.bf16.msra.mxu0 %v765
        %831 = vmatprep.subr.bf16.mxu0 0
        %832 = vmatpush1.bf16.msra.mxu0 %v766
        %833 = vmatprep.subr.bf16.mxu0 0
        %834 = vmatpush1.bf16.msra.mxu0 %v767
        %835 = vmatprep.subr.bf16.mxu0 0
        %836 = vmatpush1.bf16.msra.mxu0 %v768
        %837 = vmatprep.subr.bf16.mxu0 0
        %838 = vmatpush1.bf16.msra.mxu0 %v769
        %839 = vmatprep.subr.bf16.mxu0 0
        %840 = vmatpush1.bf16.msra.mxu0 %v770
        %841 = vmatprep.subr.bf16.mxu0 0
        %842 = vmatpush1.bf16.msra.mxu0 %v771
        %843 = vmatprep.subr.bf16.mxu0 0
        %844 = vmatpush1.bf16.msra.mxu0 %v772
        %845 = vmatprep.subr.bf16.mxu0 0
        %846 = vmatpush1.bf16.msra.mxu0 %v773
        %847 = vmatprep.subr.bf16.mxu0 0
        %848 = vmatpush1.bf16.msra.mxu0 %v774
        %849 = vmatprep.subr.bf16.mxu0 0
        %850 = vmatpush1.bf16.msra.mxu0 %v775
        %851 = vmatprep.subr.bf16.mxu0 0
        %852 = vmatpush1.bf16.msra.mxu0 %v776
        %853 = vmatprep.subr.bf16.mxu0 0
        %854 = vmatpush1.bf16.msra.mxu0 %v777
        %855 = vmatprep.subr.bf16.mxu0 0
        %856 = vmatpush1.bf16.msra.mxu0 %v778
        %857 = vmatprep.subr.bf16.mxu0 0
        %858 = vmatpush1.bf16.msra.mxu0 %v779
        %859 = vmatprep.subr.bf16.mxu0 0
        %860 = vmatpush1.bf16.msra.mxu0 %v780
        %861 = vmatprep.mubr.bf16.mxu0 %v630
        %862 = vmatmul.mubr.bf16.gmra.mrb[0].mxu0 %v629
        %v863 = vpop.f32.mrb[0].mxu0
        %v864 = vadd.f32 0.0, %v863
        %v865 = vpop.f32.mrb[0].mxu0
        %v866 = vpop.f32.mrb[0].mxu0
        %v867 = vpop.f32.mrb[0].mxu0
        %868 = vdwg.mxu0
        %869 = vmatprep.subr.bf16.mxu0 0
        %870 = vmatpush1.bf16.msra.mxu0 %v781
        %871 = vmatprep.subr.bf16.mxu0 0
        %872 = vmatpush1.bf16.msra.mxu0 %v782
        %873 = vmatprep.subr.bf16.mxu0 0
        %874 = vmatpush1.bf16.msra.mxu0 %v783
        %875 = vmatprep.subr.bf16.mxu0 0
        %876 = vmatpush1.bf16.msra.mxu0 %v784
        %877 = vmatprep.subr.bf16.mxu0 0
        %878 = vmatpush1.bf16.msra.mxu0 %v785
        %879 = vmatprep.subr.bf16.mxu0 0
        %880 = vmatpush1.bf16.msra.mxu0 %v786
        %881 = vmatprep.subr.bf16.mxu0 0
        %882 = vmatpush1.bf16.msra.mxu0 %v787
        %883 = vmatprep.subr.bf16.mxu0 0
        %884 = vmatpush1.bf16.msra.mxu0 %v788
        %885 = vmatprep.subr.bf16.mxu0 0
        %886 = vmatpush1.bf16.msra.mxu0 %v789
        %887 = vmatprep.subr.bf16.mxu0 0
        %888 = vmatpush1.bf16.msra.mxu0 %v790
        %889 = vmatprep.subr.bf16.mxu0 0
        %890 = vmatpush1.bf16.msra.mxu0 %v791
        %891 = vmatprep.subr.bf16.mxu0 0
        %892 = vmatpush1.bf16.msra.mxu0 %v792
        %893 = vmatprep.subr.bf16.mxu0 0
        %894 = vmatpush1.bf16.msra.mxu0 %v793
        %895 = vmatprep.subr.bf16.mxu0 0
        %896 = vmatpush1.bf16.msra.mxu0 %v794
        %897 = vmatprep.subr.bf16.mxu0 0
        %898 = vmatpush1.bf16.msra.mxu0 %v795
        %899 = vmatprep.subr.bf16.mxu0 0
        %900 = vmatpush1.bf16.msra.mxu0 %v796
        %901 = vmatprep.mubr.bf16.mxu0 %v632
        %902 = vmatmul.mubr.bf16.gmra.mrb[0].mxu0 %v631
        %v903 = vpop.f32.mrb[0].mxu0
        %v904 = vadd.f32 %v864, %v903
        %v905 = vpop.f32.mrb[0].mxu0
        %v906 = vpop.f32.mrb[0].mxu0
        %v907 = vpop.f32.mrb[0].mxu0
        %908 = vdwg.mxu0
        %v909 = vadd.f32 %v556, %v904
        %910 = vst [vmem:[%s549] sm:$0xff] %v909
        // Predicated region
        $region78: #{squeezenet_forward.48} parent=68 // pred_check
          %p911 = pneg %p551
        $region79: #{squeezenet_forward.48} parent=68 // pred_check_branch
          %913 = sbr.rel (%p911) target = $region81
        $region80: #{squeezenet_forward.48} parent=68 // pred_region
          %v914 = vld [vmem:[%s549] sm:$0xff]
          %v915 = vld [vmem:[%s541] sm:$0x1]
          %v916 = vlaneseq
          %v917 = vshrl.u32 %v916, 7
          %v918 = vsub.s32 0, %v917
          %v919 = vrot.slane %v915, %v918
          %v920 = vadd.f32 %v914, %v919
          %921 = vst [vmem:[%s549] sm:$0xff] %v920
        $region81: #{squeezenet_forward.48} parent=68 // pred_fallthru
          _
        %p922 = scmp.lt.s32.totalorder %s19, 0
        %s923 = scalar_select %p922, %s19, 0
        %p924 = scmp.lt.s32.totalorder %s20, 3
        %s925 = scalar_select %p924, %s20, 3
        %s926 = smul.addr %s923, 4
        %s927 = sadd.s32 %s925, %s926
        %s928 = smul.addr %s927, 8
        %s929 = scalar_lea.vmem %s3, %s928
        // Predicated region
        $region82: #{squeezenet_forward.48} parent=68 // pred_check
          %p930 = pneg %p135
        $region83: #{squeezenet_forward.48} parent=68 // pred_check_branch
          %932 = sbr.rel (%p930) target = $region85
        $region84: #{squeezenet_forward.48} parent=68 // pred_region
          _
        $region85: #{squeezenet_forward.48} parent=68 // pred_fallthru
          _
      $region69: #{squeezenet_forward.48} parent=5 // pred_fallthru
        _
      %p933 = scmp.le.s32.totalorder 2, %s9
      // Predicated region
      $region86: #{squeezenet_forward.48} parent=5 // pred_check
        %p934 = pneg %p933
      $region87: #{squeezenet_forward.48} parent=5 // pred_check_branch
        %936 = sbr.rel (%p934) target = $region89
      $region88: #{squeezenet_forward.48} parent=5 // pred_region
        %s937 = ssub.s32 %s9, 2
        // Predicated region
        $region90: #{squeezenet_forward.48} parent=88 // pred_check
          %p938 = pneg %p141
        $region91: #{squeezenet_forward.48} parent=88 // pred_check_branch
          %940 = sbr.rel (%p938) target = $region93
        $region92: #{squeezenet_forward.48} parent=88 // pred_region
          %p941 = scmp.lt.s32.totalorder %s22, 0
          %s942 = scalar_select %p941, %s22, 0
          %p943 = scmp.lt.s32.totalorder %s23, 3
          %s944 = scalar_select %p943, %s23, 3
          %s945 = smul.addr %s942, 4
          %s946 = sadd.s32 %s944, %s945
          %s947 = smul.addr %s946, 8
          %s948 = scalar_lea.vmem %s3, %s947
        $region93: #{squeezenet_forward.48} parent=88 // pred_fallthru
          _
      $region89: #{squeezenet_forward.48} parent=5 // pred_fallthru
        _
    $region6: #{squeezenet_forward.48} parent=1 // loop_footer
      %s13 = sadd.s32 1, %s9
    $region7: #{squeezenet_forward.48} parent=1 // loop_footer_branch
      %8 = sbr.rel target = $region3
    $region8: #{squeezenet_forward.48} parent=1 // loop_exit
      _

// kernel: squeezenet_forward.53
$region0: #{squeezenet_forward.53}
  #allocation0 [shape = 'u32[]', space=smem, size = 0x4, offset = 0x4, fixed_abs, tag = 'smem constant byte address 0x4 - core index']
  #allocation1 [shape = 'u32[144,128]{1,0:T(1,128)}', space=vmem, size = 0x12000, scoped, tag = 'internal scratch']
  %s0 = inlined_call_operand.vmem [shape: bf16[16,4608], index: 0, kind: input, shape index: {}]
  %s1 = inlined_call_operand.vmem [shape: bf16[4608,512], index: 1, kind: input, shape index: {}]
  %s2 = inlined_call_operand.vmem [shape: f32[8,512], index: 2, kind: input, shape index: {}]
  %s3 = inlined_call_operand.vmem [shape: f32[16,512], index: 3, kind: output, shape index: {}]
  %s4 = sld [smem:[#allocation0]]
  $region151: #{squeezenet_forward.53} parent=0
    _
  %s6 = ssub.s32 1, %s4
  %s7 = scalar_select 0, %s6, %s4
  $region1: #{squeezenet_forward.53} parent=0
    #allocation2 [shape = 'u8[32768]{0}', space=vmem, size = 0x8000, scoped, tag = 'input window, operand 0']
    #allocation3 [shape = 'u8[262144]{0}', space=vmem, size = 0x40000, scoped, tag = 'input window, operand 1']
    #allocation4 [shape = 'u8[16384]{0}', space=vmem, size = 0x4000, scoped, tag = 'output window, operand 0']
    loop: start=0, step=1, limit=38
    $region2: #{squeezenet_forward.53} parent=1 // loop_pre_header
      _
    $region3: #{squeezenet_forward.53} parent=1 // loop_header
      %s9 = sphi 0, %s13
      %p10 = scmp.ge.s32.totalorder %s9, 38
      %s16 = sphi 0, %s35
      %s17 = sphi 0, %s31
      %s18 = sphi 0, %s27
      %s19 = sphi 0, %s16
      %s20 = sphi 0, %s17
      %s21 = sphi 0, %s18
      %s22 = sphi 0, %s19
      %s23 = sphi 0, %s20
      %s24 = sphi 0, %s21
      %s40 = sphi 0, %s42
      %s43 = sphi 0, %s40
      %s44 = sphi 0, %s43
      %s60 = sphi 0, %s44
      %s68 = sphi 0, %s70
      %s71 = sphi 0, %s68
      %s72 = sphi 0, %s71
      %s88 = sphi 0, %s72
      %s94 = sphi 0, %s96
      %s97 = sphi 0, %s94
      %s98 = sphi 0, %s97
      %s114 = sphi 0, %s98
      %s122 = sphi 0, %s124
      %s125 = sphi 0, %s122
      %s126 = sphi 0, %s125
      %s142 = sphi 0, %s126
    $region4: #{squeezenet_forward.53} parent=1 // loop_header_branch
      %12 = sbr.rel (%p10) target = $region8
    $region5: #{squeezenet_forward.53} parent=1 // loop_body
      %s14 = ssub.s32 %s9, 1
      %s15 = ssub.s32 %s9, 2
      %s25 = sadd.s32 1, %s18
      %p26 = scmp.ge.s32.totalorder %s25, 9
      %s27 = scalar_select %p26, 0, %s25
      %s28 = sadd.s32 1, %s17
      %s29 = scalar_select %p26, %s28, %s17
      %p30 = scmp.ge.s32.totalorder %s29, 4
      %s31 = scalar_select %p30, 0, %s29
      %s32 = sadd.s32 1, %s16
      %s33 = scalar_select %p30, %s32, %s16
      %p34 = scmp.ge.s32.totalorder %s33, 1
      %s35 = scalar_select %p34, 0, %s33
      %s36 = ssub.s32 %s16, %s35
      %s37 = ssub.s32 %s18, %s27
      %s38 = sor.u32 %s36, %s37
      %p39 = scmp.eq.s32.totalorder %s38, 0
      %s41 = sadd.s32 %s40, 1
      %s42 = scalar_select %p39, %s40, %s41
      %p45 = pneg %p39
      %p46 = scmp.eq.s32.totalorder %s9, 35
      %p47 = por %p45, %p46
      %p48 = scmp.ne.s32.totalorder %s40, %s43
      %p49 = scmp.eq.s32.totalorder %s9, 0
      %p50 = por %p48, %p49
      %p51 = scmp.ne.s32.totalorder %s40, %s43
      %p52 = scmp.eq.s32.totalorder %s14, 35
      %p53 = por %p51, %p52
      %p54 = scmp.ne.s32.totalorder %s43, %s44
      %p55 = scmp.eq.s32.totalorder %s14, 0
      %p56 = por %p54, %p55
      %p57 = scmp.ne.s32.totalorder %s43, %s44
      %p58 = scmp.eq.s32.totalorder %s15, 35
      %p59 = por %p57, %p58
      %p61 = scmp.ne.s32.totalorder %s44, %s60
      %p62 = scmp.eq.s32.totalorder %s15, 0
      %p63 = por %p61, %p62
      %s64 = ssub.s32 %s18, %s27
      %s65 = ssub.s32 %s17, %s31
      %s66 = sor.u32 %s64, %s65
      %p67 = scmp.eq.s32.totalorder %s66, 0
      %s69 = sadd.s32 %s68, 1
      %s70 = scalar_select %p67, %s68, %s69
      %p73 = pneg %p67
      %p74 = scmp.eq.s32.totalorder %s9, 35
      %p75 = por %p73, %p74
      %p76 = scmp.ne.s32.totalorder %s68, %s71
      %p77 = scmp.eq.s32.totalorder %s9, 0
      %p78 = por %p76, %p77
      %p79 = scmp.ne.s32.totalorder %s68, %s71
      %p80 = scmp.eq.s32.totalorder %s14, 35
      %p81 = por %p79, %p80
      %p82 = scmp.ne.s32.totalorder %s71, %s72
      %p83 = scmp.eq.s32.totalorder %s14, 0
      %p84 = por %p82, %p83
      %p85 = scmp.ne.s32.totalorder %s71, %s72
      %p86 = scmp.eq.s32.totalorder %s15, 35
      %p87 = por %p85, %p86
      %p89 = scmp.ne.s32.totalorder %s72, %s88
      %p90 = scmp.eq.s32.totalorder %s15, 0
      %p91 = por %p89, %p90
      %s92 = ssub.s32 %s17, %s31
      %p93 = scmp.eq.s32.totalorder %s92, 0
      %s95 = sadd.s32 %s94, 1
      %s96 = scalar_select %p93, %s94, %s95
      %p99 = pneg %p93
      %p100 = scmp.eq.s32.totalorder %s9, 35
      %p101 = por %p99, %p100
      %p102 = scmp.ne.s32.totalorder %s94, %s97
      %p103 = scmp.eq.s32.totalorder %s9, 0
      %p104 = por %p102, %p103
      %p105 = scmp.ne.s32.totalorder %s94, %s97
      %p106 = scmp.eq.s32.totalorder %s14, 35
      %p107 = por %p105, %p106
      %p108 = scmp.ne.s32.totalorder %s97, %s98
      %p109 = scmp.eq.s32.totalorder %s14, 0
      %p110 = por %p108, %p109
      %p111 = scmp.ne.s32.totalorder %s97, %s98
      %p112 = scmp.eq.s32.totalorder %s15, 35
      %p113 = por %p111, %p112
      %p115 = scmp.ne.s32.totalorder %s98, %s114
      %p116 = scmp.eq.s32.totalorder %s15, 0
      %p117 = por %p115, %p116
      %s118 = ssub.s32 %s16, %s35
      %s119 = ssub.s32 %s17, %s31
      %s120 = sor.u32 %s118, %s119
      %p121 = scmp.eq.s32.totalorder %s120, 0
      %s123 = sadd.s32 %s122, 1
      %s124 = scalar_select %p121, %s122, %s123
      %p127 = pneg %p121
      %p128 = scmp.eq.s32.totalorder %s9, 35
      %p129 = por %p127, %p128
      %p130 = scmp.ne.s32.totalorder %s122, %s125
      %p131 = scmp.eq.s32.totalorder %s9, 0
      %p132 = por %p130, %p131
      %p133 = scmp.ne.s32.totalorder %s122, %s125
      %p134 = scmp.eq.s32.totalorder %s14, 35
      %p135 = por %p133, %p134
      %p136 = scmp.ne.s32.totalorder %s125, %s126
      %p137 = scmp.eq.s32.totalorder %s14, 0
      %p138 = por %p136, %p137
      %p139 = scmp.ne.s32.totalorder %s125, %s126
      %p140 = scmp.eq.s32.totalorder %s15, 35
      %p141 = por %p139, %p140
      %p143 = scmp.ne.s32.totalorder %s126, %s142
      %p144 = scmp.eq.s32.totalorder %s15, 0
      %p145 = por %p143, %p144
      %p146 = scmp.le.s32.totalorder 1, %s9
      %p147 = scmp.lt.s32.totalorder %s9, 37
      %p148 = pnand %p146, %p147
      %p149 = pneg %p148
      // Predicated region
      $region9: #{squeezenet_forward.53} parent=5 // pred_check
        _
      $region10: #{squeezenet_forward.53} parent=5 // pred_check_branch
        %151 = sbr.rel (%p148) target = $region12
      $region11: #{squeezenet_forward.53} parent=5 // pred_region
        %s152 = ssub.s32 %s9, 1
      $region12: #{squeezenet_forward.53} parent=5 // pred_fallthru
        _
      %p153 = scmp.lt.s32.totalorder %s9, 36
      // Predicated region
      $region13: #{squeezenet_forward.53} parent=5 // pred_check
        %p154 = pneg %p153
      $region14: #{squeezenet_forward.53} parent=5 // pred_check_branch
        %156 = sbr.rel (%p154) target = $region16
      $region15: #{squeezenet_forward.53} parent=5 // pred_region
        // Predicated region
        $region17: #{squeezenet_forward.53} parent=15 // pred_check
          %p157 = pneg %p50
        $region18: #{squeezenet_forward.53} parent=15 // pred_check_branch
          %159 = sbr.rel (%p157) target = $region20
        $region19: #{squeezenet_forward.53} parent=15 // pred_region
          %s160 = sand.u32 %s40, 1
          %s161 = sand.u32 %s40, 1
          %s162 = smul.addr %s161, 32
          %s163 = scalar_lea.vmem [#allocation2], %s162
          %s164 = smul.u32 2, %s16
          %s165 = smul.u32 4, %s18
          %s166 = smul.addr %s164, 36
          %s167 = sadd.s32 %s165, %s166
          %s168 = smul.addr %s167, 4
          %s169 = scalar_lea.vmem %s0, %s168
          // Predicated region
          $region21: #{squeezenet_forward.53} parent=19 // pred_check
            _
          $region22: #{squeezenet_forward.53} parent=19 // pred_check_branch
            %171 = sbr.rel (0) target = $region24
          $region23: #{squeezenet_forward.53} parent=19 // pred_region
            // Predicated region
            $region25: #{squeezenet_forward.53} parent=23 // pred_check
              _
            $region26: #{squeezenet_forward.53} parent=23 // pred_check_branch
              %173 = sbr.rel (0) target = $region28
            $region27: #{squeezenet_forward.53} parent=23 // pred_region
              loop: start=0, step=1, limit=1
              $region29: #{squeezenet_forward.53} parent=27 // loop_pre_header
                _
              $region30: #{squeezenet_forward.53} parent=27 // loop_header
                %s175 = sphi 0, %s179
                %p176 = scmp.ge.s32.totalorder %s175, 1
                %s180 = sphi %s169, %s169
                %s181 = sphi %s163, %s163
              $region31: #{squeezenet_forward.53} parent=27 // loop_header_branch
                %178 = sbr.rel (%p176) target = $region35
              $region32: #{squeezenet_forward.53} parent=27 // loop_body
                %v182 = vld [vmem:[%s180] sm:$0xff]
                %183 = vst [vmem:[%s181] sm:$0xff] %v182
                %v184 = vld [vmem:[%s180 + $0x8] sm:$0xff]
                %185 = vst [vmem:[%s181 + $0x8] sm:$0xff] %v184
                %v186 = vld [vmem:[%s180 + $0x90] sm:$0xff]
                %187 = vst [vmem:[%s181 + $0x10] sm:$0xff] %v186
                %v188 = vld [vmem:[%s180 + $0x98] sm:$0xff]
                %189 = vst [vmem:[%s181 + $0x18] sm:$0xff] %v188
              $region33: #{squeezenet_forward.53} parent=27 // loop_footer
                %s179 = sadd.s32 1, %s175
              $region34: #{squeezenet_forward.53} parent=27 // loop_footer_branch
                %174 = sbr.rel target = $region30
              $region35: #{squeezenet_forward.53} parent=27 // loop_exit
                _
            $region28: #{squeezenet_forward.53} parent=23 // pred_fallthru
              _
            // Predicated region
            $region36: #{squeezenet_forward.53} parent=23 // pred_check
              _
            $region37: #{squeezenet_forward.53} parent=23 // pred_check_branch
              %191 = sbr.rel target = $region39
            $region38: #{squeezenet_forward.53} parent=23 // pred_region
              _
            $region39: #{squeezenet_forward.53} parent=23 // pred_fallthru
              _
          $region24: #{squeezenet_forward.53} parent=19 // pred_fallthru
            _
          %192 = vnop
        $region20: #{squeezenet_forward.53} parent=15 // pred_fallthru
          _
        // Predicated region
        $region40: #{squeezenet_forward.53} parent=15 // pred_check
          %p193 = pneg %p78
        $region41: #{squeezenet_forward.53} parent=15 // pred_check_branch
          %195 = sbr.rel (%p193) target = $region43
        $region42: #{squeezenet_forward.53} parent=15 // pred_region
          %s196 = sand.u32 %s68, 1
          %s197 = sand.u32 %s68, 1
          %s198 = smul.addr %s197, 256
          %s199 = scalar_lea.vmem [#allocation3], %s198
          %s200 = smul.u32 64, %s18
          %s201 = smul.addr %s200, 4
          %s202 = sadd.s32 %s17, %s201
          %s203 = smul.addr %s202, 4
          %s204 = scalar_lea.vmem %s1, %s203
          // Predicated region
          $region44: #{squeezenet_forward.53} parent=42 // pred_check
            _
          $region45: #{squeezenet_forward.53} parent=42 // pred_check_branch
            %206 = sbr.rel (0) target = $region47
          $region46: #{squeezenet_forward.53} parent=42 // pred_region
            // Predicated region
            $region48: #{squeezenet_forward.53} parent=46 // pred_check
              _
            $region49: #{squeezenet_forward.53} parent=46 // pred_check_branch
              %208 = sbr.rel target = $region51
            $region50: #{squeezenet_forward.53} parent=46 // pred_region
              // Predicated region
              $region63: #{squeezenet_forward.53} parent=50 // pred_check
                _
              $region64: #{squeezenet_forward.53} parent=50 // pred_check_branch
                %349 = sbr.rel (0) target = $region66
              $region65: #{squeezenet_forward.53} parent=50 // pred_region
                loop: start=0, step=1, limit=1
                $region67: #{squeezenet_forward.53} parent=65 // loop_pre_header
                  _
                $region68: #{squeezenet_forward.53} parent=65 // loop_header
                  %s351 = sphi 0, %s355
                  %p352 = scmp.ge.s32.totalorder %s351, 1
                  %s356 = sphi %s204, %s204
                  %s357 = sphi %s199, %s199
                $region69: #{squeezenet_forward.53} parent=65 // loop_header_branch
                  %354 = sbr.rel (%p352) target = $region73
                $region70: #{squeezenet_forward.53} parent=65 // loop_body
                  _
                $region71: #{squeezenet_forward.53} parent=65 // loop_footer
                  %s355 = sadd.s32 1, %s351
                $region72: #{squeezenet_forward.53} parent=65 // loop_footer_branch
                  %350 = sbr.rel target = $region68
                $region73: #{squeezenet_forward.53} parent=65 // loop_exit
                  _
                loop: start=0, step=1, limit=1
                $region74: #{squeezenet_forward.53} parent=65 // loop_pre_header
                  _
                $region75: #{squeezenet_forward.53} parent=65 // loop_header
                  %s360 = sphi 0, %s364
                  %p361 = scmp.ge.s32.totalorder %s360, 1
                  %s365 = sphi %s204, %s204
                  %s366 = sphi %s199, %s199
                $region76: #{squeezenet_forward.53} parent=65 // loop_header_branch
                  %363 = sbr.rel (%p361) target = $region80
                $region77: #{squeezenet_forward.53} parent=65 // loop_body
                  %v367 = vld [vmem:[%s365] sm:$0xf]
                  %368 = vst [vmem:[%s366] sm:$0xf] %v367
                  %v369 = vld [vmem:[%s365 + $0x10] sm:$0xf]
                  %370 = vst [vmem:[%s366 + $0x4] sm:$0xf] %v369
                  %v371 = vld [vmem:[%s365 + $0x20] sm:$0xf]
                  %372 = vst [vmem:[%s366 + $0x8] sm:$0xf] %v371
                  %v373 = vld [vmem:[%s365 + $0x30] sm:$0xf]
                  %374 = vst [vmem:[%s366 + $0xc] sm:$0xf] %v373
                  %v375 = vld [vmem:[%s365 + $0x40] sm:$0xf]
                  %376 = vst [vmem:[%s366 + $0x10] sm:$0xf] %v375
                  %v377 = vld [vmem:[%s365 + $0x50] sm:$0xf]
                  %378 = vst [vmem:[%s366 + $0x14] sm:$0xf] %v377
                  %v379 = vld [vmem:[%s365 + $0x60] sm:$0xf]
                  %380 = vst [vmem:[%s366 + $0x18] sm:$0xf] %v379
                  %v381 = vld [vmem:[%s365 + $0x70] sm:$0xf]
                  %382 = vst [vmem:[%s366 + $0x1c] sm:$0xf] %v381
                  %v383 = vld [vmem:[%s365 + $0x80] sm:$0xf]
                  %384 = vst [vmem:[%s366 + $0x20] sm:$0xf] %v383
                  %v385 = vld [vmem:[%s365 + $0x90] sm:$0xf]
                  %386 = vst [vmem:[%s366 + $0x24] sm:$0xf] %v385
                  %v387 = vld [vmem:[%s365 + $0xa0] sm:$0xf]
                  %388 = vst [vmem:[%s366 + $0x28] sm:$0xf] %v387
                  %v389 = vld [vmem:[%s365 + $0xb0] sm:$0xf]
                  %390 = vst [vmem:[%s366 + $0x2c] sm:$0xf] %v389
                  %v391 = vld [vmem:[%s365 + $0xc0] sm:$0xf]
                  %392 = vst [vmem:[%s366 + $0x30] sm:$0xf] %v391
                  %v393 = vld [vmem:[%s365 + $0xd0] sm:$0xf]
                  %394 = vst [vmem:[%s366 + $0x34] sm:$0xf] %v393
                  %v395 = vld [vmem:[%s365 + $0xe0] sm:$0xf]
                  %396 = vst [vmem:[%s366 + $0x38] sm:$0xf] %v395
                  %v397 = vld [vmem:[%s365 + $0xf0] sm:$0xf]
                  %398 = vst [vmem:[%s366 + $0x3c] sm:$0xf] %v397
                  %v399 = vld [vmem:[%s365 + $0x100] sm:$0xf]
                  %400 = vst [vmem:[%s366 + $0x40] sm:$0xf] %v399
                  %v401 = vld [vmem:[%s365 + $0x110] sm:$0xf]
                  %402 = vst [vmem:[%s366 + $0x44] sm:$0xf] %v401
                  %v403 = vld [vmem:[%s365 + $0x120] sm:$0xf]
                  %404 = vst [vmem:[%s366 + $0x48] sm:$0xf] %v403
                  %v405 = vld [vmem:[%s365 + $0x130] sm:$0xf]
                  %406 = vst [vmem:[%s366 + $0x4c] sm:$0xf] %v405
                  %v407 = vld [vmem:[%s365 + $0x140] sm:$0xf]
                  %408 = vst [vmem:[%s366 + $0x50] sm:$0xf] %v407
                  %v409 = vld [vmem:[%s365 + $0x150] sm:$0xf]
                  %410 = vst [vmem:[%s366 + $0x54] sm:$0xf] %v409
                  %v411 = vld [vmem:[%s365 + $0x160] sm:$0xf]
                  %412 = vst [vmem:[%s366 + $0x58] sm:$0xf] %v411
                  %v413 = vld [vmem:[%s365 + $0x170] sm:$0xf]
                  %414 = vst [vmem:[%s366 + $0x5c] sm:$0xf] %v413
                  %v415 = vld [vmem:[%s365 + $0x180] sm:$0xf]
                  %416 = vst [vmem:[%s366 + $0x60] sm:$0xf] %v415
                  %v417 = vld [vmem:[%s365 + $0x190] sm:$0xf]
                  %418 = vst [vmem:[%s366 + $0x64] sm:$0xf] %v417
                  %v419 = vld [vmem:[%s365 + $0x1a0] sm:$0xf]
                  %420 = vst [vmem:[%s366 + $0x68] sm:$0xf] %v419
                  %v421 = vld [vmem:[%s365 + $0x1b0] sm:$0xf]
                  %422 = vst [vmem:[%s366 + $0x6c] sm:$0xf] %v421
                  %v423 = vld [vmem:[%s365 + $0x1c0] sm:$0xf]
                  %424 = vst [vmem:[%s366 + $0x70] sm:$0xf] %v423
                  %v425 = vld [vmem:[%s365 + $0x1d0] sm:$0xf]
                  %426 = vst [vmem:[%s366 + $0x74] sm:$0xf] %v425
                  %v427 = vld [vmem:[%s365 + $0x1e0] sm:$0xf]
                  %428 = vst [vmem:[%s366 + $0x78] sm:$0xf] %v427
                  %v429 = vld [vmem:[%s365 + $0x1f0] sm:$0xf]
                  %430 = vst [vmem:[%s366 + $0x7c] sm:$0xf] %v429
                  %v431 = vld [vmem:[%s365 + $0x200] sm:$0xf]
                  %432 = vst [vmem:[%s366 + $0x80] sm:$0xf] %v431
                  %v433 = vld [vmem:[%s365 + $0x210] sm:$0xf]
                  %434 = vst [vmem:[%s366 + $0x84] sm:$0xf] %v433
                  %v435 = vld [vmem:[%s365 + $0x220] sm:$0xf]
                  %436 = vst [vmem:[%s366 + $0x88] sm:$0xf] %v435
                  %v437 = vld [vmem:[%s365 + $0x230] sm:$0xf]
                  %438 = vst [vmem:[%s366 + $0x8c] sm:$0xf] %v437
                  %v439 = vld [vmem:[%s365 + $0x240] sm:$0xf]
                  %440 = vst [vmem:[%s366 + $0x90] sm:$0xf] %v439
                  %v441 = vld [vmem:[%s365 + $0x250] sm:$0xf]
                  %442 = vst [vmem:[%s366 + $0x94] sm:$0xf] %v441
                  %v443 = vld [vmem:[%s365 + $0x260] sm:$0xf]
                  %444 = vst [vmem:[%s366 + $0x98] sm:$0xf] %v443
                  %v445 = vld [vmem:[%s365 + $0x270] sm:$0xf]
                  %446 = vst [vmem:[%s366 + $0x9c] sm:$0xf] %v445
                  %v447 = vld [vmem:[%s365 + $0x280] sm:$0xf]
                  %448 = vst [vmem:[%s366 + $0xa0] sm:$0xf] %v447
                  %v449 = vld [vmem:[%s365 + $0x290] sm:$0xf]
                  %450 = vst [vmem:[%s366 + $0xa4] sm:$0xf] %v449
                  %v451 = vld [vmem:[%s365 + $0x2a0] sm:$0xf]
                  %452 = vst [vmem:[%s366 + $0xa8] sm:$0xf] %v451
                  %v453 = vld [vmem:[%s365 + $0x2b0] sm:$0xf]
                  %454 = vst [vmem:[%s366 + $0xac] sm:$0xf] %v453
                  %v455 = vld [vmem:[%s365 + $0x2c0] sm:$0xf]
                  %456 = vst [vmem:[%s366 + $0xb0] sm:$0xf] %v455
                  %v457 = vld [vmem:[%s365 + $0x2d0] sm:$0xf]
                  %458 = vst [vmem:[%s366 + $0xb4] sm:$0xf] %v457
                  %v459 = vld [vmem:[%s365 + $0x2e0] sm:$0xf]
                  %460 = vst [vmem:[%s366 + $0xb8] sm:$0xf] %v459
                  %v461 = vld [vmem:[%s365 + $0x2f0] sm:$0xf]
                  %462 = vst [vmem:[%s366 + $0xbc] sm:$0xf] %v461
                  %v463 = vld [vmem:[%s365 + $0x300] sm:$0xf]
                  %464 = vst [vmem:[%s366 + $0xc0] sm:$0xf] %v463
                  %v465 = vld [vmem:[%s365 + $0x310] sm:$0xf]
                  %466 = vst [vmem:[%s366 + $0xc4] sm:$0xf] %v465
                  %v467 = vld [vmem:[%s365 + $0x320] sm:$0xf]
                  %468 = vst [vmem:[%s366 + $0xc8] sm:$0xf] %v467
                  %v469 = vld [vmem:[%s365 + $0x330] sm:$0xf]
                  %470 = vst [vmem:[%s366 + $0xcc] sm:$0xf] %v469
                  %v471 = vld [vmem:[%s365 + $0x340] sm:$0xf]
                  %472 = vst [vmem:[%s366 + $0xd0] sm:$0xf] %v471
                  %v473 = vld [vmem:[%s365 + $0x350] sm:$0xf]
                  %474 = vst [vmem:[%s366 + $0xd4] sm:$0xf] %v473
                  %v475 = vld [vmem:[%s365 + $0x360] sm:$0xf]
                  %476 = vst [vmem:[%s366 + $0xd8] sm:$0xf] %v475
                  %v477 = vld [vmem:[%s365 + $0x370] sm:$0xf]
                  %478 = vst [vmem:[%s366 + $0xdc] sm:$0xf] %v477
                  %v479 = vld [vmem:[%s365 + $0x380] sm:$0xf]
                  %480 = vst [vmem:[%s366 + $0xe0] sm:$0xf] %v479
                  %v481 = vld [vmem:[%s365 + $0x390] sm:$0xf]
                  %482 = vst [vmem:[%s366 + $0xe4] sm:$0xf] %v481
                  %v483 = vld [vmem:[%s365 + $0x3a0] sm:$0xf]
                  %484 = vst [vmem:[%s366 + $0xe8] sm:$0xf] %v483
                  %v485 = vld [vmem:[%s365 + $0x3b0] sm:$0xf]
                  %486 = vst [vmem:[%s366 + $0xec] sm:$0xf] %v485
                  %v487 = vld [vmem:[%s365 + $0x3c0] sm:$0xf]
                  %488 = vst [vmem:[%s366 + $0xf0] sm:$0xf] %v487
                  %v489 = vld [vmem:[%s365 + $0x3d0] sm:$0xf]
                  %490 = vst [vmem:[%s366 + $0xf4] sm:$0xf] %v489
                  %v491 = vld [vmem:[%s365 + $0x3e0] sm:$0xf]
                  %492 = vst [vmem:[%s366 + $0xf8] sm:$0xf] %v491
                  %v493 = vld [vmem:[%s365 + $0x3f0] sm:$0xf]
                  %494 = vst [vmem:[%s366 + $0xfc] sm:$0xf] %v493
                $region78: #{squeezenet_forward.53} parent=65 // loop_footer
                  %s364 = sadd.s32 1, %s360
                $region79: #{squeezenet_forward.53} parent=65 // loop_footer_branch
                  %359 = sbr.rel target = $region75
                $region80: #{squeezenet_forward.53} parent=65 // loop_exit
                  _
              $region66: #{squeezenet_forward.53} parent=50 // pred_fallthru
                _
            $region51: #{squeezenet_forward.53} parent=46 // pred_fallthru
              _
            // Predicated region
            $region52: #{squeezenet_forward.53} parent=46 // pred_check
              _
            $region53: #{squeezenet_forward.53} parent=46 // pred_check_branch
              %210 = sbr.rel (0) target = $region55
            $region54: #{squeezenet_forward.53} parent=46 // pred_region
              loop: start=0, step=1, limit=1
              $region56: #{squeezenet_forward.53} parent=54 // loop_pre_header
                _
              $region57: #{squeezenet_forward.53} parent=54 // loop_header
                %s213 = sphi 0, %s217
                %p214 = scmp.ge.s32.totalorder %s213, 1
                %s218 = sphi %s204, %s204
                %s219 = sphi %s199, %s199
              $region58: #{squeezenet_forward.53} parent=54 // loop_header_branch
                %216 = sbr.rel (%p214) target = $region62
              $region59: #{squeezenet_forward.53} parent=54 // loop_body
                %v220 = vld [vmem:[%s218] sm:$0xf]
                %221 = vst [vmem:[%s219] sm:$0xf] %v220
                %v222 = vld [vmem:[%s218 + $0x10] sm:$0xf]
                %223 = vst [vmem:[%s219 + $0x4] sm:$0xf] %v222
                %v224 = vld [vmem:[%s218 + $0x20] sm:$0xf]
                %225 = vst [vmem:[%s219 + $0x8] sm:$0xf] %v224
                %v226 = vld [vmem:[%s218 + $0x30] sm:$0xf]
                %227 = vst [vmem:[%s219 + $0xc] sm:$0xf] %v226
                %v228 = vld [vmem:[%s218 + $0x40] sm:$0xf]
                %229 = vst [vmem:[%s219 + $0x10] sm:$0xf] %v228
                %v230 = vld [vmem:[%s218 + $0x50] sm:$0xf]
                %231 = vst [vmem:[%s219 + $0x14] sm:$0xf] %v230
                %v232 = vld [vmem:[%s218 + $0x60] sm:$0xf]
                %233 = vst [vmem:[%s219 + $0x18] sm:$0xf] %v232
                %v234 = vld [vmem:[%s218 + $0x70] sm:$0xf]
                %235 = vst [vmem:[%s219 + $0x1c] sm:$0xf] %v234
                %v236 = vld [vmem:[%s218 + $0x80] sm:$0xf]
                %237 = vst [vmem:[%s219 + $0x20] sm:$0xf] %v236
                %v238 = vld [vmem:[%s218 + $0x90] sm:$0xf]
                %239 = vst [vmem:[%s219 + $0x24] sm:$0xf] %v238
                %v240 = vld [vmem:[%s218 + $0xa0] sm:$0xf]
                %241 = vst [vmem:[%s219 + $0x28] sm:$0xf] %v240
                %v242 = vld [vmem:[%s218 + $0xb0] sm:$0xf]
                %243 = vst [vmem:[%s219 + $0x2c] sm:$0xf] %v242
                %v244 = vld [vmem:[%s218 + $0xc0] sm:$0xf]
                %245 = vst [vmem:[%s219 + $0x30] sm:$0xf] %v244
                %v246 = vld [vmem:[%s218 + $0xd0] sm:$0xf]
                %247 = vst [vmem:[%s219 + $0x34] sm:$0xf] %v246
                %v248 = vld [vmem:[%s218 + $0xe0] sm:$0xf]
                %249 = vst [vmem:[%s219 + $0x38] sm:$0xf] %v248
                %v250 = vld [vmem:[%s218 + $0xf0] sm:$0xf]
                %251 = vst [vmem:[%s219 + $0x3c] sm:$0xf] %v250
                %v252 = vld [vmem:[%s218 + $0x100] sm:$0xf]
                %253 = vst [vmem:[%s219 + $0x40] sm:$0xf] %v252
                %v254 = vld [vmem:[%s218 + $0x110] sm:$0xf]
                %255 = vst [vmem:[%s219 + $0x44] sm:$0xf] %v254
                %v256 = vld [vmem:[%s218 + $0x120] sm:$0xf]
                %257 = vst [vmem:[%s219 + $0x48] sm:$0xf] %v256
                %v258 = vld [vmem:[%s218 + $0x130] sm:$0xf]
                %259 = vst [vmem:[%s219 + $0x4c] sm:$0xf] %v258
                %v260 = vld [vmem:[%s218 + $0x140] sm:$0xf]
                %261 = vst [vmem:[%s219 + $0x50] sm:$0xf] %v260
                %v262 = vld [vmem:[%s218 + $0x150] sm:$0xf]
                %263 = vst [vmem:[%s219 + $0x54] sm:$0xf] %v262
                %v264 = vld [vmem:[%s218 + $0x160] sm:$0xf]
                %265 = vst [vmem:[%s219 + $0x58] sm:$0xf] %v264
                %v266 = vld [vmem:[%s218 + $0x170] sm:$0xf]
                %267 = vst [vmem:[%s219 + $0x5c] sm:$0xf] %v266
                %v268 = vld [vmem:[%s218 + $0x180] sm:$0xf]
                %269 = vst [vmem:[%s219 + $0x60] sm:$0xf] %v268
                %v270 = vld [vmem:[%s218 + $0x190] sm:$0xf]
                %271 = vst [vmem:[%s219 + $0x64] sm:$0xf] %v270
                %v272 = vld [vmem:[%s218 + $0x1a0] sm:$0xf]
                %273 = vst [vmem:[%s219 + $0x68] sm:$0xf] %v272
                %v274 = vld [vmem:[%s218 + $0x1b0] sm:$0xf]
                %275 = vst [vmem:[%s219 + $0x6c] sm:$0xf] %v274
                %v276 = vld [vmem:[%s218 + $0x1c0] sm:$0xf]
                %277 = vst [vmem:[%s219 + $0x70] sm:$0xf] %v276
                %v278 = vld [vmem:[%s218 + $0x1d0] sm:$0xf]
                %279 = vst [vmem:[%s219 + $0x74] sm:$0xf] %v278
                %v280 = vld [vmem:[%s218 + $0x1e0] sm:$0xf]
                %281 = vst [vmem:[%s219 + $0x78] sm:$0xf] %v280
                %v282 = vld [vmem:[%s218 + $0x1f0] sm:$0xf]
                %283 = vst [vmem:[%s219 + $0x7c] sm:$0xf] %v282
                %v284 = vld [vmem:[%s218 + $0x200] sm:$0xf]
                %285 = vst [vmem:[%s219 + $0x80] sm:$0xf] %v284
                %v286 = vld [vmem:[%s218 + $0x210] sm:$0xf]
                %287 = vst [vmem:[%s219 + $0x84] sm:$0xf] %v286
                %v288 = vld [vmem:[%s218 + $0x220] sm:$0xf]
                %289 = vst [vmem:[%s219 + $0x88] sm:$0xf] %v288
                %v290 = vld [vmem:[%s218 + $0x230] sm:$0xf]
                %291 = vst [vmem:[%s219 + $0x8c] sm:$0xf] %v290
                %v292 = vld [vmem:[%s218 + $0x240] sm:$0xf]
                %293 = vst [vmem:[%s219 + $0x90] sm:$0xf] %v292
                %v294 = vld [vmem:[%s218 + $0x250] sm:$0xf]
                %295 = vst [vmem:[%s219 + $0x94] sm:$0xf] %v294
                %v296 = vld [vmem:[%s218 + $0x260] sm:$0xf]
                %297 = vst [vmem:[%s219 + $0x98] sm:$0xf] %v296
                %v298 = vld [vmem:[%s218 + $0x270] sm:$0xf]
                %299 = vst [vmem:[%s219 + $0x9c] sm:$0xf] %v298
                %v300 = vld [vmem:[%s218 + $0x280] sm:$0xf]
                %301 = vst [vmem:[%s219 + $0xa0] sm:$0xf] %v300
                %v302 = vld [vmem:[%s218 + $0x290] sm:$0xf]
                %303 = vst [vmem:[%s219 + $0xa4] sm:$0xf] %v302
                %v304 = vld [vmem:[%s218 + $0x2a0] sm:$0xf]
                %305 = vst [vmem:[%s219 + $0xa8] sm:$0xf] %v304
                %v306 = vld [vmem:[%s218 + $0x2b0] sm:$0xf]
                %307 = vst [vmem:[%s219 + $0xac] sm:$0xf] %v306
                %v308 = vld [vmem:[%s218 + $0x2c0] sm:$0xf]
                %309 = vst [vmem:[%s219 + $0xb0] sm:$0xf] %v308
                %v310 = vld [vmem:[%s218 + $0x2d0] sm:$0xf]
                %311 = vst [vmem:[%s219 + $0xb4] sm:$0xf] %v310
                %v312 = vld [vmem:[%s218 + $0x2e0] sm:$0xf]
                %313 = vst [vmem:[%s219 + $0xb8] sm:$0xf] %v312
                %v314 = vld [vmem:[%s218 + $0x2f0] sm:$0xf]
                %315 = vst [vmem:[%s219 + $0xbc] sm:$0xf] %v314
                %v316 = vld [vmem:[%s218 + $0x300] sm:$0xf]
                %317 = vst [vmem:[%s219 + $0xc0] sm:$0xf] %v316
                %v318 = vld [vmem:[%s218 + $0x310] sm:$0xf]
                %319 = vst [vmem:[%s219 + $0xc4] sm:$0xf] %v318
                %v320 = vld [vmem:[%s218 + $0x320] sm:$0xf]
                %321 = vst [vmem:[%s219 + $0xc8] sm:$0xf] %v320
                %v322 = vld [vmem:[%s218 + $0x330] sm:$0xf]
                %323 = vst [vmem:[%s219 + $0xcc] sm:$0xf] %v322
                %v324 = vld [vmem:[%s218 + $0x340] sm:$0xf]
                %325 = vst [vmem:[%s219 + $0xd0] sm:$0xf] %v324
                %v326 = vld [vmem:[%s218 + $0x350] sm:$0xf]
                %327 = vst [vmem:[%s219 + $0xd4] sm:$0xf] %v326
                %v328 = vld [vmem:[%s218 + $0x360] sm:$0xf]
                %329 = vst [vmem:[%s219 + $0xd8] sm:$0xf] %v328
                %v330 = vld [vmem:[%s218 + $0x370] sm:$0xf]
                %331 = vst [vmem:[%s219 + $0xdc] sm:$0xf] %v330
                %v332 = vld [vmem:[%s218 + $0x380] sm:$0xf]
                %333 = vst [vmem:[%s219 + $0xe0] sm:$0xf] %v332
                %v334 = vld [vmem:[%s218 + $0x390] sm:$0xf]
                %335 = vst [vmem:[%s219 + $0xe4] sm:$0xf] %v334
                %v336 = vld [vmem:[%s218 + $0x3a0] sm:$0xf]
                %337 = vst [vmem:[%s219 + $0xe8] sm:$0xf] %v336
                %v338 = vld [vmem:[%s218 + $0x3b0] sm:$0xf]
                %339 = vst [vmem:[%s219 + $0xec] sm:$0xf] %v338
                %v340 = vld [vmem:[%s218 + $0x3c0] sm:$0xf]
                %341 = vst [vmem:[%s219 + $0xf0] sm:$0xf] %v340
                %v342 = vld [vmem:[%s218 + $0x3d0] sm:$0xf]
                %343 = vst [vmem:[%s219 + $0xf4] sm:$0xf] %v342
                %v344 = vld [vmem:[%s218 + $0x3e0] sm:$0xf]
                %345 = vst [vmem:[%s219 + $0xf8] sm:$0xf] %v344
                %v346 = vld [vmem:[%s218 + $0x3f0] sm:$0xf]
                %347 = vst [vmem:[%s219 + $0xfc] sm:$0xf] %v346
              $region60: #{squeezenet_forward.53} parent=54 // loop_footer
                %s217 = sadd.s32 1, %s213
              $region61: #{squeezenet_forward.53} parent=54 // loop_footer_branch
                %212 = sbr.rel target = $region57
              $region62: #{squeezenet_forward.53} parent=54 // loop_exit
                _
            $region55: #{squeezenet_forward.53} parent=46 // pred_fallthru
              _
          $region47: #{squeezenet_forward.53} parent=42 // pred_fallthru
            _
          %495 = vnop
        $region43: #{squeezenet_forward.53} parent=15 // pred_fallthru
          _
        // Predicated region
        $region81: #{squeezenet_forward.53} parent=15 // pred_check
          %p496 = pneg %p104
        $region82: #{squeezenet_forward.53} parent=15 // pred_check_branch
          %498 = sbr.rel (%p496) target = $region84
        $region83: #{squeezenet_forward.53} parent=15 // pred_region
          %p499 = scmp.lt.s32.totalorder %s17, 3
          %s500 = scalar_select %p499, %s17, 3
          %s501 = smul.addr %s500, 8
          %s502 = scalar_lea.vmem %s2, %s501
        $region84: #{squeezenet_forward.53} parent=15 // pred_fallthru
          _
      $region16: #{squeezenet_forward.53} parent=5 // pred_fallthru
        _
      %p503 = scmp.le.s32.totalorder 1, %s9
      %p504 = scmp.lt.s32.totalorder %s9, 37
      %p505 = pnand %p503, %p504
      %p506 = pneg %p505
      // Predicated region
      $region85: #{squeezenet_forward.53} parent=5 // pred_check
        _
      $region86: #{squeezenet_forward.53} parent=5 // pred_check_branch
        %508 = sbr.rel (%p505) target = $region88
      $region87: #{squeezenet_forward.53} parent=5 // pred_region
        %s509 = ssub.s32 %s9, 1
        %s510 = sand.u32 %s43, 1
        %s511 = sand.u32 %s43, 1
        %s512 = smul.addr %s511, 32
        %s513 = scalar_lea.vmem [#allocation2], %s512
        // Predicated region
        $region89: #{squeezenet_forward.53} parent=87 // pred_check
          %p514 = pneg %p56
        $region90: #{squeezenet_forward.53} parent=87 // pred_check_branch
          %516 = sbr.rel (%p514) target = $region92
        $region91: #{squeezenet_forward.53} parent=87 // pred_region
          _
        $region92: #{squeezenet_forward.53} parent=87 // pred_fallthru
          _
        %s517 = sand.u32 %s71, 1
        %s518 = sand.u32 %s71, 1
        %s519 = smul.addr %s518, 256
        %s520 = scalar_lea.vmem [#allocation3], %s519
        // Predicated region
        $region93: #{squeezenet_forward.53} parent=87 // pred_check
          %p521 = pneg %p84
        $region94: #{squeezenet_forward.53} parent=87 // pred_check_branch
          %523 = sbr.rel (%p521) target = $region96
        $region95: #{squeezenet_forward.53} parent=87 // pred_region
          _
        $region96: #{squeezenet_forward.53} parent=87 // pred_fallthru
          _
        %s524 = sand.u32 %s43, 1
        %s525 = sand.u32 %s43, 1
        %s526 = smul.addr %s525, 32
        %s527 = scalar_lea.vmem [#allocation2], %s526
        %p528 = pneg %p56
        %p529 = pneg %p53
        %s530 = sand.u32 %s71, 1
        %s531 = sand.u32 %s71, 1
        %s532 = smul.addr %s531, 256
        %s533 = scalar_lea.vmem [#allocation3], %s532
        %p534 = pneg %p84
        %p535 = pneg %p81
        %p536 = scmp.lt.s32.totalorder %s20, 3
        %s537 = scalar_select %p536, %s20, 3
        %s538 = smul.addr %s537, 8
        %s539 = scalar_lea.vmem %s2, %s538
        %p540 = pneg %p110
        %p541 = pneg %p107
        %p542 = pneg %p138
        %p543 = pneg %p135
        %s544 = sand.u32 %s125, 1
        %s545 = sand.u32 %s125, 1
        %s546 = smul.addr %s545, 16
        %s547 = scalar_lea.vmem [#allocation4], %s546
        %s548 = smul.u32 2, %s19
        %s549 = smul.u32 4, %s21
        %s550 = smul.u32 64, %s21
        %p551 = scmp.lt.s32.totalorder %s20, 3
        %s552 = scalar_select %p551, %s20, 3
        %s553 = smul.addr %s552, 8
        %s554 = scalar_lea.vmem %s2, %s553
        %s555 = smul.u32 2, %s19
        %p557 = scmp.eq.s32.totalorder %s21, 0
        // Predicated region
        $region97: #{squeezenet_forward.53} parent=87 // pred_check
          %p558 = pneg %p557
        $region98: #{squeezenet_forward.53} parent=87 // pred_check_branch
          %560 = sbr.rel (%p558) target = $region100
        $region99: #{squeezenet_forward.53} parent=87 // pred_region
          %561 = vst [vmem:[%s547] sm:$0xff] 0.0
          %562 = vst [vmem:[%s547 + $0x8] sm:$0xff] 0.0
        $region100: #{squeezenet_forward.53} parent=87 // pred_fallthru
          _
        %v563 = vld [vmem:[%s547] sm:$0xff]
        %v564 = vld [vmem:[%s547 + $0x8] sm:$0xff]
        %v565 = vld [vmem:[%s513] sm:$0xff]
        %v566 = vld [vmem:[%s513 + $0x8] sm:$0xff]
        %v567 = vld [vmem:[%s513 + $0x10] sm:$0xff]
        %v568 = vld [vmem:[%s513 + $0x18] sm:$0xff]
        %v569 = vld [vmem:[%s520] sm:$0xf]
        %v570 = vld [vmem:[%s520 + $0x4] sm:$0xf]
        %v571 = vld [vmem:[%s520 + $0x8] sm:$0xf]
        %v572 = vld [vmem:[%s520 + $0xc] sm:$0xf]
        %v573 = vld [vmem:[%s520 + $0x10] sm:$0xf]
        %v574 = vld [vmem:[%s520 + $0x14] sm:$0xf]
        %v575 = vld [vmem:[%s520 + $0x18] sm:$0xf]
        %v576 = vld [vmem:[%s520 + $0x1c] sm:$0xf]
        %v577 = vld [vmem:[%s520 + $0x20] sm:$0xf]
        %v578 = vld [vmem:[%s520 + $0x24] sm:$0xf]
        %v579 = vld [vmem:[%s520 + $0x28] sm:$0xf]
        %v580 = vld [vmem:[%s520 + $0x2c] sm:$0xf]
        %v581 = vld [vmem:[%s520 + $0x30] sm:$0xf]
        %v582 = vld [vmem:[%s520 + $0x34] sm:$0xf]
        %v583 = vld [vmem:[%s520 + $0x38] sm:$0xf]
        %v584 = vld [vmem:[%s520 + $0x3c] sm:$0xf]
        %v585 = vld [vmem:[%s520 + $0x40] sm:$0xf]
        %v586 = vld [vmem:[%s520 + $0x44] sm:$0xf]
        %v587 = vld [vmem:[%s520 + $0x48] sm:$0xf]
        %v588 = vld [vmem:[%s520 + $0x4c] sm:$0xf]
        %v589 = vld [vmem:[%s520 + $0x50] sm:$0xf]
        %v590 = vld [vmem:[%s520 + $0x54] sm:$0xf]
        %v591 = vld [vmem:[%s520 + $0x58] sm:$0xf]
        %v592 = vld [vmem:[%s520 + $0x5c] sm:$0xf]
        %v593 = vld [vmem:[%s520 + $0x60] sm:$0xf]
        %v594 = vld [vmem:[%s520 + $0x64] sm:$0xf]
        %v595 = vld [vmem:[%s520 + $0x68] sm:$0xf]
        %v596 = vld [vmem:[%s520 + $0x6c] sm:$0xf]
        %v597 = vld [vmem:[%s520 + $0x70] sm:$0xf]
        %v598 = vld [vmem:[%s520 + $0x74] sm:$0xf]
        %v599 = vld [vmem:[%s520 + $0x78] sm:$0xf]
        %v600 = vld [vmem:[%s520 + $0x7c] sm:$0xf]
        %v601 = vld [vmem:[%s520 + $0x80] sm:$0xf]
        %v602 = vld [vmem:[%s520 + $0x84] sm:$0xf]
        %v603 = vld [vmem:[%s520 + $0x88] sm:$0xf]
        %v604 = vld [vmem:[%s520 + $0x8c] sm:$0xf]
        %v605 = vld [vmem:[%s520 + $0x90] sm:$0xf]
        %v606 = vld [vmem:[%s520 + $0x94] sm:$0xf]
        %v607 = vld [vmem:[%s520 + $0x98] sm:$0xf]
        %v608 = vld [vmem:[%s520 + $0x9c] sm:$0xf]
        %v609 = vld [vmem:[%s520 + $0xa0] sm:$0xf]
        %v610 = vld [vmem:[%s520 + $0xa4] sm:$0xf]
        %v611 = vld [vmem:[%s520 + $0xa8] sm:$0xf]
        %v612 = vld [vmem:[%s520 + $0xac] sm:$0xf]
        %v613 = vld [vmem:[%s520 + $0xb0] sm:$0xf]
        %v614 = vld [vmem:[%s520 + $0xb4] sm:$0xf]
        %v615 = vld [vmem:[%s520 + $0xb8] sm:$0xf]
        %v616 = vld [vmem:[%s520 + $0xbc] sm:$0xf]
        %v617 = vld [vmem:[%s520 + $0xc0] sm:$0xf]
        %v618 = vld [vmem:[%s520 + $0xc4] sm:$0xf]
        %v619 = vld [vmem:[%s520 + $0xc8] sm:$0xf]
        %v620 = vld [vmem:[%s520 + $0xcc] sm:$0xf]
        %v621 = vld [vmem:[%s520 + $0xd0] sm:$0xf]
        %v622 = vld [vmem:[%s520 + $0xd4] sm:$0xf]
        %v623 = vld [vmem:[%s520 + $0xd8] sm:$0xf]
        %v624 = vld [vmem:[%s520 + $0xdc] sm:$0xf]
        %v625 = vld [vmem:[%s520 + $0xe0] sm:$0xf]
        %v626 = vld [vmem:[%s520 + $0xe4] sm:$0xf]
        %v627 = vld [vmem:[%s520 + $0xe8] sm:$0xf]
        %v628 = vld [vmem:[%s520 + $0xec] sm:$0xf]
        %v629 = vld [vmem:[%s520 + $0xf0] sm:$0xf]
        %v630 = vld [vmem:[%s520 + $0xf4] sm:$0xf]
        %v631 = vld [vmem:[%s520 + $0xf8] sm:$0xf]
        %v632 = vld [vmem:[%s520 + $0xfc] sm:$0xf]
        %v637 = vunpack.c.l.b16 %v565
        %v638 = vunpack.c.h.b16 %v565
        %v639 = vunpack.c.l.b16 %v566
        %v640 = vunpack.c.h.b16 %v566
        %v641 = vunpack.c.l.b16 %v567
        %v642 = vunpack.c.h.b16 %v567
        %v643 = vunpack.c.l.b16 %v568
        %v644 = vunpack.c.h.b16 %v568
        %v645 = vpack.c.b16 %v641, %v637
        %v646 = vpack.c.b16 %v642, %v638
        %v647 = vpack.c.b16 %v643, %v639
        %v648 = vpack.c.b16 %v644, %v640
        %v717 = vunpack.c.l.b16 %v569
        %v718 = vunpack.c.l.b16 %v570
        %v719 = vunpack.c.l.b16 %v571
        %v720 = vunpack.c.l.b16 %v572
        %v721 = vunpack.c.l.b16 %v573
        %v722 = vunpack.c.l.b16 %v574
        %v723 = vunpack.c.l.b16 %v575
        %v724 = vunpack.c.l.b16 %v576
        %v725 = vunpack.c.l.b16 %v577
        %v726 = vunpack.c.l.b16 %v578
        %v727 = vunpack.c.l.b16 %v579
        %v728 = vunpack.c.l.b16 %v580
        %v729 = vunpack.c.l.b16 %v581
        %v730 = vunpack.c.l.b16 %v582
        %v731 = vunpack.c.l.b16 %v583
        %v732 = vunpack.c.l.b16 %v584
        %v733 = vunpack.c.l.b16 %v585
        %v734 = vunpack.c.l.b16 %v586
        %v735 = vunpack.c.l.b16 %v587
        %v736 = vunpack.c.l.b16 %v588
        %v737 = vunpack.c.l.b16 %v589
        %v738 = vunpack.c.l.b16 %v590
        %v739 = vunpack.c.l.b16 %v591
        %v740 = vunpack.c.l.b16 %v592
        %v741 = vunpack.c.l.b16 %v593
        %v742 = vunpack.c.l.b16 %v594
        %v743 = vunpack.c.l.b16 %v595
        %v744 = vunpack.c.l.b16 %v596
        %v745 = vunpack.c.l.b16 %v597
        %v746 = vunpack.c.l.b16 %v598
        %v747 = vunpack.c.l.b16 %v599
        %v748 = vunpack.c.l.b16 %v600
        %v749 = vunpack.c.l.b16 %v601
        %v750 = vunpack.c.l.b16 %v602
        %v751 = vunpack.c.l.b16 %v603
        %v752 = vunpack.c.l.b16 %v604
        %v753 = vunpack.c.l.b16 %v605
        %v754 = vunpack.c.l.b16 %v606
        %v755 = vunpack.c.l.b16 %v607
        %v756 = vunpack.c.l.b16 %v608
        %v757 = vunpack.c.l.b16 %v609
        %v758 = vunpack.c.l.b16 %v610
        %v759 = vunpack.c.l.b16 %v611
        %v760 = vunpack.c.l.b16 %v612
        %v761 = vunpack.c.l.b16 %v613
        %v762 = vunpack.c.l.b16 %v614
        %v763 = vunpack.c.l.b16 %v615
        %v764 = vunpack.c.l.b16 %v616
        %v765 = vunpack.c.l.b16 %v617
        %v766 = vunpack.c.l.b16 %v618
        %v767 = vunpack.c.l.b16 %v619
        %v768 = vunpack.c.l.b16 %v620
        %v769 = vunpack.c.l.b16 %v621
        %v770 = vunpack.c.l.b16 %v622
        %v771 = vunpack.c.l.b16 %v623
        %v772 = vunpack.c.l.b16 %v624
        %v773 = vunpack.c.l.b16 %v625
        %v774 = vunpack.c.l.b16 %v626
        %v775 = vunpack.c.l.b16 %v627
        %v776 = vunpack.c.l.b16 %v628
        %v777 = vunpack.c.l.b16 %v629
        %v778 = vunpack.c.l.b16 %v630
        %v779 = vunpack.c.l.b16 %v631
        %v780 = vunpack.c.l.b16 %v632
        %v781 = vpack.c.b16 %v718, %v717
        %v782 = vpack.c.b16 %v720, %v719
        %v783 = vpack.c.b16 %v722, %v721
        %v784 = vpack.c.b16 %v724, %v723
        %v785 = vpack.c.b16 %v726, %v725
        %v786 = vpack.c.b16 %v728, %v727
        %v787 = vpack.c.b16 %v730, %v729
        %v788 = vpack.c.b16 %v732, %v731
        %v789 = vpack.c.b16 %v734, %v733
        %v790 = vpack.c.b16 %v736, %v735
        %v791 = vpack.c.b16 %v738, %v737
        %v792 = vpack.c.b16 %v740, %v739
        %v793 = vpack.c.b16 %v742, %v741
        %v794 = vpack.c.b16 %v744, %v743
        %v795 = vpack.c.b16 %v746, %v745
        %v796 = vpack.c.b16 %v748, %v747
        %v797 = vpack.c.b16 %v750, %v749
        %v798 = vpack.c.b16 %v752, %v751
        %v799 = vpack.c.b16 %v754, %v753
        %v800 = vpack.c.b16 %v756, %v755
        %v801 = vpack.c.b16 %v758, %v757
        %v802 = vpack.c.b16 %v760, %v759
        %v803 = vpack.c.b16 %v762, %v761
        %v804 = vpack.c.b16 %v764, %v763
        %v805 = vpack.c.b16 %v766, %v765
        %v806 = vpack.c.b16 %v768, %v767
        %v807 = vpack.c.b16 %v770, %v769
        %v808 = vpack.c.b16 %v772, %v771
        %v809 = vpack.c.b16 %v774, %v773
        %v810 = vpack.c.b16 %v776, %v775
        %v811 = vpack.c.b16 %v778, %v777
        %v812 = vpack.c.b16 %v780, %v779
        %845 = vmatprep.subr.bf16.mxu0 0
        %846 = vmatpush1.bf16.msra.mxu0 %v781
        %847 = vmatprep.subr.bf16.mxu0 0
        %848 = vmatpush1.bf16.msra.mxu0 %v782
        %849 = vmatprep.subr.bf16.mxu0 0
        %850 = vmatpush1.bf16.msra.mxu0 %v783
        %851 = vmatprep.subr.bf16.mxu0 0
        %852 = vmatpush1.bf16.msra.mxu0 %v784
        %853 = vmatprep.subr.bf16.mxu0 0
        %854 = vmatpush1.bf16.msra.mxu0 %v785
        %855 = vmatprep.subr.bf16.mxu0 0
        %856 = vmatpush1.bf16.msra.mxu0 %v786
        %857 = vmatprep.subr.bf16.mxu0 0
        %858 = vmatpush1.bf16.msra.mxu0 %v787
        %859 = vmatprep.subr.bf16.mxu0 0
        %860 = vmatpush1.bf16.msra.mxu0 %v788
        %861 = vmatprep.subr.bf16.mxu0 0
        %862 = vmatpush1.bf16.msra.mxu0 %v789
        %863 = vmatprep.subr.bf16.mxu0 0
        %864 = vmatpush1.bf16.msra.mxu0 %v790
        %865 = vmatprep.subr.bf16.mxu0 0
        %866 = vmatpush1.bf16.msra.mxu0 %v791
        %867 = vmatprep.subr.bf16.mxu0 0
        %868 = vmatpush1.bf16.msra.mxu0 %v792
        %869 = vmatprep.subr.bf16.mxu0 0
        %870 = vmatpush1.bf16.msra.mxu0 %v793
        %871 = vmatprep.subr.bf16.mxu0 0
        %872 = vmatpush1.bf16.msra.mxu0 %v794
        %873 = vmatprep.subr.bf16.mxu0 0
        %874 = vmatpush1.bf16.msra.mxu0 %v795
        %875 = vmatprep.subr.bf16.mxu0 0
        %876 = vmatpush1.bf16.msra.mxu0 %v796
        %877 = vmatprep.mubr.bf16.mxu0 %v646
        %878 = vmatmul.mubr.bf16.gmra.mrb[0].mxu0 %v645
        %v879 = vpop.f32.mrb[0].mxu0
        %v880 = vadd.f32 0.0, %v879
        %v881 = vpop.f32.mrb[0].mxu0
        %v882 = vpop.f32.mrb[0].mxu0
        %v883 = vadd.f32 0.0, %v882
        %v884 = vpop.f32.mrb[0].mxu0
        %885 = vdwg.mxu0
        %886 = vmatprep.subr.bf16.mxu0 0
        %887 = vmatpush1.bf16.msra.mxu0 %v797
        %888 = vmatprep.subr.bf16.mxu0 0
        %889 = vmatpush1.bf16.msra.mxu0 %v798
        %890 = vmatprep.subr.bf16.mxu0 0
        %891 = vmatpush1.bf16.msra.mxu0 %v799
        %892 = vmatprep.subr.bf16.mxu0 0
        %893 = vmatpush1.bf16.msra.mxu0 %v800
        %894 = vmatprep.subr.bf16.mxu0 0
        %895 = vmatpush1.bf16.msra.mxu0 %v801
        %896 = vmatprep.subr.bf16.mxu0 0
        %897 = vmatpush1.bf16.msra.mxu0 %v802
        %898 = vmatprep.subr.bf16.mxu0 0
        %899 = vmatpush1.bf16.msra.mxu0 %v803
        %900 = vmatprep.subr.bf16.mxu0 0
        %901 = vmatpush1.bf16.msra.mxu0 %v804
        %902 = vmatprep.subr.bf16.mxu0 0
        %903 = vmatpush1.bf16.msra.mxu0 %v805
        %904 = vmatprep.subr.bf16.mxu0 0
        %905 = vmatpush1.bf16.msra.mxu0 %v806
        %906 = vmatprep.subr.bf16.mxu0 0
        %907 = vmatpush1.bf16.msra.mxu0 %v807
        %908 = vmatprep.subr.bf16.mxu0 0
        %909 = vmatpush1.bf16.msra.mxu0 %v808
        %910 = vmatprep.subr.bf16.mxu0 0
        %911 = vmatpush1.bf16.msra.mxu0 %v809
        %912 = vmatprep.subr.bf16.mxu0 0
        %913 = vmatpush1.bf16.msra.mxu0 %v810
        %914 = vmatprep.subr.bf16.mxu0 0
        %915 = vmatpush1.bf16.msra.mxu0 %v811
        %916 = vmatprep.subr.bf16.mxu0 0
        %917 = vmatpush1.bf16.msra.mxu0 %v812
        %918 = vmatprep.mubr.bf16.mxu0 %v648
        %919 = vmatmul.mubr.bf16.gmra.mrb[0].mxu0 %v647
        %v920 = vpop.f32.mrb[0].mxu0
        %v921 = vadd.f32 %v880, %v920
        %v922 = vpop.f32.mrb[0].mxu0
        %v923 = vpop.f32.mrb[0].mxu0
        %v924 = vadd.f32 %v883, %v923
        %v925 = vpop.f32.mrb[0].mxu0
        %926 = vdwg.mxu0
        %v927 = vadd.f32 %v563, %v921
        %v928 = vadd.f32 %v564, %v924
        %929 = vst [vmem:[%s547] sm:$0xff] %v927
        %930 = vst [vmem:[%s547 + $0x8] sm:$0xff] %v928
        %p931 = scmp.eq.s32.totalorder %s21, 8
        // Predicated region
        $region101: #{squeezenet_forward.53} parent=87 // pred_check
          %p932 = pneg %p931
        $region102: #{squeezenet_forward.53} parent=87 // pred_check_branch
          %934 = sbr.rel (%p932) target = $region104
        $region103: #{squeezenet_forward.53} parent=87 // pred_region
          %v935 = vld [vmem:[%s547] sm:$0xff]
          %v936 = vld [vmem:[%s547 + $0x8] sm:$0xff]
          %v937 = vld [vmem:[%s554] sm:$0x1]
          %v938 = vlaneseq
          %v939 = vshrl.u32 %v938, 7
          %v940 = vsub.s32 0, %v939
          %v941 = vrot.slane %v937, %v940
          %v942 = vadd.f32 %v935, %v941
          %v943 = vadd.f32 %v936, %v941
          %944 = vst [vmem:[%s547] sm:$0xff] %v942
          %945 = vst [vmem:[%s547 + $0x8] sm:$0xff] %v943
        $region104: #{squeezenet_forward.53} parent=87 // pred_fallthru
          _
        %s946 = sand.u32 %s125, 1
        %s947 = sand.u32 %s125, 1
        %s948 = smul.addr %s947, 16
        %s949 = scalar_lea.vmem [#allocation4], %s948
        // Predicated region
        $region105: #{squeezenet_forward.53} parent=87 // pred_check
          %p950 = pneg %p135
        $region106: #{squeezenet_forward.53} parent=87 // pred_check_branch
          %952 = sbr.rel (%p950) target = $region108
        $region107: #{squeezenet_forward.53} parent=87 // pred_region
          %s953 = smul.u32 2, %s19
          %s954 = smul.addr %s953, 4
          %s955 = sadd.s32 %s20, %s954
          %s956 = smul.addr %s955, 8
          %s957 = scalar_lea.vmem %s3, %s956
          // Predicated region
          $region109: #{squeezenet_forward.53} parent=107 // pred_check
            _
          $region110: #{squeezenet_forward.53} parent=107 // pred_check_branch
            %959 = sbr.rel (0) target = $region112
          $region111: #{squeezenet_forward.53} parent=107 // pred_region
            // Predicated region
            $region113: #{squeezenet_forward.53} parent=111 // pred_check
              _
            $region114: #{squeezenet_forward.53} parent=111 // pred_check_branch
              %961 = sbr.rel (0) target = $region116
            $region115: #{squeezenet_forward.53} parent=111 // pred_region
              // Predicated region
              $region128: #{squeezenet_forward.53} parent=115 // pred_check
                _
              $region129: #{squeezenet_forward.53} parent=115 // pred_check_branch
                %978 = sbr.rel (0) target = $region131
              $region130: #{squeezenet_forward.53} parent=115 // pred_region
                loop: start=0, step=1, limit=1
                $region132: #{squeezenet_forward.53} parent=130 // loop_pre_header
                  _
                $region133: #{squeezenet_forward.53} parent=130 // loop_header
                  %s980 = sphi 0, %s984
                  %p981 = scmp.ge.s32.totalorder %s980, 1
                  %s985 = sphi %s949, %s949
                  %s986 = sphi %s957, %s957
                $region134: #{squeezenet_forward.53} parent=130 // loop_header_branch
                  %983 = sbr.rel (%p981) target = $region138
                $region135: #{squeezenet_forward.53} parent=130 // loop_body
                  %v987 = vld [vmem:[%s985] sm:$0xff]
                  %988 = vst [vmem:[%s986] sm:$0xff] %v987
                  %v989 = vld [vmem:[%s985 + $0x8] sm:$0xff]
                  %990 = vst [vmem:[%s986 + $0x20] sm:$0xff] %v989
                $region136: #{squeezenet_forward.53} parent=130 // loop_footer
                  %s984 = sadd.s32 1, %s980
                $region137: #{squeezenet_forward.53} parent=130 // loop_footer_branch
                  %979 = sbr.rel target = $region133
                $region138: #{squeezenet_forward.53} parent=130 // loop_exit
                  _
              $region131: #{squeezenet_forward.53} parent=115 // pred_fallthru
                _
              // Predicated region
              $region139: #{squeezenet_forward.53} parent=115 // pred_check
                _
              $region140: #{squeezenet_forward.53} parent=115 // pred_check_branch
                %992 = sbr.rel target = $region142
              $region141: #{squeezenet_forward.53} parent=115 // pred_region
                _
              $region142: #{squeezenet_forward.53} parent=115 // pred_fallthru
                _
            $region116: #{squeezenet_forward.53} parent=111 // pred_fallthru
              _
            // Predicated region
            $region117: #{squeezenet_forward.53} parent=111 // pred_check
              _
            $region118: #{squeezenet_forward.53} parent=111 // pred_check_branch
              %963 = sbr.rel target = $region120
            $region119: #{squeezenet_forward.53} parent=111 // pred_region
              loop: start=0, step=1, limit=1
              $region121: #{squeezenet_forward.53} parent=119 // loop_pre_header
                _
              $region122: #{squeezenet_forward.53} parent=119 // loop_header
                %s966 = sphi 0, %s970
                %p967 = scmp.ge.s32.totalorder %s966, 1
                %s971 = sphi %s949, %s949
                %s972 = sphi %s957, %s957
              $region123: #{squeezenet_forward.53} parent=119 // loop_header_branch
                %969 = sbr.rel (%p967) target = $region127
              $region124: #{squeezenet_forward.53} parent=119 // loop_body
                %v973 = vld [vmem:[%s971] sm:$0xff]
                %974 = vst [vmem:[%s972] sm:$0xff] %v973
                %v975 = vld [vmem:[%s971 + $0x8] sm:$0xff]
                %976 = vst [vmem:[%s972 + $0x20] sm:$0xff] %v975
              $region125: #{squeezenet_forward.53} parent=119 // loop_footer
                %s970 = sadd.s32 1, %s966
              $region126: #{squeezenet_forward.53} parent=119 // loop_footer_branch
                %965 = sbr.rel target = $region122
              $region127: #{squeezenet_forward.53} parent=119 // loop_exit
                _
            $region120: #{squeezenet_forward.53} parent=111 // pred_fallthru
              _
          $region112: #{squeezenet_forward.53} parent=107 // pred_fallthru
            _
          %993 = vnop
        $region108: #{squeezenet_forward.53} parent=87 // pred_fallthru
          _
      $region88: #{squeezenet_forward.53} parent=5 // pred_fallthru
        _
      %p994 = scmp.le.s32.totalorder 2, %s9
      // Predicated region
      $region143: #{squeezenet_forward.53} parent=5 // pred_check
        %p995 = pneg %p994
      $region144: #{squeezenet_forward.53} parent=5 // pred_check_branch
        %997 = sbr.rel (%p995) target = $region146
      $region145: #{squeezenet_forward.53} parent=5 // pred_region
        %s998 = ssub.s32 %s9, 2
        // Predicated region
        $region147: #{squeezenet_forward.53} parent=145 // pred_check
          %p999 = pneg %p141
        $region148: #{squeezenet_forward.53} parent=145 // pred_check_branch
          %1001 = sbr.rel (%p999) target = $region150
        $region149: #{squeezenet_forward.53} parent=145 // pred_region
          %s1002 = sand.u32 %s126, 1
          %s1003 = sand.u32 %s126, 1
          %s1004 = smul.addr %s1003, 16
          %s1005 = scalar_lea.vmem [#allocation4], %s1004
        $region150: #{squeezenet_forward.53} parent=145 // pred_fallthru
          _
      $region146: #{squeezenet_forward.53} parent=5 // pred_fallthru
        _
    $region6: #{squeezenet_forward.53} parent=1 // loop_footer
      %s13 = sadd.s32 1, %s9
    $region7: #{squeezenet_forward.53} parent=1 // loop_footer_branch
      %8 = sbr.rel target = $region3
    $region8: #{squeezenet_forward.53} parent=1 // loop_exit
      _

// kernel: squeeze.1
$region0: #{squeeze.1}
  %s0 = inlined_call_operand.vmem [shape: f32[768], index: 0, kind: input, shape index: {}]
  %s1 = inlined_call_operand.vmem [shape: f32[3,256], index: 1, kind: output, shape index: {}]
  $region1: #{squeeze.1} parent=0
    #allocation0 [shape = 'u8[8192]{0}', space=vmem, size = 0x2000, scoped, tag = 'scoped mem for output reshape']
    %v2 = vld [vmem:[%s0] sm:$0x3f]
    %3 = vst [vmem:[#allocation0] ss:$8 sm:$0x3] %v2
    %s4 = scalar_lea.vmem [#allocation0], 4294967281
    %5 = vst [vmem:[%s4] ss:$8 sm:$0xc] %v2
    %s6 = scalar_lea.vmem [#allocation0], 4294967266
    %7 = vst [vmem:[%s6] ss:$8 sm:$0x30] %v2
    %s9 = sshllo.u32 0, 4
    %v11 = vld [vmem:[#allocation0] sm:%s9]
    %s12 = sshllo.u32 0, 4
    %13 = vst [vmem:[%s1] sm:%s12] %v11
    %s14 = scalar_lea.vmem [#allocation0], 8
    %v15 = vld [vmem:[%s14] sm:%s9]
    %s16 = sshllo.u32 0, 4
    %s17 = scalar_lea.vmem %s1, 4
    %18 = vst [vmem:[%s17] sm:%s16] %v15

// kernel: squeezenet_forward.55
$region0: #{squeezenet_forward.55}
  #allocation0 [shape = 'u32[]', space=smem, size = 0x4, offset = 0x4, fixed_abs, tag = 'smem constant byte address 0x4 - core index']
  #allocation1 [shape = 'u32[144,128]{1,0:T(1,128)}', space=vmem, size = 0x12000, scoped, tag = 'internal scratch']
  %s0 = inlined_call_operand.vmem [shape: f32[3,256], index: 0, kind: input, shape index: {}]
  %s1 = inlined_call_operand.vmem [shape: f32[3,256], index: 1, kind: output, shape index: {}]
  %s2 = sld [smem:[#allocation0]]
  $region14: #{squeezenet_forward.55} parent=0
    _
  %s4 = ssub.s32 1, %s2
  %s5 = scalar_select 0, %s4, %s2
  // Predicated region
  $region2: #{squeezenet_forward.55} parent=0 // pred_check
    _
  $region3: #{squeezenet_forward.55} parent=0 // pred_check_branch
    %7 = sbr.rel (0) target = $region5
  $region4: #{squeezenet_forward.55} parent=0 // pred_region
    _
  $region5: #{squeezenet_forward.55} parent=0 // pred_fallthru
    _
  %v8 = vld [vmem:[%s0] sm:$0x77]
  %v10 = vcombine.high %v8, %v8
  %vm12 = vcmask 1042432
  %v13 = vsel %vm12, %v8, -inf
  %v14 = vsel %vm12, %v10, -inf
  %v15 = vmax.f32 %v13, %v14
  %16 = vmax.xlane.f32.xlu0 %v15
  %v17 = vpop.xlane.xlu0 %16
  %v20 = vunpack.c.l.s4 839922192
  %v21 = vunpack.c.0.s8 %v20
  %v22 = vlaneseq
  %v23 = vshrl.u32 %v22, 7
  %v24 = vsub.s32 %v21, %v23
  %v25 = vrot.slane %v17, %v24
  %v27 = vsub.f32 %v8, %v25
  %v28 = vmul.f32 %v27, 1.442695
  %v29 = vpow.pop %v28
  %v31 = vcombine.high %v29, %v29
  %v33 = vsel %vm12, %v29, 0.0
  %v34 = vsel %vm12, %v31, 0.0
  %v35 = vadd.f32 %v33, %v34
  %36 = vadd.xlane.f32.xlu0 %v35
  %v37 = vpop.xlane.xlu0 %36
  %v40 = vunpack.c.l.s4 839922192
  %v41 = vunpack.c.0.s8 %v40
  %v42 = vlaneseq
  %v43 = vshrl.u32 %v42, 7
  %v44 = vsub.s32 %v41, %v43
  %v45 = vrot.slane %v37, %v44
  %v47 = vrcp.pop %v45
  %v48 = vmul.f32 %v29, %v47
  %49 = vst [vmem:[%s1] sm:$0x77] %v48
  // Predicated region
  $region6: #{squeezenet_forward.55} parent=0 // pred_check
    _
  $region7: #{squeezenet_forward.55} parent=0 // pred_check_branch
    %51 = sbr.rel (0) target = $region9
  $region8: #{squeezenet_forward.55} parent=0 // pred_region
    _
  $region9: #{squeezenet_forward.55} parent=0 // pred_fallthru
    _
  // Predicated region
  $region10: #{squeezenet_forward.55} parent=0 // pred_check
    _
  $region11: #{squeezenet_forward.55} parent=0 // pred_check_branch
    %53 = sbr.rel (0) target = $region13
  $region12: #{squeezenet_forward.55} parent=0 // pred_region
    _
  $region13: #{squeezenet_forward.55} parent=0 // pred_fallthru
    _

// kernel: squeezenet_forward.54
$region0: #{squeezenet_forward.54}
  #allocation0 [shape = 'u32[]', space=smem, size = 0x4, offset = 0x4, fixed_abs, tag = 'smem constant byte address 0x4 - core index']
  #allocation1 [shape = 'u32[144,128]{1,0:T(1,128)}', space=vmem, size = 0x12000, scoped, tag = 'internal scratch']
  %s0 = inlined_call_operand.vmem [shape: bf16[8,9728], index: 0, kind: input, shape index: {}]
  %s1 = inlined_call_operand.vmem [shape: bf16[9728,768], index: 1, kind: input, shape index: {}]
  %s2 = inlined_call_operand.vmem [shape: f32[8,768], index: 2, kind: input, shape index: {}]
  %s3 = inlined_call_operand.vmem [shape: f32[8,768], index: 3, kind: output, shape index: {}]
  %s4 = sld [smem:[#allocation0]]
  $region94: #{squeezenet_forward.54} parent=0
    _
  %s6 = ssub.s32 1, %s4
  %s7 = scalar_select 0, %s6, %s4
  $region1: #{squeezenet_forward.54} parent=0
    #allocation2 [shape = 'u8[262144]{0}', space=vmem, size = 0x40000, scoped, tag = 'input window, operand 1']
    loop: start=0, step=1, limit=116
    $region2: #{squeezenet_forward.54} parent=1 // loop_pre_header
      _
    $region3: #{squeezenet_forward.54} parent=1 // loop_header
      %s9 = sphi 0, %s13
      %p10 = scmp.ge.s32.totalorder %s9, 116
      %s16 = sphi 0, %s35
      %s17 = sphi 0, %s31
      %s18 = sphi 0, %s27
      %s19 = sphi 0, %s16
      %s20 = sphi 0, %s17
      %s21 = sphi 0, %s18
      %s22 = sphi 0, %s19
      %s23 = sphi 0, %s20
      %s24 = sphi 0, %s21
      %s40 = sphi 0, %s42
      %s43 = sphi 0, %s40
      %s44 = sphi 0, %s43
      %s60 = sphi 0, %s44
      %s68 = sphi 0, %s70
      %s71 = sphi 0, %s68
      %s72 = sphi 0, %s71
      %s88 = sphi 0, %s72
      %s94 = sphi 0, %s96
      %s97 = sphi 0, %s94
      %s98 = sphi 0, %s97
      %s114 = sphi 0, %s98
      %s122 = sphi 0, %s124
      %s125 = sphi 0, %s122
      %s126 = sphi 0, %s125
      %s142 = sphi 0, %s126
    $region4: #{squeezenet_forward.54} parent=1 // loop_header_branch
      %12 = sbr.rel (%p10) target = $region8
    $region5: #{squeezenet_forward.54} parent=1 // loop_body
      %s14 = ssub.s32 %s9, 1
      %s15 = ssub.s32 %s9, 2
      %s25 = sadd.s32 1, %s18
      %p26 = scmp.ge.s32.totalorder %s25, 19
      %s27 = scalar_select %p26, 0, %s25
      %s28 = sadd.s32 1, %s17
      %s29 = scalar_select %p26, %s28, %s17
      %p30 = scmp.ge.s32.totalorder %s29, 6
      %s31 = scalar_select %p30, 0, %s29
      %s32 = sadd.s32 1, %s16
      %s33 = scalar_select %p30, %s32, %s16
      %p34 = scmp.ge.s32.totalorder %s33, 1
      %s35 = scalar_select %p34, 0, %s33
      %s36 = ssub.s32 %s16, %s35
      %s37 = ssub.s32 %s18, %s27
      %s38 = sor.u32 %s36, %s37
      %p39 = scmp.eq.s32.totalorder %s38, 0
      %s41 = sadd.s32 %s40, 1
      %s42 = scalar_select %p39, %s40, %s41
      %p45 = pneg %p39
      %p46 = scmp.eq.s32.totalorder %s9, 113
      %p47 = por %p45, %p46
      %p48 = scmp.ne.s32.totalorder %s40, %s43
      %p49 = scmp.eq.s32.totalorder %s9, 0
      %p50 = por %p48, %p49
      %p51 = scmp.ne.s32.totalorder %s40, %s43
      %p52 = scmp.eq.s32.totalorder %s14, 113
      %p53 = por %p51, %p52
      %p54 = scmp.ne.s32.totalorder %s43, %s44
      %p55 = scmp.eq.s32.totalorder %s14, 0
      %p56 = por %p54, %p55
      %p57 = scmp.ne.s32.totalorder %s43, %s44
      %p58 = scmp.eq.s32.totalorder %s15, 113
      %p59 = por %p57, %p58
      %p61 = scmp.ne.s32.totalorder %s44, %s60
      %p62 = scmp.eq.s32.totalorder %s15, 0
      %p63 = por %p61, %p62
      %s64 = ssub.s32 %s18, %s27
      %s65 = ssub.s32 %s17, %s31
      %s66 = sor.u32 %s64, %s65
      %p67 = scmp.eq.s32.totalorder %s66, 0
      %s69 = sadd.s32 %s68, 1
      %s70 = scalar_select %p67, %s68, %s69
      %p73 = pneg %p67
      %p74 = scmp.eq.s32.totalorder %s9, 113
      %p75 = por %p73, %p74
      %p76 = scmp.ne.s32.totalorder %s68, %s71
      %p77 = scmp.eq.s32.totalorder %s9, 0
      %p78 = por %p76, %p77
      %p79 = scmp.ne.s32.totalorder %s68, %s71
      %p80 = scmp.eq.s32.totalorder %s14, 113
      %p81 = por %p79, %p80
      %p82 = scmp.ne.s32.totalorder %s71, %s72
      %p83 = scmp.eq.s32.totalorder %s14, 0
      %p84 = por %p82, %p83
      %p85 = scmp.ne.s32.totalorder %s71, %s72
      %p86 = scmp.eq.s32.totalorder %s15, 113
      %p87 = por %p85, %p86
      %p89 = scmp.ne.s32.totalorder %s72, %s88
      %p90 = scmp.eq.s32.totalorder %s15, 0
      %p91 = por %p89, %p90
      %s92 = ssub.s32 %s17, %s31
      %p93 = scmp.eq.s32.totalorder %s92, 0
      %s95 = sadd.s32 %s94, 1
      %s96 = scalar_select %p93, %s94, %s95
      %p99 = pneg %p93
      %p100 = scmp.eq.s32.totalorder %s9, 113
      %p101 = por %p99, %p100
      %p102 = scmp.ne.s32.totalorder %s94, %s97
      %p103 = scmp.eq.s32.totalorder %s9, 0
      %p104 = por %p102, %p103
      %p105 = scmp.ne.s32.totalorder %s94, %s97
      %p106 = scmp.eq.s32.totalorder %s14, 113
      %p107 = por %p105, %p106
      %p108 = scmp.ne.s32.totalorder %s97, %s98
      %p109 = scmp.eq.s32.totalorder %s14, 0
      %p110 = por %p108, %p109
      %p111 = scmp.ne.s32.totalorder %s97, %s98
      %p112 = scmp.eq.s32.totalorder %s15, 113
      %p113 = por %p111, %p112
      %p115 = scmp.ne.s32.totalorder %s98, %s114
      %p116 = scmp.eq.s32.totalorder %s15, 0
      %p117 = por %p115, %p116
      %s118 = ssub.s32 %s16, %s35
      %s119 = ssub.s32 %s17, %s31
      %s120 = sor.u32 %s118, %s119
      %p121 = scmp.eq.s32.totalorder %s120, 0
      %s123 = sadd.s32 %s122, 1
      %s124 = scalar_select %p121, %s122, %s123
      %p127 = pneg %p121
      %p128 = scmp.eq.s32.totalorder %s9, 113
      %p129 = por %p127, %p128
      %p130 = scmp.ne.s32.totalorder %s122, %s125
      %p131 = scmp.eq.s32.totalorder %s9, 0
      %p132 = por %p130, %p131
      %p133 = scmp.ne.s32.totalorder %s122, %s125
      %p134 = scmp.eq.s32.totalorder %s14, 113
      %p135 = por %p133, %p134
      %p136 = scmp.ne.s32.totalorder %s125, %s126
      %p137 = scmp.eq.s32.totalorder %s14, 0
      %p138 = por %p136, %p137
      %p139 = scmp.ne.s32.totalorder %s125, %s126
      %p140 = scmp.eq.s32.totalorder %s15, 113
      %p141 = por %p139, %p140
      %p143 = scmp.ne.s32.totalorder %s126, %s142
      %p144 = scmp.eq.s32.totalorder %s15, 0
      %p145 = por %p143, %p144
      %p146 = scmp.le.s32.totalorder 1, %s9
      %p147 = scmp.lt.s32.totalorder %s9, 115
      %p148 = pnand %p146, %p147
      %p149 = pneg %p148
      // Predicated region
      $region9: #{squeezenet_forward.54} parent=5 // pred_check
        _
      $region10: #{squeezenet_forward.54} parent=5 // pred_check_branch
        %151 = sbr.rel (%p148) target = $region12
      $region11: #{squeezenet_forward.54} parent=5 // pred_region
        %s152 = ssub.s32 %s9, 1
      $region12: #{squeezenet_forward.54} parent=5 // pred_fallthru
        _
      %p153 = scmp.lt.s32.totalorder %s9, 114
      // Predicated region
      $region13: #{squeezenet_forward.54} parent=5 // pred_check
        %p154 = pneg %p153
      $region14: #{squeezenet_forward.54} parent=5 // pred_check_branch
        %156 = sbr.rel (%p154) target = $region16
      $region15: #{squeezenet_forward.54} parent=5 // pred_region
        // Predicated region
        $region17: #{squeezenet_forward.54} parent=15 // pred_check
          %p157 = pneg %p50
        $region18: #{squeezenet_forward.54} parent=15 // pred_check_branch
          %159 = sbr.rel (%p157) target = $region20
        $region19: #{squeezenet_forward.54} parent=15 // pred_region
          %s160 = smul.u32 4, %s18
          %p161 = scmp.lt.s32.totalorder %s16, 0
          %s162 = scalar_select %p161, %s16, 0
          %p163 = scmp.lt.s32.totalorder %s160, 75
          %s164 = scalar_select %p163, %s160, 75
          %s165 = smul.addr %s162, 76
          %s166 = sadd.s32 %s164, %s165
          %s167 = smul.addr %s166, 4
          %s168 = scalar_lea.vmem %s0, %s167
          %s169 = smul.u32 4, %s18
        $region20: #{squeezenet_forward.54} parent=15 // pred_fallthru
          _
        // Predicated region
        $region21: #{squeezenet_forward.54} parent=15 // pred_check
          %p170 = pneg %p78
        $region22: #{squeezenet_forward.54} parent=15 // pred_check_branch
          %172 = sbr.rel (%p170) target = $region24
        $region23: #{squeezenet_forward.54} parent=15 // pred_region
          %s173 = sand.u32 %s68, 1
          %s174 = sand.u32 %s68, 1
          %s175 = smul.addr %s174, 256
          %s176 = scalar_lea.vmem [#allocation2], %s175
          %s177 = smul.u32 64, %s18
          %s178 = smul.addr %s177, 6
          %s179 = sadd.s32 %s17, %s178
          %s180 = smul.addr %s179, 4
          %s181 = scalar_lea.vmem %s1, %s180
          // Predicated region
          $region25: #{squeezenet_forward.54} parent=23 // pred_check
            _
          $region26: #{squeezenet_forward.54} parent=23 // pred_check_branch
            %183 = sbr.rel (0) target = $region28
          $region27: #{squeezenet_forward.54} parent=23 // pred_region
            // Predicated region
            $region29: #{squeezenet_forward.54} parent=27 // pred_check
              _
            $region30: #{squeezenet_forward.54} parent=27 // pred_check_branch
              %185 = sbr.rel target = $region32
            $region31: #{squeezenet_forward.54} parent=27 // pred_region
              // Predicated region
              $region44: #{squeezenet_forward.54} parent=31 // pred_check
                _
              $region45: #{squeezenet_forward.54} parent=31 // pred_check_branch
                %326 = sbr.rel (0) target = $region47
              $region46: #{squeezenet_forward.54} parent=31 // pred_region
                loop: start=0, step=1, limit=1
                $region48: #{squeezenet_forward.54} parent=46 // loop_pre_header
                  _
                $region49: #{squeezenet_forward.54} parent=46 // loop_header
                  %s328 = sphi 0, %s332
                  %p329 = scmp.ge.s32.totalorder %s328, 1
                  %s333 = sphi %s181, %s181
                  %s334 = sphi %s176, %s176
                $region50: #{squeezenet_forward.54} parent=46 // loop_header_branch
                  %331 = sbr.rel (%p329) target = $region54
                $region51: #{squeezenet_forward.54} parent=46 // loop_body
                  _
                $region52: #{squeezenet_forward.54} parent=46 // loop_footer
                  %s332 = sadd.s32 1, %s328
                $region53: #{squeezenet_forward.54} parent=46 // loop_footer_branch
                  %327 = sbr.rel target = $region49
                $region54: #{squeezenet_forward.54} parent=46 // loop_exit
                  _
                loop: start=0, step=1, limit=1
                $region55: #{squeezenet_forward.54} parent=46 // loop_pre_header
                  _
                $region56: #{squeezenet_forward.54} parent=46 // loop_header
                  %s337 = sphi 0, %s341
                  %p338 = scmp.ge.s32.totalorder %s337, 1
                  %s342 = sphi %s181, %s181
                  %s343 = sphi %s176, %s176
                $region57: #{squeezenet_forward.54} parent=46 // loop_header_branch
                  %340 = sbr.rel (%p338) target = $region61
                $region58: #{squeezenet_forward.54} parent=46 // loop_body
                  %v344 = vld [vmem:[%s342] sm:$0xf]
                  %345 = vst [vmem:[%s343] sm:$0xf] %v344
                  %v346 = vld [vmem:[%s342 + $0x18] sm:$0xf]
                  %347 = vst [vmem:[%s343 + $0x4] sm:$0xf] %v346
                  %v348 = vld [vmem:[%s342 + $0x30] sm:$0xf]
                  %349 = vst [vmem:[%s343 + $0x8] sm:$0xf] %v348
                  %v350 = vld [vmem:[%s342 + $0x48] sm:$0xf]
                  %351 = vst [vmem:[%s343 + $0xc] sm:$0xf] %v350
                  %v352 = vld [vmem:[%s342 + $0x60] sm:$0xf]
                  %353 = vst [vmem:[%s343 + $0x10] sm:$0xf] %v352
                  %v354 = vld [vmem:[%s342 + $0x78] sm:$0xf]
                  %355 = vst [vmem:[%s343 + $0x14] sm:$0xf] %v354
                  %v356 = vld [vmem:[%s342 + $0x90] sm:$0xf]
                  %357 = vst [vmem:[%s343 + $0x18] sm:$0xf] %v356
                  %v358 = vld [vmem:[%s342 + $0xa8] sm:$0xf]
                  %359 = vst [vmem:[%s343 + $0x1c] sm:$0xf] %v358
                  %v360 = vld [vmem:[%s342 + $0xc0] sm:$0xf]
                  %361 = vst [vmem:[%s343 + $0x20] sm:$0xf] %v360
                  %v362 = vld [vmem:[%s342 + $0xd8] sm:$0xf]
                  %363 = vst [vmem:[%s343 + $0x24] sm:$0xf] %v362
                  %v364 = vld [vmem:[%s342 + $0xf0] sm:$0xf]
                  %365 = vst [vmem:[%s343 + $0x28] sm:$0xf] %v364
                  %v366 = vld [vmem:[%s342 + $0x108] sm:$0xf]
                  %367 = vst [vmem:[%s343 + $0x2c] sm:$0xf] %v366
                  %v368 = vld [vmem:[%s342 + $0x120] sm:$0xf]
                  %369 = vst [vmem:[%s343 + $0x30] sm:$0xf] %v368
                  %v370 = vld [vmem:[%s342 + $0x138] sm:$0xf]
                  %371 = vst [vmem:[%s343 + $0x34] sm:$0xf] %v370
                  %v372 = vld [vmem:[%s342 + $0x150] sm:$0xf]
                  %373 = vst [vmem:[%s343 + $0x38] sm:$0xf] %v372
                  %v374 = vld [vmem:[%s342 + $0x168] sm:$0xf]
                  %375 = vst [vmem:[%s343 + $0x3c] sm:$0xf] %v374
                  %v376 = vld [vmem:[%s342 + $0x180] sm:$0xf]
                  %377 = vst [vmem:[%s343 + $0x40] sm:$0xf] %v376
                  %v378 = vld [vmem:[%s342 + $0x198] sm:$0xf]
                  %379 = vst [vmem:[%s343 + $0x44] sm:$0xf] %v378
                  %v380 = vld [vmem:[%s342 + $0x1b0] sm:$0xf]
                  %381 = vst [vmem:[%s343 + $0x48] sm:$0xf] %v380
                  %v382 = vld [vmem:[%s342 + $0x1c8] sm:$0xf]
                  %383 = vst [vmem:[%s343 + $0x4c] sm:$0xf] %v382
                  %v384 = vld [vmem:[%s342 + $0x1e0] sm:$0xf]
                  %385 = vst [vmem:[%s343 + $0x50] sm:$0xf] %v384
                  %v386 = vld [vmem:[%s342 + $0x1f8] sm:$0xf]
                  %387 = vst [vmem:[%s343 + $0x54] sm:$0xf] %v386
                  %v388 = vld [vmem:[%s342 + $0x210] sm:$0xf]
                  %389 = vst [vmem:[%s343 + $0x58] sm:$0xf] %v388
                  %v390 = vld [vmem:[%s342 + $0x228] sm:$0xf]
                  %391 = vst [vmem:[%s343 + $0x5c] sm:$0xf] %v390
                  %v392 = vld [vmem:[%s342 + $0x240] sm:$0xf]
                  %393 = vst [vmem:[%s343 + $0x60] sm:$0xf] %v392
                  %v394 = vld [vmem:[%s342 + $0x258] sm:$0xf]
                  %395 = vst [vmem:[%s343 + $0x64] sm:$0xf] %v394
                  %v396 = vld [vmem:[%s342 + $0x270] sm:$0xf]
                  %397 = vst [vmem:[%s343 + $0x68] sm:$0xf] %v396
                  %v398 = vld [vmem:[%s342 + $0x288] sm:$0xf]
                  %399 = vst [vmem:[%s343 + $0x6c] sm:$0xf] %v398
                  %v400 = vld [vmem:[%s342 + $0x2a0] sm:$0xf]
                  %401 = vst [vmem:[%s343 + $0x70] sm:$0xf] %v400
                  %v402 = vld [vmem:[%s342 + $0x2b8] sm:$0xf]
                  %403 = vst [vmem:[%s343 + $0x74] sm:$0xf] %v402
                  %v404 = vld [vmem:[%s342 + $0x2d0] sm:$0xf]
                  %405 = vst [vmem:[%s343 + $0x78] sm:$0xf] %v404
                  %v406 = vld [vmem:[%s342 + $0x2e8] sm:$0xf]
                  %407 = vst [vmem:[%s343 + $0x7c] sm:$0xf] %v406
                  %v408 = vld [vmem:[%s342 + $0x300] sm:$0xf]
                  %409 = vst [vmem:[%s343 + $0x80] sm:$0xf] %v408
                  %v410 = vld [vmem:[%s342 + $0x318] sm:$0xf]
                  %411 = vst [vmem:[%s343 + $0x84] sm:$0xf] %v410
                  %v412 = vld [vmem:[%s342 + $0x330] sm:$0xf]
                  %413 = vst [vmem:[%s343 + $0x88] sm:$0xf] %v412
                  %v414 = vld [vmem:[%s342 + $0x348] sm:$0xf]
                  %415 = vst [vmem:[%s343 + $0x8c] sm:$0xf] %v414
                  %v416 = vld [vmem:[%s342 + $0x360] sm:$0xf]
                  %417 = vst [vmem:[%s343 + $0x90] sm:$0xf] %v416
                  %v418 = vld [vmem:[%s342 + $0x378] sm:$0xf]
                  %419 = vst [vmem:[%s343 + $0x94] sm:$0xf] %v418
                  %v420 = vld [vmem:[%s342 + $0x390] sm:$0xf]
                  %421 = vst [vmem:[%s343 + $0x98] sm:$0xf] %v420
                  %v422 = vld [vmem:[%s342 + $0x3a8] sm:$0xf]
                  %423 = vst [vmem:[%s343 + $0x9c] sm:$0xf] %v422
                  %v424 = vld [vmem:[%s342 + $0x3c0] sm:$0xf]
                  %425 = vst [vmem:[%s343 + $0xa0] sm:$0xf] %v424
                  %v426 = vld [vmem:[%s342 + $0x3d8] sm:$0xf]
                  %427 = vst [vmem:[%s343 + $0xa4] sm:$0xf] %v426
                  %v428 = vld [vmem:[%s342 + $0x3f0] sm:$0xf]
                  %429 = vst [vmem:[%s343 + $0xa8] sm:$0xf] %v428
                  %v430 = vld [vmem:[%s342 + $0x408] sm:$0xf]
                  %431 = vst [vmem:[%s343 + $0xac] sm:$0xf] %v430
                  %v432 = vld [vmem:[%s342 + $0x420] sm:$0xf]
                  %433 = vst [vmem:[%s343 + $0xb0] sm:$0xf] %v432
                  %v434 = vld [vmem:[%s342 + $0x438] sm:$0xf]
                  %435 = vst [vmem:[%s343 + $0xb4] sm:$0xf] %v434
                  %v436 = vld [vmem:[%s342 + $0x450] sm:$0xf]
                  %437 = vst [vmem:[%s343 + $0xb8] sm:$0xf] %v436
                  %v438 = vld [vmem:[%s342 + $0x468] sm:$0xf]
                  %439 = vst [vmem:[%s343 + $0xbc] sm:$0xf] %v438
                  %v440 = vld [vmem:[%s342 + $0x480] sm:$0xf]
                  %441 = vst [vmem:[%s343 + $0xc0] sm:$0xf] %v440
                  %v442 = vld [vmem:[%s342 + $0x498] sm:$0xf]
                  %443 = vst [vmem:[%s343 + $0xc4] sm:$0xf] %v442
                  %v444 = vld [vmem:[%s342 + $0x4b0] sm:$0xf]
                  %445 = vst [vmem:[%s343 + $0xc8] sm:$0xf] %v444
                  %v446 = vld [vmem:[%s342 + $0x4c8] sm:$0xf]
                  %447 = vst [vmem:[%s343 + $0xcc] sm:$0xf] %v446
                  %v448 = vld [vmem:[%s342 + $0x4e0] sm:$0xf]
                  %449 = vst [vmem:[%s343 + $0xd0] sm:$0xf] %v448
                  %v450 = vld [vmem:[%s342 + $0x4f8] sm:$0xf]
                  %451 = vst [vmem:[%s343 + $0xd4] sm:$0xf] %v450
                  %v452 = vld [vmem:[%s342 + $0x510] sm:$0xf]
                  %453 = vst [vmem:[%s343 + $0xd8] sm:$0xf] %v452
                  %v454 = vld [vmem:[%s342 + $0x528] sm:$0xf]
                  %455 = vst [vmem:[%s343 + $0xdc] sm:$0xf] %v454
                  %v456 = vld [vmem:[%s342 + $0x540] sm:$0xf]
                  %457 = vst [vmem:[%s343 + $0xe0] sm:$0xf] %v456
                  %v458 = vld [vmem:[%s342 + $0x558] sm:$0xf]
                  %459 = vst [vmem:[%s343 + $0xe4] sm:$0xf] %v458
                  %v460 = vld [vmem:[%s342 + $0x570] sm:$0xf]
                  %461 = vst [vmem:[%s343 + $0xe8] sm:$0xf] %v460
                  %v462 = vld [vmem:[%s342 + $0x588] sm:$0xf]
                  %463 = vst [vmem:[%s343 + $0xec] sm:$0xf] %v462
                  %v464 = vld [vmem:[%s342 + $0x5a0] sm:$0xf]
                  %465 = vst [vmem:[%s343 + $0xf0] sm:$0xf] %v464
                  %v466 = vld [vmem:[%s342 + $0x5b8] sm:$0xf]
                  %467 = vst [vmem:[%s343 + $0xf4] sm:$0xf] %v466
                  %v468 = vld [vmem:[%s342 + $0x5d0] sm:$0xf]
                  %469 = vst [vmem:[%s343 + $0xf8] sm:$0xf] %v468
                  %v470 = vld [vmem:[%s342 + $0x5e8] sm:$0xf]
                  %471 = vst [vmem:[%s343 + $0xfc] sm:$0xf] %v470
                $region59: #{squeezenet_forward.54} parent=46 // loop_footer
                  %s341 = sadd.s32 1, %s337
                $region60: #{squeezenet_forward.54} parent=46 // loop_footer_branch
                  %336 = sbr.rel target = $region56
                $region61: #{squeezenet_forward.54} parent=46 // loop_exit
                  _
              $region47: #{squeezenet_forward.54} parent=31 // pred_fallthru
                _
            $region32: #{squeezenet_forward.54} parent=27 // pred_fallthru
              _
            // Predicated region
            $region33: #{squeezenet_forward.54} parent=27 // pred_check
              _
            $region34: #{squeezenet_forward.54} parent=27 // pred_check_branch
              %187 = sbr.rel (0) target = $region36
            $region35: #{squeezenet_forward.54} parent=27 // pred_region
              loop: start=0, step=1, limit=1
              $region37: #{squeezenet_forward.54} parent=35 // loop_pre_header
                _
              $region38: #{squeezenet_forward.54} parent=35 // loop_header
                %s190 = sphi 0, %s194
                %p191 = scmp.ge.s32.totalorder %s190, 1
                %s195 = sphi %s181, %s181
                %s196 = sphi %s176, %s176
              $region39: #{squeezenet_forward.54} parent=35 // loop_header_branch
                %193 = sbr.rel (%p191) target = $region43
              $region40: #{squeezenet_forward.54} parent=35 // loop_body
                %v197 = vld [vmem:[%s195] sm:$0xf]
                %198 = vst [vmem:[%s196] sm:$0xf] %v197
                %v199 = vld [vmem:[%s195 + $0x18] sm:$0xf]
                %200 = vst [vmem:[%s196 + $0x4] sm:$0xf] %v199
                %v201 = vld [vmem:[%s195 + $0x30] sm:$0xf]
                %202 = vst [vmem:[%s196 + $0x8] sm:$0xf] %v201
                %v203 = vld [vmem:[%s195 + $0x48] sm:$0xf]
                %204 = vst [vmem:[%s196 + $0xc] sm:$0xf] %v203
                %v205 = vld [vmem:[%s195 + $0x60] sm:$0xf]
                %206 = vst [vmem:[%s196 + $0x10] sm:$0xf] %v205
                %v207 = vld [vmem:[%s195 + $0x78] sm:$0xf]
                %208 = vst [vmem:[%s196 + $0x14] sm:$0xf] %v207
                %v209 = vld [vmem:[%s195 + $0x90] sm:$0xf]
                %210 = vst [vmem:[%s196 + $0x18] sm:$0xf] %v209
                %v211 = vld [vmem:[%s195 + $0xa8] sm:$0xf]
                %212 = vst [vmem:[%s196 + $0x1c] sm:$0xf] %v211
                %v213 = vld [vmem:[%s195 + $0xc0] sm:$0xf]
                %214 = vst [vmem:[%s196 + $0x20] sm:$0xf] %v213
                %v215 = vld [vmem:[%s195 + $0xd8] sm:$0xf]
                %216 = vst [vmem:[%s196 + $0x24] sm:$0xf] %v215
                %v217 = vld [vmem:[%s195 + $0xf0] sm:$0xf]
                %218 = vst [vmem:[%s196 + $0x28] sm:$0xf] %v217
                %v219 = vld [vmem:[%s195 + $0x108] sm:$0xf]
                %220 = vst [vmem:[%s196 + $0x2c] sm:$0xf] %v219
                %v221 = vld [vmem:[%s195 + $0x120] sm:$0xf]
                %222 = vst [vmem:[%s196 + $0x30] sm:$0xf] %v221
                %v223 = vld [vmem:[%s195 + $0x138] sm:$0xf]
                %224 = vst [vmem:[%s196 + $0x34] sm:$0xf] %v223
                %v225 = vld [vmem:[%s195 + $0x150] sm:$0xf]
                %226 = vst [vmem:[%s196 + $0x38] sm:$0xf] %v225
                %v227 = vld [vmem:[%s195 + $0x168] sm:$0xf]
                %228 = vst [vmem:[%s196 + $0x3c] sm:$0xf] %v227
                %v229 = vld [vmem:[%s195 + $0x180] sm:$0xf]
                %230 = vst [vmem:[%s196 + $0x40] sm:$0xf] %v229
                %v231 = vld [vmem:[%s195 + $0x198] sm:$0xf]
                %232 = vst [vmem:[%s196 + $0x44] sm:$0xf] %v231
                %v233 = vld [vmem:[%s195 + $0x1b0] sm:$0xf]
                %234 = vst [vmem:[%s196 + $0x48] sm:$0xf] %v233
                %v235 = vld [vmem:[%s195 + $0x1c8] sm:$0xf]
                %236 = vst [vmem:[%s196 + $0x4c] sm:$0xf] %v235
                %v237 = vld [vmem:[%s195 + $0x1e0] sm:$0xf]
                %238 = vst [vmem:[%s196 + $0x50] sm:$0xf] %v237
                %v239 = vld [vmem:[%s195 + $0x1f8] sm:$0xf]
                %240 = vst [vmem:[%s196 + $0x54] sm:$0xf] %v239
                %v241 = vld [vmem:[%s195 + $0x210] sm:$0xf]
                %242 = vst [vmem:[%s196 + $0x58] sm:$0xf] %v241
                %v243 = vld [vmem:[%s195 + $0x228] sm:$0xf]
                %244 = vst [vmem:[%s196 + $0x5c] sm:$0xf] %v243
                %v245 = vld [vmem:[%s195 + $0x240] sm:$0xf]
                %246 = vst [vmem:[%s196 + $0x60] sm:$0xf] %v245
                %v247 = vld [vmem:[%s195 + $0x258] sm:$0xf]
                %248 = vst [vmem:[%s196 + $0x64] sm:$0xf] %v247
                %v249 = vld [vmem:[%s195 + $0x270] sm:$0xf]
                %250 = vst [vmem:[%s196 + $0x68] sm:$0xf] %v249
                %v251 = vld [vmem:[%s195 + $0x288] sm:$0xf]
                %252 = vst [vmem:[%s196 + $0x6c] sm:$0xf] %v251
                %v253 = vld [vmem:[%s195 + $0x2a0] sm:$0xf]
                %254 = vst [vmem:[%s196 + $0x70] sm:$0xf] %v253
                %v255 = vld [vmem:[%s195 + $0x2b8] sm:$0xf]
                %256 = vst [vmem:[%s196 + $0x74] sm:$0xf] %v255
                %v257 = vld [vmem:[%s195 + $0x2d0] sm:$0xf]
                %258 = vst [vmem:[%s196 + $0x78] sm:$0xf] %v257
                %v259 = vld [vmem:[%s195 + $0x2e8] sm:$0xf]
                %260 = vst [vmem:[%s196 + $0x7c] sm:$0xf] %v259
                %v261 = vld [vmem:[%s195 + $0x300] sm:$0xf]
                %262 = vst [vmem:[%s196 + $0x80] sm:$0xf] %v261
                %v263 = vld [vmem:[%s195 + $0x318] sm:$0xf]
                %264 = vst [vmem:[%s196 + $0x84] sm:$0xf] %v263
                %v265 = vld [vmem:[%s195 + $0x330] sm:$0xf]
                %266 = vst [vmem:[%s196 + $0x88] sm:$0xf] %v265
                %v267 = vld [vmem:[%s195 + $0x348] sm:$0xf]
                %268 = vst [vmem:[%s196 + $0x8c] sm:$0xf] %v267
                %v269 = vld [vmem:[%s195 + $0x360] sm:$0xf]
                %270 = vst [vmem:[%s196 + $0x90] sm:$0xf] %v269
                %v271 = vld [vmem:[%s195 + $0x378] sm:$0xf]
                %272 = vst [vmem:[%s196 + $0x94] sm:$0xf] %v271
                %v273 = vld [vmem:[%s195 + $0x390] sm:$0xf]
                %274 = vst [vmem:[%s196 + $0x98] sm:$0xf] %v273
                %v275 = vld [vmem:[%s195 + $0x3a8] sm:$0xf]
                %276 = vst [vmem:[%s196 + $0x9c] sm:$0xf] %v275
                %v277 = vld [vmem:[%s195 + $0x3c0] sm:$0xf]
                %278 = vst [vmem:[%s196 + $0xa0] sm:$0xf] %v277
                %v279 = vld [vmem:[%s195 + $0x3d8] sm:$0xf]
                %280 = vst [vmem:[%s196 + $0xa4] sm:$0xf] %v279
                %v281 = vld [vmem:[%s195 + $0x3f0] sm:$0xf]
                %282 = vst [vmem:[%s196 + $0xa8] sm:$0xf] %v281
                %v283 = vld [vmem:[%s195 + $0x408] sm:$0xf]
                %284 = vst [vmem:[%s196 + $0xac] sm:$0xf] %v283
                %v285 = vld [vmem:[%s195 + $0x420] sm:$0xf]
                %286 = vst [vmem:[%s196 + $0xb0] sm:$0xf] %v285
                %v287 = vld [vmem:[%s195 + $0x438] sm:$0xf]
                %288 = vst [vmem:[%s196 + $0xb4] sm:$0xf] %v287
                %v289 = vld [vmem:[%s195 + $0x450] sm:$0xf]
                %290 = vst [vmem:[%s196 + $0xb8] sm:$0xf] %v289
                %v291 = vld [vmem:[%s195 + $0x468] sm:$0xf]
                %292 = vst [vmem:[%s196 + $0xbc] sm:$0xf] %v291
                %v293 = vld [vmem:[%s195 + $0x480] sm:$0xf]
                %294 = vst [vmem:[%s196 + $0xc0] sm:$0xf] %v293
                %v295 = vld [vmem:[%s195 + $0x498] sm:$0xf]
                %296 = vst [vmem:[%s196 + $0xc4] sm:$0xf] %v295
                %v297 = vld [vmem:[%s195 + $0x4b0] sm:$0xf]
                %298 = vst [vmem:[%s196 + $0xc8] sm:$0xf] %v297
                %v299 = vld [vmem:[%s195 + $0x4c8] sm:$0xf]
                %300 = vst [vmem:[%s196 + $0xcc] sm:$0xf] %v299
                %v301 = vld [vmem:[%s195 + $0x4e0] sm:$0xf]
                %302 = vst [vmem:[%s196 + $0xd0] sm:$0xf] %v301
                %v303 = vld [vmem:[%s195 + $0x4f8] sm:$0xf]
                %304 = vst [vmem:[%s196 + $0xd4] sm:$0xf] %v303
                %v305 = vld [vmem:[%s195 + $0x510] sm:$0xf]
                %306 = vst [vmem:[%s196 + $0xd8] sm:$0xf] %v305
                %v307 = vld [vmem:[%s195 + $0x528] sm:$0xf]
                %308 = vst [vmem:[%s196 + $0xdc] sm:$0xf] %v307
                %v309 = vld [vmem:[%s195 + $0x540] sm:$0xf]
                %310 = vst [vmem:[%s196 + $0xe0] sm:$0xf] %v309
                %v311 = vld [vmem:[%s195 + $0x558] sm:$0xf]
                %312 = vst [vmem:[%s196 + $0xe4] sm:$0xf] %v311
                %v313 = vld [vmem:[%s195 + $0x570] sm:$0xf]
                %314 = vst [vmem:[%s196 + $0xe8] sm:$0xf] %v313
                %v315 = vld [vmem:[%s195 + $0x588] sm:$0xf]
                %316 = vst [vmem:[%s196 + $0xec] sm:$0xf] %v315
                %v317 = vld [vmem:[%s195 + $0x5a0] sm:$0xf]
                %318 = vst [vmem:[%s196 + $0xf0] sm:$0xf] %v317
                %v319 = vld [vmem:[%s195 + $0x5b8] sm:$0xf]
                %320 = vst [vmem:[%s196 + $0xf4] sm:$0xf] %v319
                %v321 = vld [vmem:[%s195 + $0x5d0] sm:$0xf]
                %322 = vst [vmem:[%s196 + $0xf8] sm:$0xf] %v321
                %v323 = vld [vmem:[%s195 + $0x5e8] sm:$0xf]
                %324 = vst [vmem:[%s196 + $0xfc] sm:$0xf] %v323
              $region41: #{squeezenet_forward.54} parent=35 // loop_footer
                %s194 = sadd.s32 1, %s190
              $region42: #{squeezenet_forward.54} parent=35 // loop_footer_branch
                %189 = sbr.rel target = $region38
              $region43: #{squeezenet_forward.54} parent=35 // loop_exit
                _
            $region36: #{squeezenet_forward.54} parent=27 // pred_fallthru
              _
          $region28: #{squeezenet_forward.54} parent=23 // pred_fallthru
            _
          %472 = vnop
        $region24: #{squeezenet_forward.54} parent=15 // pred_fallthru
          _
        // Predicated region
        $region62: #{squeezenet_forward.54} parent=15 // pred_check
          %p473 = pneg %p104
        $region63: #{squeezenet_forward.54} parent=15 // pred_check_branch
          %475 = sbr.rel (%p473) target = $region65
        $region64: #{squeezenet_forward.54} parent=15 // pred_region
          %p476 = scmp.lt.s32.totalorder %s17, 5
          %s477 = scalar_select %p476, %s17, 5
          %s478 = smul.addr %s477, 8
          %s479 = scalar_lea.vmem %s2, %s478
        $region65: #{squeezenet_forward.54} parent=15 // pred_fallthru
          _
      $region16: #{squeezenet_forward.54} parent=5 // pred_fallthru
        _
      %p480 = scmp.le.s32.totalorder 1, %s9
      %p481 = scmp.lt.s32.totalorder %s9, 115
      %p482 = pnand %p480, %p481
      %p483 = pneg %p482
      // Predicated region
      $region66: #{squeezenet_forward.54} parent=5 // pred_check
        _
      $region67: #{squeezenet_forward.54} parent=5 // pred_check_branch
        %485 = sbr.rel (%p482) target = $region69
      $region68: #{squeezenet_forward.54} parent=5 // pred_region
        %s486 = ssub.s32 %s9, 1
        %s487 = sand.u32 %s71, 1
        %s488 = sand.u32 %s71, 1
        %s489 = smul.addr %s488, 256
        %s490 = scalar_lea.vmem [#allocation2], %s489
        // Predicated region
        $region70: #{squeezenet_forward.54} parent=68 // pred_check
          %p491 = pneg %p84
        $region71: #{squeezenet_forward.54} parent=68 // pred_check_branch
          %493 = sbr.rel (%p491) target = $region73
        $region72: #{squeezenet_forward.54} parent=68 // pred_region
          _
        $region73: #{squeezenet_forward.54} parent=68 // pred_fallthru
          _
        %s494 = smul.u32 4, %s21
        %p495 = scmp.lt.s32.totalorder %s19, 0
        %s496 = scalar_select %p495, %s19, 0
        %p497 = scmp.lt.s32.totalorder %s494, 75
        %s498 = scalar_select %p497, %s494, 75
        %s499 = smul.addr %s496, 76
        %s500 = sadd.s32 %s498, %s499
        %s501 = smul.addr %s500, 4
        %s502 = scalar_lea.vmem %s0, %s501
        %p503 = pneg %p56
        %p504 = pneg %p53
        %s505 = sand.u32 %s71, 1
        %s506 = sand.u32 %s71, 1
        %s507 = smul.addr %s506, 256
        %s508 = scalar_lea.vmem [#allocation2], %s507
        %p509 = pneg %p84
        %p510 = pneg %p81
        %p511 = scmp.lt.s32.totalorder %s20, 5
        %s512 = scalar_select %p511, %s20, 5
        %s513 = smul.addr %s512, 8
        %s514 = scalar_lea.vmem %s2, %s513
        %p515 = pneg %p110
        %p516 = pneg %p107
        %p517 = pneg %p138
        %p518 = pneg %p135
        %p519 = scmp.lt.s32.totalorder %s19, 0
        %s520 = scalar_select %p519, %s19, 0
        %p521 = scmp.lt.s32.totalorder %s20, 5
        %s522 = scalar_select %p521, %s20, 5
        %s523 = smul.addr %s520, 6
        %s524 = sadd.s32 %s522, %s523
        %s525 = smul.addr %s524, 8
        %s526 = scalar_lea.vmem %s3, %s525
        %s527 = smul.u32 4, %s21
        %p528 = scmp.lt.s32.totalorder %s19, 0
        %s529 = scalar_select %p528, %s19, 0
        %p530 = scmp.lt.s32.totalorder %s527, 75
        %s531 = scalar_select %p530, %s527, 75
        %s532 = smul.addr %s529, 76
        %s533 = sadd.s32 %s531, %s532
        %s534 = smul.addr %s533, 4
        %s535 = scalar_lea.vmem %s0, %s534
        %s536 = smul.u32 4, %s21
        %s537 = smul.u32 64, %s21
        %p538 = scmp.lt.s32.totalorder %s20, 5
        %s539 = scalar_select %p538, %s20, 5
        %s540 = smul.addr %s539, 8
        %s541 = scalar_lea.vmem %s2, %s540
        %p542 = scmp.lt.s32.totalorder %s19, 0
        %s543 = scalar_select %p542, %s19, 0
        %p544 = scmp.lt.s32.totalorder %s20, 5
        %s545 = scalar_select %p544, %s20, 5
        %s546 = smul.addr %s543, 6
        %s547 = sadd.s32 %s545, %s546
        %s548 = smul.addr %s547, 8
        %s549 = scalar_lea.vmem %s3, %s548
        %p551 = scmp.eq.s32.totalorder %s21, 0
        // Predicated region
        $region74: #{squeezenet_forward.54} parent=68 // pred_check
          %p552 = pneg %p551
        $region75: #{squeezenet_forward.54} parent=68 // pred_check_branch
          %554 = sbr.rel (%p552) target = $region77
        $region76: #{squeezenet_forward.54} parent=68 // pred_region
          %555 = vst [vmem:[%s549] sm:$0xff] 0.0
        $region77: #{squeezenet_forward.54} parent=68 // pred_fallthru
          _
        %v556 = vld [vmem:[%s549] sm:$0xff]
        %v557 = vld [vmem:[%s535] sm:$0xff]
        %v558 = vld [vmem:[%s535 + $0x8] sm:$0xff]
        %v559 = vld [vmem:[%s490] sm:$0xf]
        %v560 = vld [vmem:[%s490 + $0x4] sm:$0xf]
        %v561 = vld [vmem:[%s490 + $0x8] sm:$0xf]
        %v562 = vld [vmem:[%s490 + $0xc] sm:$0xf]
        %v563 = vld [vmem:[%s490 + $0x10] sm:$0xf]
        %v564 = vld [vmem:[%s490 + $0x14] sm:$0xf]
        %v565 = vld [vmem:[%s490 + $0x18] sm:$0xf]
        %v566 = vld [vmem:[%s490 + $0x1c] sm:$0xf]
        %v567 = vld [vmem:[%s490 + $0x20] sm:$0xf]
        %v568 = vld [vmem:[%s490 + $0x24] sm:$0xf]
        %v569 = vld [vmem:[%s490 + $0x28] sm:$0xf]
        %v570 = vld [vmem:[%s490 + $0x2c] sm:$0xf]
        %v571 = vld [vmem:[%s490 + $0x30] sm:$0xf]
        %v572 = vld [vmem:[%s490 + $0x34] sm:$0xf]
        %v573 = vld [vmem:[%s490 + $0x38] sm:$0xf]
        %v574 = vld [vmem:[%s490 + $0x3c] sm:$0xf]
        %v575 = vld [vmem:[%s490 + $0x40] sm:$0xf]
        %v576 = vld [vmem:[%s490 + $0x44] sm:$0xf]
        %v577 = vld [vmem:[%s490 + $0x48] sm:$0xf]
        %v578 = vld [vmem:[%s490 + $0x4c] sm:$0xf]
        %v579 = vld [vmem:[%s490 + $0x50] sm:$0xf]
        %v580 = vld [vmem:[%s490 + $0x54] sm:$0xf]
        %v581 = vld [vmem:[%s490 + $0x58] sm:$0xf]
        %v582 = vld [vmem:[%s490 + $0x5c] sm:$0xf]
        %v583 = vld [vmem:[%s490 + $0x60] sm:$0xf]
        %v584 = vld [vmem:[%s490 + $0x64] sm:$0xf]
        %v585 = vld [vmem:[%s490 + $0x68] sm:$0xf]
        %v586 = vld [vmem:[%s490 + $0x6c] sm:$0xf]
        %v587 = vld [vmem:[%s490 + $0x70] sm:$0xf]
        %v588 = vld [vmem:[%s490 + $0x74] sm:$0xf]
        %v589 = vld [vmem:[%s490 + $0x78] sm:$0xf]
        %v590 = vld [vmem:[%s490 + $0x7c] sm:$0xf]
        %v591 = vld [vmem:[%s490 + $0x80] sm:$0xf]
        %v592 = vld [vmem:[%s490 + $0x84] sm:$0xf]
        %v593 = vld [vmem:[%s490 + $0x88] sm:$0xf]
        %v594 = vld [vmem:[%s490 + $0x8c] sm:$0xf]
        %v595 = vld [vmem:[%s490 + $0x90] sm:$0xf]
        %v596 = vld [vmem:[%s490 + $0x94] sm:$0xf]
        %v597 = vld [vmem:[%s490 + $0x98] sm:$0xf]
        %v598 = vld [vmem:[%s490 + $0x9c] sm:$0xf]
        %v599 = vld [vmem:[%s490 + $0xa0] sm:$0xf]
        %v600 = vld [vmem:[%s490 + $0xa4] sm:$0xf]
        %v601 = vld [vmem:[%s490 + $0xa8] sm:$0xf]
        %v602 = vld [vmem:[%s490 + $0xac] sm:$0xf]
        %v603 = vld [vmem:[%s490 + $0xb0] sm:$0xf]
        %v604 = vld [vmem:[%s490 + $0xb4] sm:$0xf]
        %v605 = vld [vmem:[%s490 + $0xb8] sm:$0xf]
        %v606 = vld [vmem:[%s490 + $0xbc] sm:$0xf]
        %v607 = vld [vmem:[%s490 + $0xc0] sm:$0xf]
        %v608 = vld [vmem:[%s490 + $0xc4] sm:$0xf]
        %v609 = vld [vmem:[%s490 + $0xc8] sm:$0xf]
        %v610 = vld [vmem:[%s490 + $0xcc] sm:$0xf]
        %v611 = vld [vmem:[%s490 + $0xd0] sm:$0xf]
        %v612 = vld [vmem:[%s490 + $0xd4] sm:$0xf]
        %v613 = vld [vmem:[%s490 + $0xd8] sm:$0xf]
        %v614 = vld [vmem:[%s490 + $0xdc] sm:$0xf]
        %v615 = vld [vmem:[%s490 + $0xe0] sm:$0xf]
        %v616 = vld [vmem:[%s490 + $0xe4] sm:$0xf]
        %v617 = vld [vmem:[%s490 + $0xe8] sm:$0xf]
        %v618 = vld [vmem:[%s490 + $0xec] sm:$0xf]
        %v619 = vld [vmem:[%s490 + $0xf0] sm:$0xf]
        %v620 = vld [vmem:[%s490 + $0xf4] sm:$0xf]
        %v621 = vld [vmem:[%s490 + $0xf8] sm:$0xf]
        %v622 = vld [vmem:[%s490 + $0xfc] sm:$0xf]
        %v625 = vunpack.c.l.b16 %v557
        %v626 = vunpack.c.h.b16 %v557
        %v627 = vunpack.c.l.b16 %v558
        %v628 = vunpack.c.h.b16 %v558
        %v629 = vpack.c.b16 %v625, %v625
        %v630 = vpack.c.b16 %v626, %v626
        %v631 = vpack.c.b16 %v627, %v627
        %v632 = vpack.c.b16 %v628, %v628
        %v701 = vunpack.c.l.b16 %v559
        %v702 = vunpack.c.l.b16 %v560
        %v703 = vunpack.c.l.b16 %v561
        %v704 = vunpack.c.l.b16 %v562
        %v705 = vunpack.c.l.b16 %v563
        %v706 = vunpack.c.l.b16 %v564
        %v707 = vunpack.c.l.b16 %v565
        %v708 = vunpack.c.l.b16 %v566
        %v709 = vunpack.c.l.b16 %v567
        %v710 = vunpack.c.l.b16 %v568
        %v711 = vunpack.c.l.b16 %v569
        %v712 = vunpack.c.l.b16 %v570
        %v713 = vunpack.c.l.b16 %v571
        %v714 = vunpack.c.l.b16 %v572
        %v715 = vunpack.c.l.b16 %v573
        %v716 = vunpack.c.l.b16 %v574
        %v717 = vunpack.c.l.b16 %v575
        %v718 = vunpack.c.l.b16 %v576
        %v719 = vunpack.c.l.b16 %v577
        %v720 = vunpack.c.l.b16 %v578
        %v721 = vunpack.c.l.b16 %v579
        %v722 = vunpack.c.l.b16 %v580
        %v723 = vunpack.c.l.b16 %v581
        %v724 = vunpack.c.l.b16 %v582
        %v725 = vunpack.c.l.b16 %v583
        %v726 = vunpack.c.l.b16 %v584
        %v727 = vunpack.c.l.b16 %v585
        %v728 = vunpack.c.l.b16 %v586
        %v729 = vunpack.c.l.b16 %v587
        %v730 = vunpack.c.l.b16 %v588
        %v731 = vunpack.c.l.b16 %v589
        %v732 = vunpack.c.l.b16 %v590
        %v733 = vunpack.c.l.b16 %v591
        %v734 = vunpack.c.l.b16 %v592
        %v735 = vunpack.c.l.b16 %v593
        %v736 = vunpack.c.l.b16 %v594
        %v737 = vunpack.c.l.b16 %v595
        %v738 = vunpack.c.l.b16 %v596
        %v739 = vunpack.c.l.b16 %v597
        %v740 = vunpack.c.l.b16 %v598
        %v741 = vunpack.c.l.b16 %v599
        %v742 = vunpack.c.l.b16 %v600
        %v743 = vunpack.c.l.b16 %v601
        %v744 = vunpack.c.l.b16 %v602
        %v745 = vunpack.c.l.b16 %v603
        %v746 = vunpack.c.l.b16 %v604
        %v747 = vunpack.c.l.b16 %v605
        %v748 = vunpack.c.l.b16 %v606
        %v749 = vunpack.c.l.b16 %v607
        %v750 = vunpack.c.l.b16 %v608
        %v751 = vunpack.c.l.b16 %v609
        %v752 = vunpack.c.l.b16 %v610
        %v753 = vunpack.c.l.b16 %v611
        %v754 = vunpack.c.l.b16 %v612
        %v755 = vunpack.c.l.b16 %v613
        %v756 = vunpack.c.l.b16 %v614
        %v757 = vunpack.c.l.b16 %v615
        %v758 = vunpack.c.l.b16 %v616
        %v759 = vunpack.c.l.b16 %v617
        %v760 = vunpack.c.l.b16 %v618
        %v761 = vunpack.c.l.b16 %v619
        %v762 = vunpack.c.l.b16 %v620
        %v763 = vunpack.c.l.b16 %v621
        %v764 = vunpack.c.l.b16 %v622
        %v765 = vpack.c.b16 %v702, %v701
        %v766 = vpack.c.b16 %v704, %v703
        %v767 = vpack.c.b16 %v706, %v705
        %v768 = vpack.c.b16 %v708, %v707
        %v769 = vpack.c.b16 %v710, %v709
        %v770 = vpack.c.b16 %v712, %v711
        %v771 = vpack.c.b16 %v714, %v713
        %v772 = vpack.c.b16 %v716, %v715
        %v773 = vpack.c.b16 %v718, %v717
        %v774 = vpack.c.b16 %v720, %v719
        %v775 = vpack.c.b16 %v722, %v721
        %v776 = vpack.c.b16 %v724, %v723
        %v777 = vpack.c.b16 %v726, %v725
        %v778 = vpack.c.b16 %v728, %v727
        %v779 = vpack.c.b16 %v730, %v729
        %v780 = vpack.c.b16 %v732, %v731
        %v781 = vpack.c.b16 %v734, %v733
        %v782 = vpack.c.b16 %v736, %v735
        %v783 = vpack.c.b16 %v738, %v737
        %v784 = vpack.c.b16 %v740, %v739
        %v785 = vpack.c.b16 %v742, %v741
        %v786 = vpack.c.b16 %v744, %v743
        %v787 = vpack.c.b16 %v746, %v745
        %v788 = vpack.c.b16 %v748, %v747
        %v789 = vpack.c.b16 %v750, %v749
        %v790 = vpack.c.b16 %v752, %v751
        %v791 = vpack.c.b16 %v754, %v753
        %v792 = vpack.c.b16 %v756, %v755
        %v793 = vpack.c.b16 %v758, %v757
        %v794 = vpack.c.b16 %v760, %v759
        %v795 = vpack.c.b16 %v762, %v761
        %v796 = vpack.c.b16 %v764, %v763
        %829 = vmatprep.subr.bf16.mxu0 0
        %830 = vmatpush1.bf16.msra.mxu0 %v765
        %831 = vmatprep.subr.bf16.mxu0 0
        %832 = vmatpush1.bf16.msra.mxu0 %v766
        %833 = vmatprep.subr.bf16.mxu0 0
        %834 = vmatpush1.bf16.msra.mxu0 %v767
        %835 = vmatprep.subr.bf16.mxu0 0
        %836 = vmatpush1.bf16.msra.mxu0 %v768
        %837 = vmatprep.subr.bf16.mxu0 0
        %838 = vmatpush1.bf16.msra.mxu0 %v769
        %839 = vmatprep.subr.bf16.mxu0 0
        %840 = vmatpush1.bf16.msra.mxu0 %v770
        %841 = vmatprep.subr.bf16.mxu0 0
        %842 = vmatpush1.bf16.msra.mxu0 %v771
        %843 = vmatprep.subr.bf16.mxu0 0
        %844 = vmatpush1.bf16.msra.mxu0 %v772
        %845 = vmatprep.subr.bf16.mxu0 0
        %846 = vmatpush1.bf16.msra.mxu0 %v773
        %847 = vmatprep.subr.bf16.mxu0 0
        %848 = vmatpush1.bf16.msra.mxu0 %v774
        %849 = vmatprep.subr.bf16.mxu0 0
        %850 = vmatpush1.bf16.msra.mxu0 %v775
        %851 = vmatprep.subr.bf16.mxu0 0
        %852 = vmatpush1.bf16.msra.mxu0 %v776
        %853 = vmatprep.subr.bf16.mxu0 0
        %854 = vmatpush1.bf16.msra.mxu0 %v777
        %855 = vmatprep.subr.bf16.mxu0 0
        %856 = vmatpush1.bf16.msra.mxu0 %v778
        %857 = vmatprep.subr.bf16.mxu0 0
        %858 = vmatpush1.bf16.msra.mxu0 %v779
        %859 = vmatprep.subr.bf16.mxu0 0
        %860 = vmatpush1.bf16.msra.mxu0 %v780
        %861 = vmatprep.mubr.bf16.mxu0 %v630
        %862 = vmatmul.mubr.bf16.gmra.mrb[0].mxu0 %v629
        %v863 = vpop.f32.mrb[0].mxu0
        %v864 = vadd.f32 0.0, %v863
        %v865 = vpop.f32.mrb[0].mxu0
        %v866 = vpop.f32.mrb[0].mxu0
        %v867 = vpop.f32.mrb[0].mxu0
        %868 = vdwg.mxu0
        %869 = vmatprep.subr.bf16.mxu0 0
        %870 = vmatpush1.bf16.msra.mxu0 %v781
        %871 = vmatprep.subr.bf16.mxu0 0
        %872 = vmatpush1.bf16.msra.mxu0 %v782
        %873 = vmatprep.subr.bf16.mxu0 0
        %874 = vmatpush1.bf16.msra.mxu0 %v783
        %875 = vmatprep.subr.bf16.mxu0 0
        %876 = vmatpush1.bf16.msra.mxu0 %v784
        %877 = vmatprep.subr.bf16.mxu0 0
        %878 = vmatpush1.bf16.msra.mxu0 %v785
        %879 = vmatprep.subr.bf16.mxu0 0
        %880 = vmatpush1.bf16.msra.mxu0 %v786
        %881 = vmatprep.subr.bf16.mxu0 0
        %882 = vmatpush1.bf16.msra.mxu0 %v787
        %883 = vmatprep.subr.bf16.mxu0 0
        %884 = vmatpush1.bf16.msra.mxu0 %v788
        %885 = vmatprep.subr.bf16.mxu0 0
        %886 = vmatpush1.bf16.msra.mxu0 %v789
        %887 = vmatprep.subr.bf16.mxu0 0
        %888 = vmatpush1.bf16.msra.mxu0 %v790
        %889 = vmatprep.subr.bf16.mxu0 0
        %890 = vmatpush1.bf16.msra.mxu0 %v791
        %891 = vmatprep.subr.bf16.mxu0 0
        %892 = vmatpush1.bf16.msra.mxu0 %v792
        %893 = vmatprep.subr.bf16.mxu0 0
        %894 = vmatpush1.bf16.msra.mxu0 %v793
        %895 = vmatprep.subr.bf16.mxu0 0
        %896 = vmatpush1.bf16.msra.mxu0 %v794
        %897 = vmatprep.subr.bf16.mxu0 0
        %898 = vmatpush1.bf16.msra.mxu0 %v795
        %899 = vmatprep.subr.bf16.mxu0 0
        %900 = vmatpush1.bf16.msra.mxu0 %v796
        %901 = vmatprep.mubr.bf16.mxu0 %v632
        %902 = vmatmul.mubr.bf16.gmra.mrb[0].mxu0 %v631
        %v903 = vpop.f32.mrb[0].mxu0
        %v904 = vadd.f32 %v864, %v903
        %v905 = vpop.f32.mrb[0].mxu0
        %v906 = vpop.f32.mrb[0].mxu0
        %v907 = vpop.f32.mrb[0].mxu0
        %908 = vdwg.mxu0
        %v909 = vadd.f32 %v556, %v904
        %910 = vst [vmem:[%s549] sm:$0xff] %v909
        %p911 = scmp.eq.s32.totalorder %s21, 18
        // Predicated region
        $region78: #{squeezenet_forward.54} parent=68 // pred_check
          %p912 = pneg %p911
        $region79: #{squeezenet_forward.54} parent=68 // pred_check_branch
          %914 = sbr.rel (%p912) target = $region81
        $region80: #{squeezenet_forward.54} parent=68 // pred_region
          %v915 = vld [vmem:[%s549] sm:$0xff]
          %v916 = vld [vmem:[%s541] sm:$0x1]
          %v917 = vlaneseq
          %v918 = vshrl.u32 %v917, 7
          %v919 = vsub.s32 0, %v918
          %v920 = vrot.slane %v916, %v919
          %v921 = vadd.f32 %v915, %v920
          %922 = vst [vmem:[%s549] sm:$0xff] %v921
        $region81: #{squeezenet_forward.54} parent=68 // pred_fallthru
          _
        %p923 = scmp.lt.s32.totalorder %s19, 0
        %s924 = scalar_select %p923, %s19, 0
        %p925 = scmp.lt.s32.totalorder %s20, 5
        %s926 = scalar_select %p925, %s20, 5
        %s927 = smul.addr %s924, 6
        %s928 = sadd.s32 %s926, %s927
        %s929 = smul.addr %s928, 8
        %s930 = scalar_lea.vmem %s3, %s929
        // Predicated region
        $region82: #{squeezenet_forward.54} parent=68 // pred_check
          %p931 = pneg %p135
        $region83: #{squeezenet_forward.54} parent=68 // pred_check_branch
          %933 = sbr.rel (%p931) target = $region85
        $region84: #{squeezenet_forward.54} parent=68 // pred_region
          _
        $region85: #{squeezenet_forward.54} parent=68 // pred_fallthru
          _
      $region69: #{squeezenet_forward.54} parent=5 // pred_fallthru
        _
      %p934 = scmp.le.s32.totalorder 2, %s9
      // Predicated region
      $region86: #{squeezenet_forward.54} parent=5 // pred_check
        %p935 = pneg %p934
      $region87: #{squeezenet_forward.54} parent=5 // pred_check_branch
        %937 = sbr.rel (%p935) target = $region89
      $region88: #{squeezenet_forward.54} parent=5 // pred_region
        %s938 = ssub.s32 %s9, 2
        // Predicated region
        $region90: #{squeezenet_forward.54} parent=88 // pred_check
          %p939 = pneg %p141
        $region91: #{squeezenet_forward.54} parent=88 // pred_check_branch
          %941 = sbr.rel (%p939) target = $region93
        $region92: #{squeezenet_forward.54} parent=88 // pred_region
          %p942 = scmp.lt.s32.totalorder %s22, 0
          %s943 = scalar_select %p942, %s22, 0
          %p944 = scmp.lt.s32.totalorder %s23, 5
          %s945 = scalar_select %p944, %s23, 5
          %s946 = smul.addr %s943, 6
          %s947 = sadd.s32 %s945, %s946
          %s948 = smul.addr %s947, 8
          %s949 = scalar_lea.vmem %s3, %s948
        $region93: #{squeezenet_forward.54} parent=88 // pred_fallthru
          _
      $region89: #{squeezenet_forward.54} parent=5 // pred_fallthru
        _
    $region6: #{squeezenet_forward.54} parent=1 // loop_footer
      %s13 = sadd.s32 1, %s9
    $region7: #{squeezenet_forward.54} parent=1 // loop_footer_branch
      %8 = sbr.rel target = $region3
    $region8: #{squeezenet_forward.54} parent=1 // loop_exit
      _

</llo_original>
